<compile_context>
chip_gen: v7x
topology: tpu7x:2x2x1
jax: 0.10.0
libtpu: 0.0.40
codegen_flags: <defaults>
</compile_context>

<pallas_src>
import functools

import jax
import jax.numpy as jnp
from jax.experimental import pallas as pl
from jax.experimental.pallas import tpu as pltpu


def _round_up(n, m):
    return ((n + m - 1) // m) * m


def _pick_time_chunk(seq_len, max_chunk=64):
    """Largest divisor of seq_len that is <= max_chunk (timesteps / grid step)."""
    for c in range(min(seq_len, max_chunk), 0, -1):
        if seq_len % c == 0:
            return c
    return 1


# ----------------------------------------------------------------------------
# Optional single-buffering of loop-invariant operands (saves VMEM, esp. v7x).
# Probed eagerly at import (outside any jit trace) so we fall back cleanly on
# Pallas builds that do not support pipeline_mode / Buffered(1).
# ----------------------------------------------------------------------------
def _probe_single_buffer():
    if not hasattr(pl, "Buffered"):
        return False

    def _copy(x_ref, o_ref):
        o_ref[...] = x_ref[...]

    try:
        out = pl.pallas_call(
            _copy,
            out_shape=jax.ShapeDtypeStruct((8, 128), jnp.float32),
            grid=(2,),
            in_specs=[pl.BlockSpec((8, 128), lambda i: (0, 0),
                                   pipeline_mode=pl.Buffered(1))],
            out_specs=pl.BlockSpec((8, 128), lambda i: (0, 0)),
        )(jnp.zeros((8, 128), jnp.float32))
        jax.block_until_ready(out)
        return True
    except Exception:  # fall back to default double-buffering
        return False


_SINGLE_BUFFER_OK = _probe_single_buffer()


def _invariant_spec(block_shape, index_map):
    """BlockSpec for operands whose block never changes across the grid."""
    if _SINGLE_BUFFER_OK:
        return pl.BlockSpec(block_shape, index_map, pipeline_mode=pl.Buffered(1))
    return pl.BlockSpec(block_shape, index_map)


# ----------------------------------------------------------------------------
# Pallas kernel: one LSTM layer, BOTH directions fused.  Grid = (time chunks,).
# ----------------------------------------------------------------------------
def _make_bilstm_kernel(D, H, tt, nc):
    n_in = D + 5
    n_out = D + 2

    def kernel(*refs):
        x_refs = refs[:D]
        wih_ref, whh_ref, b_ref, h0_ref, c0_ref = refs[D:n_in]
        y_refs = refs[n_in:n_in + D]
        hn_ref, cn_ref = refs[n_in + D], refs[n_in + D + 1]
        h_scr, c_scr = refs[n_in + n_out], refs[n_in + n_out + 1]
        xg_scrs = refs[n_in + n_out + 2:]

        k = pl.program_id(0)
        Bp, I = x_refs[0].shape[1], x_refs[0].shape[2]

        # NOTE: correctness relies on the single grid axis being sequential
        # ("arbitrary"): h_scr / c_scr persist across grid steps.
        @pl.when(k == 0)
        def _():
            h_scr[...] = h0_ref[...].astype(jnp.float32)
            c_scr[...] = c0_ref[...].astype(jnp.float32)

        # ---- chunk-level input projection: one big MXU matmul per direction
        #      (M = tt*Bp), bias folded in once, stored to VMEM scratch. ------
        for d in range(D):
            xc = x_refs[d][...].reshape(tt * Bp, I)
            xg = jnp.dot(xc, wih_ref[d], preferred_element_type=jnp.float32)
            xg_scrs[d][...] = (xg + b_ref[d]).reshape(tt, Bp, 4 * H)

        whh = [whh_ref[d] for d in range(D)]   # loop-invariant (H, 4H) values

        # ---- recurrence: h/c live in registers (fori_loop carry); both
        #      directions advance every step so their independent MXU / EUP /
        #      VPU work overlaps on a single TensorCore. ----------------------
        def step(s, carry):
            new = []
            for d in range(D):
                h_d, c_d = carry[2 * d], carry[2 * d + 1]
                # forward walks its chunk front-to-back, reverse back-to-front
                t_loc = s if d == 0 else tt - 1 - s
                gates = xg_scrs[d][t_loc] + jnp.dot(
                    h_d, whh[d], preferred_element_type=jnp.float32)
                # PyTorch gate order: i, f, g, o
                i_g = jax.nn.sigmoid(gates[:, 0 * H:1 * H])
                f_g = jax.nn.sigmoid(gates[:, 1 * H:2 * H])
                g_g = jnp.tanh(gates[:, 2 * H:3 * H])
                o_g = jax.nn.sigmoid(gates[:, 3 * H:4 * H])
                c_new = f_g * c_d + i_g * g_g
                h_new = o_g * jnp.tanh(c_new)
                y_refs[d][t_loc] = h_new.astype(y_refs[d].dtype)
                new.extend([h_new, c_new])
            return tuple(new)

        init = []
        for d in range(D):
            init.extend([h_scr[d], c_scr[d]])
        final = jax.lax.fori_loop(0, tt, step, tuple(init), unroll=min(tt, 8))

        # flush register state to the persistent scratch at the chunk boundary
        for d in range(D):
            h_scr[d] = final[2 * d]
            c_scr[d] = final[2 * d + 1]

        @pl.when(k == nc - 1)
        def _():
            hn_ref[...] = h_scr[...].astype(hn_ref.dtype)
            cn_ref[...] = c_scr[...].astype(cn_ref.dtype)

    return kernel


def bilstm_layer(x_tm, w_ih, w_hh, b, h0, c0, *, time_chunk=None, out_dtype=None):
    """One LSTM layer, all directions fused in a single pallas_call.

    x_tm : (T, Bp, I)   time-major layer input (batch padded to a multiple of 8)
    w_ih : (D, I, 4H)   pre-transposed W_ih per direction
    w_hh : (D, H, 4H)   pre-transposed W_hh per direction
    b    : (D, 1, 4H)   b_ih + b_hh
    h0,c0: (D, Bp, H)
    Returns ([y_d (T, Bp, H)], h_n (D, Bp, H), c_n (D, Bp, H)).
    """
    T, Bp, I = x_tm.shape
    D, H = h0.shape[0], h0.shape[-1]
    out_dtype = out_dtype or x_tm.dtype
    tt = time_chunk or _pick_time_chunk(T)
    nc = T // tt
    assert nc * tt == T, "time_chunk must divide the sequence length"

    # Forward walks chunks 0..nc-1; reverse walks nc-1..0 (and walks each chunk
    # back-to-front inside the kernel).
    chunk_maps = [lambda k: (k, 0, 0), lambda k: (nc - 1 - k, 0, 0)][:D]
    const_map = lambda k: (0, 0, 0)

    in_specs = ([pl.BlockSpec((tt, Bp, I), m) for m in chunk_maps] + [
        _invariant_spec((D, I, 4 * H), const_map),   # W_ih^T
        _invariant_spec((D, H, 4 * H), const_map),   # W_hh^T
        _invariant_spec((D, 1, 4 * H), const_map),   # bias
        _invariant_spec((D, Bp, H), const_map),      # h0
        _invariant_spec((D, Bp, H), const_map),      # c0
    ])
    out_specs = ([pl.BlockSpec((tt, Bp, H), m) for m in chunk_maps] + [
        pl.BlockSpec((D, Bp, H), const_map),          # h_n (resident accumulator)
        pl.BlockSpec((D, Bp, H), const_map),          # c_n
    ])
    out_shape = tuple([jax.ShapeDtypeStruct((T, Bp, H), out_dtype)] * D
                      + [jax.ShapeDtypeStruct((D, Bp, H), out_dtype)] * 2)
    scratch_shapes = ([pltpu.VMEM((D, Bp, H), jnp.float32),        # h state
                       pltpu.VMEM((D, Bp, H), jnp.float32)]        # c state
                      + [pltpu.VMEM((tt, Bp, 4 * H), jnp.float32)  # x@W_ih per dir
                         for _ in range(D)])

    outs = pl.pallas_call(
        _make_bilstm_kernel(D, H, tt, nc),
        out_shape=out_shape,
        grid_spec=pltpu.PrefetchScalarGridSpec(
            num_scalar_prefetch=0,
            grid=(nc,),                      # single sequential recurrence axis
            in_specs=in_specs,
            out_specs=out_specs,
            scratch_shapes=scratch_shapes),
        compiler_params=pltpu.CompilerParams(
            dimension_semantics=("arbitrary",),   # recurrence must stay sequential
            vmem_limit_bytes=48 * 1024 * 1024),   # headroom on v7x's 64 MiB VMEM
    )(*([x_tm] * D), w_ih, w_hh, b, h0, c0)

    ys = list(outs[:D])
    hn, cn = outs[D], outs[D + 1]
    return ys, hn, cn


# ----------------------------------------------------------------------------
# BiRNN forward (multi-layer, optionally bidirectional), matching nn.LSTM.
# ----------------------------------------------------------------------------
def birnn_forward(params, x, initial_states, *, n_layers, bidirectional,
                  compute_dtype=None, time_chunk=None):
    h0, c0 = initial_states                      # each (L*D, B, H)
    D = 2 if bidirectional else 1
    B, T, _ = x.shape

    # Pad batch to a multiple of 8 so reshapes / stores are sublane-aligned.
    Bp = _round_up(max(B, 1), 8)
    pad = Bp - B

    layer_in = jnp.transpose(x, (1, 0, 2))       # -> time-major (T, B, I)
    if pad:
        layer_in = jnp.pad(layer_in, ((0, 0), (0, pad), (0, 0)))
        h0 = jnp.pad(h0, ((0, 0), (0, pad), (0, 0)))
        c0 = jnp.pad(c0, ((0, 0), (0, pad), (0, 0)))

    hns, cns = [], []
    for layer in range(n_layers):
        p = params[layer]
        w_ih, w_hh = p["w_ih_t"], p["w_hh_t"]
        xin = layer_in
        if compute_dtype is not None:            # bf16 MXU path (v5e/v6e/v7x)
            w_ih = w_ih.astype(compute_dtype)
            w_hh = w_hh.astype(compute_dtype)
            xin = xin.astype(compute_dtype)
        h0_l = jax.lax.slice_in_dim(h0, layer * D, (layer + 1) * D, axis=0)
        c0_l = jax.lax.slice_in_dim(c0, layer * D, (layer + 1) * D, axis=0)
        ys, hn, cn = bilstm_layer(xin, w_ih, w_hh, p["b"], h0_l, c0_l,
                                  time_chunk=time_chunk, out_dtype=x.dtype)
        # (T, Bp, H) per direction -> (T, Bp, D*H); no 4-D transpose needed.
        layer_in = ys[0] if D == 1 else jnp.concatenate(ys, axis=-1)
        hns.append(hn)
        cns.append(cn)
        # TODO(synk): inter-layer dropout (drop_h=0.05) only applies in PyTorch
        # training mode; eval-mode forward (identity) is implemented here.

    output = jnp.transpose(layer_in[:, :B, :], (1, 0, 2)).astype(x.dtype)  # (B,T,D*H)
    h_n = jnp.concatenate(hns, axis=0)[:, :B, :].astype(x.dtype)           # (L*D,B,H)
    c_n = jnp.concatenate(cns, axis=0)[:, :B, :].astype(x.dtype)
    return output, (h_n, c_n)


# ----------------------------------------------------------------------------
# Deterministic parameter init (PyTorch LSTM default: U(-1/sqrt(H), 1/sqrt(H))).
# Weights are stored pre-transposed and direction-stacked for the kernel.
# ----------------------------------------------------------------------------
def init_params(key, n_input, n_hidden, n_layers, bidirectional):
    D = 2 if bidirectional else 1
    bound = 1.0 / float(n_hidden) ** 0.5
    params = []
    for layer in range(n_layers):
        in_size = n_input if layer == 0 else n_hidden * D
        wih, whh, bs = [], [], []
        for _ in range(D):
            key, k1, k2, k3, k4 = jax.random.split(key, 5)
            w_ih = jax.random.uniform(k1, (4 * n_hidden, in_size),
                                      jnp.float32, -bound, bound)
            w_hh = jax.random.uniform(k2, (4 * n_hidden, n_hidden),
                                      jnp.float32, -bound, bound)
            b_ih = jax.random.uniform(k3, (4 * n_hidden,),
                                      jnp.float32, -bound, bound)
            b_hh = jax.random.uniform(k4, (4 * n_hidden,),
                                      jnp.float32, -bound, bound)
            wih.append(w_ih.T)                                  # (in, 4H)
            whh.append(w_hh.T)                                  # (H, 4H)
            bs.append((b_ih + b_hh).reshape(1, 4 * n_hidden))   # (1, 4H)
        params.append(dict(w_ih_t=jnp.stack(wih, 0),            # (D, in, 4H)
                           w_hh_t=jnp.stack(whh, 0),            # (D, H, 4H)
                           b=jnp.stack(bs, 0)))                 # (D, 1, 4H)
    return params


# ----------------------------------------------------------------------------
# Pure-JAX reference (lax.scan) for the correctness check.
# ----------------------------------------------------------------------------
def _ref_lstm_direction(x_tm, w_ih_t, w_hh_t, b, h0, c0, reverse):
    H = h0.shape[-1]
    xs = x_tm[::-1] if reverse else x_tm

    def step(carry, x_t):
        h, c = carry
        gates = x_t @ w_ih_t + h @ w_hh_t + b
        i = jax.nn.sigmoid(gates[:, :H])
        f = jax.nn.sigmoid(gates[:, H:2 * H])
        g = jnp.tanh(gates[:, 2 * H:3 * H])
        o = jax.nn.sigmoid(gates[:, 3 * H:])
        c = f * c + i * g
        h = o * jnp.tanh(c)
        return (h, c), h

    (hn, cn), ys = jax.lax.scan(step, (h0, c0), xs)
    if reverse:
        ys = ys[::-1]
    return ys, hn, cn


def _ref_birnn(params, x, initial_states, *, n_layers, bidirectional):
    h0, c0 = initial_states
    D = 2 if bidirectional else 1
    layer_in = jnp.transpose(x, (1, 0, 2))
    hns, cns = [], []
    for layer in range(n_layers):
        p = params[layer]
        outs = []
        for d in range(D):
            idx = layer * D + d
            y, hn, cn = _ref_lstm_direction(layer_in, p["w_ih_t"][d],
                                            p["w_hh_t"][d], p["b"][d],
                                            h0[idx], c0[idx], reverse=(d == 1))
            outs.append(y)
            hns.append(hn)
            cns.append(cn)
        layer_in = jnp.concatenate(outs, axis=-1) if D == 2 else outs[0]
    return (jnp.transpose(layer_in, (1, 0, 2)),
            (jnp.stack(hns, 0), jnp.stack(cns, 0)))


if __name__ == "__main__":
    n_input, n_hidden, n_layers = 16, 32, 2
    bidirectional = True
    batch, seq = 2, 8
    D = 2 if bidirectional else 1

    key = jax.random.PRNGKey(0)
    key, kx, kh, kc = jax.random.split(key, 4)
    x = jax.random.normal(kx, (batch, seq, n_input), jnp.float32)
    h0 = jax.random.normal(kh, (n_layers * D, batch, n_hidden), jnp.float32)
    c0 = jax.random.normal(kc, (n_layers * D, batch, n_hidden), jnp.float32)

    params = init_params(key, n_input, n_hidden, n_layers, bidirectional)

    fwd = jax.jit(functools.partial(birnn_forward, n_layers=n_layers,
                                    bidirectional=bidirectional))
    out, (h_n, c_n) = fwd(params, x, (h0, c0))
    jax.block_until_ready((out, h_n, c_n))

    ref_out, (ref_h, ref_c) = _ref_birnn(params, x, (h0, c0),
                                         n_layers=n_layers,
                                         bidirectional=bidirectional)
    assert out.shape == (batch, seq, D * n_hidden)
    assert h_n.shape == (n_layers * D, batch, n_hidden)
    assert c_n.shape == (n_layers * D, batch, n_hidden)
    assert jnp.allclose(out, ref_out, atol=1e-5, rtol=1e-5)
    assert jnp.allclose(h_n, ref_h, atol=1e-5, rtol=1e-5)
    assert jnp.allclose(c_n, ref_c, atol=1e-5, rtol=1e-5)

    print("KERNEL_OK")
</pallas_src>

<mosaic_0001>
module attributes {stable_mosaic.version = 11 : i64} {
  func.func @_copy(%arg0: i32, %arg1: memref<8x128xf32, #tpu.memory_space<vmem>>, %arg2: memref<8x128xf32, #tpu.memory_space<vmem>>) attributes {dimension_semantics = [#tpu.dimension_semantics<arbitrary>], iteration_bounds = array<i64: 2>, scalar_prefetch = 0 : i64, scratch_operands = 0 : i64, tpu.core_type = #tpu.core_type<tc>, window_params = [{pipeline_mode = #tpu.pipeline_mode<synchronous>, transform_indices = @transform_0, window_bounds = array<i64: 8, 128>}, {pipeline_mode = #tpu.pipeline_mode<synchronous>, transform_indices = @transform_1, window_bounds = array<i64: 8, 128>}]} {
    %c0 = arith.constant 0 : index
    %c0_0 = arith.constant 0 : index
    %0 = vector.load %arg1[%c0, %c0_0] : memref<8x128xf32, #tpu.memory_space<vmem>>, vector<8x128xf32>
    %c0_1 = arith.constant 0 : index
    %c0_2 = arith.constant 0 : index
    %1 = vector.load %arg2[%c0_1, %c0_2] : memref<8x128xf32, #tpu.memory_space<vmem>>, vector<8x128xf32>
    tpu.vector_store %arg2[%c0_1, %c0_2], %0 {strides = array<i32>} : memref<8x128xf32, #tpu.memory_space<vmem>>, vector<8x128xf32>,
    return
  }
  func.func @transform_0(%arg0: i32) -> (i32, i32) {
    %c0_i32 = arith.constant 0 : i32
    %c0_i32_0 = arith.constant 0 : i32
    %c0_i32_1 = arith.constant 0 : i32
    return %c0_i32, %c0_i32_0 : i32, i32
  }
  func.func @transform_1(%arg0: i32) -> (i32, i32) {
    %c0_i32 = arith.constant 0 : i32
    %c0_i32_0 = arith.constant 0 : i32
    %c0_i32_1 = arith.constant 0 : i32
    return %c0_i32, %c0_i32_0 : i32, i32
  }
}

module attributes {stable_mosaic.version = 11 : i64} {
  func.func @kernel(%arg0: i32, %arg1: memref<8x8x16xf32, #tpu.memory_space<vmem>>, %arg2: memref<8x8x16xf32, #tpu.memory_space<vmem>>, %arg3: memref<2x16x128xf32, #tpu.memory_space<vmem>>, %arg4: memref<2x32x128xf32, #tpu.memory_space<vmem>>, %arg5: memref<2x1x128xf32, #tpu.memory_space<vmem>>, %arg6: memref<2x8x32xf32, #tpu.memory_space<vmem>>, %arg7: memref<2x8x32xf32, #tpu.memory_space<vmem>>, %arg8: memref<8x8x32xf32, #tpu.memory_space<vmem>>, %arg9: memref<8x8x32xf32, #tpu.memory_space<vmem>>, %arg10: memref<2x8x32xf32, #tpu.memory_space<vmem>>, %arg11: memref<2x8x32xf32, #tpu.memory_space<vmem>>, %arg12: memref<2x8x32xf32, #tpu.memory_space<vmem>>, %arg13: memref<2x8x32xf32, #tpu.memory_space<vmem>>, %arg14: memref<8x8x128xf32, #tpu.memory_space<vmem>>, %arg15: memref<8x8x128xf32, #tpu.memory_space<vmem>>) attributes {dimension_semantics = [#tpu.dimension_semantics<arbitrary>], iteration_bounds = array<i64: 1>, scalar_prefetch = 0 : i64, scratch_operands = 4 : i64, tpu.core_type = #tpu.core_type<tc>, window_params = [{transform_indices = @transform_0, window_bounds = array<i64: 8, 8, 16>}, {transform_indices = @transform_1, window_bounds = array<i64: 8, 8, 16>}, {pipeline_mode = #tpu.pipeline_mode<synchronous>, transform_indices = @transform_2, window_bounds = array<i64: 2, 16, 128>}, {pipeline_mode = #tpu.pipeline_mode<synchronous>, transform_indices = @transform_3, window_bounds = array<i64: 2, 32, 128>}, {pipeline_mode = #tpu.pipeline_mode<synchronous>, transform_indices = @transform_4, window_bounds = array<i64: 2, 1, 128>}, {pipeline_mode = #tpu.pipeline_mode<synchronous>, transform_indices = @transform_5, window_bounds = array<i64: 2, 8, 32>}, {pipeline_mode = #tpu.pipeline_mode<synchronous>, transform_indices = @transform_6, window_bounds = array<i64: 2, 8, 32>}, {transform_indices = @transform_7, window_bounds = array<i64: 8, 8, 32>}, {transform_indices = @transform_8, window_bounds = array<i64: 8, 8, 32>}, {pipeline_mode = #tpu.pipeline_mode<synchronous>, transform_indices = @transform_9, window_bounds = array<i64: 2, 8, 32>}, {pipeline_mode = #tpu.pipeline_mode<synchronous>, transform_indices = @transform_10, window_bounds = array<i64: 2, 8, 32>}]} {
    %c0_i32 = arith.constant 0 : i32
    %0 = arith.cmpi eq, %arg0, %c0_i32 : i32
    %1 = arith.extui %0 : i1 to i32
    %c0_i32_0 = arith.constant 0 : i32
    %2 = arith.cmpi ne, %1, %c0_i32_0 : i32
    scf.if %2 {
      %c0_193 = arith.constant 0 : index
      %c0_194 = arith.constant 0 : index
      %c0_195 = arith.constant 0 : index
      %604 = vector.load %arg6[%c0_193, %c0_194, %c0_195] : memref<2x8x32xf32, #tpu.memory_space<vmem>>, vector<2x8x32xf32>
      %c0_196 = arith.constant 0 : index
      %c0_197 = arith.constant 0 : index
      %c0_198 = arith.constant 0 : index
      %605 = vector.load %arg12[%c0_196, %c0_197, %c0_198] : memref<2x8x32xf32, #tpu.memory_space<vmem>>, vector<2x8x32xf32>
      tpu.vector_store %arg12[%c0_196, %c0_197, %c0_198], %604 {strides = array<i32>} : memref<2x8x32xf32, #tpu.memory_space<vmem>>, vector<2x8x32xf32>,
      %c0_199 = arith.constant 0 : index
      %c0_200 = arith.constant 0 : index
      %c0_201 = arith.constant 0 : index
      %606 = vector.load %arg7[%c0_199, %c0_200, %c0_201] : memref<2x8x32xf32, #tpu.memory_space<vmem>>, vector<2x8x32xf32>
      %c0_202 = arith.constant 0 : index
      %c0_203 = arith.constant 0 : index
      %c0_204 = arith.constant 0 : index
      %607 = vector.load %arg13[%c0_202, %c0_203, %c0_204] : memref<2x8x32xf32, #tpu.memory_space<vmem>>, vector<2x8x32xf32>
      tpu.vector_store %arg13[%c0_202, %c0_203, %c0_204], %606 {strides = array<i32>} : memref<2x8x32xf32, #tpu.memory_space<vmem>>, vector<2x8x32xf32>,
    } else {
    }
    %c0 = arith.constant 0 : index
    %c0_1 = arith.constant 0 : index
    %c0_2 = arith.constant 0 : index
    %3 = vector.load %arg1[%c0, %c0_1, %c0_2] : memref<8x8x16xf32, #tpu.memory_space<vmem>>, vector<8x8x16xf32>
    %4 = vector.shape_cast %3 : vector<8x8x16xf32> to vector<64x16xf32>
    %c0_3 = arith.constant 0 : index
    %c0_4 = arith.constant 0 : index
    %c0_5 = arith.constant 0 : index
    %5 = vector.load %arg3[%c0_3, %c0_4, %c0_5] : memref<2x16x128xf32, #tpu.memory_space<vmem>>, vector<1x16x128xf32>
    %6 = vector.shape_cast %5 : vector<1x16x128xf32> to vector<16x128xf32>
    %cst = arith.constant dense<0.000000e+00> : vector<64x128xf32>
    %7 = tpu.matmul %4, %6, %cst {dimension_numbers = #tpu.dot_dimension_numbers<[1], [0], [0], [1], [0, 0, 1, 1], [], []>} : vector<64x16xf32>, vector<16x128xf32>, vector<64x128xf32> -> vector<64x128xf32>
    %c0_6 = arith.constant 0 : index
    %c0_7 = arith.constant 0 : index
    %c0_8 = arith.constant 0 : index
    %8 = vector.load %arg5[%c0_6, %c0_7, %c0_8] : memref<2x1x128xf32, #tpu.memory_space<vmem>>, vector<1x1x128xf32>
    %9 = vector.shape_cast %8 : vector<1x1x128xf32> to vector<1x128xf32>
    %10 = vector.broadcast %9 : vector<1x128xf32> to vector<64x128xf32>
    %11 = arith.addf %7, %10 : vector<64x128xf32>
    %12 = vector.shape_cast %11 : vector<64x128xf32> to vector<8x8x128xf32>
    %c0_9 = arith.constant 0 : index
    %c0_10 = arith.constant 0 : index
    %c0_11 = arith.constant 0 : index
    %13 = vector.load %arg14[%c0_9, %c0_10, %c0_11] : memref<8x8x128xf32, #tpu.memory_space<vmem>>, vector<8x8x128xf32>
    tpu.vector_store %arg14[%c0_9, %c0_10, %c0_11], %12 {strides = array<i32>} : memref<8x8x128xf32, #tpu.memory_space<vmem>>, vector<8x8x128xf32>,
    %c0_12 = arith.constant 0 : index
    %c0_13 = arith.constant 0 : index
    %c0_14 = arith.constant 0 : index
    %14 = vector.load %arg2[%c0_12, %c0_13, %c0_14] : memref<8x8x16xf32, #tpu.memory_space<vmem>>, vector<8x8x16xf32>
    %15 = vector.shape_cast %14 : vector<8x8x16xf32> to vector<64x16xf32>
    %c1 = arith.constant 1 : index
    %c0_15 = arith.constant 0 : index
    %c0_16 = arith.constant 0 : index
    %16 = vector.load %arg3[%c1, %c0_15, %c0_16] : memref<2x16x128xf32, #tpu.memory_space<vmem>>, vector<1x16x128xf32>
    %17 = vector.shape_cast %16 : vector<1x16x128xf32> to vector<16x128xf32>
    %cst_17 = arith.constant dense<0.000000e+00> : vector<64x128xf32>
    %18 = tpu.matmul %15, %17, %cst_17 {dimension_numbers = #tpu.dot_dimension_numbers<[1], [0], [0], [1], [0, 0, 1, 1], [], []>} : vector<64x16xf32>, vector<16x128xf32>, vector<64x128xf32> -> vector<64x128xf32>
    %c1_18 = arith.constant 1 : index
    %c0_19 = arith.constant 0 : index
    %c0_20 = arith.constant 0 : index
    %19 = vector.load %arg5[%c1_18, %c0_19, %c0_20] : memref<2x1x128xf32, #tpu.memory_space<vmem>>, vector<1x1x128xf32>
    %20 = vector.shape_cast %19 : vector<1x1x128xf32> to vector<1x128xf32>
    %21 = vector.broadcast %20 : vector<1x128xf32> to vector<64x128xf32>
    %22 = arith.addf %18, %21 : vector<64x128xf32>
    %23 = vector.shape_cast %22 : vector<64x128xf32> to vector<8x8x128xf32>
    %c0_21 = arith.constant 0 : index
    %c0_22 = arith.constant 0 : index
    %c0_23 = arith.constant 0 : index
    %24 = vector.load %arg15[%c0_21, %c0_22, %c0_23] : memref<8x8x128xf32, #tpu.memory_space<vmem>>, vector<8x8x128xf32>
    tpu.vector_store %arg15[%c0_21, %c0_22, %c0_23], %23 {strides = array<i32>} : memref<8x8x128xf32, #tpu.memory_space<vmem>>, vector<8x8x128xf32>,
    %c0_24 = arith.constant 0 : index
    %c0_25 = arith.constant 0 : index
    %c0_26 = arith.constant 0 : index
    %25 = vector.load %arg4[%c0_24, %c0_25, %c0_26] : memref<2x32x128xf32, #tpu.memory_space<vmem>>, vector<1x32x128xf32>
    %26 = vector.shape_cast %25 : vector<1x32x128xf32> to vector<32x128xf32>
    %c1_27 = arith.constant 1 : index
    %c0_28 = arith.constant 0 : index
    %c0_29 = arith.constant 0 : index
    %27 = vector.load %arg4[%c1_27, %c0_28, %c0_29] : memref<2x32x128xf32, #tpu.memory_space<vmem>>, vector<1x32x128xf32>
    %28 = vector.shape_cast %27 : vector<1x32x128xf32> to vector<32x128xf32>
    %c0_30 = arith.constant 0 : index
    %c0_31 = arith.constant 0 : index
    %c0_32 = arith.constant 0 : index
    %29 = vector.load %arg12[%c0_30, %c0_31, %c0_32] : memref<2x8x32xf32, #tpu.memory_space<vmem>>, vector<1x8x32xf32>
    %30 = vector.shape_cast %29 : vector<1x8x32xf32> to vector<8x32xf32>
    %c0_33 = arith.constant 0 : index
    %c0_34 = arith.constant 0 : index
    %c0_35 = arith.constant 0 : index
    %31 = vector.load %arg13[%c0_33, %c0_34, %c0_35] : memref<2x8x32xf32, #tpu.memory_space<vmem>>, vector<1x8x32xf32>
    %32 = vector.shape_cast %31 : vector<1x8x32xf32> to vector<8x32xf32>
    %c1_36 = arith.constant 1 : index
    %c0_37 = arith.constant 0 : index
    %c0_38 = arith.constant 0 : index
    %33 = vector.load %arg12[%c1_36, %c0_37, %c0_38] : memref<2x8x32xf32, #tpu.memory_space<vmem>>, vector<1x8x32xf32>
    %34 = vector.shape_cast %33 : vector<1x8x32xf32> to vector<8x32xf32>
    %c1_39 = arith.constant 1 : index
    %c0_40 = arith.constant 0 : index
    %c0_41 = arith.constant 0 : index
    %35 = vector.load %arg13[%c1_39, %c0_40, %c0_41] : memref<2x8x32xf32, #tpu.memory_space<vmem>>, vector<1x8x32xf32>
    %36 = vector.shape_cast %35 : vector<1x8x32xf32> to vector<8x32xf32>
    %c0_i32_42 = arith.constant 0 : i32
    %37 = arith.index_cast %c0_i32_42 : i32 to index
    %c0_43 = arith.constant 0 : index
    %c0_44 = arith.constant 0 : index
    %38 = vector.load %arg14[%37, %c0_43, %c0_44] : memref<8x8x128xf32, #tpu.memory_space<vmem>>, vector<1x8x128xf32>
    %39 = vector.shape_cast %38 : vector<1x8x128xf32> to vector<8x128xf32>
    %cst_45 = arith.constant dense<0.000000e+00> : vector<8x128xf32>
    %40 = tpu.matmul %30, %26, %cst_45 {dimension_numbers = #tpu.dot_dimension_numbers<[1], [0], [0], [1], [0, 0, 1, 1], [], []>} : vector<8x32xf32>, vector<32x128xf32>, vector<8x128xf32> -> vector<8x128xf32>
    %41 = arith.addf %39, %40 : vector<8x128xf32>
    %42 = vector.extract_strided_slice %41 {offsets = [0, 0], sizes = [8, 32], strides = [1, 1]} : vector<8x128xf32> to vector<8x32xf32>
    %43 = arith.negf %42 : vector<8x32xf32>
    %44 = math.exp %43 : vector<8x32xf32>
    %cst_46 = arith.constant 1.000000e+00 : f32
    %45 = vector.broadcast %cst_46 : f32 to vector<8x32xf32>
    %46 = arith.addf %45, %44 : vector<8x32xf32>
    %47 = arith.divf %45, %46 : vector<8x32xf32>
    %48 = vector.extract_strided_slice %41 {offsets = [0, 32], sizes = [8, 32], strides = [1, 1]} : vector<8x128xf32> to vector<8x32xf32>
    %49 = arith.negf %48 : vector<8x32xf32>
    %50 = math.exp %49 : vector<8x32xf32>
    %cst_47 = arith.constant 1.000000e+00 : f32
    %51 = vector.broadcast %cst_47 : f32 to vector<8x32xf32>
    %52 = arith.addf %51, %50 : vector<8x32xf32>
    %53 = arith.divf %51, %52 : vector<8x32xf32>
    %54 = vector.extract_strided_slice %41 {offsets = [0, 64], sizes = [8, 32], strides = [1, 1]} : vector<8x128xf32> to vector<8x32xf32>
    %55 = math.tanh %54 : vector<8x32xf32>
    %56 = vector.extract_strided_slice %41 {offsets = [0, 96], sizes = [8, 32], strides = [1, 1]} : vector<8x128xf32> to vector<8x32xf32>
    %57 = arith.negf %56 : vector<8x32xf32>
    %58 = math.exp %57 : vector<8x32xf32>
    %cst_48 = arith.constant 1.000000e+00 : f32
    %59 = vector.broadcast %cst_48 : f32 to vector<8x32xf32>
    %60 = arith.addf %59, %58 : vector<8x32xf32>
    %61 = arith.divf %59, %60 : vector<8x32xf32>
    %62 = arith.mulf %53, %32 : vector<8x32xf32>
    %63 = arith.mulf %47, %55 : vector<8x32xf32>
    %64 = arith.addf %62, %63 : vector<8x32xf32>
    %65 = math.tanh %64 : vector<8x32xf32>
    %66 = arith.mulf %61, %65 : vector<8x32xf32>
    %67 = arith.index_cast %c0_i32_42 : i32 to index
    %c0_49 = arith.constant 0 : index
    %c0_50 = arith.constant 0 : index
    %68 = vector.load %arg8[%67, %c0_49, %c0_50] : memref<8x8x32xf32, #tpu.memory_space<vmem>>, vector<1x8x32xf32>
    %69 = vector.shape_cast %68 : vector<1x8x32xf32> to vector<8x32xf32>
    %70 = vector.shape_cast %66 : vector<8x32xf32> to vector<1x8x32xf32>
    tpu.vector_store %arg8[%67, %c0_49, %c0_50], %70 {strides = array<i32>} : memref<8x8x32xf32, #tpu.memory_space<vmem>>, vector<1x8x32xf32>,
    %c7_i32 = arith.constant 7 : i32
    %71 = arith.subi %c7_i32, %c0_i32_42 : i32
    %72 = arith.index_cast %71 : i32 to index
    %c0_51 = arith.constant 0 : index
    %c0_52 = arith.constant 0 : index
    %73 = vector.load %arg15[%72, %c0_51, %c0_52] : memref<8x8x128xf32, #tpu.memory_space<vmem>>, vector<1x8x128xf32>
    %74 = vector.shape_cast %73 : vector<1x8x128xf32> to vector<8x128xf32>
    %cst_53 = arith.constant dense<0.000000e+00> : vector<8x128xf32>
    %75 = tpu.matmul %34, %28, %cst_53 {dimension_numbers = #tpu.dot_dimension_numbers<[1], [0], [0], [1], [0, 0, 1, 1], [], []>} : vector<8x32xf32>, vector<32x128xf32>, vector<8x128xf32> -> vector<8x128xf32>
    %76 = arith.addf %74, %75 : vector<8x128xf32>
    %77 = vector.extract_strided_slice %76 {offsets = [0, 0], sizes = [8, 32], strides = [1, 1]} : vector<8x128xf32> to vector<8x32xf32>
    %78 = arith.negf %77 : vector<8x32xf32>
    %79 = math.exp %78 : vector<8x32xf32>
    %cst_54 = arith.constant 1.000000e+00 : f32
    %80 = vector.broadcast %cst_54 : f32 to vector<8x32xf32>
    %81 = arith.addf %80, %79 : vector<8x32xf32>
    %82 = arith.divf %80, %81 : vector<8x32xf32>
    %83 = vector.extract_strided_slice %76 {offsets = [0, 32], sizes = [8, 32], strides = [1, 1]} : vector<8x128xf32> to vector<8x32xf32>
    %84 = arith.negf %83 : vector<8x32xf32>
    %85 = math.exp %84 : vector<8x32xf32>
    %cst_55 = arith.constant 1.000000e+00 : f32
    %86 = vector.broadcast %cst_55 : f32 to vector<8x32xf32>
    %87 = arith.addf %86, %85 : vector<8x32xf32>
    %88 = arith.divf %86, %87 : vector<8x32xf32>
    %89 = vector.extract_strided_slice %76 {offsets = [0, 64], sizes = [8, 32], strides = [1, 1]} : vector<8x128xf32> to vector<8x32xf32>
    %90 = math.tanh %89 : vector<8x32xf32>
    %91 = vector.extract_strided_slice %76 {offsets = [0, 96], sizes = [8, 32], strides = [1, 1]} : vector<8x128xf32> to vector<8x32xf32>
    %92 = arith.negf %91 : vector<8x32xf32>
    %93 = math.exp %92 : vector<8x32xf32>
    %cst_56 = arith.constant 1.000000e+00 : f32
    %94 = vector.broadcast %cst_56 : f32 to vector<8x32xf32>
    %95 = arith.addf %94, %93 : vector<8x32xf32>
    %96 = arith.divf %94, %95 : vector<8x32xf32>
    %97 = arith.mulf %88, %36 : vector<8x32xf32>
    %98 = arith.mulf %82, %90 : vector<8x32xf32>
    %99 = arith.addf %97, %98 : vector<8x32xf32>
    %100 = math.tanh %99 : vector<8x32xf32>
    %101 = arith.mulf %96, %100 : vector<8x32xf32>
    %102 = arith.index_cast %71 : i32 to index
    %c0_57 = arith.constant 0 : index
    %c0_58 = arith.constant 0 : index
    %103 = vector.load %arg9[%102, %c0_57, %c0_58] : memref<8x8x32xf32, #tpu.memory_space<vmem>>, vector<1x8x32xf32>
    %104 = vector.shape_cast %103 : vector<1x8x32xf32> to vector<8x32xf32>
    %105 = vector.shape_cast %101 : vector<8x32xf32> to vector<1x8x32xf32>
    tpu.vector_store %arg9[%102, %c0_57, %c0_58], %105 {strides = array<i32>} : memref<8x8x32xf32, #tpu.memory_space<vmem>>, vector<1x8x32xf32>,
    %c1_i32 = arith.constant 1 : i32
    %106 = arith.index_cast %c1_i32 : i32 to index
    %c0_59 = arith.constant 0 : index
    %c0_60 = arith.constant 0 : index
    %107 = vector.load %arg14[%106, %c0_59, %c0_60] : memref<8x8x128xf32, #tpu.memory_space<vmem>>, vector<1x8x128xf32>
    %108 = vector.shape_cast %107 : vector<1x8x128xf32> to vector<8x128xf32>
    %cst_61 = arith.constant dense<0.000000e+00> : vector<8x128xf32>
    %109 = tpu.matmul %66, %26, %cst_61 {dimension_numbers = #tpu.dot_dimension_numbers<[1], [0], [0], [1], [0, 0, 1, 1], [], []>} : vector<8x32xf32>, vector<32x128xf32>, vector<8x128xf32> -> vector<8x128xf32>
    %110 = arith.addf %108, %109 : vector<8x128xf32>
    %111 = vector.extract_strided_slice %110 {offsets = [0, 0], sizes = [8, 32], strides = [1, 1]} : vector<8x128xf32> to vector<8x32xf32>
    %112 = arith.negf %111 : vector<8x32xf32>
    %113 = math.exp %112 : vector<8x32xf32>
    %cst_62 = arith.constant 1.000000e+00 : f32
    %114 = vector.broadcast %cst_62 : f32 to vector<8x32xf32>
    %115 = arith.addf %114, %113 : vector<8x32xf32>
    %116 = arith.divf %114, %115 : vector<8x32xf32>
    %117 = vector.extract_strided_slice %110 {offsets = [0, 32], sizes = [8, 32], strides = [1, 1]} : vector<8x128xf32> to vector<8x32xf32>
    %118 = arith.negf %117 : vector<8x32xf32>
    %119 = math.exp %118 : vector<8x32xf32>
    %cst_63 = arith.constant 1.000000e+00 : f32
    %120 = vector.broadcast %cst_63 : f32 to vector<8x32xf32>
    %121 = arith.addf %120, %119 : vector<8x32xf32>
    %122 = arith.divf %120, %121 : vector<8x32xf32>
    %123 = vector.extract_strided_slice %110 {offsets = [0, 64], sizes = [8, 32], strides = [1, 1]} : vector<8x128xf32> to vector<8x32xf32>
    %124 = math.tanh %123 : vector<8x32xf32>
    %125 = vector.extract_strided_slice %110 {offsets = [0, 96], sizes = [8, 32], strides = [1, 1]} : vector<8x128xf32> to vector<8x32xf32>
    %126 = arith.negf %125 : vector<8x32xf32>
    %127 = math.exp %126 : vector<8x32xf32>
    %cst_64 = arith.constant 1.000000e+00 : f32
    %128 = vector.broadcast %cst_64 : f32 to vector<8x32xf32>
    %129 = arith.addf %128, %127 : vector<8x32xf32>
    %130 = arith.divf %128, %129 : vector<8x32xf32>
    %131 = arith.mulf %122, %64 : vector<8x32xf32>
    %132 = arith.mulf %116, %124 : vector<8x32xf32>
    %133 = arith.addf %131, %132 : vector<8x32xf32>
    %134 = math.tanh %133 : vector<8x32xf32>
    %135 = arith.mulf %130, %134 : vector<8x32xf32>
    %136 = arith.index_cast %c1_i32 : i32 to index
    %c0_65 = arith.constant 0 : index
    %c0_66 = arith.constant 0 : index
    %137 = vector.load %arg8[%136, %c0_65, %c0_66] : memref<8x8x32xf32, #tpu.memory_space<vmem>>, vector<1x8x32xf32>
    %138 = vector.shape_cast %137 : vector<1x8x32xf32> to vector<8x32xf32>
    %139 = vector.shape_cast %135 : vector<8x32xf32> to vector<1x8x32xf32>
    tpu.vector_store %arg8[%136, %c0_65, %c0_66], %139 {strides = array<i32>} : memref<8x8x32xf32, #tpu.memory_space<vmem>>, vector<1x8x32xf32>,
    %c7_i32_67 = arith.constant 7 : i32
    %140 = arith.subi %c7_i32_67, %c1_i32 : i32
    %141 = arith.index_cast %140 : i32 to index
    %c0_68 = arith.constant 0 : index
    %c0_69 = arith.constant 0 : index
    %142 = vector.load %arg15[%141, %c0_68, %c0_69] : memref<8x8x128xf32, #tpu.memory_space<vmem>>, vector<1x8x128xf32>
    %143 = vector.shape_cast %142 : vector<1x8x128xf32> to vector<8x128xf32>
    %cst_70 = arith.constant dense<0.000000e+00> : vector<8x128xf32>
    %144 = tpu.matmul %101, %28, %cst_70 {dimension_numbers = #tpu.dot_dimension_numbers<[1], [0], [0], [1], [0, 0, 1, 1], [], []>} : vector<8x32xf32>, vector<32x128xf32>, vector<8x128xf32> -> vector<8x128xf32>
    %145 = arith.addf %143, %144 : vector<8x128xf32>
    %146 = vector.extract_strided_slice %145 {offsets = [0, 0], sizes = [8, 32], strides = [1, 1]} : vector<8x128xf32> to vector<8x32xf32>
    %147 = arith.negf %146 : vector<8x32xf32>
    %148 = math.exp %147 : vector<8x32xf32>
    %cst_71 = arith.constant 1.000000e+00 : f32
    %149 = vector.broadcast %cst_71 : f32 to vector<8x32xf32>
    %150 = arith.addf %149, %148 : vector<8x32xf32>
    %151 = arith.divf %149, %150 : vector<8x32xf32>
    %152 = vector.extract_strided_slice %145 {offsets = [0, 32], sizes = [8, 32], strides = [1, 1]} : vector<8x128xf32> to vector<8x32xf32>
    %153 = arith.negf %152 : vector<8x32xf32>
    %154 = math.exp %153 : vector<8x32xf32>
    %cst_72 = arith.constant 1.000000e+00 : f32
    %155 = vector.broadcast %cst_72 : f32 to vector<8x32xf32>
    %156 = arith.addf %155, %154 : vector<8x32xf32>
    %157 = arith.divf %155, %156 : vector<8x32xf32>
    %158 = vector.extract_strided_slice %145 {offsets = [0, 64], sizes = [8, 32], strides = [1, 1]} : vector<8x128xf32> to vector<8x32xf32>
    %159 = math.tanh %158 : vector<8x32xf32>
    %160 = vector.extract_strided_slice %145 {offsets = [0, 96], sizes = [8, 32], strides = [1, 1]} : vector<8x128xf32> to vector<8x32xf32>
    %161 = arith.negf %160 : vector<8x32xf32>
    %162 = math.exp %161 : vector<8x32xf32>
    %cst_73 = arith.constant 1.000000e+00 : f32
    %163 = vector.broadcast %cst_73 : f32 to vector<8x32xf32>
    %164 = arith.addf %163, %162 : vector<8x32xf32>
    %165 = arith.divf %163, %164 : vector<8x32xf32>
    %166 = arith.mulf %157, %99 : vector<8x32xf32>
    %167 = arith.mulf %151, %159 : vector<8x32xf32>
    %168 = arith.addf %166, %167 : vector<8x32xf32>
    %169 = math.tanh %168 : vector<8x32xf32>
    %170 = arith.mulf %165, %169 : vector<8x32xf32>
    %171 = arith.index_cast %140 : i32 to index
    %c0_74 = arith.constant 0 : index
    %c0_75 = arith.constant 0 : index
    %172 = vector.load %arg9[%171, %c0_74, %c0_75] : memref<8x8x32xf32, #tpu.memory_space<vmem>>, vector<1x8x32xf32>
    %173 = vector.shape_cast %172 : vector<1x8x32xf32> to vector<8x32xf32>
    %174 = vector.shape_cast %170 : vector<8x32xf32> to vector<1x8x32xf32>
    tpu.vector_store %arg9[%171, %c0_74, %c0_75], %174 {strides = array<i32>} : memref<8x8x32xf32, #tpu.memory_space<vmem>>, vector<1x8x32xf32>,
    %c2_i32 = arith.constant 2 : i32
    %175 = arith.index_cast %c2_i32 : i32 to index
    %c0_76 = arith.constant 0 : index
    %c0_77 = arith.constant 0 : index
    %176 = vector.load %arg14[%175, %c0_76, %c0_77] : memref<8x8x128xf32, #tpu.memory_space<vmem>>, vector<1x8x128xf32>
    %177 = vector.shape_cast %176 : vector<1x8x128xf32> to vector<8x128xf32>
    %cst_78 = arith.constant dense<0.000000e+00> : vector<8x128xf32>
    %178 = tpu.matmul %135, %26, %cst_78 {dimension_numbers = #tpu.dot_dimension_numbers<[1], [0], [0], [1], [0, 0, 1, 1], [], []>} : vector<8x32xf32>, vector<32x128xf32>, vector<8x128xf32> -> vector<8x128xf32>
    %179 = arith.addf %177, %178 : vector<8x128xf32>
    %180 = vector.extract_strided_slice %179 {offsets = [0, 0], sizes = [8, 32], strides = [1, 1]} : vector<8x128xf32> to vector<8x32xf32>
    %181 = arith.negf %180 : vector<8x32xf32>
    %182 = math.exp %181 : vector<8x32xf32>
    %cst_79 = arith.constant 1.000000e+00 : f32
    %183 = vector.broadcast %cst_79 : f32 to vector<8x32xf32>
    %184 = arith.addf %183, %182 : vector<8x32xf32>
    %185 = arith.divf %183, %184 : vector<8x32xf32>
    %186 = vector.extract_strided_slice %179 {offsets = [0, 32], sizes = [8, 32], strides = [1, 1]} : vector<8x128xf32> to vector<8x32xf32>
    %187 = arith.negf %186 : vector<8x32xf32>
    %188 = math.exp %187 : vector<8x32xf32>
    %cst_80 = arith.constant 1.000000e+00 : f32
    %189 = vector.broadcast %cst_80 : f32 to vector<8x32xf32>
    %190 = arith.addf %189, %188 : vector<8x32xf32>
    %191 = arith.divf %189, %190 : vector<8x32xf32>
    %192 = vector.extract_strided_slice %179 {offsets = [0, 64], sizes = [8, 32], strides = [1, 1]} : vector<8x128xf32> to vector<8x32xf32>
    %193 = math.tanh %192 : vector<8x32xf32>
    %194 = vector.extract_strided_slice %179 {offsets = [0, 96], sizes = [8, 32], strides = [1, 1]} : vector<8x128xf32> to vector<8x32xf32>
    %195 = arith.negf %194 : vector<8x32xf32>
    %196 = math.exp %195 : vector<8x32xf32>
    %cst_81 = arith.constant 1.000000e+00 : f32
    %197 = vector.broadcast %cst_81 : f32 to vector<8x32xf32>
    %198 = arith.addf %197, %196 : vector<8x32xf32>
    %199 = arith.divf %197, %198 : vector<8x32xf32>
    %200 = arith.mulf %191, %133 : vector<8x32xf32>
    %201 = arith.mulf %185, %193 : vector<8x32xf32>
    %202 = arith.addf %200, %201 : vector<8x32xf32>
    %203 = math.tanh %202 : vector<8x32xf32>
    %204 = arith.mulf %199, %203 : vector<8x32xf32>
    %205 = arith.index_cast %c2_i32 : i32 to index
    %c0_82 = arith.constant 0 : index
    %c0_83 = arith.constant 0 : index
    %206 = vector.load %arg8[%205, %c0_82, %c0_83] : memref<8x8x32xf32, #tpu.memory_space<vmem>>, vector<1x8x32xf32>
    %207 = vector.shape_cast %206 : vector<1x8x32xf32> to vector<8x32xf32>
    %208 = vector.shape_cast %204 : vector<8x32xf32> to vector<1x8x32xf32>
    tpu.vector_store %arg8[%205, %c0_82, %c0_83], %208 {strides = array<i32>} : memref<8x8x32xf32, #tpu.memory_space<vmem>>, vector<1x8x32xf32>,
    %c7_i32_84 = arith.constant 7 : i32
    %209 = arith.subi %c7_i32_84, %c2_i32 : i32
    %210 = arith.index_cast %209 : i32 to index
    %c0_85 = arith.constant 0 : index
    %c0_86 = arith.constant 0 : index
    %211 = vector.load %arg15[%210, %c0_85, %c0_86] : memref<8x8x128xf32, #tpu.memory_space<vmem>>, vector<1x8x128xf32>
    %212 = vector.shape_cast %211 : vector<1x8x128xf32> to vector<8x128xf32>
    %cst_87 = arith.constant dense<0.000000e+00> : vector<8x128xf32>
    %213 = tpu.matmul %170, %28, %cst_87 {dimension_numbers = #tpu.dot_dimension_numbers<[1], [0], [0], [1], [0, 0, 1, 1], [], []>} : vector<8x32xf32>, vector<32x128xf32>, vector<8x128xf32> -> vector<8x128xf32>
    %214 = arith.addf %212, %213 : vector<8x128xf32>
    %215 = vector.extract_strided_slice %214 {offsets = [0, 0], sizes = [8, 32], strides = [1, 1]} : vector<8x128xf32> to vector<8x32xf32>
    %216 = arith.negf %215 : vector<8x32xf32>
    %217 = math.exp %216 : vector<8x32xf32>
    %cst_88 = arith.constant 1.000000e+00 : f32
    %218 = vector.broadcast %cst_88 : f32 to vector<8x32xf32>
    %219 = arith.addf %218, %217 : vector<8x32xf32>
    %220 = arith.divf %218, %219 : vector<8x32xf32>
    %221 = vector.extract_strided_slice %214 {offsets = [0, 32], sizes = [8, 32], strides = [1, 1]} : vector<8x128xf32> to vector<8x32xf32>
    %222 = arith.negf %221 : vector<8x32xf32>
    %223 = math.exp %222 : vector<8x32xf32>
    %cst_89 = arith.constant 1.000000e+00 : f32
    %224 = vector.broadcast %cst_89 : f32 to vector<8x32xf32>
    %225 = arith.addf %224, %223 : vector<8x32xf32>
    %226 = arith.divf %224, %225 : vector<8x32xf32>
    %227 = vector.extract_strided_slice %214 {offsets = [0, 64], sizes = [8, 32], strides = [1, 1]} : vector<8x128xf32> to vector<8x32xf32>
    %228 = math.tanh %227 : vector<8x32xf32>
    %229 = vector.extract_strided_slice %214 {offsets = [0, 96], sizes = [8, 32], strides = [1, 1]} : vector<8x128xf32> to vector<8x32xf32>
    %230 = arith.negf %229 : vector<8x32xf32>
    %231 = math.exp %230 : vector<8x32xf32>
    %cst_90 = arith.constant 1.000000e+00 : f32
    %232 = vector.broadcast %cst_90 : f32 to vector<8x32xf32>
    %233 = arith.addf %232, %231 : vector<8x32xf32>
    %234 = arith.divf %232, %233 : vector<8x32xf32>
    %235 = arith.mulf %226, %168 : vector<8x32xf32>
    %236 = arith.mulf %220, %228 : vector<8x32xf32>
    %237 = arith.addf %235, %236 : vector<8x32xf32>
    %238 = math.tanh %237 : vector<8x32xf32>
    %239 = arith.mulf %234, %238 : vector<8x32xf32>
    %240 = arith.index_cast %209 : i32 to index
    %c0_91 = arith.constant 0 : index
    %c0_92 = arith.constant 0 : index
    %241 = vector.load %arg9[%240, %c0_91, %c0_92] : memref<8x8x32xf32, #tpu.memory_space<vmem>>, vector<1x8x32xf32>
    %242 = vector.shape_cast %241 : vector<1x8x32xf32> to vector<8x32xf32>
    %243 = vector.shape_cast %239 : vector<8x32xf32> to vector<1x8x32xf32>
    tpu.vector_store %arg9[%240, %c0_91, %c0_92], %243 {strides = array<i32>} : memref<8x8x32xf32, #tpu.memory_space<vmem>>, vector<1x8x32xf32>,
    %c3_i32 = arith.constant 3 : i32
    %244 = arith.index_cast %c3_i32 : i32 to index
    %c0_93 = arith.constant 0 : index
    %c0_94 = arith.constant 0 : index
    %245 = vector.load %arg14[%244, %c0_93, %c0_94] : memref<8x8x128xf32, #tpu.memory_space<vmem>>, vector<1x8x128xf32>
    %246 = vector.shape_cast %245 : vector<1x8x128xf32> to vector<8x128xf32>
    %cst_95 = arith.constant dense<0.000000e+00> : vector<8x128xf32>
    %247 = tpu.matmul %204, %26, %cst_95 {dimension_numbers = #tpu.dot_dimension_numbers<[1], [0], [0], [1], [0, 0, 1, 1], [], []>} : vector<8x32xf32>, vector<32x128xf32>, vector<8x128xf32> -> vector<8x128xf32>
    %248 = arith.addf %246, %247 : vector<8x128xf32>
    %249 = vector.extract_strided_slice %248 {offsets = [0, 0], sizes = [8, 32], strides = [1, 1]} : vector<8x128xf32> to vector<8x32xf32>
    %250 = arith.negf %249 : vector<8x32xf32>
    %251 = math.exp %250 : vector<8x32xf32>
    %cst_96 = arith.constant 1.000000e+00 : f32
    %252 = vector.broadcast %cst_96 : f32 to vector<8x32xf32>
    %253 = arith.addf %252, %251 : vector<8x32xf32>
    %254 = arith.divf %252, %253 : vector<8x32xf32>
    %255 = vector.extract_strided_slice %248 {offsets = [0, 32], sizes = [8, 32], strides = [1, 1]} : vector<8x128xf32> to vector<8x32xf32>
    %256 = arith.negf %255 : vector<8x32xf32>
    %257 = math.exp %256 : vector<8x32xf32>
    %cst_97 = arith.constant 1.000000e+00 : f32
    %258 = vector.broadcast %cst_97 : f32 to vector<8x32xf32>
    %259 = arith.addf %258, %257 : vector<8x32xf32>
    %260 = arith.divf %258, %259 : vector<8x32xf32>
    %261 = vector.extract_strided_slice %248 {offsets = [0, 64], sizes = [8, 32], strides = [1, 1]} : vector<8x128xf32> to vector<8x32xf32>
    %262 = math.tanh %261 : vector<8x32xf32>
    %263 = vector.extract_strided_slice %248 {offsets = [0, 96], sizes = [8, 32], strides = [1, 1]} : vector<8x128xf32> to vector<8x32xf32>
    %264 = arith.negf %263 : vector<8x32xf32>
    %265 = math.exp %264 : vector<8x32xf32>
    %cst_98 = arith.constant 1.000000e+00 : f32
    %266 = vector.broadcast %cst_98 : f32 to vector<8x32xf32>
    %267 = arith.addf %266, %265 : vector<8x32xf32>
    %268 = arith.divf %266, %267 : vector<8x32xf32>
    %269 = arith.mulf %260, %202 : vector<8x32xf32>
    %270 = arith.mulf %254, %262 : vector<8x32xf32>
    %271 = arith.addf %269, %270 : vector<8x32xf32>
    %272 = math.tanh %271 : vector<8x32xf32>
    %273 = arith.mulf %268, %272 : vector<8x32xf32>
    %274 = arith.index_cast %c3_i32 : i32 to index
    %c0_99 = arith.constant 0 : index
    %c0_100 = arith.constant 0 : index
    %275 = vector.load %arg8[%274, %c0_99, %c0_100] : memref<8x8x32xf32, #tpu.memory_space<vmem>>, vector<1x8x32xf32>
    %276 = vector.shape_cast %275 : vector<1x8x32xf32> to vector<8x32xf32>
    %277 = vector.shape_cast %273 : vector<8x32xf32> to vector<1x8x32xf32>
    tpu.vector_store %arg8[%274, %c0_99, %c0_100], %277 {strides = array<i32>} : memref<8x8x32xf32, #tpu.memory_space<vmem>>, vector<1x8x32xf32>,
    %c7_i32_101 = arith.constant 7 : i32
    %278 = arith.subi %c7_i32_101, %c3_i32 : i32
    %279 = arith.index_cast %278 : i32 to index
    %c0_102 = arith.constant 0 : index
    %c0_103 = arith.constant 0 : index
    %280 = vector.load %arg15[%279, %c0_102, %c0_103] : memref<8x8x128xf32, #tpu.memory_space<vmem>>, vector<1x8x128xf32>
    %281 = vector.shape_cast %280 : vector<1x8x128xf32> to vector<8x128xf32>
    %cst_104 = arith.constant dense<0.000000e+00> : vector<8x128xf32>
    %282 = tpu.matmul %239, %28, %cst_104 {dimension_numbers = #tpu.dot_dimension_numbers<[1], [0], [0], [1], [0, 0, 1, 1], [], []>} : vector<8x32xf32>, vector<32x128xf32>, vector<8x128xf32> -> vector<8x128xf32>
    %283 = arith.addf %281, %282 : vector<8x128xf32>
    %284 = vector.extract_strided_slice %283 {offsets = [0, 0], sizes = [8, 32], strides = [1, 1]} : vector<8x128xf32> to vector<8x32xf32>
    %285 = arith.negf %284 : vector<8x32xf32>
    %286 = math.exp %285 : vector<8x32xf32>
    %cst_105 = arith.constant 1.000000e+00 : f32
    %287 = vector.broadcast %cst_105 : f32 to vector<8x32xf32>
    %288 = arith.addf %287, %286 : vector<8x32xf32>
    %289 = arith.divf %287, %288 : vector<8x32xf32>
    %290 = vector.extract_strided_slice %283 {offsets = [0, 32], sizes = [8, 32], strides = [1, 1]} : vector<8x128xf32> to vector<8x32xf32>
    %291 = arith.negf %290 : vector<8x32xf32>
    %292 = math.exp %291 : vector<8x32xf32>
    %cst_106 = arith.constant 1.000000e+00 : f32
    %293 = vector.broadcast %cst_106 : f32 to vector<8x32xf32>
    %294 = arith.addf %293, %292 : vector<8x32xf32>
    %295 = arith.divf %293, %294 : vector<8x32xf32>
    %296 = vector.extract_strided_slice %283 {offsets = [0, 64], sizes = [8, 32], strides = [1, 1]} : vector<8x128xf32> to vector<8x32xf32>
    %297 = math.tanh %296 : vector<8x32xf32>
    %298 = vector.extract_strided_slice %283 {offsets = [0, 96], sizes = [8, 32], strides = [1, 1]} : vector<8x128xf32> to vector<8x32xf32>
    %299 = arith.negf %298 : vector<8x32xf32>
    %300 = math.exp %299 : vector<8x32xf32>
    %cst_107 = arith.constant 1.000000e+00 : f32
    %301 = vector.broadcast %cst_107 : f32 to vector<8x32xf32>
    %302 = arith.addf %301, %300 : vector<8x32xf32>
    %303 = arith.divf %301, %302 : vector<8x32xf32>
    %304 = arith.mulf %295, %237 : vector<8x32xf32>
    %305 = arith.mulf %289, %297 : vector<8x32xf32>
    %306 = arith.addf %304, %305 : vector<8x32xf32>
    %307 = math.tanh %306 : vector<8x32xf32>
    %308 = arith.mulf %303, %307 : vector<8x32xf32>
    %309 = arith.index_cast %278 : i32 to index
    %c0_108 = arith.constant 0 : index
    %c0_109 = arith.constant 0 : index
    %310 = vector.load %arg9[%309, %c0_108, %c0_109] : memref<8x8x32xf32, #tpu.memory_space<vmem>>, vector<1x8x32xf32>
    %311 = vector.shape_cast %310 : vector<1x8x32xf32> to vector<8x32xf32>
    %312 = vector.shape_cast %308 : vector<8x32xf32> to vector<1x8x32xf32>
    tpu.vector_store %arg9[%309, %c0_108, %c0_109], %312 {strides = array<i32>} : memref<8x8x32xf32, #tpu.memory_space<vmem>>, vector<1x8x32xf32>,
    %c4_i32 = arith.constant 4 : i32
    %313 = arith.index_cast %c4_i32 : i32 to index
    %c0_110 = arith.constant 0 : index
    %c0_111 = arith.constant 0 : index
    %314 = vector.load %arg14[%313, %c0_110, %c0_111] : memref<8x8x128xf32, #tpu.memory_space<vmem>>, vector<1x8x128xf32>
    %315 = vector.shape_cast %314 : vector<1x8x128xf32> to vector<8x128xf32>
    %cst_112 = arith.constant dense<0.000000e+00> : vector<8x128xf32>
    %316 = tpu.matmul %273, %26, %cst_112 {dimension_numbers = #tpu.dot_dimension_numbers<[1], [0], [0], [1], [0, 0, 1, 1], [], []>} : vector<8x32xf32>, vector<32x128xf32>, vector<8x128xf32> -> vector<8x128xf32>
    %317 = arith.addf %315, %316 : vector<8x128xf32>
    %318 = vector.extract_strided_slice %317 {offsets = [0, 0], sizes = [8, 32], strides = [1, 1]} : vector<8x128xf32> to vector<8x32xf32>
    %319 = arith.negf %318 : vector<8x32xf32>
    %320 = math.exp %319 : vector<8x32xf32>
    %cst_113 = arith.constant 1.000000e+00 : f32
    %321 = vector.broadcast %cst_113 : f32 to vector<8x32xf32>
    %322 = arith.addf %321, %320 : vector<8x32xf32>
    %323 = arith.divf %321, %322 : vector<8x32xf32>
    %324 = vector.extract_strided_slice %317 {offsets = [0, 32], sizes = [8, 32], strides = [1, 1]} : vector<8x128xf32> to vector<8x32xf32>
    %325 = arith.negf %324 : vector<8x32xf32>
    %326 = math.exp %325 : vector<8x32xf32>
    %cst_114 = arith.constant 1.000000e+00 : f32
    %327 = vector.broadcast %cst_114 : f32 to vector<8x32xf32>
    %328 = arith.addf %327, %326 : vector<8x32xf32>
    %329 = arith.divf %327, %328 : vector<8x32xf32>
    %330 = vector.extract_strided_slice %317 {offsets = [0, 64], sizes = [8, 32], strides = [1, 1]} : vector<8x128xf32> to vector<8x32xf32>
    %331 = math.tanh %330 : vector<8x32xf32>
    %332 = vector.extract_strided_slice %317 {offsets = [0, 96], sizes = [8, 32], strides = [1, 1]} : vector<8x128xf32> to vector<8x32xf32>
    %333 = arith.negf %332 : vector<8x32xf32>
    %334 = math.exp %333 : vector<8x32xf32>
    %cst_115 = arith.constant 1.000000e+00 : f32
    %335 = vector.broadcast %cst_115 : f32 to vector<8x32xf32>
    %336 = arith.addf %335, %334 : vector<8x32xf32>
    %337 = arith.divf %335, %336 : vector<8x32xf32>
    %338 = arith.mulf %329, %271 : vector<8x32xf32>
    %339 = arith.mulf %323, %331 : vector<8x32xf32>
    %340 = arith.addf %338, %339 : vector<8x32xf32>
    %341 = math.tanh %340 : vector<8x32xf32>
    %342 = arith.mulf %337, %341 : vector<8x32xf32>
    %343 = arith.index_cast %c4_i32 : i32 to index
    %c0_116 = arith.constant 0 : index
    %c0_117 = arith.constant 0 : index
    %344 = vector.load %arg8[%343, %c0_116, %c0_117] : memref<8x8x32xf32, #tpu.memory_space<vmem>>, vector<1x8x32xf32>
    %345 = vector.shape_cast %344 : vector<1x8x32xf32> to vector<8x32xf32>
    %346 = vector.shape_cast %342 : vector<8x32xf32> to vector<1x8x32xf32>
    tpu.vector_store %arg8[%343, %c0_116, %c0_117], %346 {strides = array<i32>} : memref<8x8x32xf32, #tpu.memory_space<vmem>>, vector<1x8x32xf32>,
    %c7_i32_118 = arith.constant 7 : i32
    %347 = arith.subi %c7_i32_118, %c4_i32 : i32
    %348 = arith.index_cast %347 : i32 to index
    %c0_119 = arith.constant 0 : index
    %c0_120 = arith.constant 0 : index
    %349 = vector.load %arg15[%348, %c0_119, %c0_120] : memref<8x8x128xf32, #tpu.memory_space<vmem>>, vector<1x8x128xf32>
    %350 = vector.shape_cast %349 : vector<1x8x128xf32> to vector<8x128xf32>
    %cst_121 = arith.constant dense<0.000000e+00> : vector<8x128xf32>
    %351 = tpu.matmul %308, %28, %cst_121 {dimension_numbers = #tpu.dot_dimension_numbers<[1], [0], [0], [1], [0, 0, 1, 1], [], []>} : vector<8x32xf32>, vector<32x128xf32>, vector<8x128xf32> -> vector<8x128xf32>
    %352 = arith.addf %350, %351 : vector<8x128xf32>
    %353 = vector.extract_strided_slice %352 {offsets = [0, 0], sizes = [8, 32], strides = [1, 1]} : vector<8x128xf32> to vector<8x32xf32>
    %354 = arith.negf %353 : vector<8x32xf32>
    %355 = math.exp %354 : vector<8x32xf32>
    %cst_122 = arith.constant 1.000000e+00 : f32
    %356 = vector.broadcast %cst_122 : f32 to vector<8x32xf32>
    %357 = arith.addf %356, %355 : vector<8x32xf32>
    %358 = arith.divf %356, %357 : vector<8x32xf32>
    %359 = vector.extract_strided_slice %352 {offsets = [0, 32], sizes = [8, 32], strides = [1, 1]} : vector<8x128xf32> to vector<8x32xf32>
    %360 = arith.negf %359 : vector<8x32xf32>
    %361 = math.exp %360 : vector<8x32xf32>
    %cst_123 = arith.constant 1.000000e+00 : f32
    %362 = vector.broadcast %cst_123 : f32 to vector<8x32xf32>
    %363 = arith.addf %362, %361 : vector<8x32xf32>
    %364 = arith.divf %362, %363 : vector<8x32xf32>
    %365 = vector.extract_strided_slice %352 {offsets = [0, 64], sizes = [8, 32], strides = [1, 1]} : vector<8x128xf32> to vector<8x32xf32>
    %366 = math.tanh %365 : vector<8x32xf32>
    %367 = vector.extract_strided_slice %352 {offsets = [0, 96], sizes = [8, 32], strides = [1, 1]} : vector<8x128xf32> to vector<8x32xf32>
    %368 = arith.negf %367 : vector<8x32xf32>
    %369 = math.exp %368 : vector<8x32xf32>
    %cst_124 = arith.constant 1.000000e+00 : f32
    %370 = vector.broadcast %cst_124 : f32 to vector<8x32xf32>
    %371 = arith.addf %370, %369 : vector<8x32xf32>
    %372 = arith.divf %370, %371 : vector<8x32xf32>
    %373 = arith.mulf %364, %306 : vector<8x32xf32>
    %374 = arith.mulf %358, %366 : vector<8x32xf32>
    %375 = arith.addf %373, %374 : vector<8x32xf32>
    %376 = math.tanh %375 : vector<8x32xf32>
    %377 = arith.mulf %372, %376 : vector<8x32xf32>
    %378 = arith.index_cast %347 : i32 to index
    %c0_125 = arith.constant 0 : index
    %c0_126 = arith.constant 0 : index
    %379 = vector.load %arg9[%378, %c0_125, %c0_126] : memref<8x8x32xf32, #tpu.memory_space<vmem>>, vector<1x8x32xf32>
    %380 = vector.shape_cast %379 : vector<1x8x32xf32> to vector<8x32xf32>
    %381 = vector.shape_cast %377 : vector<8x32xf32> to vector<1x8x32xf32>
    tpu.vector_store %arg9[%378, %c0_125, %c0_126], %381 {strides = array<i32>} : memref<8x8x32xf32, #tpu.memory_space<vmem>>, vector<1x8x32xf32>,
    %c5_i32 = arith.constant 5 : i32
    %382 = arith.index_cast %c5_i32 : i32 to index
    %c0_127 = arith.constant 0 : index
    %c0_128 = arith.constant 0 : index
    %383 = vector.load %arg14[%382, %c0_127, %c0_128] : memref<8x8x128xf32, #tpu.memory_space<vmem>>, vector<1x8x128xf32>
    %384 = vector.shape_cast %383 : vector<1x8x128xf32> to vector<8x128xf32>
    %cst_129 = arith.constant dense<0.000000e+00> : vector<8x128xf32>
    %385 = tpu.matmul %342, %26, %cst_129 {dimension_numbers = #tpu.dot_dimension_numbers<[1], [0], [0], [1], [0, 0, 1, 1], [], []>} : vector<8x32xf32>, vector<32x128xf32>, vector<8x128xf32> -> vector<8x128xf32>
    %386 = arith.addf %384, %385 : vector<8x128xf32>
    %387 = vector.extract_strided_slice %386 {offsets = [0, 0], sizes = [8, 32], strides = [1, 1]} : vector<8x128xf32> to vector<8x32xf32>
    %388 = arith.negf %387 : vector<8x32xf32>
    %389 = math.exp %388 : vector<8x32xf32>
    %cst_130 = arith.constant 1.000000e+00 : f32
    %390 = vector.broadcast %cst_130 : f32 to vector<8x32xf32>
    %391 = arith.addf %390, %389 : vector<8x32xf32>
    %392 = arith.divf %390, %391 : vector<8x32xf32>
    %393 = vector.extract_strided_slice %386 {offsets = [0, 32], sizes = [8, 32], strides = [1, 1]} : vector<8x128xf32> to vector<8x32xf32>
    %394 = arith.negf %393 : vector<8x32xf32>
    %395 = math.exp %394 : vector<8x32xf32>
    %cst_131 = arith.constant 1.000000e+00 : f32
    %396 = vector.broadcast %cst_131 : f32 to vector<8x32xf32>
    %397 = arith.addf %396, %395 : vector<8x32xf32>
    %398 = arith.divf %396, %397 : vector<8x32xf32>
    %399 = vector.extract_strided_slice %386 {offsets = [0, 64], sizes = [8, 32], strides = [1, 1]} : vector<8x128xf32> to vector<8x32xf32>
    %400 = math.tanh %399 : vector<8x32xf32>
    %401 = vector.extract_strided_slice %386 {offsets = [0, 96], sizes = [8, 32], strides = [1, 1]} : vector<8x128xf32> to vector<8x32xf32>
    %402 = arith.negf %401 : vector<8x32xf32>
    %403 = math.exp %402 : vector<8x32xf32>
    %cst_132 = arith.constant 1.000000e+00 : f32
    %404 = vector.broadcast %cst_132 : f32 to vector<8x32xf32>
    %405 = arith.addf %404, %403 : vector<8x32xf32>
    %406 = arith.divf %404, %405 : vector<8x32xf32>
    %407 = arith.mulf %398, %340 : vector<8x32xf32>
    %408 = arith.mulf %392, %400 : vector<8x32xf32>
    %409 = arith.addf %407, %408 : vector<8x32xf32>
    %410 = math.tanh %409 : vector<8x32xf32>
    %411 = arith.mulf %406, %410 : vector<8x32xf32>
    %412 = arith.index_cast %c5_i32 : i32 to index
    %c0_133 = arith.constant 0 : index
    %c0_134 = arith.constant 0 : index
    %413 = vector.load %arg8[%412, %c0_133, %c0_134] : memref<8x8x32xf32, #tpu.memory_space<vmem>>, vector<1x8x32xf32>
    %414 = vector.shape_cast %413 : vector<1x8x32xf32> to vector<8x32xf32>
    %415 = vector.shape_cast %411 : vector<8x32xf32> to vector<1x8x32xf32>
    tpu.vector_store %arg8[%412, %c0_133, %c0_134], %415 {strides = array<i32>} : memref<8x8x32xf32, #tpu.memory_space<vmem>>, vector<1x8x32xf32>,
    %c7_i32_135 = arith.constant 7 : i32
    %416 = arith.subi %c7_i32_135, %c5_i32 : i32
    %417 = arith.index_cast %416 : i32 to index
    %c0_136 = arith.constant 0 : index
    %c0_137 = arith.constant 0 : index
    %418 = vector.load %arg15[%417, %c0_136, %c0_137] : memref<8x8x128xf32, #tpu.memory_space<vmem>>, vector<1x8x128xf32>
    %419 = vector.shape_cast %418 : vector<1x8x128xf32> to vector<8x128xf32>
    %cst_138 = arith.constant dense<0.000000e+00> : vector<8x128xf32>
    %420 = tpu.matmul %377, %28, %cst_138 {dimension_numbers = #tpu.dot_dimension_numbers<[1], [0], [0], [1], [0, 0, 1, 1], [], []>} : vector<8x32xf32>, vector<32x128xf32>, vector<8x128xf32> -> vector<8x128xf32>
    %421 = arith.addf %419, %420 : vector<8x128xf32>
    %422 = vector.extract_strided_slice %421 {offsets = [0, 0], sizes = [8, 32], strides = [1, 1]} : vector<8x128xf32> to vector<8x32xf32>
    %423 = arith.negf %422 : vector<8x32xf32>
    %424 = math.exp %423 : vector<8x32xf32>
    %cst_139 = arith.constant 1.000000e+00 : f32
    %425 = vector.broadcast %cst_139 : f32 to vector<8x32xf32>
    %426 = arith.addf %425, %424 : vector<8x32xf32>
    %427 = arith.divf %425, %426 : vector<8x32xf32>
    %428 = vector.extract_strided_slice %421 {offsets = [0, 32], sizes = [8, 32], strides = [1, 1]} : vector<8x128xf32> to vector<8x32xf32>
    %429 = arith.negf %428 : vector<8x32xf32>
    %430 = math.exp %429 : vector<8x32xf32>
    %cst_140 = arith.constant 1.000000e+00 : f32
    %431 = vector.broadcast %cst_140 : f32 to vector<8x32xf32>
    %432 = arith.addf %431, %430 : vector<8x32xf32>
    %433 = arith.divf %431, %432 : vector<8x32xf32>
    %434 = vector.extract_strided_slice %421 {offsets = [0, 64], sizes = [8, 32], strides = [1, 1]} : vector<8x128xf32> to vector<8x32xf32>
    %435 = math.tanh %434 : vector<8x32xf32>
    %436 = vector.extract_strided_slice %421 {offsets = [0, 96], sizes = [8, 32], strides = [1, 1]} : vector<8x128xf32> to vector<8x32xf32>
    %437 = arith.negf %436 : vector<8x32xf32>
    %438 = math.exp %437 : vector<8x32xf32>
    %cst_141 = arith.constant 1.000000e+00 : f32
    %439 = vector.broadcast %cst_141 : f32 to vector<8x32xf32>
    %440 = arith.addf %439, %438 : vector<8x32xf32>
    %441 = arith.divf %439, %440 : vector<8x32xf32>
    %442 = arith.mulf %433, %375 : vector<8x32xf32>
    %443 = arith.mulf %427, %435 : vector<8x32xf32>
    %444 = arith.addf %442, %443 : vector<8x32xf32>
    %445 = math.tanh %444 : vector<8x32xf32>
    %446 = arith.mulf %441, %445 : vector<8x32xf32>
    %447 = arith.index_cast %416 : i32 to index
    %c0_142 = arith.constant 0 : index
    %c0_143 = arith.constant 0 : index
    %448 = vector.load %arg9[%447, %c0_142, %c0_143] : memref<8x8x32xf32, #tpu.memory_space<vmem>>, vector<1x8x32xf32>
    %449 = vector.shape_cast %448 : vector<1x8x32xf32> to vector<8x32xf32>
    %450 = vector.shape_cast %446 : vector<8x32xf32> to vector<1x8x32xf32>
    tpu.vector_store %arg9[%447, %c0_142, %c0_143], %450 {strides = array<i32>} : memref<8x8x32xf32, #tpu.memory_space<vmem>>, vector<1x8x32xf32>,
    %c6_i32 = arith.constant 6 : i32
    %451 = arith.index_cast %c6_i32 : i32 to index
    %c0_144 = arith.constant 0 : index
    %c0_145 = arith.constant 0 : index
    %452 = vector.load %arg14[%451, %c0_144, %c0_145] : memref<8x8x128xf32, #tpu.memory_space<vmem>>, vector<1x8x128xf32>
    %453 = vector.shape_cast %452 : vector<1x8x128xf32> to vector<8x128xf32>
    %cst_146 = arith.constant dense<0.000000e+00> : vector<8x128xf32>
    %454 = tpu.matmul %411, %26, %cst_146 {dimension_numbers = #tpu.dot_dimension_numbers<[1], [0], [0], [1], [0, 0, 1, 1], [], []>} : vector<8x32xf32>, vector<32x128xf32>, vector<8x128xf32> -> vector<8x128xf32>
    %455 = arith.addf %453, %454 : vector<8x128xf32>
    %456 = vector.extract_strided_slice %455 {offsets = [0, 0], sizes = [8, 32], strides = [1, 1]} : vector<8x128xf32> to vector<8x32xf32>
    %457 = arith.negf %456 : vector<8x32xf32>
    %458 = math.exp %457 : vector<8x32xf32>
    %cst_147 = arith.constant 1.000000e+00 : f32
    %459 = vector.broadcast %cst_147 : f32 to vector<8x32xf32>
    %460 = arith.addf %459, %458 : vector<8x32xf32>
    %461 = arith.divf %459, %460 : vector<8x32xf32>
    %462 = vector.extract_strided_slice %455 {offsets = [0, 32], sizes = [8, 32], strides = [1, 1]} : vector<8x128xf32> to vector<8x32xf32>
    %463 = arith.negf %462 : vector<8x32xf32>
    %464 = math.exp %463 : vector<8x32xf32>
    %cst_148 = arith.constant 1.000000e+00 : f32
    %465 = vector.broadcast %cst_148 : f32 to vector<8x32xf32>
    %466 = arith.addf %465, %464 : vector<8x32xf32>
    %467 = arith.divf %465, %466 : vector<8x32xf32>
    %468 = vector.extract_strided_slice %455 {offsets = [0, 64], sizes = [8, 32], strides = [1, 1]} : vector<8x128xf32> to vector<8x32xf32>
    %469 = math.tanh %468 : vector<8x32xf32>
    %470 = vector.extract_strided_slice %455 {offsets = [0, 96], sizes = [8, 32], strides = [1, 1]} : vector<8x128xf32> to vector<8x32xf32>
    %471 = arith.negf %470 : vector<8x32xf32>
    %472 = math.exp %471 : vector<8x32xf32>
    %cst_149 = arith.constant 1.000000e+00 : f32
    %473 = vector.broadcast %cst_149 : f32 to vector<8x32xf32>
    %474 = arith.addf %473, %472 : vector<8x32xf32>
    %475 = arith.divf %473, %474 : vector<8x32xf32>
    %476 = arith.mulf %467, %409 : vector<8x32xf32>
    %477 = arith.mulf %461, %469 : vector<8x32xf32>
    %478 = arith.addf %476, %477 : vector<8x32xf32>
    %479 = math.tanh %478 : vector<8x32xf32>
    %480 = arith.mulf %475, %479 : vector<8x32xf32>
    %481 = arith.index_cast %c6_i32 : i32 to index
    %c0_150 = arith.constant 0 : index
    %c0_151 = arith.constant 0 : index
    %482 = vector.load %arg8[%481, %c0_150, %c0_151] : memref<8x8x32xf32, #tpu.memory_space<vmem>>, vector<1x8x32xf32>
    %483 = vector.shape_cast %482 : vector<1x8x32xf32> to vector<8x32xf32>
    %484 = vector.shape_cast %480 : vector<8x32xf32> to vector<1x8x32xf32>
    tpu.vector_store %arg8[%481, %c0_150, %c0_151], %484 {strides = array<i32>} : memref<8x8x32xf32, #tpu.memory_space<vmem>>, vector<1x8x32xf32>,
    %c7_i32_152 = arith.constant 7 : i32
    %485 = arith.subi %c7_i32_152, %c6_i32 : i32
    %486 = arith.index_cast %485 : i32 to index
    %c0_153 = arith.constant 0 : index
    %c0_154 = arith.constant 0 : index
    %487 = vector.load %arg15[%486, %c0_153, %c0_154] : memref<8x8x128xf32, #tpu.memory_space<vmem>>, vector<1x8x128xf32>
    %488 = vector.shape_cast %487 : vector<1x8x128xf32> to vector<8x128xf32>
    %cst_155 = arith.constant dense<0.000000e+00> : vector<8x128xf32>
    %489 = tpu.matmul %446, %28, %cst_155 {dimension_numbers = #tpu.dot_dimension_numbers<[1], [0], [0], [1], [0, 0, 1, 1], [], []>} : vector<8x32xf32>, vector<32x128xf32>, vector<8x128xf32> -> vector<8x128xf32>
    %490 = arith.addf %488, %489 : vector<8x128xf32>
    %491 = vector.extract_strided_slice %490 {offsets = [0, 0], sizes = [8, 32], strides = [1, 1]} : vector<8x128xf32> to vector<8x32xf32>
    %492 = arith.negf %491 : vector<8x32xf32>
    %493 = math.exp %492 : vector<8x32xf32>
    %cst_156 = arith.constant 1.000000e+00 : f32
    %494 = vector.broadcast %cst_156 : f32 to vector<8x32xf32>
    %495 = arith.addf %494, %493 : vector<8x32xf32>
    %496 = arith.divf %494, %495 : vector<8x32xf32>
    %497 = vector.extract_strided_slice %490 {offsets = [0, 32], sizes = [8, 32], strides = [1, 1]} : vector<8x128xf32> to vector<8x32xf32>
    %498 = arith.negf %497 : vector<8x32xf32>
    %499 = math.exp %498 : vector<8x32xf32>
    %cst_157 = arith.constant 1.000000e+00 : f32
    %500 = vector.broadcast %cst_157 : f32 to vector<8x32xf32>
    %501 = arith.addf %500, %499 : vector<8x32xf32>
    %502 = arith.divf %500, %501 : vector<8x32xf32>
    %503 = vector.extract_strided_slice %490 {offsets = [0, 64], sizes = [8, 32], strides = [1, 1]} : vector<8x128xf32> to vector<8x32xf32>
    %504 = math.tanh %503 : vector<8x32xf32>
    %505 = vector.extract_strided_slice %490 {offsets = [0, 96], sizes = [8, 32], strides = [1, 1]} : vector<8x128xf32> to vector<8x32xf32>
    %506 = arith.negf %505 : vector<8x32xf32>
    %507 = math.exp %506 : vector<8x32xf32>
    %cst_158 = arith.constant 1.000000e+00 : f32
    %508 = vector.broadcast %cst_158 : f32 to vector<8x32xf32>
    %509 = arith.addf %508, %507 : vector<8x32xf32>
    %510 = arith.divf %508, %509 : vector<8x32xf32>
    %511 = arith.mulf %502, %444 : vector<8x32xf32>
    %512 = arith.mulf %496, %504 : vector<8x32xf32>
    %513 = arith.addf %511, %512 : vector<8x32xf32>
    %514 = math.tanh %513 : vector<8x32xf32>
    %515 = arith.mulf %510, %514 : vector<8x32xf32>
    %516 = arith.index_cast %485 : i32 to index
    %c0_159 = arith.constant 0 : index
    %c0_160 = arith.constant 0 : index
    %517 = vector.load %arg9[%516, %c0_159, %c0_160] : memref<8x8x32xf32, #tpu.memory_space<vmem>>, vector<1x8x32xf32>
    %518 = vector.shape_cast %517 : vector<1x8x32xf32> to vector<8x32xf32>
    %519 = vector.shape_cast %515 : vector<8x32xf32> to vector<1x8x32xf32>
    tpu.vector_store %arg9[%516, %c0_159, %c0_160], %519 {strides = array<i32>} : memref<8x8x32xf32, #tpu.memory_space<vmem>>, vector<1x8x32xf32>,
    %c7_i32_161 = arith.constant 7 : i32
    %520 = arith.index_cast %c7_i32_161 : i32 to index
    %c0_162 = arith.constant 0 : index
    %c0_163 = arith.constant 0 : index
    %521 = vector.load %arg14[%520, %c0_162, %c0_163] : memref<8x8x128xf32, #tpu.memory_space<vmem>>, vector<1x8x128xf32>
    %522 = vector.shape_cast %521 : vector<1x8x128xf32> to vector<8x128xf32>
    %cst_164 = arith.constant dense<0.000000e+00> : vector<8x128xf32>
    %523 = tpu.matmul %480, %26, %cst_164 {dimension_numbers = #tpu.dot_dimension_numbers<[1], [0], [0], [1], [0, 0, 1, 1], [], []>} : vector<8x32xf32>, vector<32x128xf32>, vector<8x128xf32> -> vector<8x128xf32>
    %524 = arith.addf %522, %523 : vector<8x128xf32>
    %525 = vector.extract_strided_slice %524 {offsets = [0, 0], sizes = [8, 32], strides = [1, 1]} : vector<8x128xf32> to vector<8x32xf32>
    %526 = arith.negf %525 : vector<8x32xf32>
    %527 = math.exp %526 : vector<8x32xf32>
    %cst_165 = arith.constant 1.000000e+00 : f32
    %528 = vector.broadcast %cst_165 : f32 to vector<8x32xf32>
    %529 = arith.addf %528, %527 : vector<8x32xf32>
    %530 = arith.divf %528, %529 : vector<8x32xf32>
    %531 = vector.extract_strided_slice %524 {offsets = [0, 32], sizes = [8, 32], strides = [1, 1]} : vector<8x128xf32> to vector<8x32xf32>
    %532 = arith.negf %531 : vector<8x32xf32>
    %533 = math.exp %532 : vector<8x32xf32>
    %cst_166 = arith.constant 1.000000e+00 : f32
    %534 = vector.broadcast %cst_166 : f32 to vector<8x32xf32>
    %535 = arith.addf %534, %533 : vector<8x32xf32>
    %536 = arith.divf %534, %535 : vector<8x32xf32>
    %537 = vector.extract_strided_slice %524 {offsets = [0, 64], sizes = [8, 32], strides = [1, 1]} : vector<8x128xf32> to vector<8x32xf32>
    %538 = math.tanh %537 : vector<8x32xf32>
    %539 = vector.extract_strided_slice %524 {offsets = [0, 96], sizes = [8, 32], strides = [1, 1]} : vector<8x128xf32> to vector<8x32xf32>
    %540 = arith.negf %539 : vector<8x32xf32>
    %541 = math.exp %540 : vector<8x32xf32>
    %cst_167 = arith.constant 1.000000e+00 : f32
    %542 = vector.broadcast %cst_167 : f32 to vector<8x32xf32>
    %543 = arith.addf %542, %541 : vector<8x32xf32>
    %544 = arith.divf %542, %543 : vector<8x32xf32>
    %545 = arith.mulf %536, %478 : vector<8x32xf32>
    %546 = arith.mulf %530, %538 : vector<8x32xf32>
    %547 = arith.addf %545, %546 : vector<8x32xf32>
    %548 = math.tanh %547 : vector<8x32xf32>
    %549 = arith.mulf %544, %548 : vector<8x32xf32>
    %550 = arith.index_cast %c7_i32_161 : i32 to index
    %c0_168 = arith.constant 0 : index
    %c0_169 = arith.constant 0 : index
    %551 = vector.load %arg8[%550, %c0_168, %c0_169] : memref<8x8x32xf32, #tpu.memory_space<vmem>>, vector<1x8x32xf32>
    %552 = vector.shape_cast %551 : vector<1x8x32xf32> to vector<8x32xf32>
    %553 = vector.shape_cast %549 : vector<8x32xf32> to vector<1x8x32xf32>
    tpu.vector_store %arg8[%550, %c0_168, %c0_169], %553 {strides = array<i32>} : memref<8x8x32xf32, #tpu.memory_space<vmem>>, vector<1x8x32xf32>,
    %c7_i32_170 = arith.constant 7 : i32
    %554 = arith.subi %c7_i32_170, %c7_i32_161 : i32
    %555 = arith.index_cast %554 : i32 to index
    %c0_171 = arith.constant 0 : index
    %c0_172 = arith.constant 0 : index
    %556 = vector.load %arg15[%555, %c0_171, %c0_172] : memref<8x8x128xf32, #tpu.memory_space<vmem>>, vector<1x8x128xf32>
    %557 = vector.shape_cast %556 : vector<1x8x128xf32> to vector<8x128xf32>
    %cst_173 = arith.constant dense<0.000000e+00> : vector<8x128xf32>
    %558 = tpu.matmul %515, %28, %cst_173 {dimension_numbers = #tpu.dot_dimension_numbers<[1], [0], [0], [1], [0, 0, 1, 1], [], []>} : vector<8x32xf32>, vector<32x128xf32>, vector<8x128xf32> -> vector<8x128xf32>
    %559 = arith.addf %557, %558 : vector<8x128xf32>
    %560 = vector.extract_strided_slice %559 {offsets = [0, 0], sizes = [8, 32], strides = [1, 1]} : vector<8x128xf32> to vector<8x32xf32>
    %561 = arith.negf %560 : vector<8x32xf32>
    %562 = math.exp %561 : vector<8x32xf32>
    %cst_174 = arith.constant 1.000000e+00 : f32
    %563 = vector.broadcast %cst_174 : f32 to vector<8x32xf32>
    %564 = arith.addf %563, %562 : vector<8x32xf32>
    %565 = arith.divf %563, %564 : vector<8x32xf32>
    %566 = vector.extract_strided_slice %559 {offsets = [0, 32], sizes = [8, 32], strides = [1, 1]} : vector<8x128xf32> to vector<8x32xf32>
    %567 = arith.negf %566 : vector<8x32xf32>
    %568 = math.exp %567 : vector<8x32xf32>
    %cst_175 = arith.constant 1.000000e+00 : f32
    %569 = vector.broadcast %cst_175 : f32 to vector<8x32xf32>
    %570 = arith.addf %569, %568 : vector<8x32xf32>
    %571 = arith.divf %569, %570 : vector<8x32xf32>
    %572 = vector.extract_strided_slice %559 {offsets = [0, 64], sizes = [8, 32], strides = [1, 1]} : vector<8x128xf32> to vector<8x32xf32>
    %573 = math.tanh %572 : vector<8x32xf32>
    %574 = vector.extract_strided_slice %559 {offsets = [0, 96], sizes = [8, 32], strides = [1, 1]} : vector<8x128xf32> to vector<8x32xf32>
    %575 = arith.negf %574 : vector<8x32xf32>
    %576 = math.exp %575 : vector<8x32xf32>
    %cst_176 = arith.constant 1.000000e+00 : f32
    %577 = vector.broadcast %cst_176 : f32 to vector<8x32xf32>
    %578 = arith.addf %577, %576 : vector<8x32xf32>
    %579 = arith.divf %577, %578 : vector<8x32xf32>
    %580 = arith.mulf %571, %513 : vector<8x32xf32>
    %581 = arith.mulf %565, %573 : vector<8x32xf32>
    %582 = arith.addf %580, %581 : vector<8x32xf32>
    %583 = math.tanh %582 : vector<8x32xf32>
    %584 = arith.mulf %579, %583 : vector<8x32xf32>
    %585 = arith.index_cast %554 : i32 to index
    %c0_177 = arith.constant 0 : index
    %c0_178 = arith.constant 0 : index
    %586 = vector.load %arg9[%585, %c0_177, %c0_178] : memref<8x8x32xf32, #tpu.memory_space<vmem>>, vector<1x8x32xf32>
    %587 = vector.shape_cast %586 : vector<1x8x32xf32> to vector<8x32xf32>
    %588 = vector.shape_cast %584 : vector<8x32xf32> to vector<1x8x32xf32>
    tpu.vector_store %arg9[%585, %c0_177, %c0_178], %588 {strides = array<i32>} : memref<8x8x32xf32, #tpu.memory_space<vmem>>, vector<1x8x32xf32>,
    %c8_i32 = arith.constant 8 : i32
    %c0_179 = arith.constant 0 : index
    %c0_180 = arith.constant 0 : index
    %c0_181 = arith.constant 0 : index
    %589 = vector.load %arg12[%c0_179, %c0_180, %c0_181] : memref<2x8x32xf32, #tpu.memory_space<vmem>>, vector<1x8x32xf32>
    %590 = vector.shape_cast %589 : vector<1x8x32xf32> to vector<8x32xf32>
    %591 = vector.shape_cast %549 : vector<8x32xf32> to vector<1x8x32xf32>
    tpu.vector_store %arg12[%c0_179, %c0_180, %c0_181], %591 {strides = array<i32>} : memref<2x8x32xf32, #tpu.memory_space<vmem>>, vector<1x8x32xf32>,
    %c0_182 = arith.constant 0 : index
    %c0_183 = arith.constant 0 : index
    %c0_184 = arith.constant 0 : index
    %592 = vector.load %arg13[%c0_182, %c0_183, %c0_184] : memref<2x8x32xf32, #tpu.memory_space<vmem>>, vector<1x8x32xf32>
    %593 = vector.shape_cast %592 : vector<1x8x32xf32> to vector<8x32xf32>
    %594 = vector.shape_cast %547 : vector<8x32xf32> to vector<1x8x32xf32>
    tpu.vector_store %arg13[%c0_182, %c0_183, %c0_184], %594 {strides = array<i32>} : memref<2x8x32xf32, #tpu.memory_space<vmem>>, vector<1x8x32xf32>,
    %c1_185 = arith.constant 1 : index
    %c0_186 = arith.constant 0 : index
    %c0_187 = arith.constant 0 : index
    %595 = vector.load %arg12[%c1_185, %c0_186, %c0_187] : memref<2x8x32xf32, #tpu.memory_space<vmem>>, vector<1x8x32xf32>
    %596 = vector.shape_cast %595 : vector<1x8x32xf32> to vector<8x32xf32>
    %597 = vector.shape_cast %584 : vector<8x32xf32> to vector<1x8x32xf32>
    tpu.vector_store %arg12[%c1_185, %c0_186, %c0_187], %597 {strides = array<i32>} : memref<2x8x32xf32, #tpu.memory_space<vmem>>, vector<1x8x32xf32>,
    %c1_188 = arith.constant 1 : index
    %c0_189 = arith.constant 0 : index
    %c0_190 = arith.constant 0 : index
    %598 = vector.load %arg13[%c1_188, %c0_189, %c0_190] : memref<2x8x32xf32, #tpu.memory_space<vmem>>, vector<1x8x32xf32>
    %599 = vector.shape_cast %598 : vector<1x8x32xf32> to vector<8x32xf32>
    %600 = vector.shape_cast %582 : vector<8x32xf32> to vector<1x8x32xf32>
    tpu.vector_store %arg13[%c1_188, %c0_189, %c0_190], %600 {strides = array<i32>} : memref<2x8x32xf32, #tpu.memory_space<vmem>>, vector<1x8x32xf32>,
    %c0_i32_191 = arith.constant 0 : i32
    %601 = arith.cmpi eq, %arg0, %c0_i32_191 : i32
    %602 = arith.extui %601 : i1 to i32
    %c0_i32_192 = arith.constant 0 : i32
    %603 = arith.cmpi ne, %602, %c0_i32_192 : i32
    scf.if %603 {
      %c0_193 = arith.constant 0 : index
      %c0_194 = arith.constant 0 : index
      %c0_195 = arith.constant 0 : index
      %604 = vector.load %arg12[%c0_193, %c0_194, %c0_195] : memref<2x8x32xf32, #tpu.memory_space<vmem>>, vector<2x8x32xf32>
      %c0_196 = arith.constant 0 : index
      %c0_197 = arith.constant 0 : index
      %c0_198 = arith.constant 0 : index
      %605 = vector.load %arg10[%c0_196, %c0_197, %c0_198] : memref<2x8x32xf32, #tpu.memory_space<vmem>>, vector<2x8x32xf32>
      tpu.vector_store %arg10[%c0_196, %c0_197, %c0_198], %604 {strides = array<i32>} : memref<2x8x32xf32, #tpu.memory_space<vmem>>, vector<2x8x32xf32>,
      %c0_199 = arith.constant 0 : index
      %c0_200 = arith.constant 0 : index
      %c0_201 = arith.constant 0 : index
      %606 = vector.load %arg13[%c0_199, %c0_200, %c0_201] : memref<2x8x32xf32, #tpu.memory_space<vmem>>, vector<2x8x32xf32>
      %c0_202 = arith.constant 0 : index
      %c0_203 = arith.constant 0 : index
      %c0_204 = arith.constant 0 : index
      %607 = vector.load %arg11[%c0_202, %c0_203, %c0_204] : memref<2x8x32xf32, #tpu.memory_space<vmem>>, vector<2x8x32xf32>
      tpu.vector_store %arg11[%c0_202, %c0_203, %c0_204], %606 {strides = array<i32>} : memref<2x8x32xf32, #tpu.memory_space<vmem>>, vector<2x8x32xf32>,
    } else {
    }
    return
  }
  func.func @transform_0(%arg0: i32) -> (i32, i32, i32) {
    %c0_i32 = arith.constant 0 : i32
    %c0_i32_0 = arith.constant 0 : i32
    %c0_i32_1 = arith.constant 0 : i32
    return %arg0, %c0_i32, %c0_i32_0 : i32, i32, i32
  }
  func.func @transform_1(%arg0: i32) -> (i32, i32, i32) {
    %c0_i32 = arith.constant 0 : i32
    %0 = arith.subi %c0_i32, %arg0 : i32
    %c0_i32_0 = arith.constant 0 : i32
    %c0_i32_1 = arith.constant 0 : i32
    %c0_i32_2 = arith.constant 0 : i32
    return %0, %c0_i32_0, %c0_i32_1 : i32, i32, i32
  }
  func.func @transform_2(%arg0: i32) -> (i32, i32, i32) {
    %c0_i32 = arith.constant 0 : i32
    %c0_i32_0 = arith.constant 0 : i32
    %c0_i32_1 = arith.constant 0 : i32
    %c0_i32_2 = arith.constant 0 : i32
    return %c0_i32, %c0_i32_0, %c0_i32_1 : i32, i32, i32
  }
  func.func @transform_3(%arg0: i32) -> (i32, i32, i32) {
    %c0_i32 = arith.constant 0 : i32
    %c0_i32_0 = arith.constant 0 : i32
    %c0_i32_1 = arith.constant 0 : i32
    %c0_i32_2 = arith.constant 0 : i32
    return %c0_i32, %c0_i32_0, %c0_i32_1 : i32, i32, i32
  }
  func.func @transform_4(%arg0: i32) -> (i32, i32, i32) {
    %c0_i32 = arith.constant 0 : i32
    %c0_i32_0 = arith.constant 0 : i32
    %c0_i32_1 = arith.constant 0 : i32
    %c0_i32_2 = arith.constant 0 : i32
    return %c0_i32, %c0_i32_0, %c0_i32_1 : i32, i32, i32
  }
  func.func @transform_5(%arg0: i32) -> (i32, i32, i32) {
    %c0_i32 = arith.constant 0 : i32
    %c0_i32_0 = arith.constant 0 : i32
    %c0_i32_1 = arith.constant 0 : i32
    %c0_i32_2 = arith.constant 0 : i32
    return %c0_i32, %c0_i32_0, %c0_i32_1 : i32, i32, i32
  }
  func.func @transform_6(%arg0: i32) -> (i32, i32, i32) {
    %c0_i32 = arith.constant 0 : i32
    %c0_i32_0 = arith.constant 0 : i32
    %c0_i32_1 = arith.constant 0 : i32
    %c0_i32_2 = arith.constant 0 : i32
    return %c0_i32, %c0_i32_0, %c0_i32_1 : i32, i32, i32
  }
  func.func @transform_7(%arg0: i32) -> (i32, i32, i32) {
    %c0_i32 = arith.constant 0 : i32
    %c0_i32_0 = arith.constant 0 : i32
    %c0_i32_1 = arith.constant 0 : i32
    return %arg0, %c0_i32, %c0_i32_0 : i32, i32, i32
  }
  func.func @transform_8(%arg0: i32) -> (i32, i32, i32) {
    %c0_i32 = arith.constant 0 : i32
    %0 = arith.subi %c0_i32, %arg0 : i32
    %c0_i32_0 = arith.constant 0 : i32
    %c0_i32_1 = arith.constant 0 : i32
    %c0_i32_2 = arith.constant 0 : i32
    return %0, %c0_i32_0, %c0_i32_1 : i32, i32, i32
  }
  func.func @transform_9(%arg0: i32) -> (i32, i32, i32) {
    %c0_i32 = arith.constant 0 : i32
    %c0_i32_0 = arith.constant 0 : i32
    %c0_i32_1 = arith.constant 0 : i32
    %c0_i32_2 = arith.constant 0 : i32
    return %c0_i32, %c0_i32_0, %c0_i32_1 : i32, i32, i32
  }
  func.func @transform_10(%arg0: i32) -> (i32, i32, i32) {
    %c0_i32 = arith.constant 0 : i32
    %c0_i32_0 = arith.constant 0 : i32
    %c0_i32_1 = arith.constant 0 : i32
    %c0_i32_2 = arith.constant 0 : i32
    return %c0_i32, %c0_i32_0, %c0_i32_1 : i32, i32, i32
  }
}

module attributes {stable_mosaic.version = 11 : i64} {
  func.func @kernel(%arg0: i32, %arg1: memref<8x8x64xf32, #tpu.memory_space<vmem>>, %arg2: memref<8x8x64xf32, #tpu.memory_space<vmem>>, %arg3: memref<2x64x128xf32, #tpu.memory_space<vmem>>, %arg4: memref<2x32x128xf32, #tpu.memory_space<vmem>>, %arg5: memref<2x1x128xf32, #tpu.memory_space<vmem>>, %arg6: memref<2x8x32xf32, #tpu.memory_space<vmem>>, %arg7: memref<2x8x32xf32, #tpu.memory_space<vmem>>, %arg8: memref<8x8x32xf32, #tpu.memory_space<vmem>>, %arg9: memref<8x8x32xf32, #tpu.memory_space<vmem>>, %arg10: memref<2x8x32xf32, #tpu.memory_space<vmem>>, %arg11: memref<2x8x32xf32, #tpu.memory_space<vmem>>, %arg12: memref<2x8x32xf32, #tpu.memory_space<vmem>>, %arg13: memref<2x8x32xf32, #tpu.memory_space<vmem>>, %arg14: memref<8x8x128xf32, #tpu.memory_space<vmem>>, %arg15: memref<8x8x128xf32, #tpu.memory_space<vmem>>) attributes {dimension_semantics = [#tpu.dimension_semantics<arbitrary>], iteration_bounds = array<i64: 1>, scalar_prefetch = 0 : i64, scratch_operands = 4 : i64, tpu.core_type = #tpu.core_type<tc>, window_params = [{transform_indices = @transform_0, window_bounds = array<i64: 8, 8, 64>}, {transform_indices = @transform_1, window_bounds = array<i64: 8, 8, 64>}, {pipeline_mode = #tpu.pipeline_mode<synchronous>, transform_indices = @transform_2, window_bounds = array<i64: 2, 64, 128>}, {pipeline_mode = #tpu.pipeline_mode<synchronous>, transform_indices = @transform_3, window_bounds = array<i64: 2, 32, 128>}, {pipeline_mode = #tpu.pipeline_mode<synchronous>, transform_indices = @transform_4, window_bounds = array<i64: 2, 1, 128>}, {pipeline_mode = #tpu.pipeline_mode<synchronous>, transform_indices = @transform_5, window_bounds = array<i64: 2, 8, 32>}, {pipeline_mode = #tpu.pipeline_mode<synchronous>, transform_indices = @transform_6, window_bounds = array<i64: 2, 8, 32>}, {transform_indices = @transform_7, window_bounds = array<i64: 8, 8, 32>}, {transform_indices = @transform_8, window_bounds = array<i64: 8, 8, 32>}, {pipeline_mode = #tpu.pipeline_mode<synchronous>, transform_indices = @transform_9, window_bounds = array<i64: 2, 8, 32>}, {pipeline_mode = #tpu.pipeline_mode<synchronous>, transform_indices = @transform_10, window_bounds = array<i64: 2, 8, 32>}]} {
    %c0_i32 = arith.constant 0 : i32
    %0 = arith.cmpi eq, %arg0, %c0_i32 : i32
    %1 = arith.extui %0 : i1 to i32
    %c0_i32_0 = arith.constant 0 : i32
    %2 = arith.cmpi ne, %1, %c0_i32_0 : i32
    scf.if %2 {
      %c0_193 = arith.constant 0 : index
      %c0_194 = arith.constant 0 : index
      %c0_195 = arith.constant 0 : index
      %604 = vector.load %arg6[%c0_193, %c0_194, %c0_195] : memref<2x8x32xf32, #tpu.memory_space<vmem>>, vector<2x8x32xf32>
      %c0_196 = arith.constant 0 : index
      %c0_197 = arith.constant 0 : index
      %c0_198 = arith.constant 0 : index
      %605 = vector.load %arg12[%c0_196, %c0_197, %c0_198] : memref<2x8x32xf32, #tpu.memory_space<vmem>>, vector<2x8x32xf32>
      tpu.vector_store %arg12[%c0_196, %c0_197, %c0_198], %604 {strides = array<i32>} : memref<2x8x32xf32, #tpu.memory_space<vmem>>, vector<2x8x32xf32>,
      %c0_199 = arith.constant 0 : index
      %c0_200 = arith.constant 0 : index
      %c0_201 = arith.constant 0 : index
      %606 = vector.load %arg7[%c0_199, %c0_200, %c0_201] : memref<2x8x32xf32, #tpu.memory_space<vmem>>, vector<2x8x32xf32>
      %c0_202 = arith.constant 0 : index
      %c0_203 = arith.constant 0 : index
      %c0_204 = arith.constant 0 : index
      %607 = vector.load %arg13[%c0_202, %c0_203, %c0_204] : memref<2x8x32xf32, #tpu.memory_space<vmem>>, vector<2x8x32xf32>
      tpu.vector_store %arg13[%c0_202, %c0_203, %c0_204], %606 {strides = array<i32>} : memref<2x8x32xf32, #tpu.memory_space<vmem>>, vector<2x8x32xf32>,
    } else {
    }
    %c0 = arith.constant 0 : index
    %c0_1 = arith.constant 0 : index
    %c0_2 = arith.constant 0 : index
    %3 = vector.load %arg1[%c0, %c0_1, %c0_2] : memref<8x8x64xf32, #tpu.memory_space<vmem>>, vector<8x8x64xf32>
    %4 = vector.shape_cast %3 : vector<8x8x64xf32> to vector<64x64xf32>
    %c0_3 = arith.constant 0 : index
    %c0_4 = arith.constant 0 : index
    %c0_5 = arith.constant 0 : index
    %5 = vector.load %arg3[%c0_3, %c0_4, %c0_5] : memref<2x64x128xf32, #tpu.memory_space<vmem>>, vector<1x64x128xf32>
    %6 = vector.shape_cast %5 : vector<1x64x128xf32> to vector<64x128xf32>
    %cst = arith.constant dense<0.000000e+00> : vector<64x128xf32>
    %7 = tpu.matmul %4, %6, %cst {dimension_numbers = #tpu.dot_dimension_numbers<[1], [0], [0], [1], [0, 0, 1, 1], [], []>} : vector<64x64xf32>, vector<64x128xf32>, vector<64x128xf32> -> vector<64x128xf32>
    %c0_6 = arith.constant 0 : index
    %c0_7 = arith.constant 0 : index
    %c0_8 = arith.constant 0 : index
    %8 = vector.load %arg5[%c0_6, %c0_7, %c0_8] : memref<2x1x128xf32, #tpu.memory_space<vmem>>, vector<1x1x128xf32>
    %9 = vector.shape_cast %8 : vector<1x1x128xf32> to vector<1x128xf32>
    %10 = vector.broadcast %9 : vector<1x128xf32> to vector<64x128xf32>
    %11 = arith.addf %7, %10 : vector<64x128xf32>
    %12 = vector.shape_cast %11 : vector<64x128xf32> to vector<8x8x128xf32>
    %c0_9 = arith.constant 0 : index
    %c0_10 = arith.constant 0 : index
    %c0_11 = arith.constant 0 : index
    %13 = vector.load %arg14[%c0_9, %c0_10, %c0_11] : memref<8x8x128xf32, #tpu.memory_space<vmem>>, vector<8x8x128xf32>
    tpu.vector_store %arg14[%c0_9, %c0_10, %c0_11], %12 {strides = array<i32>} : memref<8x8x128xf32, #tpu.memory_space<vmem>>, vector<8x8x128xf32>,
    %c0_12 = arith.constant 0 : index
    %c0_13 = arith.constant 0 : index
    %c0_14 = arith.constant 0 : index
    %14 = vector.load %arg2[%c0_12, %c0_13, %c0_14] : memref<8x8x64xf32, #tpu.memory_space<vmem>>, vector<8x8x64xf32>
    %15 = vector.shape_cast %14 : vector<8x8x64xf32> to vector<64x64xf32>
    %c1 = arith.constant 1 : index
    %c0_15 = arith.constant 0 : index
    %c0_16 = arith.constant 0 : index
    %16 = vector.load %arg3[%c1, %c0_15, %c0_16] : memref<2x64x128xf32, #tpu.memory_space<vmem>>, vector<1x64x128xf32>
    %17 = vector.shape_cast %16 : vector<1x64x128xf32> to vector<64x128xf32>
    %cst_17 = arith.constant dense<0.000000e+00> : vector<64x128xf32>
    %18 = tpu.matmul %15, %17, %cst_17 {dimension_numbers = #tpu.dot_dimension_numbers<[1], [0], [0], [1], [0, 0, 1, 1], [], []>} : vector<64x64xf32>, vector<64x128xf32>, vector<64x128xf32> -> vector<64x128xf32>
    %c1_18 = arith.constant 1 : index
    %c0_19 = arith.constant 0 : index
    %c0_20 = arith.constant 0 : index
    %19 = vector.load %arg5[%c1_18, %c0_19, %c0_20] : memref<2x1x128xf32, #tpu.memory_space<vmem>>, vector<1x1x128xf32>
    %20 = vector.shape_cast %19 : vector<1x1x128xf32> to vector<1x128xf32>
    %21 = vector.broadcast %20 : vector<1x128xf32> to vector<64x128xf32>
    %22 = arith.addf %18, %21 : vector<64x128xf32>
    %23 = vector.shape_cast %22 : vector<64x128xf32> to vector<8x8x128xf32>
    %c0_21 = arith.constant 0 : index
    %c0_22 = arith.constant 0 : index
    %c0_23 = arith.constant 0 : index
    %24 = vector.load %arg15[%c0_21, %c0_22, %c0_23] : memref<8x8x128xf32, #tpu.memory_space<vmem>>, vector<8x8x128xf32>
    tpu.vector_store %arg15[%c0_21, %c0_22, %c0_23], %23 {strides = array<i32>} : memref<8x8x128xf32, #tpu.memory_space<vmem>>, vector<8x8x128xf32>,
    %c0_24 = arith.constant 0 : index
    %c0_25 = arith.constant 0 : index
    %c0_26 = arith.constant 0 : index
    %25 = vector.load %arg4[%c0_24, %c0_25, %c0_26] : memref<2x32x128xf32, #tpu.memory_space<vmem>>, vector<1x32x128xf32>
    %26 = vector.shape_cast %25 : vector<1x32x128xf32> to vector<32x128xf32>
    %c1_27 = arith.constant 1 : index
    %c0_28 = arith.constant 0 : index
    %c0_29 = arith.constant 0 : index
    %27 = vector.load %arg4[%c1_27, %c0_28, %c0_29] : memref<2x32x128xf32, #tpu.memory_space<vmem>>, vector<1x32x128xf32>
    %28 = vector.shape_cast %27 : vector<1x32x128xf32> to vector<32x128xf32>
    %c0_30 = arith.constant 0 : index
    %c0_31 = arith.constant 0 : index
    %c0_32 = arith.constant 0 : index
    %29 = vector.load %arg12[%c0_30, %c0_31, %c0_32] : memref<2x8x32xf32, #tpu.memory_space<vmem>>, vector<1x8x32xf32>
    %30 = vector.shape_cast %29 : vector<1x8x32xf32> to vector<8x32xf32>
    %c0_33 = arith.constant 0 : index
    %c0_34 = arith.constant 0 : index
    %c0_35 = arith.constant 0 : index
    %31 = vector.load %arg13[%c0_33, %c0_34, %c0_35] : memref<2x8x32xf32, #tpu.memory_space<vmem>>, vector<1x8x32xf32>
    %32 = vector.shape_cast %31 : vector<1x8x32xf32> to vector<8x32xf32>
    %c1_36 = arith.constant 1 : index
    %c0_37 = arith.constant 0 : index
    %c0_38 = arith.constant 0 : index
    %33 = vector.load %arg12[%c1_36, %c0_37, %c0_38] : memref<2x8x32xf32, #tpu.memory_space<vmem>>, vector<1x8x32xf32>
    %34 = vector.shape_cast %33 : vector<1x8x32xf32> to vector<8x32xf32>
    %c1_39 = arith.constant 1 : index
    %c0_40 = arith.constant 0 : index
    %c0_41 = arith.constant 0 : index
    %35 = vector.load %arg13[%c1_39, %c0_40, %c0_41] : memref<2x8x32xf32, #tpu.memory_space<vmem>>, vector<1x8x32xf32>
    %36 = vector.shape_cast %35 : vector<1x8x32xf32> to vector<8x32xf32>
    %c0_i32_42 = arith.constant 0 : i32
    %37 = arith.index_cast %c0_i32_42 : i32 to index
    %c0_43 = arith.constant 0 : index
    %c0_44 = arith.constant 0 : index
    %38 = vector.load %arg14[%37, %c0_43, %c0_44] : memref<8x8x128xf32, #tpu.memory_space<vmem>>, vector<1x8x128xf32>
    %39 = vector.shape_cast %38 : vector<1x8x128xf32> to vector<8x128xf32>
    %cst_45 = arith.constant dense<0.000000e+00> : vector<8x128xf32>
    %40 = tpu.matmul %30, %26, %cst_45 {dimension_numbers = #tpu.dot_dimension_numbers<[1], [0], [0], [1], [0, 0, 1, 1], [], []>} : vector<8x32xf32>, vector<32x128xf32>, vector<8x128xf32> -> vector<8x128xf32>
    %41 = arith.addf %39, %40 : vector<8x128xf32>
    %42 = vector.extract_strided_slice %41 {offsets = [0, 0], sizes = [8, 32], strides = [1, 1]} : vector<8x128xf32> to vector<8x32xf32>
    %43 = arith.negf %42 : vector<8x32xf32>
    %44 = math.exp %43 : vector<8x32xf32>
    %cst_46 = arith.constant 1.000000e+00 : f32
    %45 = vector.broadcast %cst_46 : f32 to vector<8x32xf32>
    %46 = arith.addf %45, %44 : vector<8x32xf32>
    %47 = arith.divf %45, %46 : vector<8x32xf32>
    %48 = vector.extract_strided_slice %41 {offsets = [0, 32], sizes = [8, 32], strides = [1, 1]} : vector<8x128xf32> to vector<8x32xf32>
    %49 = arith.negf %48 : vector<8x32xf32>
    %50 = math.exp %49 : vector<8x32xf32>
    %cst_47 = arith.constant 1.000000e+00 : f32
    %51 = vector.broadcast %cst_47 : f32 to vector<8x32xf32>
    %52 = arith.addf %51, %50 : vector<8x32xf32>
    %53 = arith.divf %51, %52 : vector<8x32xf32>
    %54 = vector.extract_strided_slice %41 {offsets = [0, 64], sizes = [8, 32], strides = [1, 1]} : vector<8x128xf32> to vector<8x32xf32>
    %55 = math.tanh %54 : vector<8x32xf32>
    %56 = vector.extract_strided_slice %41 {offsets = [0, 96], sizes = [8, 32], strides = [1, 1]} : vector<8x128xf32> to vector<8x32xf32>
    %57 = arith.negf %56 : vector<8x32xf32>
    %58 = math.exp %57 : vector<8x32xf32>
    %cst_48 = arith.constant 1.000000e+00 : f32
    %59 = vector.broadcast %cst_48 : f32 to vector<8x32xf32>
    %60 = arith.addf %59, %58 : vector<8x32xf32>
    %61 = arith.divf %59, %60 : vector<8x32xf32>
    %62 = arith.mulf %53, %32 : vector<8x32xf32>
    %63 = arith.mulf %47, %55 : vector<8x32xf32>
    %64 = arith.addf %62, %63 : vector<8x32xf32>
    %65 = math.tanh %64 : vector<8x32xf32>
    %66 = arith.mulf %61, %65 : vector<8x32xf32>
    %67 = arith.index_cast %c0_i32_42 : i32 to index
    %c0_49 = arith.constant 0 : index
    %c0_50 = arith.constant 0 : index
    %68 = vector.load %arg8[%67, %c0_49, %c0_50] : memref<8x8x32xf32, #tpu.memory_space<vmem>>, vector<1x8x32xf32>
    %69 = vector.shape_cast %68 : vector<1x8x32xf32> to vector<8x32xf32>
    %70 = vector.shape_cast %66 : vector<8x32xf32> to vector<1x8x32xf32>
    tpu.vector_store %arg8[%67, %c0_49, %c0_50], %70 {strides = array<i32>} : memref<8x8x32xf32, #tpu.memory_space<vmem>>, vector<1x8x32xf32>,
    %c7_i32 = arith.constant 7 : i32
    %71 = arith.subi %c7_i32, %c0_i32_42 : i32
    %72 = arith.index_cast %71 : i32 to index
    %c0_51 = arith.constant 0 : index
    %c0_52 = arith.constant 0 : index
    %73 = vector.load %arg15[%72, %c0_51, %c0_52] : memref<8x8x128xf32, #tpu.memory_space<vmem>>, vector<1x8x128xf32>
    %74 = vector.shape_cast %73 : vector<1x8x128xf32> to vector<8x128xf32>
    %cst_53 = arith.constant dense<0.000000e+00> : vector<8x128xf32>
    %75 = tpu.matmul %34, %28, %cst_53 {dimension_numbers = #tpu.dot_dimension_numbers<[1], [0], [0], [1], [0, 0, 1, 1], [], []>} : vector<8x32xf32>, vector<32x128xf32>, vector<8x128xf32> -> vector<8x128xf32>
    %76 = arith.addf %74, %75 : vector<8x128xf32>
    %77 = vector.extract_strided_slice %76 {offsets = [0, 0], sizes = [8, 32], strides = [1, 1]} : vector<8x128xf32> to vector<8x32xf32>
    %78 = arith.negf %77 : vector<8x32xf32>
    %79 = math.exp %78 : vector<8x32xf32>
    %cst_54 = arith.constant 1.000000e+00 : f32
    %80 = vector.broadcast %cst_54 : f32 to vector<8x32xf32>
    %81 = arith.addf %80, %79 : vector<8x32xf32>
    %82 = arith.divf %80, %81 : vector<8x32xf32>
    %83 = vector.extract_strided_slice %76 {offsets = [0, 32], sizes = [8, 32], strides = [1, 1]} : vector<8x128xf32> to vector<8x32xf32>
    %84 = arith.negf %83 : vector<8x32xf32>
    %85 = math.exp %84 : vector<8x32xf32>
    %cst_55 = arith.constant 1.000000e+00 : f32
    %86 = vector.broadcast %cst_55 : f32 to vector<8x32xf32>
    %87 = arith.addf %86, %85 : vector<8x32xf32>
    %88 = arith.divf %86, %87 : vector<8x32xf32>
    %89 = vector.extract_strided_slice %76 {offsets = [0, 64], sizes = [8, 32], strides = [1, 1]} : vector<8x128xf32> to vector<8x32xf32>
    %90 = math.tanh %89 : vector<8x32xf32>
    %91 = vector.extract_strided_slice %76 {offsets = [0, 96], sizes = [8, 32], strides = [1, 1]} : vector<8x128xf32> to vector<8x32xf32>
    %92 = arith.negf %91 : vector<8x32xf32>
    %93 = math.exp %92 : vector<8x32xf32>
    %cst_56 = arith.constant 1.000000e+00 : f32
    %94 = vector.broadcast %cst_56 : f32 to vector<8x32xf32>
    %95 = arith.addf %94, %93 : vector<8x32xf32>
    %96 = arith.divf %94, %95 : vector<8x32xf32>
    %97 = arith.mulf %88, %36 : vector<8x32xf32>
    %98 = arith.mulf %82, %90 : vector<8x32xf32>
    %99 = arith.addf %97, %98 : vector<8x32xf32>
    %100 = math.tanh %99 : vector<8x32xf32>
    %101 = arith.mulf %96, %100 : vector<8x32xf32>
    %102 = arith.index_cast %71 : i32 to index
    %c0_57 = arith.constant 0 : index
    %c0_58 = arith.constant 0 : index
    %103 = vector.load %arg9[%102, %c0_57, %c0_58] : memref<8x8x32xf32, #tpu.memory_space<vmem>>, vector<1x8x32xf32>
    %104 = vector.shape_cast %103 : vector<1x8x32xf32> to vector<8x32xf32>
    %105 = vector.shape_cast %101 : vector<8x32xf32> to vector<1x8x32xf32>
    tpu.vector_store %arg9[%102, %c0_57, %c0_58], %105 {strides = array<i32>} : memref<8x8x32xf32, #tpu.memory_space<vmem>>, vector<1x8x32xf32>,
    %c1_i32 = arith.constant 1 : i32
    %106 = arith.index_cast %c1_i32 : i32 to index
    %c0_59 = arith.constant 0 : index
    %c0_60 = arith.constant 0 : index
    %107 = vector.load %arg14[%106, %c0_59, %c0_60] : memref<8x8x128xf32, #tpu.memory_space<vmem>>, vector<1x8x128xf32>
    %108 = vector.shape_cast %107 : vector<1x8x128xf32> to vector<8x128xf32>
    %cst_61 = arith.constant dense<0.000000e+00> : vector<8x128xf32>
    %109 = tpu.matmul %66, %26, %cst_61 {dimension_numbers = #tpu.dot_dimension_numbers<[1], [0], [0], [1], [0, 0, 1, 1], [], []>} : vector<8x32xf32>, vector<32x128xf32>, vector<8x128xf32> -> vector<8x128xf32>
    %110 = arith.addf %108, %109 : vector<8x128xf32>
    %111 = vector.extract_strided_slice %110 {offsets = [0, 0], sizes = [8, 32], strides = [1, 1]} : vector<8x128xf32> to vector<8x32xf32>
    %112 = arith.negf %111 : vector<8x32xf32>
    %113 = math.exp %112 : vector<8x32xf32>
    %cst_62 = arith.constant 1.000000e+00 : f32
    %114 = vector.broadcast %cst_62 : f32 to vector<8x32xf32>
    %115 = arith.addf %114, %113 : vector<8x32xf32>
    %116 = arith.divf %114, %115 : vector<8x32xf32>
    %117 = vector.extract_strided_slice %110 {offsets = [0, 32], sizes = [8, 32], strides = [1, 1]} : vector<8x128xf32> to vector<8x32xf32>
    %118 = arith.negf %117 : vector<8x32xf32>
    %119 = math.exp %118 : vector<8x32xf32>
    %cst_63 = arith.constant 1.000000e+00 : f32
    %120 = vector.broadcast %cst_63 : f32 to vector<8x32xf32>
    %121 = arith.addf %120, %119 : vector<8x32xf32>
    %122 = arith.divf %120, %121 : vector<8x32xf32>
    %123 = vector.extract_strided_slice %110 {offsets = [0, 64], sizes = [8, 32], strides = [1, 1]} : vector<8x128xf32> to vector<8x32xf32>
    %124 = math.tanh %123 : vector<8x32xf32>
    %125 = vector.extract_strided_slice %110 {offsets = [0, 96], sizes = [8, 32], strides = [1, 1]} : vector<8x128xf32> to vector<8x32xf32>
    %126 = arith.negf %125 : vector<8x32xf32>
    %127 = math.exp %126 : vector<8x32xf32>
    %cst_64 = arith.constant 1.000000e+00 : f32
    %128 = vector.broadcast %cst_64 : f32 to vector<8x32xf32>
    %129 = arith.addf %128, %127 : vector<8x32xf32>
    %130 = arith.divf %128, %129 : vector<8x32xf32>
    %131 = arith.mulf %122, %64 : vector<8x32xf32>
    %132 = arith.mulf %116, %124 : vector<8x32xf32>
    %133 = arith.addf %131, %132 : vector<8x32xf32>
    %134 = math.tanh %133 : vector<8x32xf32>
    %135 = arith.mulf %130, %134 : vector<8x32xf32>
    %136 = arith.index_cast %c1_i32 : i32 to index
    %c0_65 = arith.constant 0 : index
    %c0_66 = arith.constant 0 : index
    %137 = vector.load %arg8[%136, %c0_65, %c0_66] : memref<8x8x32xf32, #tpu.memory_space<vmem>>, vector<1x8x32xf32>
    %138 = vector.shape_cast %137 : vector<1x8x32xf32> to vector<8x32xf32>
    %139 = vector.shape_cast %135 : vector<8x32xf32> to vector<1x8x32xf32>
    tpu.vector_store %arg8[%136, %c0_65, %c0_66], %139 {strides = array<i32>} : memref<8x8x32xf32, #tpu.memory_space<vmem>>, vector<1x8x32xf32>,
    %c7_i32_67 = arith.constant 7 : i32
    %140 = arith.subi %c7_i32_67, %c1_i32 : i32
    %141 = arith.index_cast %140 : i32 to index
    %c0_68 = arith.constant 0 : index
    %c0_69 = arith.constant 0 : index
    %142 = vector.load %arg15[%141, %c0_68, %c0_69] : memref<8x8x128xf32, #tpu.memory_space<vmem>>, vector<1x8x128xf32>
    %143 = vector.shape_cast %142 : vector<1x8x128xf32> to vector<8x128xf32>
    %cst_70 = arith.constant dense<0.000000e+00> : vector<8x128xf32>
    %144 = tpu.matmul %101, %28, %cst_70 {dimension_numbers = #tpu.dot_dimension_numbers<[1], [0], [0], [1], [0, 0, 1, 1], [], []>} : vector<8x32xf32>, vector<32x128xf32>, vector<8x128xf32> -> vector<8x128xf32>
    %145 = arith.addf %143, %144 : vector<8x128xf32>
    %146 = vector.extract_strided_slice %145 {offsets = [0, 0], sizes = [8, 32], strides = [1, 1]} : vector<8x128xf32> to vector<8x32xf32>
    %147 = arith.negf %146 : vector<8x32xf32>
    %148 = math.exp %147 : vector<8x32xf32>
    %cst_71 = arith.constant 1.000000e+00 : f32
    %149 = vector.broadcast %cst_71 : f32 to vector<8x32xf32>
    %150 = arith.addf %149, %148 : vector<8x32xf32>
    %151 = arith.divf %149, %150 : vector<8x32xf32>
    %152 = vector.extract_strided_slice %145 {offsets = [0, 32], sizes = [8, 32], strides = [1, 1]} : vector<8x128xf32> to vector<8x32xf32>
    %153 = arith.negf %152 : vector<8x32xf32>
    %154 = math.exp %153 : vector<8x32xf32>
    %cst_72 = arith.constant 1.000000e+00 : f32
    %155 = vector.broadcast %cst_72 : f32 to vector<8x32xf32>
    %156 = arith.addf %155, %154 : vector<8x32xf32>
    %157 = arith.divf %155, %156 : vector<8x32xf32>
    %158 = vector.extract_strided_slice %145 {offsets = [0, 64], sizes = [8, 32], strides = [1, 1]} : vector<8x128xf32> to vector<8x32xf32>
    %159 = math.tanh %158 : vector<8x32xf32>
    %160 = vector.extract_strided_slice %145 {offsets = [0, 96], sizes = [8, 32], strides = [1, 1]} : vector<8x128xf32> to vector<8x32xf32>
    %161 = arith.negf %160 : vector<8x32xf32>
    %162 = math.exp %161 : vector<8x32xf32>
    %cst_73 = arith.constant 1.000000e+00 : f32
    %163 = vector.broadcast %cst_73 : f32 to vector<8x32xf32>
    %164 = arith.addf %163, %162 : vector<8x32xf32>
    %165 = arith.divf %163, %164 : vector<8x32xf32>
    %166 = arith.mulf %157, %99 : vector<8x32xf32>
    %167 = arith.mulf %151, %159 : vector<8x32xf32>
    %168 = arith.addf %166, %167 : vector<8x32xf32>
    %169 = math.tanh %168 : vector<8x32xf32>
    %170 = arith.mulf %165, %169 : vector<8x32xf32>
    %171 = arith.index_cast %140 : i32 to index
    %c0_74 = arith.constant 0 : index
    %c0_75 = arith.constant 0 : index
    %172 = vector.load %arg9[%171, %c0_74, %c0_75] : memref<8x8x32xf32, #tpu.memory_space<vmem>>, vector<1x8x32xf32>
    %173 = vector.shape_cast %172 : vector<1x8x32xf32> to vector<8x32xf32>
    %174 = vector.shape_cast %170 : vector<8x32xf32> to vector<1x8x32xf32>
    tpu.vector_store %arg9[%171, %c0_74, %c0_75], %174 {strides = array<i32>} : memref<8x8x32xf32, #tpu.memory_space<vmem>>, vector<1x8x32xf32>,
    %c2_i32 = arith.constant 2 : i32
    %175 = arith.index_cast %c2_i32 : i32 to index
    %c0_76 = arith.constant 0 : index
    %c0_77 = arith.constant 0 : index
    %176 = vector.load %arg14[%175, %c0_76, %c0_77] : memref<8x8x128xf32, #tpu.memory_space<vmem>>, vector<1x8x128xf32>
    %177 = vector.shape_cast %176 : vector<1x8x128xf32> to vector<8x128xf32>
    %cst_78 = arith.constant dense<0.000000e+00> : vector<8x128xf32>
    %178 = tpu.matmul %135, %26, %cst_78 {dimension_numbers = #tpu.dot_dimension_numbers<[1], [0], [0], [1], [0, 0, 1, 1], [], []>} : vector<8x32xf32>, vector<32x128xf32>, vector<8x128xf32> -> vector<8x128xf32>
    %179 = arith.addf %177, %178 : vector<8x128xf32>
    %180 = vector.extract_strided_slice %179 {offsets = [0, 0], sizes = [8, 32], strides = [1, 1]} : vector<8x128xf32> to vector<8x32xf32>
    %181 = arith.negf %180 : vector<8x32xf32>
    %182 = math.exp %181 : vector<8x32xf32>
    %cst_79 = arith.constant 1.000000e+00 : f32
    %183 = vector.broadcast %cst_79 : f32 to vector<8x32xf32>
    %184 = arith.addf %183, %182 : vector<8x32xf32>
    %185 = arith.divf %183, %184 : vector<8x32xf32>
    %186 = vector.extract_strided_slice %179 {offsets = [0, 32], sizes = [8, 32], strides = [1, 1]} : vector<8x128xf32> to vector<8x32xf32>
    %187 = arith.negf %186 : vector<8x32xf32>
    %188 = math.exp %187 : vector<8x32xf32>
    %cst_80 = arith.constant 1.000000e+00 : f32
    %189 = vector.broadcast %cst_80 : f32 to vector<8x32xf32>
    %190 = arith.addf %189, %188 : vector<8x32xf32>
    %191 = arith.divf %189, %190 : vector<8x32xf32>
    %192 = vector.extract_strided_slice %179 {offsets = [0, 64], sizes = [8, 32], strides = [1, 1]} : vector<8x128xf32> to vector<8x32xf32>
    %193 = math.tanh %192 : vector<8x32xf32>
    %194 = vector.extract_strided_slice %179 {offsets = [0, 96], sizes = [8, 32], strides = [1, 1]} : vector<8x128xf32> to vector<8x32xf32>
    %195 = arith.negf %194 : vector<8x32xf32>
    %196 = math.exp %195 : vector<8x32xf32>
    %cst_81 = arith.constant 1.000000e+00 : f32
    %197 = vector.broadcast %cst_81 : f32 to vector<8x32xf32>
    %198 = arith.addf %197, %196 : vector<8x32xf32>
    %199 = arith.divf %197, %198 : vector<8x32xf32>
    %200 = arith.mulf %191, %133 : vector<8x32xf32>
    %201 = arith.mulf %185, %193 : vector<8x32xf32>
    %202 = arith.addf %200, %201 : vector<8x32xf32>
    %203 = math.tanh %202 : vector<8x32xf32>
    %204 = arith.mulf %199, %203 : vector<8x32xf32>
    %205 = arith.index_cast %c2_i32 : i32 to index
    %c0_82 = arith.constant 0 : index
    %c0_83 = arith.constant 0 : index
    %206 = vector.load %arg8[%205, %c0_82, %c0_83] : memref<8x8x32xf32, #tpu.memory_space<vmem>>, vector<1x8x32xf32>
    %207 = vector.shape_cast %206 : vector<1x8x32xf32> to vector<8x32xf32>
    %208 = vector.shape_cast %204 : vector<8x32xf32> to vector<1x8x32xf32>
    tpu.vector_store %arg8[%205, %c0_82, %c0_83], %208 {strides = array<i32>} : memref<8x8x32xf32, #tpu.memory_space<vmem>>, vector<1x8x32xf32>,
    %c7_i32_84 = arith.constant 7 : i32
    %209 = arith.subi %c7_i32_84, %c2_i32 : i32
    %210 = arith.index_cast %209 : i32 to index
    %c0_85 = arith.constant 0 : index
    %c0_86 = arith.constant 0 : index
    %211 = vector.load %arg15[%210, %c0_85, %c0_86] : memref<8x8x128xf32, #tpu.memory_space<vmem>>, vector<1x8x128xf32>
    %212 = vector.shape_cast %211 : vector<1x8x128xf32> to vector<8x128xf32>
    %cst_87 = arith.constant dense<0.000000e+00> : vector<8x128xf32>
    %213 = tpu.matmul %170, %28, %cst_87 {dimension_numbers = #tpu.dot_dimension_numbers<[1], [0], [0], [1], [0, 0, 1, 1], [], []>} : vector<8x32xf32>, vector<32x128xf32>, vector<8x128xf32> -> vector<8x128xf32>
    %214 = arith.addf %212, %213 : vector<8x128xf32>
    %215 = vector.extract_strided_slice %214 {offsets = [0, 0], sizes = [8, 32], strides = [1, 1]} : vector<8x128xf32> to vector<8x32xf32>
    %216 = arith.negf %215 : vector<8x32xf32>
    %217 = math.exp %216 : vector<8x32xf32>
    %cst_88 = arith.constant 1.000000e+00 : f32
    %218 = vector.broadcast %cst_88 : f32 to vector<8x32xf32>
    %219 = arith.addf %218, %217 : vector<8x32xf32>
    %220 = arith.divf %218, %219 : vector<8x32xf32>
    %221 = vector.extract_strided_slice %214 {offsets = [0, 32], sizes = [8, 32], strides = [1, 1]} : vector<8x128xf32> to vector<8x32xf32>
    %222 = arith.negf %221 : vector<8x32xf32>
    %223 = math.exp %222 : vector<8x32xf32>
    %cst_89 = arith.constant 1.000000e+00 : f32
    %224 = vector.broadcast %cst_89 : f32 to vector<8x32xf32>
    %225 = arith.addf %224, %223 : vector<8x32xf32>
    %226 = arith.divf %224, %225 : vector<8x32xf32>
    %227 = vector.extract_strided_slice %214 {offsets = [0, 64], sizes = [8, 32], strides = [1, 1]} : vector<8x128xf32> to vector<8x32xf32>
    %228 = math.tanh %227 : vector<8x32xf32>
    %229 = vector.extract_strided_slice %214 {offsets = [0, 96], sizes = [8, 32], strides = [1, 1]} : vector<8x128xf32> to vector<8x32xf32>
    %230 = arith.negf %229 : vector<8x32xf32>
    %231 = math.exp %230 : vector<8x32xf32>
    %cst_90 = arith.constant 1.000000e+00 : f32
    %232 = vector.broadcast %cst_90 : f32 to vector<8x32xf32>
    %233 = arith.addf %232, %231 : vector<8x32xf32>
    %234 = arith.divf %232, %233 : vector<8x32xf32>
    %235 = arith.mulf %226, %168 : vector<8x32xf32>
    %236 = arith.mulf %220, %228 : vector<8x32xf32>
    %237 = arith.addf %235, %236 : vector<8x32xf32>
    %238 = math.tanh %237 : vector<8x32xf32>
    %239 = arith.mulf %234, %238 : vector<8x32xf32>
    %240 = arith.index_cast %209 : i32 to index
    %c0_91 = arith.constant 0 : index
    %c0_92 = arith.constant 0 : index
    %241 = vector.load %arg9[%240, %c0_91, %c0_92] : memref<8x8x32xf32, #tpu.memory_space<vmem>>, vector<1x8x32xf32>
    %242 = vector.shape_cast %241 : vector<1x8x32xf32> to vector<8x32xf32>
    %243 = vector.shape_cast %239 : vector<8x32xf32> to vector<1x8x32xf32>
    tpu.vector_store %arg9[%240, %c0_91, %c0_92], %243 {strides = array<i32>} : memref<8x8x32xf32, #tpu.memory_space<vmem>>, vector<1x8x32xf32>,
    %c3_i32 = arith.constant 3 : i32
    %244 = arith.index_cast %c3_i32 : i32 to index
    %c0_93 = arith.constant 0 : index
    %c0_94 = arith.constant 0 : index
    %245 = vector.load %arg14[%244, %c0_93, %c0_94] : memref<8x8x128xf32, #tpu.memory_space<vmem>>, vector<1x8x128xf32>
    %246 = vector.shape_cast %245 : vector<1x8x128xf32> to vector<8x128xf32>
    %cst_95 = arith.constant dense<0.000000e+00> : vector<8x128xf32>
    %247 = tpu.matmul %204, %26, %cst_95 {dimension_numbers = #tpu.dot_dimension_numbers<[1], [0], [0], [1], [0, 0, 1, 1], [], []>} : vector<8x32xf32>, vector<32x128xf32>, vector<8x128xf32> -> vector<8x128xf32>
    %248 = arith.addf %246, %247 : vector<8x128xf32>
    %249 = vector.extract_strided_slice %248 {offsets = [0, 0], sizes = [8, 32], strides = [1, 1]} : vector<8x128xf32> to vector<8x32xf32>
    %250 = arith.negf %249 : vector<8x32xf32>
    %251 = math.exp %250 : vector<8x32xf32>
    %cst_96 = arith.constant 1.000000e+00 : f32
    %252 = vector.broadcast %cst_96 : f32 to vector<8x32xf32>
    %253 = arith.addf %252, %251 : vector<8x32xf32>
    %254 = arith.divf %252, %253 : vector<8x32xf32>
    %255 = vector.extract_strided_slice %248 {offsets = [0, 32], sizes = [8, 32], strides = [1, 1]} : vector<8x128xf32> to vector<8x32xf32>
    %256 = arith.negf %255 : vector<8x32xf32>
    %257 = math.exp %256 : vector<8x32xf32>
    %cst_97 = arith.constant 1.000000e+00 : f32
    %258 = vector.broadcast %cst_97 : f32 to vector<8x32xf32>
    %259 = arith.addf %258, %257 : vector<8x32xf32>
    %260 = arith.divf %258, %259 : vector<8x32xf32>
    %261 = vector.extract_strided_slice %248 {offsets = [0, 64], sizes = [8, 32], strides = [1, 1]} : vector<8x128xf32> to vector<8x32xf32>
    %262 = math.tanh %261 : vector<8x32xf32>
    %263 = vector.extract_strided_slice %248 {offsets = [0, 96], sizes = [8, 32], strides = [1, 1]} : vector<8x128xf32> to vector<8x32xf32>
    %264 = arith.negf %263 : vector<8x32xf32>
    %265 = math.exp %264 : vector<8x32xf32>
    %cst_98 = arith.constant 1.000000e+00 : f32
    %266 = vector.broadcast %cst_98 : f32 to vector<8x32xf32>
    %267 = arith.addf %266, %265 : vector<8x32xf32>
    %268 = arith.divf %266, %267 : vector<8x32xf32>
    %269 = arith.mulf %260, %202 : vector<8x32xf32>
    %270 = arith.mulf %254, %262 : vector<8x32xf32>
    %271 = arith.addf %269, %270 : vector<8x32xf32>
    %272 = math.tanh %271 : vector<8x32xf32>
    %273 = arith.mulf %268, %272 : vector<8x32xf32>
    %274 = arith.index_cast %c3_i32 : i32 to index
    %c0_99 = arith.constant 0 : index
    %c0_100 = arith.constant 0 : index
    %275 = vector.load %arg8[%274, %c0_99, %c0_100] : memref<8x8x32xf32, #tpu.memory_space<vmem>>, vector<1x8x32xf32>
    %276 = vector.shape_cast %275 : vector<1x8x32xf32> to vector<8x32xf32>
    %277 = vector.shape_cast %273 : vector<8x32xf32> to vector<1x8x32xf32>
    tpu.vector_store %arg8[%274, %c0_99, %c0_100], %277 {strides = array<i32>} : memref<8x8x32xf32, #tpu.memory_space<vmem>>, vector<1x8x32xf32>,
    %c7_i32_101 = arith.constant 7 : i32
    %278 = arith.subi %c7_i32_101, %c3_i32 : i32
    %279 = arith.index_cast %278 : i32 to index
    %c0_102 = arith.constant 0 : index
    %c0_103 = arith.constant 0 : index
    %280 = vector.load %arg15[%279, %c0_102, %c0_103] : memref<8x8x128xf32, #tpu.memory_space<vmem>>, vector<1x8x128xf32>
    %281 = vector.shape_cast %280 : vector<1x8x128xf32> to vector<8x128xf32>
    %cst_104 = arith.constant dense<0.000000e+00> : vector<8x128xf32>
    %282 = tpu.matmul %239, %28, %cst_104 {dimension_numbers = #tpu.dot_dimension_numbers<[1], [0], [0], [1], [0, 0, 1, 1], [], []>} : vector<8x32xf32>, vector<32x128xf32>, vector<8x128xf32> -> vector<8x128xf32>
    %283 = arith.addf %281, %282 : vector<8x128xf32>
    %284 = vector.extract_strided_slice %283 {offsets = [0, 0], sizes = [8, 32], strides = [1, 1]} : vector<8x128xf32> to vector<8x32xf32>
    %285 = arith.negf %284 : vector<8x32xf32>
    %286 = math.exp %285 : vector<8x32xf32>
    %cst_105 = arith.constant 1.000000e+00 : f32
    %287 = vector.broadcast %cst_105 : f32 to vector<8x32xf32>
    %288 = arith.addf %287, %286 : vector<8x32xf32>
    %289 = arith.divf %287, %288 : vector<8x32xf32>
    %290 = vector.extract_strided_slice %283 {offsets = [0, 32], sizes = [8, 32], strides = [1, 1]} : vector<8x128xf32> to vector<8x32xf32>
    %291 = arith.negf %290 : vector<8x32xf32>
    %292 = math.exp %291 : vector<8x32xf32>
    %cst_106 = arith.constant 1.000000e+00 : f32
    %293 = vector.broadcast %cst_106 : f32 to vector<8x32xf32>
    %294 = arith.addf %293, %292 : vector<8x32xf32>
    %295 = arith.divf %293, %294 : vector<8x32xf32>
    %296 = vector.extract_strided_slice %283 {offsets = [0, 64], sizes = [8, 32], strides = [1, 1]} : vector<8x128xf32> to vector<8x32xf32>
    %297 = math.tanh %296 : vector<8x32xf32>
    %298 = vector.extract_strided_slice %283 {offsets = [0, 96], sizes = [8, 32], strides = [1, 1]} : vector<8x128xf32> to vector<8x32xf32>
    %299 = arith.negf %298 : vector<8x32xf32>
    %300 = math.exp %299 : vector<8x32xf32>
    %cst_107 = arith.constant 1.000000e+00 : f32
    %301 = vector.broadcast %cst_107 : f32 to vector<8x32xf32>
    %302 = arith.addf %301, %300 : vector<8x32xf32>
    %303 = arith.divf %301, %302 : vector<8x32xf32>
    %304 = arith.mulf %295, %237 : vector<8x32xf32>
    %305 = arith.mulf %289, %297 : vector<8x32xf32>
    %306 = arith.addf %304, %305 : vector<8x32xf32>
    %307 = math.tanh %306 : vector<8x32xf32>
    %308 = arith.mulf %303, %307 : vector<8x32xf32>
    %309 = arith.index_cast %278 : i32 to index
    %c0_108 = arith.constant 0 : index
    %c0_109 = arith.constant 0 : index
    %310 = vector.load %arg9[%309, %c0_108, %c0_109] : memref<8x8x32xf32, #tpu.memory_space<vmem>>, vector<1x8x32xf32>
    %311 = vector.shape_cast %310 : vector<1x8x32xf32> to vector<8x32xf32>
    %312 = vector.shape_cast %308 : vector<8x32xf32> to vector<1x8x32xf32>
    tpu.vector_store %arg9[%309, %c0_108, %c0_109], %312 {strides = array<i32>} : memref<8x8x32xf32, #tpu.memory_space<vmem>>, vector<1x8x32xf32>,
    %c4_i32 = arith.constant 4 : i32
    %313 = arith.index_cast %c4_i32 : i32 to index
    %c0_110 = arith.constant 0 : index
    %c0_111 = arith.constant 0 : index
    %314 = vector.load %arg14[%313, %c0_110, %c0_111] : memref<8x8x128xf32, #tpu.memory_space<vmem>>, vector<1x8x128xf32>
    %315 = vector.shape_cast %314 : vector<1x8x128xf32> to vector<8x128xf32>
    %cst_112 = arith.constant dense<0.000000e+00> : vector<8x128xf32>
    %316 = tpu.matmul %273, %26, %cst_112 {dimension_numbers = #tpu.dot_dimension_numbers<[1], [0], [0], [1], [0, 0, 1, 1], [], []>} : vector<8x32xf32>, vector<32x128xf32>, vector<8x128xf32> -> vector<8x128xf32>
    %317 = arith.addf %315, %316 : vector<8x128xf32>
    %318 = vector.extract_strided_slice %317 {offsets = [0, 0], sizes = [8, 32], strides = [1, 1]} : vector<8x128xf32> to vector<8x32xf32>
    %319 = arith.negf %318 : vector<8x32xf32>
    %320 = math.exp %319 : vector<8x32xf32>
    %cst_113 = arith.constant 1.000000e+00 : f32
    %321 = vector.broadcast %cst_113 : f32 to vector<8x32xf32>
    %322 = arith.addf %321, %320 : vector<8x32xf32>
    %323 = arith.divf %321, %322 : vector<8x32xf32>
    %324 = vector.extract_strided_slice %317 {offsets = [0, 32], sizes = [8, 32], strides = [1, 1]} : vector<8x128xf32> to vector<8x32xf32>
    %325 = arith.negf %324 : vector<8x32xf32>
    %326 = math.exp %325 : vector<8x32xf32>
    %cst_114 = arith.constant 1.000000e+00 : f32
    %327 = vector.broadcast %cst_114 : f32 to vector<8x32xf32>
    %328 = arith.addf %327, %326 : vector<8x32xf32>
    %329 = arith.divf %327, %328 : vector<8x32xf32>
    %330 = vector.extract_strided_slice %317 {offsets = [0, 64], sizes = [8, 32], strides = [1, 1]} : vector<8x128xf32> to vector<8x32xf32>
    %331 = math.tanh %330 : vector<8x32xf32>
    %332 = vector.extract_strided_slice %317 {offsets = [0, 96], sizes = [8, 32], strides = [1, 1]} : vector<8x128xf32> to vector<8x32xf32>
    %333 = arith.negf %332 : vector<8x32xf32>
    %334 = math.exp %333 : vector<8x32xf32>
    %cst_115 = arith.constant 1.000000e+00 : f32
    %335 = vector.broadcast %cst_115 : f32 to vector<8x32xf32>
    %336 = arith.addf %335, %334 : vector<8x32xf32>
    %337 = arith.divf %335, %336 : vector<8x32xf32>
    %338 = arith.mulf %329, %271 : vector<8x32xf32>
    %339 = arith.mulf %323, %331 : vector<8x32xf32>
    %340 = arith.addf %338, %339 : vector<8x32xf32>
    %341 = math.tanh %340 : vector<8x32xf32>
    %342 = arith.mulf %337, %341 : vector<8x32xf32>
    %343 = arith.index_cast %c4_i32 : i32 to index
    %c0_116 = arith.constant 0 : index
    %c0_117 = arith.constant 0 : index
    %344 = vector.load %arg8[%343, %c0_116, %c0_117] : memref<8x8x32xf32, #tpu.memory_space<vmem>>, vector<1x8x32xf32>
    %345 = vector.shape_cast %344 : vector<1x8x32xf32> to vector<8x32xf32>
    %346 = vector.shape_cast %342 : vector<8x32xf32> to vector<1x8x32xf32>
    tpu.vector_store %arg8[%343, %c0_116, %c0_117], %346 {strides = array<i32>} : memref<8x8x32xf32, #tpu.memory_space<vmem>>, vector<1x8x32xf32>,
    %c7_i32_118 = arith.constant 7 : i32
    %347 = arith.subi %c7_i32_118, %c4_i32 : i32
    %348 = arith.index_cast %347 : i32 to index
    %c0_119 = arith.constant 0 : index
    %c0_120 = arith.constant 0 : index
    %349 = vector.load %arg15[%348, %c0_119, %c0_120] : memref<8x8x128xf32, #tpu.memory_space<vmem>>, vector<1x8x128xf32>
    %350 = vector.shape_cast %349 : vector<1x8x128xf32> to vector<8x128xf32>
    %cst_121 = arith.constant dense<0.000000e+00> : vector<8x128xf32>
    %351 = tpu.matmul %308, %28, %cst_121 {dimension_numbers = #tpu.dot_dimension_numbers<[1], [0], [0], [1], [0, 0, 1, 1], [], []>} : vector<8x32xf32>, vector<32x128xf32>, vector<8x128xf32> -> vector<8x128xf32>
    %352 = arith.addf %350, %351 : vector<8x128xf32>
    %353 = vector.extract_strided_slice %352 {offsets = [0, 0], sizes = [8, 32], strides = [1, 1]} : vector<8x128xf32> to vector<8x32xf32>
    %354 = arith.negf %353 : vector<8x32xf32>
    %355 = math.exp %354 : vector<8x32xf32>
    %cst_122 = arith.constant 1.000000e+00 : f32
    %356 = vector.broadcast %cst_122 : f32 to vector<8x32xf32>
    %357 = arith.addf %356, %355 : vector<8x32xf32>
    %358 = arith.divf %356, %357 : vector<8x32xf32>
    %359 = vector.extract_strided_slice %352 {offsets = [0, 32], sizes = [8, 32], strides = [1, 1]} : vector<8x128xf32> to vector<8x32xf32>
    %360 = arith.negf %359 : vector<8x32xf32>
    %361 = math.exp %360 : vector<8x32xf32>
    %cst_123 = arith.constant 1.000000e+00 : f32
    %362 = vector.broadcast %cst_123 : f32 to vector<8x32xf32>
    %363 = arith.addf %362, %361 : vector<8x32xf32>
    %364 = arith.divf %362, %363 : vector<8x32xf32>
    %365 = vector.extract_strided_slice %352 {offsets = [0, 64], sizes = [8, 32], strides = [1, 1]} : vector<8x128xf32> to vector<8x32xf32>
    %366 = math.tanh %365 : vector<8x32xf32>
    %367 = vector.extract_strided_slice %352 {offsets = [0, 96], sizes = [8, 32], strides = [1, 1]} : vector<8x128xf32> to vector<8x32xf32>
    %368 = arith.negf %367 : vector<8x32xf32>
    %369 = math.exp %368 : vector<8x32xf32>
    %cst_124 = arith.constant 1.000000e+00 : f32
    %370 = vector.broadcast %cst_124 : f32 to vector<8x32xf32>
    %371 = arith.addf %370, %369 : vector<8x32xf32>
    %372 = arith.divf %370, %371 : vector<8x32xf32>
    %373 = arith.mulf %364, %306 : vector<8x32xf32>
    %374 = arith.mulf %358, %366 : vector<8x32xf32>
    %375 = arith.addf %373, %374 : vector<8x32xf32>
    %376 = math.tanh %375 : vector<8x32xf32>
    %377 = arith.mulf %372, %376 : vector<8x32xf32>
    %378 = arith.index_cast %347 : i32 to index
    %c0_125 = arith.constant 0 : index
    %c0_126 = arith.constant 0 : index
    %379 = vector.load %arg9[%378, %c0_125, %c0_126] : memref<8x8x32xf32, #tpu.memory_space<vmem>>, vector<1x8x32xf32>
    %380 = vector.shape_cast %379 : vector<1x8x32xf32> to vector<8x32xf32>
    %381 = vector.shape_cast %377 : vector<8x32xf32> to vector<1x8x32xf32>
    tpu.vector_store %arg9[%378, %c0_125, %c0_126], %381 {strides = array<i32>} : memref<8x8x32xf32, #tpu.memory_space<vmem>>, vector<1x8x32xf32>,
    %c5_i32 = arith.constant 5 : i32
    %382 = arith.index_cast %c5_i32 : i32 to index
    %c0_127 = arith.constant 0 : index
    %c0_128 = arith.constant 0 : index
    %383 = vector.load %arg14[%382, %c0_127, %c0_128] : memref<8x8x128xf32, #tpu.memory_space<vmem>>, vector<1x8x128xf32>
    %384 = vector.shape_cast %383 : vector<1x8x128xf32> to vector<8x128xf32>
    %cst_129 = arith.constant dense<0.000000e+00> : vector<8x128xf32>
    %385 = tpu.matmul %342, %26, %cst_129 {dimension_numbers = #tpu.dot_dimension_numbers<[1], [0], [0], [1], [0, 0, 1, 1], [], []>} : vector<8x32xf32>, vector<32x128xf32>, vector<8x128xf32> -> vector<8x128xf32>
    %386 = arith.addf %384, %385 : vector<8x128xf32>
    %387 = vector.extract_strided_slice %386 {offsets = [0, 0], sizes = [8, 32], strides = [1, 1]} : vector<8x128xf32> to vector<8x32xf32>
    %388 = arith.negf %387 : vector<8x32xf32>
    %389 = math.exp %388 : vector<8x32xf32>
    %cst_130 = arith.constant 1.000000e+00 : f32
    %390 = vector.broadcast %cst_130 : f32 to vector<8x32xf32>
    %391 = arith.addf %390, %389 : vector<8x32xf32>
    %392 = arith.divf %390, %391 : vector<8x32xf32>
    %393 = vector.extract_strided_slice %386 {offsets = [0, 32], sizes = [8, 32], strides = [1, 1]} : vector<8x128xf32> to vector<8x32xf32>
    %394 = arith.negf %393 : vector<8x32xf32>
    %395 = math.exp %394 : vector<8x32xf32>
    %cst_131 = arith.constant 1.000000e+00 : f32
    %396 = vector.broadcast %cst_131 : f32 to vector<8x32xf32>
    %397 = arith.addf %396, %395 : vector<8x32xf32>
    %398 = arith.divf %396, %397 : vector<8x32xf32>
    %399 = vector.extract_strided_slice %386 {offsets = [0, 64], sizes = [8, 32], strides = [1, 1]} : vector<8x128xf32> to vector<8x32xf32>
    %400 = math.tanh %399 : vector<8x32xf32>
    %401 = vector.extract_strided_slice %386 {offsets = [0, 96], sizes = [8, 32], strides = [1, 1]} : vector<8x128xf32> to vector<8x32xf32>
    %402 = arith.negf %401 : vector<8x32xf32>
    %403 = math.exp %402 : vector<8x32xf32>
    %cst_132 = arith.constant 1.000000e+00 : f32
    %404 = vector.broadcast %cst_132 : f32 to vector<8x32xf32>
    %405 = arith.addf %404, %403 : vector<8x32xf32>
    %406 = arith.divf %404, %405 : vector<8x32xf32>
    %407 = arith.mulf %398, %340 : vector<8x32xf32>
    %408 = arith.mulf %392, %400 : vector<8x32xf32>
    %409 = arith.addf %407, %408 : vector<8x32xf32>
    %410 = math.tanh %409 : vector<8x32xf32>
    %411 = arith.mulf %406, %410 : vector<8x32xf32>
    %412 = arith.index_cast %c5_i32 : i32 to index
    %c0_133 = arith.constant 0 : index
    %c0_134 = arith.constant 0 : index
    %413 = vector.load %arg8[%412, %c0_133, %c0_134] : memref<8x8x32xf32, #tpu.memory_space<vmem>>, vector<1x8x32xf32>
    %414 = vector.shape_cast %413 : vector<1x8x32xf32> to vector<8x32xf32>
    %415 = vector.shape_cast %411 : vector<8x32xf32> to vector<1x8x32xf32>
    tpu.vector_store %arg8[%412, %c0_133, %c0_134], %415 {strides = array<i32>} : memref<8x8x32xf32, #tpu.memory_space<vmem>>, vector<1x8x32xf32>,
    %c7_i32_135 = arith.constant 7 : i32
    %416 = arith.subi %c7_i32_135, %c5_i32 : i32
    %417 = arith.index_cast %416 : i32 to index
    %c0_136 = arith.constant 0 : index
    %c0_137 = arith.constant 0 : index
    %418 = vector.load %arg15[%417, %c0_136, %c0_137] : memref<8x8x128xf32, #tpu.memory_space<vmem>>, vector<1x8x128xf32>
    %419 = vector.shape_cast %418 : vector<1x8x128xf32> to vector<8x128xf32>
    %cst_138 = arith.constant dense<0.000000e+00> : vector<8x128xf32>
    %420 = tpu.matmul %377, %28, %cst_138 {dimension_numbers = #tpu.dot_dimension_numbers<[1], [0], [0], [1], [0, 0, 1, 1], [], []>} : vector<8x32xf32>, vector<32x128xf32>, vector<8x128xf32> -> vector<8x128xf32>
    %421 = arith.addf %419, %420 : vector<8x128xf32>
    %422 = vector.extract_strided_slice %421 {offsets = [0, 0], sizes = [8, 32], strides = [1, 1]} : vector<8x128xf32> to vector<8x32xf32>
    %423 = arith.negf %422 : vector<8x32xf32>
    %424 = math.exp %423 : vector<8x32xf32>
    %cst_139 = arith.constant 1.000000e+00 : f32
    %425 = vector.broadcast %cst_139 : f32 to vector<8x32xf32>
    %426 = arith.addf %425, %424 : vector<8x32xf32>
    %427 = arith.divf %425, %426 : vector<8x32xf32>
    %428 = vector.extract_strided_slice %421 {offsets = [0, 32], sizes = [8, 32], strides = [1, 1]} : vector<8x128xf32> to vector<8x32xf32>
    %429 = arith.negf %428 : vector<8x32xf32>
    %430 = math.exp %429 : vector<8x32xf32>
    %cst_140 = arith.constant 1.000000e+00 : f32
    %431 = vector.broadcast %cst_140 : f32 to vector<8x32xf32>
    %432 = arith.addf %431, %430 : vector<8x32xf32>
    %433 = arith.divf %431, %432 : vector<8x32xf32>
    %434 = vector.extract_strided_slice %421 {offsets = [0, 64], sizes = [8, 32], strides = [1, 1]} : vector<8x128xf32> to vector<8x32xf32>
    %435 = math.tanh %434 : vector<8x32xf32>
    %436 = vector.extract_strided_slice %421 {offsets = [0, 96], sizes = [8, 32], strides = [1, 1]} : vector<8x128xf32> to vector<8x32xf32>
    %437 = arith.negf %436 : vector<8x32xf32>
    %438 = math.exp %437 : vector<8x32xf32>
    %cst_141 = arith.constant 1.000000e+00 : f32
    %439 = vector.broadcast %cst_141 : f32 to vector<8x32xf32>
    %440 = arith.addf %439, %438 : vector<8x32xf32>
    %441 = arith.divf %439, %440 : vector<8x32xf32>
    %442 = arith.mulf %433, %375 : vector<8x32xf32>
    %443 = arith.mulf %427, %435 : vector<8x32xf32>
    %444 = arith.addf %442, %443 : vector<8x32xf32>
    %445 = math.tanh %444 : vector<8x32xf32>
    %446 = arith.mulf %441, %445 : vector<8x32xf32>
    %447 = arith.index_cast %416 : i32 to index
    %c0_142 = arith.constant 0 : index
    %c0_143 = arith.constant 0 : index
    %448 = vector.load %arg9[%447, %c0_142, %c0_143] : memref<8x8x32xf32, #tpu.memory_space<vmem>>, vector<1x8x32xf32>
    %449 = vector.shape_cast %448 : vector<1x8x32xf32> to vector<8x32xf32>
    %450 = vector.shape_cast %446 : vector<8x32xf32> to vector<1x8x32xf32>
    tpu.vector_store %arg9[%447, %c0_142, %c0_143], %450 {strides = array<i32>} : memref<8x8x32xf32, #tpu.memory_space<vmem>>, vector<1x8x32xf32>,
    %c6_i32 = arith.constant 6 : i32
    %451 = arith.index_cast %c6_i32 : i32 to index
    %c0_144 = arith.constant 0 : index
    %c0_145 = arith.constant 0 : index
    %452 = vector.load %arg14[%451, %c0_144, %c0_145] : memref<8x8x128xf32, #tpu.memory_space<vmem>>, vector<1x8x128xf32>
    %453 = vector.shape_cast %452 : vector<1x8x128xf32> to vector<8x128xf32>
    %cst_146 = arith.constant dense<0.000000e+00> : vector<8x128xf32>
    %454 = tpu.matmul %411, %26, %cst_146 {dimension_numbers = #tpu.dot_dimension_numbers<[1], [0], [0], [1], [0, 0, 1, 1], [], []>} : vector<8x32xf32>, vector<32x128xf32>, vector<8x128xf32> -> vector<8x128xf32>
    %455 = arith.addf %453, %454 : vector<8x128xf32>
    %456 = vector.extract_strided_slice %455 {offsets = [0, 0], sizes = [8, 32], strides = [1, 1]} : vector<8x128xf32> to vector<8x32xf32>
    %457 = arith.negf %456 : vector<8x32xf32>
    %458 = math.exp %457 : vector<8x32xf32>
    %cst_147 = arith.constant 1.000000e+00 : f32
    %459 = vector.broadcast %cst_147 : f32 to vector<8x32xf32>
    %460 = arith.addf %459, %458 : vector<8x32xf32>
    %461 = arith.divf %459, %460 : vector<8x32xf32>
    %462 = vector.extract_strided_slice %455 {offsets = [0, 32], sizes = [8, 32], strides = [1, 1]} : vector<8x128xf32> to vector<8x32xf32>
    %463 = arith.negf %462 : vector<8x32xf32>
    %464 = math.exp %463 : vector<8x32xf32>
    %cst_148 = arith.constant 1.000000e+00 : f32
    %465 = vector.broadcast %cst_148 : f32 to vector<8x32xf32>
    %466 = arith.addf %465, %464 : vector<8x32xf32>
    %467 = arith.divf %465, %466 : vector<8x32xf32>
    %468 = vector.extract_strided_slice %455 {offsets = [0, 64], sizes = [8, 32], strides = [1, 1]} : vector<8x128xf32> to vector<8x32xf32>
    %469 = math.tanh %468 : vector<8x32xf32>
    %470 = vector.extract_strided_slice %455 {offsets = [0, 96], sizes = [8, 32], strides = [1, 1]} : vector<8x128xf32> to vector<8x32xf32>
    %471 = arith.negf %470 : vector<8x32xf32>
    %472 = math.exp %471 : vector<8x32xf32>
    %cst_149 = arith.constant 1.000000e+00 : f32
    %473 = vector.broadcast %cst_149 : f32 to vector<8x32xf32>
    %474 = arith.addf %473, %472 : vector<8x32xf32>
    %475 = arith.divf %473, %474 : vector<8x32xf32>
    %476 = arith.mulf %467, %409 : vector<8x32xf32>
    %477 = arith.mulf %461, %469 : vector<8x32xf32>
    %478 = arith.addf %476, %477 : vector<8x32xf32>
    %479 = math.tanh %478 : vector<8x32xf32>
    %480 = arith.mulf %475, %479 : vector<8x32xf32>
    %481 = arith.index_cast %c6_i32 : i32 to index
    %c0_150 = arith.constant 0 : index
    %c0_151 = arith.constant 0 : index
    %482 = vector.load %arg8[%481, %c0_150, %c0_151] : memref<8x8x32xf32, #tpu.memory_space<vmem>>, vector<1x8x32xf32>
    %483 = vector.shape_cast %482 : vector<1x8x32xf32> to vector<8x32xf32>
    %484 = vector.shape_cast %480 : vector<8x32xf32> to vector<1x8x32xf32>
    tpu.vector_store %arg8[%481, %c0_150, %c0_151], %484 {strides = array<i32>} : memref<8x8x32xf32, #tpu.memory_space<vmem>>, vector<1x8x32xf32>,
    %c7_i32_152 = arith.constant 7 : i32
    %485 = arith.subi %c7_i32_152, %c6_i32 : i32
    %486 = arith.index_cast %485 : i32 to index
    %c0_153 = arith.constant 0 : index
    %c0_154 = arith.constant 0 : index
    %487 = vector.load %arg15[%486, %c0_153, %c0_154] : memref<8x8x128xf32, #tpu.memory_space<vmem>>, vector<1x8x128xf32>
    %488 = vector.shape_cast %487 : vector<1x8x128xf32> to vector<8x128xf32>
    %cst_155 = arith.constant dense<0.000000e+00> : vector<8x128xf32>
    %489 = tpu.matmul %446, %28, %cst_155 {dimension_numbers = #tpu.dot_dimension_numbers<[1], [0], [0], [1], [0, 0, 1, 1], [], []>} : vector<8x32xf32>, vector<32x128xf32>, vector<8x128xf32> -> vector<8x128xf32>
    %490 = arith.addf %488, %489 : vector<8x128xf32>
    %491 = vector.extract_strided_slice %490 {offsets = [0, 0], sizes = [8, 32], strides = [1, 1]} : vector<8x128xf32> to vector<8x32xf32>
    %492 = arith.negf %491 : vector<8x32xf32>
    %493 = math.exp %492 : vector<8x32xf32>
    %cst_156 = arith.constant 1.000000e+00 : f32
    %494 = vector.broadcast %cst_156 : f32 to vector<8x32xf32>
    %495 = arith.addf %494, %493 : vector<8x32xf32>
    %496 = arith.divf %494, %495 : vector<8x32xf32>
    %497 = vector.extract_strided_slice %490 {offsets = [0, 32], sizes = [8, 32], strides = [1, 1]} : vector<8x128xf32> to vector<8x32xf32>
    %498 = arith.negf %497 : vector<8x32xf32>
    %499 = math.exp %498 : vector<8x32xf32>
    %cst_157 = arith.constant 1.000000e+00 : f32
    %500 = vector.broadcast %cst_157 : f32 to vector<8x32xf32>
    %501 = arith.addf %500, %499 : vector<8x32xf32>
    %502 = arith.divf %500, %501 : vector<8x32xf32>
    %503 = vector.extract_strided_slice %490 {offsets = [0, 64], sizes = [8, 32], strides = [1, 1]} : vector<8x128xf32> to vector<8x32xf32>
    %504 = math.tanh %503 : vector<8x32xf32>
    %505 = vector.extract_strided_slice %490 {offsets = [0, 96], sizes = [8, 32], strides = [1, 1]} : vector<8x128xf32> to vector<8x32xf32>
    %506 = arith.negf %505 : vector<8x32xf32>
    %507 = math.exp %506 : vector<8x32xf32>
    %cst_158 = arith.constant 1.000000e+00 : f32
    %508 = vector.broadcast %cst_158 : f32 to vector<8x32xf32>
    %509 = arith.addf %508, %507 : vector<8x32xf32>
    %510 = arith.divf %508, %509 : vector<8x32xf32>
    %511 = arith.mulf %502, %444 : vector<8x32xf32>
    %512 = arith.mulf %496, %504 : vector<8x32xf32>
    %513 = arith.addf %511, %512 : vector<8x32xf32>
    %514 = math.tanh %513 : vector<8x32xf32>
    %515 = arith.mulf %510, %514 : vector<8x32xf32>
    %516 = arith.index_cast %485 : i32 to index
    %c0_159 = arith.constant 0 : index
    %c0_160 = arith.constant 0 : index
    %517 = vector.load %arg9[%516, %c0_159, %c0_160] : memref<8x8x32xf32, #tpu.memory_space<vmem>>, vector<1x8x32xf32>
    %518 = vector.shape_cast %517 : vector<1x8x32xf32> to vector<8x32xf32>
    %519 = vector.shape_cast %515 : vector<8x32xf32> to vector<1x8x32xf32>
    tpu.vector_store %arg9[%516, %c0_159, %c0_160], %519 {strides = array<i32>} : memref<8x8x32xf32, #tpu.memory_space<vmem>>, vector<1x8x32xf32>,
    %c7_i32_161 = arith.constant 7 : i32
    %520 = arith.index_cast %c7_i32_161 : i32 to index
    %c0_162 = arith.constant 0 : index
    %c0_163 = arith.constant 0 : index
    %521 = vector.load %arg14[%520, %c0_162, %c0_163] : memref<8x8x128xf32, #tpu.memory_space<vmem>>, vector<1x8x128xf32>
    %522 = vector.shape_cast %521 : vector<1x8x128xf32> to vector<8x128xf32>
    %cst_164 = arith.constant dense<0.000000e+00> : vector<8x128xf32>
    %523 = tpu.matmul %480, %26, %cst_164 {dimension_numbers = #tpu.dot_dimension_numbers<[1], [0], [0], [1], [0, 0, 1, 1], [], []>} : vector<8x32xf32>, vector<32x128xf32>, vector<8x128xf32> -> vector<8x128xf32>
    %524 = arith.addf %522, %523 : vector<8x128xf32>
    %525 = vector.extract_strided_slice %524 {offsets = [0, 0], sizes = [8, 32], strides = [1, 1]} : vector<8x128xf32> to vector<8x32xf32>
    %526 = arith.negf %525 : vector<8x32xf32>
    %527 = math.exp %526 : vector<8x32xf32>
    %cst_165 = arith.constant 1.000000e+00 : f32
    %528 = vector.broadcast %cst_165 : f32 to vector<8x32xf32>
    %529 = arith.addf %528, %527 : vector<8x32xf32>
    %530 = arith.divf %528, %529 : vector<8x32xf32>
    %531 = vector.extract_strided_slice %524 {offsets = [0, 32], sizes = [8, 32], strides = [1, 1]} : vector<8x128xf32> to vector<8x32xf32>
    %532 = arith.negf %531 : vector<8x32xf32>
    %533 = math.exp %532 : vector<8x32xf32>
    %cst_166 = arith.constant 1.000000e+00 : f32
    %534 = vector.broadcast %cst_166 : f32 to vector<8x32xf32>
    %535 = arith.addf %534, %533 : vector<8x32xf32>
    %536 = arith.divf %534, %535 : vector<8x32xf32>
    %537 = vector.extract_strided_slice %524 {offsets = [0, 64], sizes = [8, 32], strides = [1, 1]} : vector<8x128xf32> to vector<8x32xf32>
    %538 = math.tanh %537 : vector<8x32xf32>
    %539 = vector.extract_strided_slice %524 {offsets = [0, 96], sizes = [8, 32], strides = [1, 1]} : vector<8x128xf32> to vector<8x32xf32>
    %540 = arith.negf %539 : vector<8x32xf32>
    %541 = math.exp %540 : vector<8x32xf32>
    %cst_167 = arith.constant 1.000000e+00 : f32
    %542 = vector.broadcast %cst_167 : f32 to vector<8x32xf32>
    %543 = arith.addf %542, %541 : vector<8x32xf32>
    %544 = arith.divf %542, %543 : vector<8x32xf32>
    %545 = arith.mulf %536, %478 : vector<8x32xf32>
    %546 = arith.mulf %530, %538 : vector<8x32xf32>
    %547 = arith.addf %545, %546 : vector<8x32xf32>
    %548 = math.tanh %547 : vector<8x32xf32>
    %549 = arith.mulf %544, %548 : vector<8x32xf32>
    %550 = arith.index_cast %c7_i32_161 : i32 to index
    %c0_168 = arith.constant 0 : index
    %c0_169 = arith.constant 0 : index
    %551 = vector.load %arg8[%550, %c0_168, %c0_169] : memref<8x8x32xf32, #tpu.memory_space<vmem>>, vector<1x8x32xf32>
    %552 = vector.shape_cast %551 : vector<1x8x32xf32> to vector<8x32xf32>
    %553 = vector.shape_cast %549 : vector<8x32xf32> to vector<1x8x32xf32>
    tpu.vector_store %arg8[%550, %c0_168, %c0_169], %553 {strides = array<i32>} : memref<8x8x32xf32, #tpu.memory_space<vmem>>, vector<1x8x32xf32>,
    %c7_i32_170 = arith.constant 7 : i32
    %554 = arith.subi %c7_i32_170, %c7_i32_161 : i32
    %555 = arith.index_cast %554 : i32 to index
    %c0_171 = arith.constant 0 : index
    %c0_172 = arith.constant 0 : index
    %556 = vector.load %arg15[%555, %c0_171, %c0_172] : memref<8x8x128xf32, #tpu.memory_space<vmem>>, vector<1x8x128xf32>
    %557 = vector.shape_cast %556 : vector<1x8x128xf32> to vector<8x128xf32>
    %cst_173 = arith.constant dense<0.000000e+00> : vector<8x128xf32>
    %558 = tpu.matmul %515, %28, %cst_173 {dimension_numbers = #tpu.dot_dimension_numbers<[1], [0], [0], [1], [0, 0, 1, 1], [], []>} : vector<8x32xf32>, vector<32x128xf32>, vector<8x128xf32> -> vector<8x128xf32>
    %559 = arith.addf %557, %558 : vector<8x128xf32>
    %560 = vector.extract_strided_slice %559 {offsets = [0, 0], sizes = [8, 32], strides = [1, 1]} : vector<8x128xf32> to vector<8x32xf32>
    %561 = arith.negf %560 : vector<8x32xf32>
    %562 = math.exp %561 : vector<8x32xf32>
    %cst_174 = arith.constant 1.000000e+00 : f32
    %563 = vector.broadcast %cst_174 : f32 to vector<8x32xf32>
    %564 = arith.addf %563, %562 : vector<8x32xf32>
    %565 = arith.divf %563, %564 : vector<8x32xf32>
    %566 = vector.extract_strided_slice %559 {offsets = [0, 32], sizes = [8, 32], strides = [1, 1]} : vector<8x128xf32> to vector<8x32xf32>
    %567 = arith.negf %566 : vector<8x32xf32>
    %568 = math.exp %567 : vector<8x32xf32>
    %cst_175 = arith.constant 1.000000e+00 : f32
    %569 = vector.broadcast %cst_175 : f32 to vector<8x32xf32>
    %570 = arith.addf %569, %568 : vector<8x32xf32>
    %571 = arith.divf %569, %570 : vector<8x32xf32>
    %572 = vector.extract_strided_slice %559 {offsets = [0, 64], sizes = [8, 32], strides = [1, 1]} : vector<8x128xf32> to vector<8x32xf32>
    %573 = math.tanh %572 : vector<8x32xf32>
    %574 = vector.extract_strided_slice %559 {offsets = [0, 96], sizes = [8, 32], strides = [1, 1]} : vector<8x128xf32> to vector<8x32xf32>
    %575 = arith.negf %574 : vector<8x32xf32>
    %576 = math.exp %575 : vector<8x32xf32>
    %cst_176 = arith.constant 1.000000e+00 : f32
    %577 = vector.broadcast %cst_176 : f32 to vector<8x32xf32>
    %578 = arith.addf %577, %576 : vector<8x32xf32>
    %579 = arith.divf %577, %578 : vector<8x32xf32>
    %580 = arith.mulf %571, %513 : vector<8x32xf32>
    %581 = arith.mulf %565, %573 : vector<8x32xf32>
    %582 = arith.addf %580, %581 : vector<8x32xf32>
    %583 = math.tanh %582 : vector<8x32xf32>
    %584 = arith.mulf %579, %583 : vector<8x32xf32>
    %585 = arith.index_cast %554 : i32 to index
    %c0_177 = arith.constant 0 : index
    %c0_178 = arith.constant 0 : index
    %586 = vector.load %arg9[%585, %c0_177, %c0_178] : memref<8x8x32xf32, #tpu.memory_space<vmem>>, vector<1x8x32xf32>
    %587 = vector.shape_cast %586 : vector<1x8x32xf32> to vector<8x32xf32>
    %588 = vector.shape_cast %584 : vector<8x32xf32> to vector<1x8x32xf32>
    tpu.vector_store %arg9[%585, %c0_177, %c0_178], %588 {strides = array<i32>} : memref<8x8x32xf32, #tpu.memory_space<vmem>>, vector<1x8x32xf32>,
    %c8_i32 = arith.constant 8 : i32
    %c0_179 = arith.constant 0 : index
    %c0_180 = arith.constant 0 : index
    %c0_181 = arith.constant 0 : index
    %589 = vector.load %arg12[%c0_179, %c0_180, %c0_181] : memref<2x8x32xf32, #tpu.memory_space<vmem>>, vector<1x8x32xf32>
    %590 = vector.shape_cast %589 : vector<1x8x32xf32> to vector<8x32xf32>
    %591 = vector.shape_cast %549 : vector<8x32xf32> to vector<1x8x32xf32>
    tpu.vector_store %arg12[%c0_179, %c0_180, %c0_181], %591 {strides = array<i32>} : memref<2x8x32xf32, #tpu.memory_space<vmem>>, vector<1x8x32xf32>,
    %c0_182 = arith.constant 0 : index
    %c0_183 = arith.constant 0 : index
    %c0_184 = arith.constant 0 : index
    %592 = vector.load %arg13[%c0_182, %c0_183, %c0_184] : memref<2x8x32xf32, #tpu.memory_space<vmem>>, vector<1x8x32xf32>
    %593 = vector.shape_cast %592 : vector<1x8x32xf32> to vector<8x32xf32>
    %594 = vector.shape_cast %547 : vector<8x32xf32> to vector<1x8x32xf32>
    tpu.vector_store %arg13[%c0_182, %c0_183, %c0_184], %594 {strides = array<i32>} : memref<2x8x32xf32, #tpu.memory_space<vmem>>, vector<1x8x32xf32>,
    %c1_185 = arith.constant 1 : index
    %c0_186 = arith.constant 0 : index
    %c0_187 = arith.constant 0 : index
    %595 = vector.load %arg12[%c1_185, %c0_186, %c0_187] : memref<2x8x32xf32, #tpu.memory_space<vmem>>, vector<1x8x32xf32>
    %596 = vector.shape_cast %595 : vector<1x8x32xf32> to vector<8x32xf32>
    %597 = vector.shape_cast %584 : vector<8x32xf32> to vector<1x8x32xf32>
    tpu.vector_store %arg12[%c1_185, %c0_186, %c0_187], %597 {strides = array<i32>} : memref<2x8x32xf32, #tpu.memory_space<vmem>>, vector<1x8x32xf32>,
    %c1_188 = arith.constant 1 : index
    %c0_189 = arith.constant 0 : index
    %c0_190 = arith.constant 0 : index
    %598 = vector.load %arg13[%c1_188, %c0_189, %c0_190] : memref<2x8x32xf32, #tpu.memory_space<vmem>>, vector<1x8x32xf32>
    %599 = vector.shape_cast %598 : vector<1x8x32xf32> to vector<8x32xf32>
    %600 = vector.shape_cast %582 : vector<8x32xf32> to vector<1x8x32xf32>
    tpu.vector_store %arg13[%c1_188, %c0_189, %c0_190], %600 {strides = array<i32>} : memref<2x8x32xf32, #tpu.memory_space<vmem>>, vector<1x8x32xf32>,
    %c0_i32_191 = arith.constant 0 : i32
    %601 = arith.cmpi eq, %arg0, %c0_i32_191 : i32
    %602 = arith.extui %601 : i1 to i32
    %c0_i32_192 = arith.constant 0 : i32
    %603 = arith.cmpi ne, %602, %c0_i32_192 : i32
    scf.if %603 {
      %c0_193 = arith.constant 0 : index
      %c0_194 = arith.constant 0 : index
      %c0_195 = arith.constant 0 : index
      %604 = vector.load %arg12[%c0_193, %c0_194, %c0_195] : memref<2x8x32xf32, #tpu.memory_space<vmem>>, vector<2x8x32xf32>
      %c0_196 = arith.constant 0 : index
      %c0_197 = arith.constant 0 : index
      %c0_198 = arith.constant 0 : index
      %605 = vector.load %arg10[%c0_196, %c0_197, %c0_198] : memref<2x8x32xf32, #tpu.memory_space<vmem>>, vector<2x8x32xf32>
      tpu.vector_store %arg10[%c0_196, %c0_197, %c0_198], %604 {strides = array<i32>} : memref<2x8x32xf32, #tpu.memory_space<vmem>>, vector<2x8x32xf32>,
      %c0_199 = arith.constant 0 : index
      %c0_200 = arith.constant 0 : index
      %c0_201 = arith.constant 0 : index
      %606 = vector.load %arg13[%c0_199, %c0_200, %c0_201] : memref<2x8x32xf32, #tpu.memory_space<vmem>>, vector<2x8x32xf32>
      %c0_202 = arith.constant 0 : index
      %c0_203 = arith.constant 0 : index
      %c0_204 = arith.constant 0 : index
      %607 = vector.load %arg11[%c0_202, %c0_203, %c0_204] : memref<2x8x32xf32, #tpu.memory_space<vmem>>, vector<2x8x32xf32>
      tpu.vector_store %arg11[%c0_202, %c0_203, %c0_204], %606 {strides = array<i32>} : memref<2x8x32xf32, #tpu.memory_space<vmem>>, vector<2x8x32xf32>,
    } else {
    }
    return
  }
  func.func @transform_0(%arg0: i32) -> (i32, i32, i32) {
    %c0_i32 = arith.constant 0 : i32
    %c0_i32_0 = arith.constant 0 : i32
    %c0_i32_1 = arith.constant 0 : i32
    return %arg0, %c0_i32, %c0_i32_0 : i32, i32, i32
  }
  func.func @transform_1(%arg0: i32) -> (i32, i32, i32) {
    %c0_i32 = arith.constant 0 : i32
    %0 = arith.subi %c0_i32, %arg0 : i32
    %c0_i32_0 = arith.constant 0 : i32
    %c0_i32_1 = arith.constant 0 : i32
    %c0_i32_2 = arith.constant 0 : i32
    return %0, %c0_i32_0, %c0_i32_1 : i32, i32, i32
  }
  func.func @transform_2(%arg0: i32) -> (i32, i32, i32) {
    %c0_i32 = arith.constant 0 : i32
    %c0_i32_0 = arith.constant 0 : i32
    %c0_i32_1 = arith.constant 0 : i32
    %c0_i32_2 = arith.constant 0 : i32
    return %c0_i32, %c0_i32_0, %c0_i32_1 : i32, i32, i32
  }
  func.func @transform_3(%arg0: i32) -> (i32, i32, i32) {
    %c0_i32 = arith.constant 0 : i32
    %c0_i32_0 = arith.constant 0 : i32
    %c0_i32_1 = arith.constant 0 : i32
    %c0_i32_2 = arith.constant 0 : i32
    return %c0_i32, %c0_i32_0, %c0_i32_1 : i32, i32, i32
  }
  func.func @transform_4(%arg0: i32) -> (i32, i32, i32) {
    %c0_i32 = arith.constant 0 : i32
    %c0_i32_0 = arith.constant 0 : i32
    %c0_i32_1 = arith.constant 0 : i32
    %c0_i32_2 = arith.constant 0 : i32
    return %c0_i32, %c0_i32_0, %c0_i32_1 : i32, i32, i32
  }
  func.func @transform_5(%arg0: i32) -> (i32, i32, i32) {
    %c0_i32 = arith.constant 0 : i32
    %c0_i32_0 = arith.constant 0 : i32
    %c0_i32_1 = arith.constant 0 : i32
    %c0_i32_2 = arith.constant 0 : i32
    return %c0_i32, %c0_i32_0, %c0_i32_1 : i32, i32, i32
  }
  func.func @transform_6(%arg0: i32) -> (i32, i32, i32) {
    %c0_i32 = arith.constant 0 : i32
    %c0_i32_0 = arith.constant 0 : i32
    %c0_i32_1 = arith.constant 0 : i32
    %c0_i32_2 = arith.constant 0 : i32
    return %c0_i32, %c0_i32_0, %c0_i32_1 : i32, i32, i32
  }
  func.func @transform_7(%arg0: i32) -> (i32, i32, i32) {
    %c0_i32 = arith.constant 0 : i32
    %c0_i32_0 = arith.constant 0 : i32
    %c0_i32_1 = arith.constant 0 : i32
    return %arg0, %c0_i32, %c0_i32_0 : i32, i32, i32
  }
  func.func @transform_8(%arg0: i32) -> (i32, i32, i32) {
    %c0_i32 = arith.constant 0 : i32
    %0 = arith.subi %c0_i32, %arg0 : i32
    %c0_i32_0 = arith.constant 0 : i32
    %c0_i32_1 = arith.constant 0 : i32
    %c0_i32_2 = arith.constant 0 : i32
    return %0, %c0_i32_0, %c0_i32_1 : i32, i32, i32
  }
  func.func @transform_9(%arg0: i32) -> (i32, i32, i32) {
    %c0_i32 = arith.constant 0 : i32
    %c0_i32_0 = arith.constant 0 : i32
    %c0_i32_1 = arith.constant 0 : i32
    %c0_i32_2 = arith.constant 0 : i32
    return %c0_i32, %c0_i32_0, %c0_i32_1 : i32, i32, i32
  }
  func.func @transform_10(%arg0: i32) -> (i32, i32, i32) {
    %c0_i32 = arith.constant 0 : i32
    %c0_i32_0 = arith.constant 0 : i32
    %c0_i32_1 = arith.constant 0 : i32
    %c0_i32_2 = arith.constant 0 : i32
    return %c0_i32, %c0_i32_0, %c0_i32_1 : i32, i32, i32
  }
}

</mosaic_0001>

<llo_original>
// kernel: tpu_custom_call.1
$region0: #{tpu_custom_call.1}
  #allocation0 [shape = 'u32[]', space=smem, size = 0x4, offset = 0x4, fixed_abs, tag = 'smem constant byte address 0x4 - core index']
  #allocation1 [shape = 'u32[144,128]{1,0:T(1,128)}', space=vmem, size = 0x12000, scoped, tag = 'internal scratch']
  %s0 = inlined_call_operand.hbm [shape: f32[8,128], index: 0, kind: input, shape index: {}]
  %s1 = inlined_call_operand.hbm [shape: f32[8,128], index: 1, kind: output, shape index: {}]
  %s2 = sld [smem:[#allocation0]]
  $region41: #{tpu_custom_call.1} parent=0
    _
  %s4 = ssub.s32 1, %s2
  %s5 = scalar_select 0, %s4, %s2
  $region1: #{tpu_custom_call.1} parent=0
    #allocation2 [shape = 'u8[4096]{0}', space=vmem, size = 0x1000, scoped, tag = 'input window, operand 0, single buffered']
    #allocation3 [shape = 's32[2]{0}', space=sflag, size = 0x8, scoped, tag = 'scoped memory for tpu_custom_call.1']
    #allocation4 [shape = 's32[2]{0}', space=sflag, size = 0x8, scoped, tag = 'scoped memory for tpu_custom_call.1']
    #allocation5 [shape = 'u8[4096]{0}', space=vmem, size = 0x1000, scoped, tag = 'output window, operand 0, single buffered']
    %6 = vsyncpa [#allocation3], 0
    %7 = vsyncpa [#allocation4], 0
    loop: start=0, step=1, limit=4
    $region2: #{tpu_custom_call.1} parent=1 // loop_pre_header
      _
    $region3: #{tpu_custom_call.1} parent=1 // loop_header
      %s9 = sphi 0, %s13
      %p10 = scmp.ge.s32.totalorder %s9, 4
      %s17 = sphi 0, %s17
      %s19 = sphi 0, %s17
      %s20 = sphi 0, %s19
      %s34 = sphi 0, %s20
      %s38 = sphi 0, %s38
      %s40 = sphi 0, %s38
      %s41 = sphi 0, %s40
      %s55 = sphi 0, %s41
    $region4: #{tpu_custom_call.1} parent=1 // loop_header_branch
      %12 = sbr.rel (%p10) target = $region8
    $region5: #{tpu_custom_call.1} parent=1 // loop_body
      %s14 = ssub.s32 %s9, 1
      %s15 = ssub.s32 %s9, 2
      %s16 = sadd.s32 %s9, 1
      %s18 = sadd.s32 %s17, 1
      %p21 = scmp.eq.s32.totalorder %s9, 1
      %p22 = scmp.ne.s32.totalorder %s17, %s19
      %p23 = scmp.eq.s32.totalorder %s9, 0
      %p24 = por %p22, %p23
      %p25 = scmp.ne.s32.totalorder %s17, %s19
      %p26 = scmp.eq.s32.totalorder %s14, 1
      %p27 = por %p25, %p26
      %p28 = scmp.ne.s32.totalorder %s19, %s20
      %p29 = scmp.eq.s32.totalorder %s14, 0
      %p30 = por %p28, %p29
      %p31 = scmp.ne.s32.totalorder %s19, %s20
      %p32 = scmp.eq.s32.totalorder %s15, 1
      %p33 = por %p31, %p32
      %p35 = scmp.ne.s32.totalorder %s20, %s34
      %p36 = scmp.eq.s32.totalorder %s15, 0
      %p37 = por %p35, %p36
      %s39 = sadd.s32 %s38, 1
      %p42 = scmp.eq.s32.totalorder %s9, 1
      %p43 = scmp.ne.s32.totalorder %s38, %s40
      %p44 = scmp.eq.s32.totalorder %s9, 0
      %p45 = por %p43, %p44
      %p46 = scmp.ne.s32.totalorder %s38, %s40
      %p47 = scmp.eq.s32.totalorder %s14, 1
      %p48 = por %p46, %p47
      %p49 = scmp.ne.s32.totalorder %s40, %s41
      %p50 = scmp.eq.s32.totalorder %s14, 0
      %p51 = por %p49, %p50
      %p52 = scmp.ne.s32.totalorder %s40, %s41
      %p53 = scmp.eq.s32.totalorder %s15, 1
      %p54 = por %p52, %p53
      %p56 = scmp.ne.s32.totalorder %s41, %s55
      %p57 = scmp.eq.s32.totalorder %s15, 0
      %p58 = por %p56, %p57
      %p59 = scmp.le.s32.totalorder 1, %s9
      %p60 = scmp.lt.s32.totalorder %s9, 3
      %p61 = pnand %p59, %p60
      %p62 = pneg %p61
      // Predicated region
      $region9: #{tpu_custom_call.1} parent=5 // pred_check
        _
      $region10: #{tpu_custom_call.1} parent=5 // pred_check_branch
        %64 = sbr.rel (%p61) target = $region12
      $region11: #{tpu_custom_call.1} parent=5 // pred_region
        %s65 = ssub.s32 %s9, 1
        // Predicated region
        $region13: #{tpu_custom_call.1} parent=11 // pred_check
          %p66 = pneg %p30
        $region14: #{tpu_custom_call.1} parent=11 // pred_check_branch
          %68 = sbr.rel (%p66) target = $region16
        $region15: #{tpu_custom_call.1} parent=11 // pred_region
          %s70 = ssub.s32 128, 128
          %71 = vsyncadd [#allocation3], %s70
          %s73 = sshll.u32 [#allocation2], 4
          %s74 = int_to_ptr.vmem [resolvable:$true] %s73
          %76 = dma.hbm_to_vmem [thread:$0]  %s0, 128, %s74, [#allocation3]
        $region16: #{tpu_custom_call.1} parent=11 // pred_fallthru
          _
      $region12: #{tpu_custom_call.1} parent=5 // pred_fallthru
        _
      %p77 = scmp.lt.s32.totalorder %s9, 2
      // Predicated region
      $region17: #{tpu_custom_call.1} parent=5 // pred_check
        %p78 = pneg %p77
      $region18: #{tpu_custom_call.1} parent=5 // pred_check_branch
        %80 = sbr.rel (%p78) target = $region20
      $region19: #{tpu_custom_call.1} parent=5 // pred_region
        _
      $region20: #{tpu_custom_call.1} parent=5 // pred_fallthru
        _
      %p81 = scmp.le.s32.totalorder 1, %s9
      %p82 = scmp.lt.s32.totalorder %s9, 3
      %p83 = pnand %p81, %p82
      %p84 = pneg %p83
      // Predicated region
      $region21: #{tpu_custom_call.1} parent=5 // pred_check
        _
      $region22: #{tpu_custom_call.1} parent=5 // pred_check_branch
        %86 = sbr.rel (%p83) target = $region24
      $region23: #{tpu_custom_call.1} parent=5 // pred_region
        %s87 = ssub.s32 %s9, 1
        // Predicated region
        $region25: #{tpu_custom_call.1} parent=23 // pred_check
          %p88 = pneg %p30
        $region26: #{tpu_custom_call.1} parent=23 // pred_check_branch
          %90 = sbr.rel (%p88) target = $region28
        $region27: #{tpu_custom_call.1} parent=23 // pred_region
          %91 = dma.done [#allocation3], 128
        $region28: #{tpu_custom_call.1} parent=23 // pred_fallthru
          _
        %p92 = pneg %p30
        %p93 = pneg %p27
        %p94 = pneg %p51
        %p95 = pneg %p48
        %v96 = vld [vmem:[#allocation2] sm:$0xff]
        %97 = vst [vmem:[#allocation5] sm:$0xff] %v96
        // Predicated region
        $region29: #{tpu_custom_call.1} parent=23 // pred_check
          %p98 = pneg %p48
        $region30: #{tpu_custom_call.1} parent=23 // pred_check_branch
          %100 = sbr.rel (%p98) target = $region32
        $region31: #{tpu_custom_call.1} parent=23 // pred_region
          %s102 = ssub.s32 128, 128
          %103 = vsyncadd [#allocation4], %s102
          %s105 = sshll.u32 [#allocation5], 4
          %s106 = int_to_ptr.vmem [resolvable:$true] %s105
          %108 = dma.vmem_to_hbm [thread:$0]  %s106, 128, %s1, [#allocation4]
        $region32: #{tpu_custom_call.1} parent=23 // pred_fallthru
          _
        // Predicated region
        $region33: #{tpu_custom_call.1} parent=23 // pred_check
          %p109 = pneg %p48
        $region34: #{tpu_custom_call.1} parent=23 // pred_check_branch
          %111 = sbr.rel (%p109) target = $region36
        $region35: #{tpu_custom_call.1} parent=23 // pred_region
          %112 = dma.done [#allocation4], 128
        $region36: #{tpu_custom_call.1} parent=23 // pred_fallthru
          _
      $region24: #{tpu_custom_call.1} parent=5 // pred_fallthru
        _
      %p113 = scmp.le.s32.totalorder 2, %s9
      // Predicated region
      $region37: #{tpu_custom_call.1} parent=5 // pred_check
        %p114 = pneg %p113
      $region38: #{tpu_custom_call.1} parent=5 // pred_check_branch
        %116 = sbr.rel (%p114) target = $region40
      $region39: #{tpu_custom_call.1} parent=5 // pred_region
        %s117 = ssub.s32 %s9, 2
      $region40: #{tpu_custom_call.1} parent=5 // pred_fallthru
        _
    $region6: #{tpu_custom_call.1} parent=1 // loop_footer
      %s13 = sadd.s32 1, %s9
    $region7: #{tpu_custom_call.1} parent=1 // loop_footer_branch
      %8 = sbr.rel target = $region3
    $region8: #{tpu_custom_call.1} parent=1 // loop_exit
      _
    %118 = vsyncpa [#allocation3], 1
    %s119 = scalar_lea.sflag [#allocation3], 1
    %120 = vsyncpa %s119, 1
    %121 = vsyncpa [#allocation4], 1
    %s122 = scalar_lea.sflag [#allocation4], 1
    %123 = vsyncpa %s122, 1

// kernel: birnn_forward.2
$region0: #{birnn_forward.2}
  #allocation0 [shape = 'u32[]', space=smem, size = 0x4, offset = 0x4, fixed_abs, tag = 'smem constant byte address 0x4 - core index']
  #allocation1 [shape = 'u32[144,128]{1,0:T(1,128)}', space=vmem, size = 0x12000, scoped, tag = 'internal scratch']
  #allocation2 [shape = 'f32[2,8,32]{2,1,0:T(8,128)}', space=vmem, size = 0x2000, scoped, tag = 'scratch operand']
  #allocation3 [shape = 'f32[2,8,32]{2,1,0:T(8,128)}', space=vmem, size = 0x2000, scoped, tag = 'scratch operand']
  #allocation4 [shape = 'f32[8,8,128]{2,1,0:T(8,128)}', space=vmem, size = 0x8000, scoped, tag = 'scratch operand']
  #allocation5 [shape = 'f32[8,8,128]{2,1,0:T(8,128)}', space=vmem, size = 0x8000, scoped, tag = 'scratch operand']
  %s0 = inlined_call_operand.vmem [shape: f32[8,8,16], index: 0, kind: input, shape index: {}, may-alias: {0,1}]
  %s1 = inlined_call_operand.vmem [shape: f32[8,8,16], index: 1, kind: input, shape index: {}, may-alias: {0,1}]
  %s2 = inlined_call_operand.vmem [shape: f32[2,16,128], index: 2, kind: input, shape index: {}]
  %s3 = inlined_call_operand.vmem [shape: f32[2,32,128], index: 3, kind: input, shape index: {}]
  %s4 = inlined_call_operand.vmem [shape: f32[2,1,128], index: 4, kind: input, shape index: {}]
  %s5 = inlined_call_operand.vmem [shape: f32[2,8,32], index: 5, kind: input, shape index: {}]
  %s6 = inlined_call_operand.vmem [shape: f32[2,8,32], index: 6, kind: input, shape index: {}]
  %s7 = inlined_call_operand.vmem [shape: f32[8,8,32], index: 7, kind: output, shape index: {0}]
  %s8 = inlined_call_operand.vmem [shape: f32[8,8,32], index: 8, kind: output, shape index: {1}]
  %s9 = inlined_call_operand.vmem [shape: f32[2,8,32], index: 9, kind: output, shape index: {2}]
  %s10 = inlined_call_operand.vmem [shape: f32[2,8,32], index: 10, kind: output, shape index: {3}]
  %11 = xla_tuple %s7, %s8, %s9, %s10
  %s12 = sld [smem:[#allocation0]]
  $region70: #{birnn_forward.2} parent=0
    _
  %s14 = ssub.s32 1, %s12
  %s15 = scalar_select 0, %s14, %s12
  // Predicated region
  $region2: #{birnn_forward.2} parent=0 // pred_check
    _
  $region3: #{birnn_forward.2} parent=0 // pred_check_branch
    %17 = sbr.rel (0) target = $region5
  $region4: #{birnn_forward.2} parent=0 // pred_region
    _
  $region5: #{birnn_forward.2} parent=0 // pred_fallthru
    _
  // Predicated region
  $region6: #{birnn_forward.2} parent=0 // pred_check
    _
  $region7: #{birnn_forward.2} parent=0 // pred_check_branch
    %19 = sbr.rel (0) target = $region9
  $region8: #{birnn_forward.2} parent=0 // pred_region
    %s20 = ssub.s32 0, 0
    %s21 = smul.u32 8, %s20
    %p22 = scmp.lt.s32.totalorder %s21, 7
    %s23 = scalar_select %p22, %s21, 7
    %s24 = smul.addr %s23, 8
    %s25 = scalar_lea.vmem %s1, %s24
    %s26 = ssub.s32 0, 0
    %s27 = smul.u32 8, %s26
  $region9: #{birnn_forward.2} parent=0 // pred_fallthru
    _
  // Predicated region
  $region10: #{birnn_forward.2} parent=0 // pred_check
    _
  $region11: #{birnn_forward.2} parent=0 // pred_check_branch
    %29 = sbr.rel (0) target = $region13
  $region12: #{birnn_forward.2} parent=0 // pred_region
    _
  $region13: #{birnn_forward.2} parent=0 // pred_fallthru
    _
  // Predicated region
  $region14: #{birnn_forward.2} parent=0 // pred_check
    _
  $region15: #{birnn_forward.2} parent=0 // pred_check_branch
    %31 = sbr.rel (0) target = $region17
  $region16: #{birnn_forward.2} parent=0 // pred_region
    _
  $region17: #{birnn_forward.2} parent=0 // pred_fallthru
    _
  // Predicated region
  $region18: #{birnn_forward.2} parent=0 // pred_check
    _
  $region19: #{birnn_forward.2} parent=0 // pred_check_branch
    %33 = sbr.rel (0) target = $region21
  $region20: #{birnn_forward.2} parent=0 // pred_region
    _
  $region21: #{birnn_forward.2} parent=0 // pred_fallthru
    _
  // Predicated region
  $region22: #{birnn_forward.2} parent=0 // pred_check
    _
  $region23: #{birnn_forward.2} parent=0 // pred_check_branch
    %35 = sbr.rel (0) target = $region25
  $region24: #{birnn_forward.2} parent=0 // pred_region
    _
  $region25: #{birnn_forward.2} parent=0 // pred_fallthru
    _
  // Predicated region
  $region26: #{birnn_forward.2} parent=0 // pred_check
    _
  $region27: #{birnn_forward.2} parent=0 // pred_check_branch
    %37 = sbr.rel (0) target = $region29
  $region28: #{birnn_forward.2} parent=0 // pred_region
    _
  $region29: #{birnn_forward.2} parent=0 // pred_fallthru
    _
  %s38 = ssub.s32 0, 0
  %s39 = smul.u32 8, %s38
  %p40 = scmp.lt.s32.totalorder %s39, 7
  %s41 = scalar_select %p40, %s39, 7
  %s42 = smul.addr %s41, 8
  %s43 = scalar_lea.vmem %s1, %s42
  %s44 = ssub.s32 0, 0
  %s45 = smul.u32 8, %s44
  %p46 = scmp.lt.s32.totalorder %s45, 7
  %s47 = scalar_select %p46, %s45, 7
  %s48 = smul.addr %s47, 8
  %s49 = scalar_lea.vmem %s8, %s48
  %s50 = ssub.s32 0, 0
  %s51 = smul.u32 8, %s50
  %p52 = scmp.lt.s32.totalorder %s51, 7
  %s53 = scalar_select %p52, %s51, 7
  %s54 = smul.addr %s53, 8
  %s55 = scalar_lea.vmem %s1, %s54
  %s56 = ssub.s32 0, 0
  %s57 = smul.u32 8, %s56
  %s58 = ssub.s32 0, 0
  %s59 = smul.u32 8, %s58
  %p60 = scmp.lt.s32.totalorder %s59, 7
  %s61 = scalar_select %p60, %s59, 7
  %s62 = smul.addr %s61, 8
  %s63 = scalar_lea.vmem %s8, %s62
  %s64 = ssub.s32 0, 0
  %s65 = smul.u32 8, %s64
  %p66 = scmp.eq.s32.totalorder 0, 0
  // Predicated region
  $region30: #{birnn_forward.2} parent=0 // pred_check
    %p67 = pneg %p66
  $region31: #{birnn_forward.2} parent=0 // pred_check_branch
    %69 = sbr.rel (%p67) target = $region33
  $region32: #{birnn_forward.2} parent=0 // pred_region
    %v70 = vld [vmem:[%s5] sm:$0xff]
    %v71 = vld [vmem:[%s5 + $0x8] sm:$0xff]
    %vm72 = vcmask 261120
    %73 = vst.msk [vmem:[#allocation2] sm:$0xff] %vm72, %v70
    %74 = vst.msk [vmem:[#allocation2 + $0x8] sm:$0xff] %vm72, %v71
    %v75 = vld [vmem:[%s6] sm:$0xff]
    %v76 = vld [vmem:[%s6 + $0x8] sm:$0xff]
    %77 = vst.msk [vmem:[#allocation3] sm:$0xff] %vm72, %v75
    %78 = vst.msk [vmem:[#allocation3 + $0x8] sm:$0xff] %vm72, %v76
  $region33: #{birnn_forward.2} parent=0 // pred_fallthru
    _
  %v79 = vld [vmem:[%s0] sm:$0xff]
  %v80 = vld [vmem:[%s0 + $0x8] sm:$0xff]
  %v81 = vld [vmem:[%s0 + $0x10] sm:$0xff]
  %v82 = vld [vmem:[%s0 + $0x18] sm:$0xff]
  %v83 = vld [vmem:[%s0 + $0x20] sm:$0xff]
  %v84 = vld [vmem:[%s0 + $0x28] sm:$0xff]
  %v85 = vld [vmem:[%s0 + $0x30] sm:$0xff]
  %v86 = vld [vmem:[%s0 + $0x38] sm:$0xff]
  %v87 = vld [vmem:[%s2] sm:$0xff]
  %v88 = vld [vmem:[%s2 + $0x8] sm:$0xff]
  %v89 = vld [vmem:[%s4] sm:$0x1]
  %v91 = vlaneseq
  %v92 = vshrl.u32 %v91, 7
  %v93 = vsub.s32 0, %v92
  %v94 = vrot.slane %v89, %v93
  %vm96 = vcmask 130048
  %v98 = vsel %vm96, %v79, 0
  %v101 = vsel %vm96, %v80, 0
  %v104 = vsel %vm96, %v81, 0
  %v107 = vsel %vm96, %v82, 0
  %v110 = vsel %vm96, %v83, 0
  %v113 = vsel %vm96, %v84, 0
  %v116 = vsel %vm96, %v85, 0
  %v119 = vsel %vm96, %v86, 0
  %121 = vmatprep.subr.mxu0 0.0
  %122 = vmatpush1.msra.mxu0 %v87
  %123 = vmatprep.subr.mxu0 0.0
  %124 = vmatpush1.msra.mxu0 %v88
  %125 = vmatprep.subr.mxu0 0.0
  %126 = vmatpush1.msra.mxu0 0.0
  %127 = vmatprep.subr.mxu0 0.0
  %128 = vmatpush1.msra.mxu0 0.0
  %129 = vmatprep.subr.mxu0 0.0
  %130 = vmatpush1.msra.mxu0 0.0
  %131 = vmatprep.subr.mxu0 0.0
  %132 = vmatpush1.msra.mxu0 0.0
  %133 = vmatprep.subr.mxu0 0.0
  %134 = vmatpush1.msra.mxu0 0.0
  %135 = vmatprep.subr.mxu0 0.0
  %136 = vmatpush1.msra.mxu0 0.0
  %137 = vmatprep.subr.mxu0 0.0
  %138 = vmatpush1.msra.mxu0 0.0
  %139 = vmatprep.subr.mxu0 0.0
  %140 = vmatpush1.msra.mxu0 0.0
  %141 = vmatprep.subr.mxu0 0.0
  %142 = vmatpush1.msra.mxu0 0.0
  %143 = vmatprep.subr.mxu0 0.0
  %144 = vmatpush1.msra.mxu0 0.0
  %145 = vmatprep.subr.mxu0 0.0
  %146 = vmatpush1.msra.mxu0 0.0
  %147 = vmatprep.subr.mxu0 0.0
  %148 = vmatpush1.msra.mxu0 0.0
  %149 = vmatprep.subr.mxu0 0.0
  %150 = vmatpush1.msra.mxu0 0.0
  %151 = vmatprep.subr.mxu0 0.0
  %152 = vmatpush1.msra.mxu0 0.0
  %153 = vmatprep.subr.mxu0 0.0
  %154 = vmatpush1.msra.mxu0 0.0
  %155 = vmatprep.subr.mxu0 0.0
  %156 = vmatpush1.msra.mxu0 0.0
  %157 = vmatprep.subr.mxu0 0.0
  %158 = vmatpush1.msra.mxu0 0.0
  %159 = vmatprep.subr.mxu0 0.0
  %160 = vmatpush1.msra.mxu0 0.0
  %161 = vmatprep.subr.mxu0 0.0
  %162 = vmatpush1.msra.mxu0 0.0
  %163 = vmatprep.subr.mxu0 0.0
  %164 = vmatpush1.msra.mxu0 0.0
  %165 = vmatprep.subr.mxu0 0.0
  %166 = vmatpush1.msra.mxu0 0.0
  %167 = vmatprep.subr.mxu0 0.0
  %168 = vmatpush1.msra.mxu0 0.0
  %169 = vmatprep.subr.mxu0 0.0
  %170 = vmatpush1.msra.mxu0 0.0
  %171 = vmatprep.subr.mxu0 0.0
  %172 = vmatpush1.msra.mxu0 0.0
  %173 = vmatprep.subr.mxu0 0.0
  %174 = vmatpush1.msra.mxu0 0.0
  %175 = vmatprep.subr.mxu0 0.0
  %176 = vmatpush1.msra.mxu0 0.0
  %177 = vmatprep.subr.mxu0 0.0
  %178 = vmatpush1.msra.mxu0 0.0
  %179 = vmatprep.subr.mxu0 0.0
  %180 = vmatpush1.msra.mxu0 0.0
  %181 = vmatprep.subr.mxu0 0.0
  %182 = vmatpush1.msra.mxu0 0.0
  %183 = vmatprep.subr.mxu0 0.0
  %184 = vmatpush1.msra.mxu0 0.0
  %185 = vmatprep.mubr.f32.mxu0 0.0
  %186 = vmatmul.mubr.f32.gmra.mrb[0].mxu0 %v98
  %v187 = vpop.f32.mrb[0].mxu0
  %v188 = vadd.f32 %v94, %v187
  %v189 = vpop.f32.mrb[0].mxu0
  %190 = vmatprep.mubr.f32.mxu0 0.0
  %191 = vmatmul.mubr.f32.gmra.mrb[0].mxu0 %v101
  %v192 = vpop.f32.mrb[0].mxu0
  %v193 = vadd.f32 %v94, %v192
  %v194 = vpop.f32.mrb[0].mxu0
  %195 = vmatprep.mubr.f32.mxu0 0.0
  %196 = vmatmul.mubr.f32.gmra.mrb[0].mxu0 %v104
  %v197 = vpop.f32.mrb[0].mxu0
  %v198 = vadd.f32 %v94, %v197
  %v199 = vpop.f32.mrb[0].mxu0
  %200 = vmatprep.mubr.f32.mxu0 0.0
  %201 = vmatmul.mubr.f32.gmra.mrb[0].mxu0 %v107
  %v202 = vpop.f32.mrb[0].mxu0
  %v203 = vadd.f32 %v94, %v202
  %v204 = vpop.f32.mrb[0].mxu0
  %205 = vmatprep.mubr.f32.mxu0 0.0
  %206 = vmatmul.mubr.f32.gmra.mrb[0].mxu0 %v110
  %v207 = vpop.f32.mrb[0].mxu0
  %v208 = vadd.f32 %v94, %v207
  %v209 = vpop.f32.mrb[0].mxu0
  %210 = vmatprep.mubr.f32.mxu0 0.0
  %211 = vmatmul.mubr.f32.gmra.mrb[0].mxu0 %v113
  %v212 = vpop.f32.mrb[0].mxu0
  %v213 = vadd.f32 %v94, %v212
  %v214 = vpop.f32.mrb[0].mxu0
  %215 = vmatprep.mubr.f32.mxu0 0.0
  %216 = vmatmul.mubr.f32.gmra.mrb[0].mxu0 %v116
  %v217 = vpop.f32.mrb[0].mxu0
  %v218 = vadd.f32 %v94, %v217
  %v219 = vpop.f32.mrb[0].mxu0
  %220 = vmatprep.mubr.f32.mxu0 0.0
  %221 = vmatmul.mubr.f32.gmra.mrb[0].mxu0 %v119
  %v222 = vpop.f32.mrb[0].mxu0
  %v223 = vadd.f32 %v94, %v222
  %v224 = vpop.f32.mrb[0].mxu0
  %225 = vdwg.mxu0
  %226 = vst [vmem:[#allocation4] sm:$0xff] %v188
  %227 = vst [vmem:[#allocation4 + $0x8] sm:$0xff] %v193
  %228 = vst [vmem:[#allocation4 + $0x10] sm:$0xff] %v198
  %229 = vst [vmem:[#allocation4 + $0x18] sm:$0xff] %v203
  %230 = vst [vmem:[#allocation4 + $0x20] sm:$0xff] %v208
  %231 = vst [vmem:[#allocation4 + $0x28] sm:$0xff] %v213
  %232 = vst [vmem:[#allocation4 + $0x30] sm:$0xff] %v218
  %233 = vst [vmem:[#allocation4 + $0x38] sm:$0xff] %v223
  %v234 = vld [vmem:[%s55] sm:$0xff]
  %v235 = vld [vmem:[%s55 + $0x8] sm:$0xff]
  %v236 = vld [vmem:[%s55 + $0x10] sm:$0xff]
  %v237 = vld [vmem:[%s55 + $0x18] sm:$0xff]
  %v238 = vld [vmem:[%s55 + $0x20] sm:$0xff]
  %v239 = vld [vmem:[%s55 + $0x28] sm:$0xff]
  %v240 = vld [vmem:[%s55 + $0x30] sm:$0xff]
  %v241 = vld [vmem:[%s55 + $0x38] sm:$0xff]
  %s242 = scalar_lea.vmem %s2, 16
  %v243 = vld [vmem:[%s242] sm:$0xff]
  %v244 = vld [vmem:[%s242 + $0x8] sm:$0xff]
  %s245 = scalar_lea.vmem %s4, 1
  %v246 = vld [vmem:[%s245] sm:$0x1]
  %v248 = vlaneseq
  %v249 = vshrl.u32 %v248, 7
  %v250 = vsub.s32 0, %v249
  %v251 = vrot.slane %v246, %v250
  %v254 = vsel %vm96, %v234, 0
  %v257 = vsel %vm96, %v235, 0
  %v260 = vsel %vm96, %v236, 0
  %v263 = vsel %vm96, %v237, 0
  %v266 = vsel %vm96, %v238, 0
  %v269 = vsel %vm96, %v239, 0
  %v272 = vsel %vm96, %v240, 0
  %v275 = vsel %vm96, %v241, 0
  %277 = vmatprep.subr.mxu0 0.0
  %278 = vmatpush1.msra.mxu0 %v243
  %279 = vmatprep.subr.mxu0 0.0
  %280 = vmatpush1.msra.mxu0 %v244
  %281 = vmatprep.subr.mxu0 0.0
  %282 = vmatpush1.msra.mxu0 0.0
  %283 = vmatprep.subr.mxu0 0.0
  %284 = vmatpush1.msra.mxu0 0.0
  %285 = vmatprep.subr.mxu0 0.0
  %286 = vmatpush1.msra.mxu0 0.0
  %287 = vmatprep.subr.mxu0 0.0
  %288 = vmatpush1.msra.mxu0 0.0
  %289 = vmatprep.subr.mxu0 0.0
  %290 = vmatpush1.msra.mxu0 0.0
  %291 = vmatprep.subr.mxu0 0.0
  %292 = vmatpush1.msra.mxu0 0.0
  %293 = vmatprep.subr.mxu0 0.0
  %294 = vmatpush1.msra.mxu0 0.0
  %295 = vmatprep.subr.mxu0 0.0
  %296 = vmatpush1.msra.mxu0 0.0
  %297 = vmatprep.subr.mxu0 0.0
  %298 = vmatpush1.msra.mxu0 0.0
  %299 = vmatprep.subr.mxu0 0.0
  %300 = vmatpush1.msra.mxu0 0.0
  %301 = vmatprep.subr.mxu0 0.0
  %302 = vmatpush1.msra.mxu0 0.0
  %303 = vmatprep.subr.mxu0 0.0
  %304 = vmatpush1.msra.mxu0 0.0
  %305 = vmatprep.subr.mxu0 0.0
  %306 = vmatpush1.msra.mxu0 0.0
  %307 = vmatprep.subr.mxu0 0.0
  %308 = vmatpush1.msra.mxu0 0.0
  %309 = vmatprep.subr.mxu0 0.0
  %310 = vmatpush1.msra.mxu0 0.0
  %311 = vmatprep.subr.mxu0 0.0
  %312 = vmatpush1.msra.mxu0 0.0
  %313 = vmatprep.subr.mxu0 0.0
  %314 = vmatpush1.msra.mxu0 0.0
  %315 = vmatprep.subr.mxu0 0.0
  %316 = vmatpush1.msra.mxu0 0.0
  %317 = vmatprep.subr.mxu0 0.0
  %318 = vmatpush1.msra.mxu0 0.0
  %319 = vmatprep.subr.mxu0 0.0
  %320 = vmatpush1.msra.mxu0 0.0
  %321 = vmatprep.subr.mxu0 0.0
  %322 = vmatpush1.msra.mxu0 0.0
  %323 = vmatprep.subr.mxu0 0.0
  %324 = vmatpush1.msra.mxu0 0.0
  %325 = vmatprep.subr.mxu0 0.0
  %326 = vmatpush1.msra.mxu0 0.0
  %327 = vmatprep.subr.mxu0 0.0
  %328 = vmatpush1.msra.mxu0 0.0
  %329 = vmatprep.subr.mxu0 0.0
  %330 = vmatpush1.msra.mxu0 0.0
  %331 = vmatprep.subr.mxu0 0.0
  %332 = vmatpush1.msra.mxu0 0.0
  %333 = vmatprep.subr.mxu0 0.0
  %334 = vmatpush1.msra.mxu0 0.0
  %335 = vmatprep.subr.mxu0 0.0
  %336 = vmatpush1.msra.mxu0 0.0
  %337 = vmatprep.subr.mxu0 0.0
  %338 = vmatpush1.msra.mxu0 0.0
  %339 = vmatprep.subr.mxu0 0.0
  %340 = vmatpush1.msra.mxu0 0.0
  %341 = vmatprep.mubr.f32.mxu0 0.0
  %342 = vmatmul.mubr.f32.gmra.mrb[0].mxu0 %v254
  %v343 = vpop.f32.mrb[0].mxu0
  %v344 = vadd.f32 %v251, %v343
  %v345 = vpop.f32.mrb[0].mxu0
  %346 = vmatprep.mubr.f32.mxu0 0.0
  %347 = vmatmul.mubr.f32.gmra.mrb[0].mxu0 %v257
  %v348 = vpop.f32.mrb[0].mxu0
  %v349 = vadd.f32 %v251, %v348
  %v350 = vpop.f32.mrb[0].mxu0
  %351 = vmatprep.mubr.f32.mxu0 0.0
  %352 = vmatmul.mubr.f32.gmra.mrb[0].mxu0 %v260
  %v353 = vpop.f32.mrb[0].mxu0
  %v354 = vadd.f32 %v251, %v353
  %v355 = vpop.f32.mrb[0].mxu0
  %356 = vmatprep.mubr.f32.mxu0 0.0
  %357 = vmatmul.mubr.f32.gmra.mrb[0].mxu0 %v263
  %v358 = vpop.f32.mrb[0].mxu0
  %v359 = vadd.f32 %v251, %v358
  %v360 = vpop.f32.mrb[0].mxu0
  %361 = vmatprep.mubr.f32.mxu0 0.0
  %362 = vmatmul.mubr.f32.gmra.mrb[0].mxu0 %v266
  %v363 = vpop.f32.mrb[0].mxu0
  %v364 = vadd.f32 %v251, %v363
  %v365 = vpop.f32.mrb[0].mxu0
  %366 = vmatprep.mubr.f32.mxu0 0.0
  %367 = vmatmul.mubr.f32.gmra.mrb[0].mxu0 %v269
  %v368 = vpop.f32.mrb[0].mxu0
  %v369 = vadd.f32 %v251, %v368
  %v370 = vpop.f32.mrb[0].mxu0
  %371 = vmatprep.mubr.f32.mxu0 0.0
  %372 = vmatmul.mubr.f32.gmra.mrb[0].mxu0 %v272
  %v373 = vpop.f32.mrb[0].mxu0
  %v374 = vadd.f32 %v251, %v373
  %v375 = vpop.f32.mrb[0].mxu0
  %376 = vmatprep.mubr.f32.mxu0 0.0
  %377 = vmatmul.mubr.f32.gmra.mrb[0].mxu0 %v275
  %v378 = vpop.f32.mrb[0].mxu0
  %v379 = vadd.f32 %v251, %v378
  %v380 = vpop.f32.mrb[0].mxu0
  %381 = vdwg.mxu0
  %382 = vst [vmem:[#allocation5] sm:$0xff] %v344
  %383 = vst [vmem:[#allocation5 + $0x8] sm:$0xff] %v349
  %384 = vst [vmem:[#allocation5 + $0x10] sm:$0xff] %v354
  %385 = vst [vmem:[#allocation5 + $0x18] sm:$0xff] %v359
  %386 = vst [vmem:[#allocation5 + $0x20] sm:$0xff] %v364
  %387 = vst [vmem:[#allocation5 + $0x28] sm:$0xff] %v369
  %388 = vst [vmem:[#allocation5 + $0x30] sm:$0xff] %v374
  %389 = vst [vmem:[#allocation5 + $0x38] sm:$0xff] %v379
  %v390 = vld [vmem:[%s3] sm:$0xff]
  %v391 = vld [vmem:[%s3 + $0x8] sm:$0xff]
  %v392 = vld [vmem:[%s3 + $0x10] sm:$0xff]
  %v393 = vld [vmem:[%s3 + $0x18] sm:$0xff]
  %s394 = scalar_lea.vmem %s3, 32
  %v395 = vld [vmem:[%s394] sm:$0xff]
  %v396 = vld [vmem:[%s394 + $0x8] sm:$0xff]
  %v397 = vld [vmem:[%s394 + $0x10] sm:$0xff]
  %v398 = vld [vmem:[%s394 + $0x18] sm:$0xff]
  %v399 = vld [vmem:[#allocation2] sm:$0xff]
  %v400 = vld [vmem:[#allocation3] sm:$0xff]
  %s401 = scalar_lea.vmem [#allocation2], 8
  %v402 = vld [vmem:[%s401] sm:$0xff]
  %s403 = scalar_lea.vmem [#allocation3], 8
  %v404 = vld [vmem:[%s403] sm:$0xff]
  %v405 = vld [vmem:[#allocation4] sm:$0xff]
  %vm406 = vcmask 261120
  %v408 = vsel %vm406, %v399, 0
  %410 = vmatprep.subr.mxu0 0.0
  %411 = vmatpush1.msra.mxu0 %v390
  %412 = vmatprep.subr.mxu0 0.0
  %413 = vmatpush1.msra.mxu0 %v391
  %414 = vmatprep.subr.mxu0 0.0
  %415 = vmatpush1.msra.mxu0 %v392
  %416 = vmatprep.subr.mxu0 0.0
  %417 = vmatpush1.msra.mxu0 %v393
  %418 = vmatprep.subr.mxu0 0.0
  %419 = vmatpush1.msra.mxu0 0.0
  %420 = vmatprep.subr.mxu0 0.0
  %421 = vmatpush1.msra.mxu0 0.0
  %422 = vmatprep.subr.mxu0 0.0
  %423 = vmatpush1.msra.mxu0 0.0
  %424 = vmatprep.subr.mxu0 0.0
  %425 = vmatpush1.msra.mxu0 0.0
  %426 = vmatprep.subr.mxu0 0.0
  %427 = vmatpush1.msra.mxu0 0.0
  %428 = vmatprep.subr.mxu0 0.0
  %429 = vmatpush1.msra.mxu0 0.0
  %430 = vmatprep.subr.mxu0 0.0
  %431 = vmatpush1.msra.mxu0 0.0
  %432 = vmatprep.subr.mxu0 0.0
  %433 = vmatpush1.msra.mxu0 0.0
  %434 = vmatprep.subr.mxu0 0.0
  %435 = vmatpush1.msra.mxu0 0.0
  %436 = vmatprep.subr.mxu0 0.0
  %437 = vmatpush1.msra.mxu0 0.0
  %438 = vmatprep.subr.mxu0 0.0
  %439 = vmatpush1.msra.mxu0 0.0
  %440 = vmatprep.subr.mxu0 0.0
  %441 = vmatpush1.msra.mxu0 0.0
  %442 = vmatprep.subr.mxu0 0.0
  %443 = vmatpush1.msra.mxu0 0.0
  %444 = vmatprep.subr.mxu0 0.0
  %445 = vmatpush1.msra.mxu0 0.0
  %446 = vmatprep.subr.mxu0 0.0
  %447 = vmatpush1.msra.mxu0 0.0
  %448 = vmatprep.subr.mxu0 0.0
  %449 = vmatpush1.msra.mxu0 0.0
  %450 = vmatprep.subr.mxu0 0.0
  %451 = vmatpush1.msra.mxu0 0.0
  %452 = vmatprep.subr.mxu0 0.0
  %453 = vmatpush1.msra.mxu0 0.0
  %454 = vmatprep.subr.mxu0 0.0
  %455 = vmatpush1.msra.mxu0 0.0
  %456 = vmatprep.subr.mxu0 0.0
  %457 = vmatpush1.msra.mxu0 0.0
  %458 = vmatprep.subr.mxu0 0.0
  %459 = vmatpush1.msra.mxu0 0.0
  %460 = vmatprep.subr.mxu0 0.0
  %461 = vmatpush1.msra.mxu0 0.0
  %462 = vmatprep.subr.mxu0 0.0
  %463 = vmatpush1.msra.mxu0 0.0
  %464 = vmatprep.subr.mxu0 0.0
  %465 = vmatpush1.msra.mxu0 0.0
  %466 = vmatprep.subr.mxu0 0.0
  %467 = vmatpush1.msra.mxu0 0.0
  %468 = vmatprep.subr.mxu0 0.0
  %469 = vmatpush1.msra.mxu0 0.0
  %470 = vmatprep.subr.mxu0 0.0
  %471 = vmatpush1.msra.mxu0 0.0
  %472 = vmatprep.subr.mxu0 0.0
  %473 = vmatpush1.msra.mxu0 0.0
  %474 = vmatprep.mubr.f32.mxu0 0.0
  %475 = vmatmul.mubr.f32.gmra.mrb[0].mxu0 %v408
  %v476 = vpop.f32.mrb[0].mxu0
  %v477 = vadd.f32 0.0, %v476
  %v478 = vpop.f32.mrb[0].mxu0
  %479 = vdwg.mxu0
  %v480 = vadd.f32 %v405, %v477
  %v481 = vxor.u32 %v480, 2147483648
  %v482 = vmul.f32 %v481, 1.442695
  %v483 = vpow.pop %v482
  %v484 = vadd.f32 %v483, 1.0
  %v485 = vrcp.pop %v484
  %v486 = vmul.f32 1.0, %v485
  %v487 = vtanh.pop %v480
  %489 = vrot.lane.b32.xlu0 %v400, 32
  %v490 = vpop.permute.xlu0 %489
  %v492 = vmul.f32 %v486, %v490
  %494 = vrot.lane.b32.xlu0 %v487, 64
  %v495 = vpop.permute.xlu0 %494
  %v497 = vmul.f32 %v486, %v495
  %499 = vrot.lane.b32.xlu0 %v497, 32
  %v500 = vpop.permute.xlu0 %499
  %v502 = vadd.f32 %v492, %v500
  %v503 = vtanh.pop %v502
  %505 = vrot.lane.b32.xlu0 %v503, 64
  %v506 = vpop.permute.xlu0 %505
  %v508 = vmul.f32 %v486, %v506
  %510 = vrot.lane.b32.xlu0 %v508, 32
  %v511 = vpop.permute.xlu0 %510
  %513 = vst.msk [vmem:[%s7] sm:$0xff] %vm406, %v511
  %s514 = scalar_lea.vmem [#allocation5], 56
  %v515 = vld [vmem:[%s514] sm:$0xff]
  %v517 = vsel %vm406, %v402, 0
  %519 = vmatprep.subr.mxu0 0.0
  %520 = vmatpush1.msra.mxu0 %v395
  %521 = vmatprep.subr.mxu0 0.0
  %522 = vmatpush1.msra.mxu0 %v396
  %523 = vmatprep.subr.mxu0 0.0
  %524 = vmatpush1.msra.mxu0 %v397
  %525 = vmatprep.subr.mxu0 0.0
  %526 = vmatpush1.msra.mxu0 %v398
  %527 = vmatprep.subr.mxu0 0.0
  %528 = vmatpush1.msra.mxu0 0.0
  %529 = vmatprep.subr.mxu0 0.0
  %530 = vmatpush1.msra.mxu0 0.0
  %531 = vmatprep.subr.mxu0 0.0
  %532 = vmatpush1.msra.mxu0 0.0
  %533 = vmatprep.subr.mxu0 0.0
  %534 = vmatpush1.msra.mxu0 0.0
  %535 = vmatprep.subr.mxu0 0.0
  %536 = vmatpush1.msra.mxu0 0.0
  %537 = vmatprep.subr.mxu0 0.0
  %538 = vmatpush1.msra.mxu0 0.0
  %539 = vmatprep.subr.mxu0 0.0
  %540 = vmatpush1.msra.mxu0 0.0
  %541 = vmatprep.subr.mxu0 0.0
  %542 = vmatpush1.msra.mxu0 0.0
  %543 = vmatprep.subr.mxu0 0.0
  %544 = vmatpush1.msra.mxu0 0.0
  %545 = vmatprep.subr.mxu0 0.0
  %546 = vmatpush1.msra.mxu0 0.0
  %547 = vmatprep.subr.mxu0 0.0
  %548 = vmatpush1.msra.mxu0 0.0
  %549 = vmatprep.subr.mxu0 0.0
  %550 = vmatpush1.msra.mxu0 0.0
  %551 = vmatprep.subr.mxu0 0.0
  %552 = vmatpush1.msra.mxu0 0.0
  %553 = vmatprep.subr.mxu0 0.0
  %554 = vmatpush1.msra.mxu0 0.0
  %555 = vmatprep.subr.mxu0 0.0
  %556 = vmatpush1.msra.mxu0 0.0
  %557 = vmatprep.subr.mxu0 0.0
  %558 = vmatpush1.msra.mxu0 0.0
  %559 = vmatprep.subr.mxu0 0.0
  %560 = vmatpush1.msra.mxu0 0.0
  %561 = vmatprep.subr.mxu0 0.0
  %562 = vmatpush1.msra.mxu0 0.0
  %563 = vmatprep.subr.mxu0 0.0
  %564 = vmatpush1.msra.mxu0 0.0
  %565 = vmatprep.subr.mxu0 0.0
  %566 = vmatpush1.msra.mxu0 0.0
  %567 = vmatprep.subr.mxu0 0.0
  %568 = vmatpush1.msra.mxu0 0.0
  %569 = vmatprep.subr.mxu0 0.0
  %570 = vmatpush1.msra.mxu0 0.0
  %571 = vmatprep.subr.mxu0 0.0
  %572 = vmatpush1.msra.mxu0 0.0
  %573 = vmatprep.subr.mxu0 0.0
  %574 = vmatpush1.msra.mxu0 0.0
  %575 = vmatprep.subr.mxu0 0.0
  %576 = vmatpush1.msra.mxu0 0.0
  %577 = vmatprep.subr.mxu0 0.0
  %578 = vmatpush1.msra.mxu0 0.0
  %579 = vmatprep.subr.mxu0 0.0
  %580 = vmatpush1.msra.mxu0 0.0
  %581 = vmatprep.subr.mxu0 0.0
  %582 = vmatpush1.msra.mxu0 0.0
  %583 = vmatprep.mubr.f32.mxu0 0.0
  %584 = vmatmul.mubr.f32.gmra.mrb[0].mxu0 %v517
  %v585 = vpop.f32.mrb[0].mxu0
  %v586 = vadd.f32 0.0, %v585
  %v587 = vpop.f32.mrb[0].mxu0
  %588 = vdwg.mxu0
  %v589 = vadd.f32 %v515, %v586
  %v590 = vxor.u32 %v589, 2147483648
  %v591 = vmul.f32 %v590, 1.442695
  %v592 = vpow.pop %v591
  %v593 = vadd.f32 %v592, 1.0
  %v594 = vrcp.pop %v593
  %v595 = vmul.f32 1.0, %v594
  %v596 = vtanh.pop %v589
  %598 = vrot.lane.b32.xlu0 %v404, 32
  %v599 = vpop.permute.xlu0 %598
  %v601 = vmul.f32 %v595, %v599
  %603 = vrot.lane.b32.xlu0 %v596, 64
  %v604 = vpop.permute.xlu0 %603
  %v606 = vmul.f32 %v595, %v604
  %608 = vrot.lane.b32.xlu0 %v606, 32
  %v609 = vpop.permute.xlu0 %608
  %v611 = vadd.f32 %v601, %v609
  %v612 = vtanh.pop %v611
  %614 = vrot.lane.b32.xlu0 %v612, 64
  %v615 = vpop.permute.xlu0 %614
  %v617 = vmul.f32 %v595, %v615
  %619 = vrot.lane.b32.xlu0 %v617, 32
  %v620 = vpop.permute.xlu0 %619
  %s622 = scalar_lea.vmem %s63, 56
  %623 = vst.msk [vmem:[%s622] sm:$0xff] %vm406, %v620
  %s624 = scalar_lea.vmem [#allocation4], 8
  %v625 = vld [vmem:[%s624] sm:$0xff]
  %v626 = vsel %vm406, %v511, 0
  %628 = vmatprep.subr.mxu0 0.0
  %629 = vmatpush1.msra.mxu0 %v390
  %630 = vmatprep.subr.mxu0 0.0
  %631 = vmatpush1.msra.mxu0 %v391
  %632 = vmatprep.subr.mxu0 0.0
  %633 = vmatpush1.msra.mxu0 %v392
  %634 = vmatprep.subr.mxu0 0.0
  %635 = vmatpush1.msra.mxu0 %v393
  %636 = vmatprep.subr.mxu0 0.0
  %637 = vmatpush1.msra.mxu0 0.0
  %638 = vmatprep.subr.mxu0 0.0
  %639 = vmatpush1.msra.mxu0 0.0
  %640 = vmatprep.subr.mxu0 0.0
  %641 = vmatpush1.msra.mxu0 0.0
  %642 = vmatprep.subr.mxu0 0.0
  %643 = vmatpush1.msra.mxu0 0.0
  %644 = vmatprep.subr.mxu0 0.0
  %645 = vmatpush1.msra.mxu0 0.0
  %646 = vmatprep.subr.mxu0 0.0
  %647 = vmatpush1.msra.mxu0 0.0
  %648 = vmatprep.subr.mxu0 0.0
  %649 = vmatpush1.msra.mxu0 0.0
  %650 = vmatprep.subr.mxu0 0.0
  %651 = vmatpush1.msra.mxu0 0.0
  %652 = vmatprep.subr.mxu0 0.0
  %653 = vmatpush1.msra.mxu0 0.0
  %654 = vmatprep.subr.mxu0 0.0
  %655 = vmatpush1.msra.mxu0 0.0
  %656 = vmatprep.subr.mxu0 0.0
  %657 = vmatpush1.msra.mxu0 0.0
  %658 = vmatprep.subr.mxu0 0.0
  %659 = vmatpush1.msra.mxu0 0.0
  %660 = vmatprep.subr.mxu0 0.0
  %661 = vmatpush1.msra.mxu0 0.0
  %662 = vmatprep.subr.mxu0 0.0
  %663 = vmatpush1.msra.mxu0 0.0
  %664 = vmatprep.subr.mxu0 0.0
  %665 = vmatpush1.msra.mxu0 0.0
  %666 = vmatprep.subr.mxu0 0.0
  %667 = vmatpush1.msra.mxu0 0.0
  %668 = vmatprep.subr.mxu0 0.0
  %669 = vmatpush1.msra.mxu0 0.0
  %670 = vmatprep.subr.mxu0 0.0
  %671 = vmatpush1.msra.mxu0 0.0
  %672 = vmatprep.subr.mxu0 0.0
  %673 = vmatpush1.msra.mxu0 0.0
  %674 = vmatprep.subr.mxu0 0.0
  %675 = vmatpush1.msra.mxu0 0.0
  %676 = vmatprep.subr.mxu0 0.0
  %677 = vmatpush1.msra.mxu0 0.0
  %678 = vmatprep.subr.mxu0 0.0
  %679 = vmatpush1.msra.mxu0 0.0
  %680 = vmatprep.subr.mxu0 0.0
  %681 = vmatpush1.msra.mxu0 0.0
  %682 = vmatprep.subr.mxu0 0.0
  %683 = vmatpush1.msra.mxu0 0.0
  %684 = vmatprep.subr.mxu0 0.0
  %685 = vmatpush1.msra.mxu0 0.0
  %686 = vmatprep.subr.mxu0 0.0
  %687 = vmatpush1.msra.mxu0 0.0
  %688 = vmatprep.subr.mxu0 0.0
  %689 = vmatpush1.msra.mxu0 0.0
  %690 = vmatprep.subr.mxu0 0.0
  %691 = vmatpush1.msra.mxu0 0.0
  %692 = vmatprep.mubr.f32.mxu0 0.0
  %693 = vmatmul.mubr.f32.gmra.mrb[0].mxu0 %v626
  %v694 = vpop.f32.mrb[0].mxu0
  %v695 = vadd.f32 0.0, %v694
  %v696 = vpop.f32.mrb[0].mxu0
  %697 = vdwg.mxu0
  %v698 = vadd.f32 %v625, %v695
  %v699 = vxor.u32 %v698, 2147483648
  %v700 = vmul.f32 %v699, 1.442695
  %v701 = vpow.pop %v700
  %v702 = vadd.f32 %v701, 1.0
  %v703 = vrcp.pop %v702
  %v704 = vmul.f32 1.0, %v703
  %v705 = vtanh.pop %v698
  %v706 = vmul.f32 %v704, %v502
  %708 = vrot.lane.b32.xlu0 %v705, 64
  %v709 = vpop.permute.xlu0 %708
  %v711 = vmul.f32 %v704, %v709
  %713 = vrot.lane.b32.xlu0 %v711, 32
  %v714 = vpop.permute.xlu0 %713
  %v716 = vadd.f32 %v706, %v714
  %v717 = vtanh.pop %v716
  %719 = vrot.lane.b32.xlu0 %v717, 64
  %v720 = vpop.permute.xlu0 %719
  %v722 = vmul.f32 %v704, %v720
  %724 = vrot.lane.b32.xlu0 %v722, 32
  %v725 = vpop.permute.xlu0 %724
  %s727 = scalar_lea.vmem %s7, 8
  %728 = vst.msk [vmem:[%s727] sm:$0xff] %vm406, %v725
  %s729 = scalar_lea.vmem [#allocation5], 48
  %v730 = vld [vmem:[%s729] sm:$0xff]
  %v731 = vsel %vm406, %v620, 0
  %733 = vmatprep.subr.mxu0 0.0
  %734 = vmatpush1.msra.mxu0 %v395
  %735 = vmatprep.subr.mxu0 0.0
  %736 = vmatpush1.msra.mxu0 %v396
  %737 = vmatprep.subr.mxu0 0.0
  %738 = vmatpush1.msra.mxu0 %v397
  %739 = vmatprep.subr.mxu0 0.0
  %740 = vmatpush1.msra.mxu0 %v398
  %741 = vmatprep.subr.mxu0 0.0
  %742 = vmatpush1.msra.mxu0 0.0
  %743 = vmatprep.subr.mxu0 0.0
  %744 = vmatpush1.msra.mxu0 0.0
  %745 = vmatprep.subr.mxu0 0.0
  %746 = vmatpush1.msra.mxu0 0.0
  %747 = vmatprep.subr.mxu0 0.0
  %748 = vmatpush1.msra.mxu0 0.0
  %749 = vmatprep.subr.mxu0 0.0
  %750 = vmatpush1.msra.mxu0 0.0
  %751 = vmatprep.subr.mxu0 0.0
  %752 = vmatpush1.msra.mxu0 0.0
  %753 = vmatprep.subr.mxu0 0.0
  %754 = vmatpush1.msra.mxu0 0.0
  %755 = vmatprep.subr.mxu0 0.0
  %756 = vmatpush1.msra.mxu0 0.0
  %757 = vmatprep.subr.mxu0 0.0
  %758 = vmatpush1.msra.mxu0 0.0
  %759 = vmatprep.subr.mxu0 0.0
  %760 = vmatpush1.msra.mxu0 0.0
  %761 = vmatprep.subr.mxu0 0.0
  %762 = vmatpush1.msra.mxu0 0.0
  %763 = vmatprep.subr.mxu0 0.0
  %764 = vmatpush1.msra.mxu0 0.0
  %765 = vmatprep.subr.mxu0 0.0
  %766 = vmatpush1.msra.mxu0 0.0
  %767 = vmatprep.subr.mxu0 0.0
  %768 = vmatpush1.msra.mxu0 0.0
  %769 = vmatprep.subr.mxu0 0.0
  %770 = vmatpush1.msra.mxu0 0.0
  %771 = vmatprep.subr.mxu0 0.0
  %772 = vmatpush1.msra.mxu0 0.0
  %773 = vmatprep.subr.mxu0 0.0
  %774 = vmatpush1.msra.mxu0 0.0
  %775 = vmatprep.subr.mxu0 0.0
  %776 = vmatpush1.msra.mxu0 0.0
  %777 = vmatprep.subr.mxu0 0.0
  %778 = vmatpush1.msra.mxu0 0.0
  %779 = vmatprep.subr.mxu0 0.0
  %780 = vmatpush1.msra.mxu0 0.0
  %781 = vmatprep.subr.mxu0 0.0
  %782 = vmatpush1.msra.mxu0 0.0
  %783 = vmatprep.subr.mxu0 0.0
  %784 = vmatpush1.msra.mxu0 0.0
  %785 = vmatprep.subr.mxu0 0.0
  %786 = vmatpush1.msra.mxu0 0.0
  %787 = vmatprep.subr.mxu0 0.0
  %788 = vmatpush1.msra.mxu0 0.0
  %789 = vmatprep.subr.mxu0 0.0
  %790 = vmatpush1.msra.mxu0 0.0
  %791 = vmatprep.subr.mxu0 0.0
  %792 = vmatpush1.msra.mxu0 0.0
  %793 = vmatprep.subr.mxu0 0.0
  %794 = vmatpush1.msra.mxu0 0.0
  %795 = vmatprep.subr.mxu0 0.0
  %796 = vmatpush1.msra.mxu0 0.0
  %797 = vmatprep.mubr.f32.mxu0 0.0
  %798 = vmatmul.mubr.f32.gmra.mrb[0].mxu0 %v731
  %v799 = vpop.f32.mrb[0].mxu0
  %v800 = vadd.f32 0.0, %v799
  %v801 = vpop.f32.mrb[0].mxu0
  %802 = vdwg.mxu0
  %v803 = vadd.f32 %v730, %v800
  %v804 = vxor.u32 %v803, 2147483648
  %v805 = vmul.f32 %v804, 1.442695
  %v806 = vpow.pop %v805
  %v807 = vadd.f32 %v806, 1.0
  %v808 = vrcp.pop %v807
  %v809 = vmul.f32 1.0, %v808
  %v810 = vtanh.pop %v803
  %v811 = vmul.f32 %v809, %v611
  %813 = vrot.lane.b32.xlu0 %v810, 64
  %v814 = vpop.permute.xlu0 %813
  %v816 = vmul.f32 %v809, %v814
  %818 = vrot.lane.b32.xlu0 %v816, 32
  %v819 = vpop.permute.xlu0 %818
  %v821 = vadd.f32 %v811, %v819
  %v822 = vtanh.pop %v821
  %824 = vrot.lane.b32.xlu0 %v822, 64
  %v825 = vpop.permute.xlu0 %824
  %v827 = vmul.f32 %v809, %v825
  %829 = vrot.lane.b32.xlu0 %v827, 32
  %v830 = vpop.permute.xlu0 %829
  %s832 = scalar_lea.vmem %s63, 48
  %833 = vst.msk [vmem:[%s832] sm:$0xff] %vm406, %v830
  %s834 = scalar_lea.vmem [#allocation4], 16
  %v835 = vld [vmem:[%s834] sm:$0xff]
  %v836 = vsel %vm406, %v725, 0
  %838 = vmatprep.subr.mxu0 0.0
  %839 = vmatpush1.msra.mxu0 %v390
  %840 = vmatprep.subr.mxu0 0.0
  %841 = vmatpush1.msra.mxu0 %v391
  %842 = vmatprep.subr.mxu0 0.0
  %843 = vmatpush1.msra.mxu0 %v392
  %844 = vmatprep.subr.mxu0 0.0
  %845 = vmatpush1.msra.mxu0 %v393
  %846 = vmatprep.subr.mxu0 0.0
  %847 = vmatpush1.msra.mxu0 0.0
  %848 = vmatprep.subr.mxu0 0.0
  %849 = vmatpush1.msra.mxu0 0.0
  %850 = vmatprep.subr.mxu0 0.0
  %851 = vmatpush1.msra.mxu0 0.0
  %852 = vmatprep.subr.mxu0 0.0
  %853 = vmatpush1.msra.mxu0 0.0
  %854 = vmatprep.subr.mxu0 0.0
  %855 = vmatpush1.msra.mxu0 0.0
  %856 = vmatprep.subr.mxu0 0.0
  %857 = vmatpush1.msra.mxu0 0.0
  %858 = vmatprep.subr.mxu0 0.0
  %859 = vmatpush1.msra.mxu0 0.0
  %860 = vmatprep.subr.mxu0 0.0
  %861 = vmatpush1.msra.mxu0 0.0
  %862 = vmatprep.subr.mxu0 0.0
  %863 = vmatpush1.msra.mxu0 0.0
  %864 = vmatprep.subr.mxu0 0.0
  %865 = vmatpush1.msra.mxu0 0.0
  %866 = vmatprep.subr.mxu0 0.0
  %867 = vmatpush1.msra.mxu0 0.0
  %868 = vmatprep.subr.mxu0 0.0
  %869 = vmatpush1.msra.mxu0 0.0
  %870 = vmatprep.subr.mxu0 0.0
  %871 = vmatpush1.msra.mxu0 0.0
  %872 = vmatprep.subr.mxu0 0.0
  %873 = vmatpush1.msra.mxu0 0.0
  %874 = vmatprep.subr.mxu0 0.0
  %875 = vmatpush1.msra.mxu0 0.0
  %876 = vmatprep.subr.mxu0 0.0
  %877 = vmatpush1.msra.mxu0 0.0
  %878 = vmatprep.subr.mxu0 0.0
  %879 = vmatpush1.msra.mxu0 0.0
  %880 = vmatprep.subr.mxu0 0.0
  %881 = vmatpush1.msra.mxu0 0.0
  %882 = vmatprep.subr.mxu0 0.0
  %883 = vmatpush1.msra.mxu0 0.0
  %884 = vmatprep.subr.mxu0 0.0
  %885 = vmatpush1.msra.mxu0 0.0
  %886 = vmatprep.subr.mxu0 0.0
  %887 = vmatpush1.msra.mxu0 0.0
  %888 = vmatprep.subr.mxu0 0.0
  %889 = vmatpush1.msra.mxu0 0.0
  %890 = vmatprep.subr.mxu0 0.0
  %891 = vmatpush1.msra.mxu0 0.0
  %892 = vmatprep.subr.mxu0 0.0
  %893 = vmatpush1.msra.mxu0 0.0
  %894 = vmatprep.subr.mxu0 0.0
  %895 = vmatpush1.msra.mxu0 0.0
  %896 = vmatprep.subr.mxu0 0.0
  %897 = vmatpush1.msra.mxu0 0.0
  %898 = vmatprep.subr.mxu0 0.0
  %899 = vmatpush1.msra.mxu0 0.0
  %900 = vmatprep.subr.mxu0 0.0
  %901 = vmatpush1.msra.mxu0 0.0
  %902 = vmatprep.mubr.f32.mxu0 0.0
  %903 = vmatmul.mubr.f32.gmra.mrb[0].mxu0 %v836
  %v904 = vpop.f32.mrb[0].mxu0
  %v905 = vadd.f32 0.0, %v904
  %v906 = vpop.f32.mrb[0].mxu0
  %907 = vdwg.mxu0
  %v908 = vadd.f32 %v835, %v905
  %v909 = vxor.u32 %v908, 2147483648
  %v910 = vmul.f32 %v909, 1.442695
  %v911 = vpow.pop %v910
  %v912 = vadd.f32 %v911, 1.0
  %v913 = vrcp.pop %v912
  %v914 = vmul.f32 1.0, %v913
  %v915 = vtanh.pop %v908
  %v916 = vmul.f32 %v914, %v716
  %918 = vrot.lane.b32.xlu0 %v915, 64
  %v919 = vpop.permute.xlu0 %918
  %v921 = vmul.f32 %v914, %v919
  %923 = vrot.lane.b32.xlu0 %v921, 32
  %v924 = vpop.permute.xlu0 %923
  %v926 = vadd.f32 %v916, %v924
  %v927 = vtanh.pop %v926
  %929 = vrot.lane.b32.xlu0 %v927, 64
  %v930 = vpop.permute.xlu0 %929
  %v932 = vmul.f32 %v914, %v930
  %934 = vrot.lane.b32.xlu0 %v932, 32
  %v935 = vpop.permute.xlu0 %934
  %s937 = scalar_lea.vmem %s7, 16
  %938 = vst.msk [vmem:[%s937] sm:$0xff] %vm406, %v935
  %s939 = scalar_lea.vmem [#allocation5], 40
  %v940 = vld [vmem:[%s939] sm:$0xff]
  %v941 = vsel %vm406, %v830, 0
  %943 = vmatprep.subr.mxu0 0.0
  %944 = vmatpush1.msra.mxu0 %v395
  %945 = vmatprep.subr.mxu0 0.0
  %946 = vmatpush1.msra.mxu0 %v396
  %947 = vmatprep.subr.mxu0 0.0
  %948 = vmatpush1.msra.mxu0 %v397
  %949 = vmatprep.subr.mxu0 0.0
  %950 = vmatpush1.msra.mxu0 %v398
  %951 = vmatprep.subr.mxu0 0.0
  %952 = vmatpush1.msra.mxu0 0.0
  %953 = vmatprep.subr.mxu0 0.0
  %954 = vmatpush1.msra.mxu0 0.0
  %955 = vmatprep.subr.mxu0 0.0
  %956 = vmatpush1.msra.mxu0 0.0
  %957 = vmatprep.subr.mxu0 0.0
  %958 = vmatpush1.msra.mxu0 0.0
  %959 = vmatprep.subr.mxu0 0.0
  %960 = vmatpush1.msra.mxu0 0.0
  %961 = vmatprep.subr.mxu0 0.0
  %962 = vmatpush1.msra.mxu0 0.0
  %963 = vmatprep.subr.mxu0 0.0
  %964 = vmatpush1.msra.mxu0 0.0
  %965 = vmatprep.subr.mxu0 0.0
  %966 = vmatpush1.msra.mxu0 0.0
  %967 = vmatprep.subr.mxu0 0.0
  %968 = vmatpush1.msra.mxu0 0.0
  %969 = vmatprep.subr.mxu0 0.0
  %970 = vmatpush1.msra.mxu0 0.0
  %971 = vmatprep.subr.mxu0 0.0
  %972 = vmatpush1.msra.mxu0 0.0
  %973 = vmatprep.subr.mxu0 0.0
  %974 = vmatpush1.msra.mxu0 0.0
  %975 = vmatprep.subr.mxu0 0.0
  %976 = vmatpush1.msra.mxu0 0.0
  %977 = vmatprep.subr.mxu0 0.0
  %978 = vmatpush1.msra.mxu0 0.0
  %979 = vmatprep.subr.mxu0 0.0
  %980 = vmatpush1.msra.mxu0 0.0
  %981 = vmatprep.subr.mxu0 0.0
  %982 = vmatpush1.msra.mxu0 0.0
  %983 = vmatprep.subr.mxu0 0.0
  %984 = vmatpush1.msra.mxu0 0.0
  %985 = vmatprep.subr.mxu0 0.0
  %986 = vmatpush1.msra.mxu0 0.0
  %987 = vmatprep.subr.mxu0 0.0
  %988 = vmatpush1.msra.mxu0 0.0
  %989 = vmatprep.subr.mxu0 0.0
  %990 = vmatpush1.msra.mxu0 0.0
  %991 = vmatprep.subr.mxu0 0.0
  %992 = vmatpush1.msra.mxu0 0.0
  %993 = vmatprep.subr.mxu0 0.0
  %994 = vmatpush1.msra.mxu0 0.0
  %995 = vmatprep.subr.mxu0 0.0
  %996 = vmatpush1.msra.mxu0 0.0
  %997 = vmatprep.subr.mxu0 0.0
  %998 = vmatpush1.msra.mxu0 0.0
  %999 = vmatprep.subr.mxu0 0.0
  %1000 = vmatpush1.msra.mxu0 0.0
  %1001 = vmatprep.subr.mxu0 0.0
  %1002 = vmatpush1.msra.mxu0 0.0
  %1003 = vmatprep.subr.mxu0 0.0
  %1004 = vmatpush1.msra.mxu0 0.0
  %1005 = vmatprep.subr.mxu0 0.0
  %1006 = vmatpush1.msra.mxu0 0.0
  %1007 = vmatprep.mubr.f32.mxu0 0.0
  %1008 = vmatmul.mubr.f32.gmra.mrb[0].mxu0 %v941
  %v1009 = vpop.f32.mrb[0].mxu0
  %v1010 = vadd.f32 0.0, %v1009
  %v1011 = vpop.f32.mrb[0].mxu0
  %1012 = vdwg.mxu0
  %v1013 = vadd.f32 %v940, %v1010
  %v1014 = vxor.u32 %v1013, 2147483648
  %v1015 = vmul.f32 %v1014, 1.442695
  %v1016 = vpow.pop %v1015
  %v1017 = vadd.f32 %v1016, 1.0
  %v1018 = vrcp.pop %v1017
  %v1019 = vmul.f32 1.0, %v1018
  %v1020 = vtanh.pop %v1013
  %v1021 = vmul.f32 %v1019, %v821
  %1023 = vrot.lane.b32.xlu0 %v1020, 64
  %v1024 = vpop.permute.xlu0 %1023
  %v1026 = vmul.f32 %v1019, %v1024
  %1028 = vrot.lane.b32.xlu0 %v1026, 32
  %v1029 = vpop.permute.xlu0 %1028
  %v1031 = vadd.f32 %v1021, %v1029
  %v1032 = vtanh.pop %v1031
  %1034 = vrot.lane.b32.xlu0 %v1032, 64
  %v1035 = vpop.permute.xlu0 %1034
  %v1037 = vmul.f32 %v1019, %v1035
  %1039 = vrot.lane.b32.xlu0 %v1037, 32
  %v1040 = vpop.permute.xlu0 %1039
  %s1042 = scalar_lea.vmem %s63, 40
  %1043 = vst.msk [vmem:[%s1042] sm:$0xff] %vm406, %v1040
  %s1044 = scalar_lea.vmem [#allocation4], 24
  %v1045 = vld [vmem:[%s1044] sm:$0xff]
  %v1046 = vsel %vm406, %v935, 0
  %1048 = vmatprep.subr.mxu0 0.0
  %1049 = vmatpush1.msra.mxu0 %v390
  %1050 = vmatprep.subr.mxu0 0.0
  %1051 = vmatpush1.msra.mxu0 %v391
  %1052 = vmatprep.subr.mxu0 0.0
  %1053 = vmatpush1.msra.mxu0 %v392
  %1054 = vmatprep.subr.mxu0 0.0
  %1055 = vmatpush1.msra.mxu0 %v393
  %1056 = vmatprep.subr.mxu0 0.0
  %1057 = vmatpush1.msra.mxu0 0.0
  %1058 = vmatprep.subr.mxu0 0.0
  %1059 = vmatpush1.msra.mxu0 0.0
  %1060 = vmatprep.subr.mxu0 0.0
  %1061 = vmatpush1.msra.mxu0 0.0
  %1062 = vmatprep.subr.mxu0 0.0
  %1063 = vmatpush1.msra.mxu0 0.0
  %1064 = vmatprep.subr.mxu0 0.0
  %1065 = vmatpush1.msra.mxu0 0.0
  %1066 = vmatprep.subr.mxu0 0.0
  %1067 = vmatpush1.msra.mxu0 0.0
  %1068 = vmatprep.subr.mxu0 0.0
  %1069 = vmatpush1.msra.mxu0 0.0
  %1070 = vmatprep.subr.mxu0 0.0
  %1071 = vmatpush1.msra.mxu0 0.0
  %1072 = vmatprep.subr.mxu0 0.0
  %1073 = vmatpush1.msra.mxu0 0.0
  %1074 = vmatprep.subr.mxu0 0.0
  %1075 = vmatpush1.msra.mxu0 0.0
  %1076 = vmatprep.subr.mxu0 0.0
  %1077 = vmatpush1.msra.mxu0 0.0
  %1078 = vmatprep.subr.mxu0 0.0
  %1079 = vmatpush1.msra.mxu0 0.0
  %1080 = vmatprep.subr.mxu0 0.0
  %1081 = vmatpush1.msra.mxu0 0.0
  %1082 = vmatprep.subr.mxu0 0.0
  %1083 = vmatpush1.msra.mxu0 0.0
  %1084 = vmatprep.subr.mxu0 0.0
  %1085 = vmatpush1.msra.mxu0 0.0
  %1086 = vmatprep.subr.mxu0 0.0
  %1087 = vmatpush1.msra.mxu0 0.0
  %1088 = vmatprep.subr.mxu0 0.0
  %1089 = vmatpush1.msra.mxu0 0.0
  %1090 = vmatprep.subr.mxu0 0.0
  %1091 = vmatpush1.msra.mxu0 0.0
  %1092 = vmatprep.subr.mxu0 0.0
  %1093 = vmatpush1.msra.mxu0 0.0
  %1094 = vmatprep.subr.mxu0 0.0
  %1095 = vmatpush1.msra.mxu0 0.0
  %1096 = vmatprep.subr.mxu0 0.0
  %1097 = vmatpush1.msra.mxu0 0.0
  %1098 = vmatprep.subr.mxu0 0.0
  %1099 = vmatpush1.msra.mxu0 0.0
  %1100 = vmatprep.subr.mxu0 0.0
  %1101 = vmatpush1.msra.mxu0 0.0
  %1102 = vmatprep.subr.mxu0 0.0
  %1103 = vmatpush1.msra.mxu0 0.0
  %1104 = vmatprep.subr.mxu0 0.0
  %1105 = vmatpush1.msra.mxu0 0.0
  %1106 = vmatprep.subr.mxu0 0.0
  %1107 = vmatpush1.msra.mxu0 0.0
  %1108 = vmatprep.subr.mxu0 0.0
  %1109 = vmatpush1.msra.mxu0 0.0
  %1110 = vmatprep.subr.mxu0 0.0
  %1111 = vmatpush1.msra.mxu0 0.0
  %1112 = vmatprep.mubr.f32.mxu0 0.0
  %1113 = vmatmul.mubr.f32.gmra.mrb[0].mxu0 %v1046
  %v1114 = vpop.f32.mrb[0].mxu0
  %v1115 = vadd.f32 0.0, %v1114
  %v1116 = vpop.f32.mrb[0].mxu0
  %1117 = vdwg.mxu0
  %v1118 = vadd.f32 %v1045, %v1115
  %v1119 = vxor.u32 %v1118, 2147483648
  %v1120 = vmul.f32 %v1119, 1.442695
  %v1121 = vpow.pop %v1120
  %v1122 = vadd.f32 %v1121, 1.0
  %v1123 = vrcp.pop %v1122
  %v1124 = vmul.f32 1.0, %v1123
  %v1125 = vtanh.pop %v1118
  %v1126 = vmul.f32 %v1124, %v926
  %1128 = vrot.lane.b32.xlu0 %v1125, 64
  %v1129 = vpop.permute.xlu0 %1128
  %v1131 = vmul.f32 %v1124, %v1129
  %1133 = vrot.lane.b32.xlu0 %v1131, 32
  %v1134 = vpop.permute.xlu0 %1133
  %v1136 = vadd.f32 %v1126, %v1134
  %v1137 = vtanh.pop %v1136
  %1139 = vrot.lane.b32.xlu0 %v1137, 64
  %v1140 = vpop.permute.xlu0 %1139
  %v1142 = vmul.f32 %v1124, %v1140
  %1144 = vrot.lane.b32.xlu0 %v1142, 32
  %v1145 = vpop.permute.xlu0 %1144
  %s1147 = scalar_lea.vmem %s7, 24
  %1148 = vst.msk [vmem:[%s1147] sm:$0xff] %vm406, %v1145
  %s1149 = scalar_lea.vmem [#allocation5], 32
  %v1150 = vld [vmem:[%s1149] sm:$0xff]
  %v1151 = vsel %vm406, %v1040, 0
  %1153 = vmatprep.subr.mxu0 0.0
  %1154 = vmatpush1.msra.mxu0 %v395
  %1155 = vmatprep.subr.mxu0 0.0
  %1156 = vmatpush1.msra.mxu0 %v396
  %1157 = vmatprep.subr.mxu0 0.0
  %1158 = vmatpush1.msra.mxu0 %v397
  %1159 = vmatprep.subr.mxu0 0.0
  %1160 = vmatpush1.msra.mxu0 %v398
  %1161 = vmatprep.subr.mxu0 0.0
  %1162 = vmatpush1.msra.mxu0 0.0
  %1163 = vmatprep.subr.mxu0 0.0
  %1164 = vmatpush1.msra.mxu0 0.0
  %1165 = vmatprep.subr.mxu0 0.0
  %1166 = vmatpush1.msra.mxu0 0.0
  %1167 = vmatprep.subr.mxu0 0.0
  %1168 = vmatpush1.msra.mxu0 0.0
  %1169 = vmatprep.subr.mxu0 0.0
  %1170 = vmatpush1.msra.mxu0 0.0
  %1171 = vmatprep.subr.mxu0 0.0
  %1172 = vmatpush1.msra.mxu0 0.0
  %1173 = vmatprep.subr.mxu0 0.0
  %1174 = vmatpush1.msra.mxu0 0.0
  %1175 = vmatprep.subr.mxu0 0.0
  %1176 = vmatpush1.msra.mxu0 0.0
  %1177 = vmatprep.subr.mxu0 0.0
  %1178 = vmatpush1.msra.mxu0 0.0
  %1179 = vmatprep.subr.mxu0 0.0
  %1180 = vmatpush1.msra.mxu0 0.0
  %1181 = vmatprep.subr.mxu0 0.0
  %1182 = vmatpush1.msra.mxu0 0.0
  %1183 = vmatprep.subr.mxu0 0.0
  %1184 = vmatpush1.msra.mxu0 0.0
  %1185 = vmatprep.subr.mxu0 0.0
  %1186 = vmatpush1.msra.mxu0 0.0
  %1187 = vmatprep.subr.mxu0 0.0
  %1188 = vmatpush1.msra.mxu0 0.0
  %1189 = vmatprep.subr.mxu0 0.0
  %1190 = vmatpush1.msra.mxu0 0.0
  %1191 = vmatprep.subr.mxu0 0.0
  %1192 = vmatpush1.msra.mxu0 0.0
  %1193 = vmatprep.subr.mxu0 0.0
  %1194 = vmatpush1.msra.mxu0 0.0
  %1195 = vmatprep.subr.mxu0 0.0
  %1196 = vmatpush1.msra.mxu0 0.0
  %1197 = vmatprep.subr.mxu0 0.0
  %1198 = vmatpush1.msra.mxu0 0.0
  %1199 = vmatprep.subr.mxu0 0.0
  %1200 = vmatpush1.msra.mxu0 0.0
  %1201 = vmatprep.subr.mxu0 0.0
  %1202 = vmatpush1.msra.mxu0 0.0
  %1203 = vmatprep.subr.mxu0 0.0
  %1204 = vmatpush1.msra.mxu0 0.0
  %1205 = vmatprep.subr.mxu0 0.0
  %1206 = vmatpush1.msra.mxu0 0.0
  %1207 = vmatprep.subr.mxu0 0.0
  %1208 = vmatpush1.msra.mxu0 0.0
  %1209 = vmatprep.subr.mxu0 0.0
  %1210 = vmatpush1.msra.mxu0 0.0
  %1211 = vmatprep.subr.mxu0 0.0
  %1212 = vmatpush1.msra.mxu0 0.0
  %1213 = vmatprep.subr.mxu0 0.0
  %1214 = vmatpush1.msra.mxu0 0.0
  %1215 = vmatprep.subr.mxu0 0.0
  %1216 = vmatpush1.msra.mxu0 0.0
  %1217 = vmatprep.mubr.f32.mxu0 0.0
  %1218 = vmatmul.mubr.f32.gmra.mrb[0].mxu0 %v1151
  %v1219 = vpop.f32.mrb[0].mxu0
  %v1220 = vadd.f32 0.0, %v1219
  %v1221 = vpop.f32.mrb[0].mxu0
  %1222 = vdwg.mxu0
  %v1223 = vadd.f32 %v1150, %v1220
  %v1224 = vxor.u32 %v1223, 2147483648
  %v1225 = vmul.f32 %v1224, 1.442695
  %v1226 = vpow.pop %v1225
  %v1227 = vadd.f32 %v1226, 1.0
  %v1228 = vrcp.pop %v1227
  %v1229 = vmul.f32 1.0, %v1228
  %v1230 = vtanh.pop %v1223
  %v1231 = vmul.f32 %v1229, %v1031
  %1233 = vrot.lane.b32.xlu0 %v1230, 64
  %v1234 = vpop.permute.xlu0 %1233
  %v1236 = vmul.f32 %v1229, %v1234
  %1238 = vrot.lane.b32.xlu0 %v1236, 32
  %v1239 = vpop.permute.xlu0 %1238
  %v1241 = vadd.f32 %v1231, %v1239
  %v1242 = vtanh.pop %v1241
  %1244 = vrot.lane.b32.xlu0 %v1242, 64
  %v1245 = vpop.permute.xlu0 %1244
  %v1247 = vmul.f32 %v1229, %v1245
  %1249 = vrot.lane.b32.xlu0 %v1247, 32
  %v1250 = vpop.permute.xlu0 %1249
  %s1252 = scalar_lea.vmem %s63, 32
  %1253 = vst.msk [vmem:[%s1252] sm:$0xff] %vm406, %v1250
  %s1254 = scalar_lea.vmem [#allocation4], 32
  %v1255 = vld [vmem:[%s1254] sm:$0xff]
  %v1256 = vsel %vm406, %v1145, 0
  %1258 = vmatprep.subr.mxu0 0.0
  %1259 = vmatpush1.msra.mxu0 %v390
  %1260 = vmatprep.subr.mxu0 0.0
  %1261 = vmatpush1.msra.mxu0 %v391
  %1262 = vmatprep.subr.mxu0 0.0
  %1263 = vmatpush1.msra.mxu0 %v392
  %1264 = vmatprep.subr.mxu0 0.0
  %1265 = vmatpush1.msra.mxu0 %v393
  %1266 = vmatprep.subr.mxu0 0.0
  %1267 = vmatpush1.msra.mxu0 0.0
  %1268 = vmatprep.subr.mxu0 0.0
  %1269 = vmatpush1.msra.mxu0 0.0
  %1270 = vmatprep.subr.mxu0 0.0
  %1271 = vmatpush1.msra.mxu0 0.0
  %1272 = vmatprep.subr.mxu0 0.0
  %1273 = vmatpush1.msra.mxu0 0.0
  %1274 = vmatprep.subr.mxu0 0.0
  %1275 = vmatpush1.msra.mxu0 0.0
  %1276 = vmatprep.subr.mxu0 0.0
  %1277 = vmatpush1.msra.mxu0 0.0
  %1278 = vmatprep.subr.mxu0 0.0
  %1279 = vmatpush1.msra.mxu0 0.0
  %1280 = vmatprep.subr.mxu0 0.0
  %1281 = vmatpush1.msra.mxu0 0.0
  %1282 = vmatprep.subr.mxu0 0.0
  %1283 = vmatpush1.msra.mxu0 0.0
  %1284 = vmatprep.subr.mxu0 0.0
  %1285 = vmatpush1.msra.mxu0 0.0
  %1286 = vmatprep.subr.mxu0 0.0
  %1287 = vmatpush1.msra.mxu0 0.0
  %1288 = vmatprep.subr.mxu0 0.0
  %1289 = vmatpush1.msra.mxu0 0.0
  %1290 = vmatprep.subr.mxu0 0.0
  %1291 = vmatpush1.msra.mxu0 0.0
  %1292 = vmatprep.subr.mxu0 0.0
  %1293 = vmatpush1.msra.mxu0 0.0
  %1294 = vmatprep.subr.mxu0 0.0
  %1295 = vmatpush1.msra.mxu0 0.0
  %1296 = vmatprep.subr.mxu0 0.0
  %1297 = vmatpush1.msra.mxu0 0.0
  %1298 = vmatprep.subr.mxu0 0.0
  %1299 = vmatpush1.msra.mxu0 0.0
  %1300 = vmatprep.subr.mxu0 0.0
  %1301 = vmatpush1.msra.mxu0 0.0
  %1302 = vmatprep.subr.mxu0 0.0
  %1303 = vmatpush1.msra.mxu0 0.0
  %1304 = vmatprep.subr.mxu0 0.0
  %1305 = vmatpush1.msra.mxu0 0.0
  %1306 = vmatprep.subr.mxu0 0.0
  %1307 = vmatpush1.msra.mxu0 0.0
  %1308 = vmatprep.subr.mxu0 0.0
  %1309 = vmatpush1.msra.mxu0 0.0
  %1310 = vmatprep.subr.mxu0 0.0
  %1311 = vmatpush1.msra.mxu0 0.0
  %1312 = vmatprep.subr.mxu0 0.0
  %1313 = vmatpush1.msra.mxu0 0.0
  %1314 = vmatprep.subr.mxu0 0.0
  %1315 = vmatpush1.msra.mxu0 0.0
  %1316 = vmatprep.subr.mxu0 0.0
  %1317 = vmatpush1.msra.mxu0 0.0
  %1318 = vmatprep.subr.mxu0 0.0
  %1319 = vmatpush1.msra.mxu0 0.0
  %1320 = vmatprep.subr.mxu0 0.0
  %1321 = vmatpush1.msra.mxu0 0.0
  %1322 = vmatprep.mubr.f32.mxu0 0.0
  %1323 = vmatmul.mubr.f32.gmra.mrb[0].mxu0 %v1256
  %v1324 = vpop.f32.mrb[0].mxu0
  %v1325 = vadd.f32 0.0, %v1324
  %v1326 = vpop.f32.mrb[0].mxu0
  %1327 = vdwg.mxu0
  %v1328 = vadd.f32 %v1255, %v1325
  %v1329 = vxor.u32 %v1328, 2147483648
  %v1330 = vmul.f32 %v1329, 1.442695
  %v1331 = vpow.pop %v1330
  %v1332 = vadd.f32 %v1331, 1.0
  %v1333 = vrcp.pop %v1332
  %v1334 = vmul.f32 1.0, %v1333
  %v1335 = vtanh.pop %v1328
  %v1336 = vmul.f32 %v1334, %v1136
  %1338 = vrot.lane.b32.xlu0 %v1335, 64
  %v1339 = vpop.permute.xlu0 %1338
  %v1341 = vmul.f32 %v1334, %v1339
  %1343 = vrot.lane.b32.xlu0 %v1341, 32
  %v1344 = vpop.permute.xlu0 %1343
  %v1346 = vadd.f32 %v1336, %v1344
  %v1347 = vtanh.pop %v1346
  %1349 = vrot.lane.b32.xlu0 %v1347, 64
  %v1350 = vpop.permute.xlu0 %1349
  %v1352 = vmul.f32 %v1334, %v1350
  %1354 = vrot.lane.b32.xlu0 %v1352, 32
  %v1355 = vpop.permute.xlu0 %1354
  %s1357 = scalar_lea.vmem %s7, 32
  %1358 = vst.msk [vmem:[%s1357] sm:$0xff] %vm406, %v1355
  %s1359 = scalar_lea.vmem [#allocation5], 24
  %v1360 = vld [vmem:[%s1359] sm:$0xff]
  %v1361 = vsel %vm406, %v1250, 0
  %1363 = vmatprep.subr.mxu0 0.0
  %1364 = vmatpush1.msra.mxu0 %v395
  %1365 = vmatprep.subr.mxu0 0.0
  %1366 = vmatpush1.msra.mxu0 %v396
  %1367 = vmatprep.subr.mxu0 0.0
  %1368 = vmatpush1.msra.mxu0 %v397
  %1369 = vmatprep.subr.mxu0 0.0
  %1370 = vmatpush1.msra.mxu0 %v398
  %1371 = vmatprep.subr.mxu0 0.0
  %1372 = vmatpush1.msra.mxu0 0.0
  %1373 = vmatprep.subr.mxu0 0.0
  %1374 = vmatpush1.msra.mxu0 0.0
  %1375 = vmatprep.subr.mxu0 0.0
  %1376 = vmatpush1.msra.mxu0 0.0
  %1377 = vmatprep.subr.mxu0 0.0
  %1378 = vmatpush1.msra.mxu0 0.0
  %1379 = vmatprep.subr.mxu0 0.0
  %1380 = vmatpush1.msra.mxu0 0.0
  %1381 = vmatprep.subr.mxu0 0.0
  %1382 = vmatpush1.msra.mxu0 0.0
  %1383 = vmatprep.subr.mxu0 0.0
  %1384 = vmatpush1.msra.mxu0 0.0
  %1385 = vmatprep.subr.mxu0 0.0
  %1386 = vmatpush1.msra.mxu0 0.0
  %1387 = vmatprep.subr.mxu0 0.0
  %1388 = vmatpush1.msra.mxu0 0.0
  %1389 = vmatprep.subr.mxu0 0.0
  %1390 = vmatpush1.msra.mxu0 0.0
  %1391 = vmatprep.subr.mxu0 0.0
  %1392 = vmatpush1.msra.mxu0 0.0
  %1393 = vmatprep.subr.mxu0 0.0
  %1394 = vmatpush1.msra.mxu0 0.0
  %1395 = vmatprep.subr.mxu0 0.0
  %1396 = vmatpush1.msra.mxu0 0.0
  %1397 = vmatprep.subr.mxu0 0.0
  %1398 = vmatpush1.msra.mxu0 0.0
  %1399 = vmatprep.subr.mxu0 0.0
  %1400 = vmatpush1.msra.mxu0 0.0
  %1401 = vmatprep.subr.mxu0 0.0
  %1402 = vmatpush1.msra.mxu0 0.0
  %1403 = vmatprep.subr.mxu0 0.0
  %1404 = vmatpush1.msra.mxu0 0.0
  %1405 = vmatprep.subr.mxu0 0.0
  %1406 = vmatpush1.msra.mxu0 0.0
  %1407 = vmatprep.subr.mxu0 0.0
  %1408 = vmatpush1.msra.mxu0 0.0
  %1409 = vmatprep.subr.mxu0 0.0
  %1410 = vmatpush1.msra.mxu0 0.0
  %1411 = vmatprep.subr.mxu0 0.0
  %1412 = vmatpush1.msra.mxu0 0.0
  %1413 = vmatprep.subr.mxu0 0.0
  %1414 = vmatpush1.msra.mxu0 0.0
  %1415 = vmatprep.subr.mxu0 0.0
  %1416 = vmatpush1.msra.mxu0 0.0
  %1417 = vmatprep.subr.mxu0 0.0
  %1418 = vmatpush1.msra.mxu0 0.0
  %1419 = vmatprep.subr.mxu0 0.0
  %1420 = vmatpush1.msra.mxu0 0.0
  %1421 = vmatprep.subr.mxu0 0.0
  %1422 = vmatpush1.msra.mxu0 0.0
  %1423 = vmatprep.subr.mxu0 0.0
  %1424 = vmatpush1.msra.mxu0 0.0
  %1425 = vmatprep.subr.mxu0 0.0
  %1426 = vmatpush1.msra.mxu0 0.0
  %1427 = vmatprep.mubr.f32.mxu0 0.0
  %1428 = vmatmul.mubr.f32.gmra.mrb[0].mxu0 %v1361
  %v1429 = vpop.f32.mrb[0].mxu0
  %v1430 = vadd.f32 0.0, %v1429
  %v1431 = vpop.f32.mrb[0].mxu0
  %1432 = vdwg.mxu0
  %v1433 = vadd.f32 %v1360, %v1430
  %v1434 = vxor.u32 %v1433, 2147483648
  %v1435 = vmul.f32 %v1434, 1.442695
  %v1436 = vpow.pop %v1435
  %v1437 = vadd.f32 %v1436, 1.0
  %v1438 = vrcp.pop %v1437
  %v1439 = vmul.f32 1.0, %v1438
  %v1440 = vtanh.pop %v1433
  %v1441 = vmul.f32 %v1439, %v1241
  %1443 = vrot.lane.b32.xlu0 %v1440, 64
  %v1444 = vpop.permute.xlu0 %1443
  %v1446 = vmul.f32 %v1439, %v1444
  %1448 = vrot.lane.b32.xlu0 %v1446, 32
  %v1449 = vpop.permute.xlu0 %1448
  %v1451 = vadd.f32 %v1441, %v1449
  %v1452 = vtanh.pop %v1451
  %1454 = vrot.lane.b32.xlu0 %v1452, 64
  %v1455 = vpop.permute.xlu0 %1454
  %v1457 = vmul.f32 %v1439, %v1455
  %1459 = vrot.lane.b32.xlu0 %v1457, 32
  %v1460 = vpop.permute.xlu0 %1459
  %s1462 = scalar_lea.vmem %s63, 24
  %1463 = vst.msk [vmem:[%s1462] sm:$0xff] %vm406, %v1460
  %s1464 = scalar_lea.vmem [#allocation4], 40
  %v1465 = vld [vmem:[%s1464] sm:$0xff]
  %v1466 = vsel %vm406, %v1355, 0
  %1468 = vmatprep.subr.mxu0 0.0
  %1469 = vmatpush1.msra.mxu0 %v390
  %1470 = vmatprep.subr.mxu0 0.0
  %1471 = vmatpush1.msra.mxu0 %v391
  %1472 = vmatprep.subr.mxu0 0.0
  %1473 = vmatpush1.msra.mxu0 %v392
  %1474 = vmatprep.subr.mxu0 0.0
  %1475 = vmatpush1.msra.mxu0 %v393
  %1476 = vmatprep.subr.mxu0 0.0
  %1477 = vmatpush1.msra.mxu0 0.0
  %1478 = vmatprep.subr.mxu0 0.0
  %1479 = vmatpush1.msra.mxu0 0.0
  %1480 = vmatprep.subr.mxu0 0.0
  %1481 = vmatpush1.msra.mxu0 0.0
  %1482 = vmatprep.subr.mxu0 0.0
  %1483 = vmatpush1.msra.mxu0 0.0
  %1484 = vmatprep.subr.mxu0 0.0
  %1485 = vmatpush1.msra.mxu0 0.0
  %1486 = vmatprep.subr.mxu0 0.0
  %1487 = vmatpush1.msra.mxu0 0.0
  %1488 = vmatprep.subr.mxu0 0.0
  %1489 = vmatpush1.msra.mxu0 0.0
  %1490 = vmatprep.subr.mxu0 0.0
  %1491 = vmatpush1.msra.mxu0 0.0
  %1492 = vmatprep.subr.mxu0 0.0
  %1493 = vmatpush1.msra.mxu0 0.0
  %1494 = vmatprep.subr.mxu0 0.0
  %1495 = vmatpush1.msra.mxu0 0.0
  %1496 = vmatprep.subr.mxu0 0.0
  %1497 = vmatpush1.msra.mxu0 0.0
  %1498 = vmatprep.subr.mxu0 0.0
  %1499 = vmatpush1.msra.mxu0 0.0
  %1500 = vmatprep.subr.mxu0 0.0
  %1501 = vmatpush1.msra.mxu0 0.0
  %1502 = vmatprep.subr.mxu0 0.0
  %1503 = vmatpush1.msra.mxu0 0.0
  %1504 = vmatprep.subr.mxu0 0.0
  %1505 = vmatpush1.msra.mxu0 0.0
  %1506 = vmatprep.subr.mxu0 0.0
  %1507 = vmatpush1.msra.mxu0 0.0
  %1508 = vmatprep.subr.mxu0 0.0
  %1509 = vmatpush1.msra.mxu0 0.0
  %1510 = vmatprep.subr.mxu0 0.0
  %1511 = vmatpush1.msra.mxu0 0.0
  %1512 = vmatprep.subr.mxu0 0.0
  %1513 = vmatpush1.msra.mxu0 0.0
  %1514 = vmatprep.subr.mxu0 0.0
  %1515 = vmatpush1.msra.mxu0 0.0
  %1516 = vmatprep.subr.mxu0 0.0
  %1517 = vmatpush1.msra.mxu0 0.0
  %1518 = vmatprep.subr.mxu0 0.0
  %1519 = vmatpush1.msra.mxu0 0.0
  %1520 = vmatprep.subr.mxu0 0.0
  %1521 = vmatpush1.msra.mxu0 0.0
  %1522 = vmatprep.subr.mxu0 0.0
  %1523 = vmatpush1.msra.mxu0 0.0
  %1524 = vmatprep.subr.mxu0 0.0
  %1525 = vmatpush1.msra.mxu0 0.0
  %1526 = vmatprep.subr.mxu0 0.0
  %1527 = vmatpush1.msra.mxu0 0.0
  %1528 = vmatprep.subr.mxu0 0.0
  %1529 = vmatpush1.msra.mxu0 0.0
  %1530 = vmatprep.subr.mxu0 0.0
  %1531 = vmatpush1.msra.mxu0 0.0
  %1532 = vmatprep.mubr.f32.mxu0 0.0
  %1533 = vmatmul.mubr.f32.gmra.mrb[0].mxu0 %v1466
  %v1534 = vpop.f32.mrb[0].mxu0
  %v1535 = vadd.f32 0.0, %v1534
  %v1536 = vpop.f32.mrb[0].mxu0
  %1537 = vdwg.mxu0
  %v1538 = vadd.f32 %v1465, %v1535
  %v1539 = vxor.u32 %v1538, 2147483648
  %v1540 = vmul.f32 %v1539, 1.442695
  %v1541 = vpow.pop %v1540
  %v1542 = vadd.f32 %v1541, 1.0
  %v1543 = vrcp.pop %v1542
  %v1544 = vmul.f32 1.0, %v1543
  %v1545 = vtanh.pop %v1538
  %v1546 = vmul.f32 %v1544, %v1346
  %1548 = vrot.lane.b32.xlu0 %v1545, 64
  %v1549 = vpop.permute.xlu0 %1548
  %v1551 = vmul.f32 %v1544, %v1549
  %1553 = vrot.lane.b32.xlu0 %v1551, 32
  %v1554 = vpop.permute.xlu0 %1553
  %v1556 = vadd.f32 %v1546, %v1554
  %v1557 = vtanh.pop %v1556
  %1559 = vrot.lane.b32.xlu0 %v1557, 64
  %v1560 = vpop.permute.xlu0 %1559
  %v1562 = vmul.f32 %v1544, %v1560
  %1564 = vrot.lane.b32.xlu0 %v1562, 32
  %v1565 = vpop.permute.xlu0 %1564
  %s1567 = scalar_lea.vmem %s7, 40
  %1568 = vst.msk [vmem:[%s1567] sm:$0xff] %vm406, %v1565
  %s1569 = scalar_lea.vmem [#allocation5], 16
  %v1570 = vld [vmem:[%s1569] sm:$0xff]
  %v1571 = vsel %vm406, %v1460, 0
  %1573 = vmatprep.subr.mxu0 0.0
  %1574 = vmatpush1.msra.mxu0 %v395
  %1575 = vmatprep.subr.mxu0 0.0
  %1576 = vmatpush1.msra.mxu0 %v396
  %1577 = vmatprep.subr.mxu0 0.0
  %1578 = vmatpush1.msra.mxu0 %v397
  %1579 = vmatprep.subr.mxu0 0.0
  %1580 = vmatpush1.msra.mxu0 %v398
  %1581 = vmatprep.subr.mxu0 0.0
  %1582 = vmatpush1.msra.mxu0 0.0
  %1583 = vmatprep.subr.mxu0 0.0
  %1584 = vmatpush1.msra.mxu0 0.0
  %1585 = vmatprep.subr.mxu0 0.0
  %1586 = vmatpush1.msra.mxu0 0.0
  %1587 = vmatprep.subr.mxu0 0.0
  %1588 = vmatpush1.msra.mxu0 0.0
  %1589 = vmatprep.subr.mxu0 0.0
  %1590 = vmatpush1.msra.mxu0 0.0
  %1591 = vmatprep.subr.mxu0 0.0
  %1592 = vmatpush1.msra.mxu0 0.0
  %1593 = vmatprep.subr.mxu0 0.0
  %1594 = vmatpush1.msra.mxu0 0.0
  %1595 = vmatprep.subr.mxu0 0.0
  %1596 = vmatpush1.msra.mxu0 0.0
  %1597 = vmatprep.subr.mxu0 0.0
  %1598 = vmatpush1.msra.mxu0 0.0
  %1599 = vmatprep.subr.mxu0 0.0
  %1600 = vmatpush1.msra.mxu0 0.0
  %1601 = vmatprep.subr.mxu0 0.0
  %1602 = vmatpush1.msra.mxu0 0.0
  %1603 = vmatprep.subr.mxu0 0.0
  %1604 = vmatpush1.msra.mxu0 0.0
  %1605 = vmatprep.subr.mxu0 0.0
  %1606 = vmatpush1.msra.mxu0 0.0
  %1607 = vmatprep.subr.mxu0 0.0
  %1608 = vmatpush1.msra.mxu0 0.0
  %1609 = vmatprep.subr.mxu0 0.0
  %1610 = vmatpush1.msra.mxu0 0.0
  %1611 = vmatprep.subr.mxu0 0.0
  %1612 = vmatpush1.msra.mxu0 0.0
  %1613 = vmatprep.subr.mxu0 0.0
  %1614 = vmatpush1.msra.mxu0 0.0
  %1615 = vmatprep.subr.mxu0 0.0
  %1616 = vmatpush1.msra.mxu0 0.0
  %1617 = vmatprep.subr.mxu0 0.0
  %1618 = vmatpush1.msra.mxu0 0.0
  %1619 = vmatprep.subr.mxu0 0.0
  %1620 = vmatpush1.msra.mxu0 0.0
  %1621 = vmatprep.subr.mxu0 0.0
  %1622 = vmatpush1.msra.mxu0 0.0
  %1623 = vmatprep.subr.mxu0 0.0
  %1624 = vmatpush1.msra.mxu0 0.0
  %1625 = vmatprep.subr.mxu0 0.0
  %1626 = vmatpush1.msra.mxu0 0.0
  %1627 = vmatprep.subr.mxu0 0.0
  %1628 = vmatpush1.msra.mxu0 0.0
  %1629 = vmatprep.subr.mxu0 0.0
  %1630 = vmatpush1.msra.mxu0 0.0
  %1631 = vmatprep.subr.mxu0 0.0
  %1632 = vmatpush1.msra.mxu0 0.0
  %1633 = vmatprep.subr.mxu0 0.0
  %1634 = vmatpush1.msra.mxu0 0.0
  %1635 = vmatprep.subr.mxu0 0.0
  %1636 = vmatpush1.msra.mxu0 0.0
  %1637 = vmatprep.mubr.f32.mxu0 0.0
  %1638 = vmatmul.mubr.f32.gmra.mrb[0].mxu0 %v1571
  %v1639 = vpop.f32.mrb[0].mxu0
  %v1640 = vadd.f32 0.0, %v1639
  %v1641 = vpop.f32.mrb[0].mxu0
  %1642 = vdwg.mxu0
  %v1643 = vadd.f32 %v1570, %v1640
  %v1644 = vxor.u32 %v1643, 2147483648
  %v1645 = vmul.f32 %v1644, 1.442695
  %v1646 = vpow.pop %v1645
  %v1647 = vadd.f32 %v1646, 1.0
  %v1648 = vrcp.pop %v1647
  %v1649 = vmul.f32 1.0, %v1648
  %v1650 = vtanh.pop %v1643
  %v1651 = vmul.f32 %v1649, %v1451
  %1653 = vrot.lane.b32.xlu0 %v1650, 64
  %v1654 = vpop.permute.xlu0 %1653
  %v1656 = vmul.f32 %v1649, %v1654
  %1658 = vrot.lane.b32.xlu0 %v1656, 32
  %v1659 = vpop.permute.xlu0 %1658
  %v1661 = vadd.f32 %v1651, %v1659
  %v1662 = vtanh.pop %v1661
  %1664 = vrot.lane.b32.xlu0 %v1662, 64
  %v1665 = vpop.permute.xlu0 %1664
  %v1667 = vmul.f32 %v1649, %v1665
  %1669 = vrot.lane.b32.xlu0 %v1667, 32
  %v1670 = vpop.permute.xlu0 %1669
  %s1672 = scalar_lea.vmem %s63, 16
  %1673 = vst.msk [vmem:[%s1672] sm:$0xff] %vm406, %v1670
  %s1674 = scalar_lea.vmem [#allocation4], 48
  %v1675 = vld [vmem:[%s1674] sm:$0xff]
  %v1676 = vsel %vm406, %v1565, 0
  %1678 = vmatprep.subr.mxu0 0.0
  %1679 = vmatpush1.msra.mxu0 %v390
  %1680 = vmatprep.subr.mxu0 0.0
  %1681 = vmatpush1.msra.mxu0 %v391
  %1682 = vmatprep.subr.mxu0 0.0
  %1683 = vmatpush1.msra.mxu0 %v392
  %1684 = vmatprep.subr.mxu0 0.0
  %1685 = vmatpush1.msra.mxu0 %v393
  %1686 = vmatprep.subr.mxu0 0.0
  %1687 = vmatpush1.msra.mxu0 0.0
  %1688 = vmatprep.subr.mxu0 0.0
  %1689 = vmatpush1.msra.mxu0 0.0
  %1690 = vmatprep.subr.mxu0 0.0
  %1691 = vmatpush1.msra.mxu0 0.0
  %1692 = vmatprep.subr.mxu0 0.0
  %1693 = vmatpush1.msra.mxu0 0.0
  %1694 = vmatprep.subr.mxu0 0.0
  %1695 = vmatpush1.msra.mxu0 0.0
  %1696 = vmatprep.subr.mxu0 0.0
  %1697 = vmatpush1.msra.mxu0 0.0
  %1698 = vmatprep.subr.mxu0 0.0
  %1699 = vmatpush1.msra.mxu0 0.0
  %1700 = vmatprep.subr.mxu0 0.0
  %1701 = vmatpush1.msra.mxu0 0.0
  %1702 = vmatprep.subr.mxu0 0.0
  %1703 = vmatpush1.msra.mxu0 0.0
  %1704 = vmatprep.subr.mxu0 0.0
  %1705 = vmatpush1.msra.mxu0 0.0
  %1706 = vmatprep.subr.mxu0 0.0
  %1707 = vmatpush1.msra.mxu0 0.0
  %1708 = vmatprep.subr.mxu0 0.0
  %1709 = vmatpush1.msra.mxu0 0.0
  %1710 = vmatprep.subr.mxu0 0.0
  %1711 = vmatpush1.msra.mxu0 0.0
  %1712 = vmatprep.subr.mxu0 0.0
  %1713 = vmatpush1.msra.mxu0 0.0
  %1714 = vmatprep.subr.mxu0 0.0
  %1715 = vmatpush1.msra.mxu0 0.0
  %1716 = vmatprep.subr.mxu0 0.0
  %1717 = vmatpush1.msra.mxu0 0.0
  %1718 = vmatprep.subr.mxu0 0.0
  %1719 = vmatpush1.msra.mxu0 0.0
  %1720 = vmatprep.subr.mxu0 0.0
  %1721 = vmatpush1.msra.mxu0 0.0
  %1722 = vmatprep.subr.mxu0 0.0
  %1723 = vmatpush1.msra.mxu0 0.0
  %1724 = vmatprep.subr.mxu0 0.0
  %1725 = vmatpush1.msra.mxu0 0.0
  %1726 = vmatprep.subr.mxu0 0.0
  %1727 = vmatpush1.msra.mxu0 0.0
  %1728 = vmatprep.subr.mxu0 0.0
  %1729 = vmatpush1.msra.mxu0 0.0
  %1730 = vmatprep.subr.mxu0 0.0
  %1731 = vmatpush1.msra.mxu0 0.0
  %1732 = vmatprep.subr.mxu0 0.0
  %1733 = vmatpush1.msra.mxu0 0.0
  %1734 = vmatprep.subr.mxu0 0.0
  %1735 = vmatpush1.msra.mxu0 0.0
  %1736 = vmatprep.subr.mxu0 0.0
  %1737 = vmatpush1.msra.mxu0 0.0
  %1738 = vmatprep.subr.mxu0 0.0
  %1739 = vmatpush1.msra.mxu0 0.0
  %1740 = vmatprep.subr.mxu0 0.0
  %1741 = vmatpush1.msra.mxu0 0.0
  %1742 = vmatprep.mubr.f32.mxu0 0.0
  %1743 = vmatmul.mubr.f32.gmra.mrb[0].mxu0 %v1676
  %v1744 = vpop.f32.mrb[0].mxu0
  %v1745 = vadd.f32 0.0, %v1744
  %v1746 = vpop.f32.mrb[0].mxu0
  %1747 = vdwg.mxu0
  %v1748 = vadd.f32 %v1675, %v1745
  %v1749 = vxor.u32 %v1748, 2147483648
  %v1750 = vmul.f32 %v1749, 1.442695
  %v1751 = vpow.pop %v1750
  %v1752 = vadd.f32 %v1751, 1.0
  %v1753 = vrcp.pop %v1752
  %v1754 = vmul.f32 1.0, %v1753
  %v1755 = vtanh.pop %v1748
  %v1756 = vmul.f32 %v1754, %v1556
  %1758 = vrot.lane.b32.xlu0 %v1755, 64
  %v1759 = vpop.permute.xlu0 %1758
  %v1761 = vmul.f32 %v1754, %v1759
  %1763 = vrot.lane.b32.xlu0 %v1761, 32
  %v1764 = vpop.permute.xlu0 %1763
  %v1766 = vadd.f32 %v1756, %v1764
  %v1767 = vtanh.pop %v1766
  %1769 = vrot.lane.b32.xlu0 %v1767, 64
  %v1770 = vpop.permute.xlu0 %1769
  %v1772 = vmul.f32 %v1754, %v1770
  %1774 = vrot.lane.b32.xlu0 %v1772, 32
  %v1775 = vpop.permute.xlu0 %1774
  %s1777 = scalar_lea.vmem %s7, 48
  %1778 = vst.msk [vmem:[%s1777] sm:$0xff] %vm406, %v1775
  %s1779 = scalar_lea.vmem [#allocation5], 8
  %v1780 = vld [vmem:[%s1779] sm:$0xff]
  %v1781 = vsel %vm406, %v1670, 0
  %1783 = vmatprep.subr.mxu0 0.0
  %1784 = vmatpush1.msra.mxu0 %v395
  %1785 = vmatprep.subr.mxu0 0.0
  %1786 = vmatpush1.msra.mxu0 %v396
  %1787 = vmatprep.subr.mxu0 0.0
  %1788 = vmatpush1.msra.mxu0 %v397
  %1789 = vmatprep.subr.mxu0 0.0
  %1790 = vmatpush1.msra.mxu0 %v398
  %1791 = vmatprep.subr.mxu0 0.0
  %1792 = vmatpush1.msra.mxu0 0.0
  %1793 = vmatprep.subr.mxu0 0.0
  %1794 = vmatpush1.msra.mxu0 0.0
  %1795 = vmatprep.subr.mxu0 0.0
  %1796 = vmatpush1.msra.mxu0 0.0
  %1797 = vmatprep.subr.mxu0 0.0
  %1798 = vmatpush1.msra.mxu0 0.0
  %1799 = vmatprep.subr.mxu0 0.0
  %1800 = vmatpush1.msra.mxu0 0.0
  %1801 = vmatprep.subr.mxu0 0.0
  %1802 = vmatpush1.msra.mxu0 0.0
  %1803 = vmatprep.subr.mxu0 0.0
  %1804 = vmatpush1.msra.mxu0 0.0
  %1805 = vmatprep.subr.mxu0 0.0
  %1806 = vmatpush1.msra.mxu0 0.0
  %1807 = vmatprep.subr.mxu0 0.0
  %1808 = vmatpush1.msra.mxu0 0.0
  %1809 = vmatprep.subr.mxu0 0.0
  %1810 = vmatpush1.msra.mxu0 0.0
  %1811 = vmatprep.subr.mxu0 0.0
  %1812 = vmatpush1.msra.mxu0 0.0
  %1813 = vmatprep.subr.mxu0 0.0
  %1814 = vmatpush1.msra.mxu0 0.0
  %1815 = vmatprep.subr.mxu0 0.0
  %1816 = vmatpush1.msra.mxu0 0.0
  %1817 = vmatprep.subr.mxu0 0.0
  %1818 = vmatpush1.msra.mxu0 0.0
  %1819 = vmatprep.subr.mxu0 0.0
  %1820 = vmatpush1.msra.mxu0 0.0
  %1821 = vmatprep.subr.mxu0 0.0
  %1822 = vmatpush1.msra.mxu0 0.0
  %1823 = vmatprep.subr.mxu0 0.0
  %1824 = vmatpush1.msra.mxu0 0.0
  %1825 = vmatprep.subr.mxu0 0.0
  %1826 = vmatpush1.msra.mxu0 0.0
  %1827 = vmatprep.subr.mxu0 0.0
  %1828 = vmatpush1.msra.mxu0 0.0
  %1829 = vmatprep.subr.mxu0 0.0
  %1830 = vmatpush1.msra.mxu0 0.0
  %1831 = vmatprep.subr.mxu0 0.0
  %1832 = vmatpush1.msra.mxu0 0.0
  %1833 = vmatprep.subr.mxu0 0.0
  %1834 = vmatpush1.msra.mxu0 0.0
  %1835 = vmatprep.subr.mxu0 0.0
  %1836 = vmatpush1.msra.mxu0 0.0
  %1837 = vmatprep.subr.mxu0 0.0
  %1838 = vmatpush1.msra.mxu0 0.0
  %1839 = vmatprep.subr.mxu0 0.0
  %1840 = vmatpush1.msra.mxu0 0.0
  %1841 = vmatprep.subr.mxu0 0.0
  %1842 = vmatpush1.msra.mxu0 0.0
  %1843 = vmatprep.subr.mxu0 0.0
  %1844 = vmatpush1.msra.mxu0 0.0
  %1845 = vmatprep.subr.mxu0 0.0
  %1846 = vmatpush1.msra.mxu0 0.0
  %1847 = vmatprep.mubr.f32.mxu0 0.0
  %1848 = vmatmul.mubr.f32.gmra.mrb[0].mxu0 %v1781
  %v1849 = vpop.f32.mrb[0].mxu0
  %v1850 = vadd.f32 0.0, %v1849
  %v1851 = vpop.f32.mrb[0].mxu0
  %1852 = vdwg.mxu0
  %v1853 = vadd.f32 %v1780, %v1850
  %v1854 = vxor.u32 %v1853, 2147483648
  %v1855 = vmul.f32 %v1854, 1.442695
  %v1856 = vpow.pop %v1855
  %v1857 = vadd.f32 %v1856, 1.0
  %v1858 = vrcp.pop %v1857
  %v1859 = vmul.f32 1.0, %v1858
  %v1860 = vtanh.pop %v1853
  %v1861 = vmul.f32 %v1859, %v1661
  %1863 = vrot.lane.b32.xlu0 %v1860, 64
  %v1864 = vpop.permute.xlu0 %1863
  %v1866 = vmul.f32 %v1859, %v1864
  %1868 = vrot.lane.b32.xlu0 %v1866, 32
  %v1869 = vpop.permute.xlu0 %1868
  %v1871 = vadd.f32 %v1861, %v1869
  %v1872 = vtanh.pop %v1871
  %1874 = vrot.lane.b32.xlu0 %v1872, 64
  %v1875 = vpop.permute.xlu0 %1874
  %v1877 = vmul.f32 %v1859, %v1875
  %1879 = vrot.lane.b32.xlu0 %v1877, 32
  %v1880 = vpop.permute.xlu0 %1879
  %s1882 = scalar_lea.vmem %s63, 8
  %1883 = vst.msk [vmem:[%s1882] sm:$0xff] %vm406, %v1880
  %s1884 = scalar_lea.vmem [#allocation4], 56
  %v1885 = vld [vmem:[%s1884] sm:$0xff]
  %v1886 = vsel %vm406, %v1775, 0
  %1888 = vmatprep.subr.mxu0 0.0
  %1889 = vmatpush1.msra.mxu0 %v390
  %1890 = vmatprep.subr.mxu0 0.0
  %1891 = vmatpush1.msra.mxu0 %v391
  %1892 = vmatprep.subr.mxu0 0.0
  %1893 = vmatpush1.msra.mxu0 %v392
  %1894 = vmatprep.subr.mxu0 0.0
  %1895 = vmatpush1.msra.mxu0 %v393
  %1896 = vmatprep.subr.mxu0 0.0
  %1897 = vmatpush1.msra.mxu0 0.0
  %1898 = vmatprep.subr.mxu0 0.0
  %1899 = vmatpush1.msra.mxu0 0.0
  %1900 = vmatprep.subr.mxu0 0.0
  %1901 = vmatpush1.msra.mxu0 0.0
  %1902 = vmatprep.subr.mxu0 0.0
  %1903 = vmatpush1.msra.mxu0 0.0
  %1904 = vmatprep.subr.mxu0 0.0
  %1905 = vmatpush1.msra.mxu0 0.0
  %1906 = vmatprep.subr.mxu0 0.0
  %1907 = vmatpush1.msra.mxu0 0.0
  %1908 = vmatprep.subr.mxu0 0.0
  %1909 = vmatpush1.msra.mxu0 0.0
  %1910 = vmatprep.subr.mxu0 0.0
  %1911 = vmatpush1.msra.mxu0 0.0
  %1912 = vmatprep.subr.mxu0 0.0
  %1913 = vmatpush1.msra.mxu0 0.0
  %1914 = vmatprep.subr.mxu0 0.0
  %1915 = vmatpush1.msra.mxu0 0.0
  %1916 = vmatprep.subr.mxu0 0.0
  %1917 = vmatpush1.msra.mxu0 0.0
  %1918 = vmatprep.subr.mxu0 0.0
  %1919 = vmatpush1.msra.mxu0 0.0
  %1920 = vmatprep.subr.mxu0 0.0
  %1921 = vmatpush1.msra.mxu0 0.0
  %1922 = vmatprep.subr.mxu0 0.0
  %1923 = vmatpush1.msra.mxu0 0.0
  %1924 = vmatprep.subr.mxu0 0.0
  %1925 = vmatpush1.msra.mxu0 0.0
  %1926 = vmatprep.subr.mxu0 0.0
  %1927 = vmatpush1.msra.mxu0 0.0
  %1928 = vmatprep.subr.mxu0 0.0
  %1929 = vmatpush1.msra.mxu0 0.0
  %1930 = vmatprep.subr.mxu0 0.0
  %1931 = vmatpush1.msra.mxu0 0.0
  %1932 = vmatprep.subr.mxu0 0.0
  %1933 = vmatpush1.msra.mxu0 0.0
  %1934 = vmatprep.subr.mxu0 0.0
  %1935 = vmatpush1.msra.mxu0 0.0
  %1936 = vmatprep.subr.mxu0 0.0
  %1937 = vmatpush1.msra.mxu0 0.0
  %1938 = vmatprep.subr.mxu0 0.0
  %1939 = vmatpush1.msra.mxu0 0.0
  %1940 = vmatprep.subr.mxu0 0.0
  %1941 = vmatpush1.msra.mxu0 0.0
  %1942 = vmatprep.subr.mxu0 0.0
  %1943 = vmatpush1.msra.mxu0 0.0
  %1944 = vmatprep.subr.mxu0 0.0
  %1945 = vmatpush1.msra.mxu0 0.0
  %1946 = vmatprep.subr.mxu0 0.0
  %1947 = vmatpush1.msra.mxu0 0.0
  %1948 = vmatprep.subr.mxu0 0.0
  %1949 = vmatpush1.msra.mxu0 0.0
  %1950 = vmatprep.subr.mxu0 0.0
  %1951 = vmatpush1.msra.mxu0 0.0
  %1952 = vmatprep.mubr.f32.mxu0 0.0
  %1953 = vmatmul.mubr.f32.gmra.mrb[0].mxu0 %v1886
  %v1954 = vpop.f32.mrb[0].mxu0
  %v1955 = vadd.f32 0.0, %v1954
  %v1956 = vpop.f32.mrb[0].mxu0
  %1957 = vdwg.mxu0
  %v1958 = vadd.f32 %v1885, %v1955
  %v1959 = vxor.u32 %v1958, 2147483648
  %v1960 = vmul.f32 %v1959, 1.442695
  %v1961 = vpow.pop %v1960
  %v1962 = vadd.f32 %v1961, 1.0
  %v1963 = vrcp.pop %v1962
  %v1964 = vmul.f32 1.0, %v1963
  %v1965 = vtanh.pop %v1958
  %v1966 = vmul.f32 %v1964, %v1766
  %1968 = vrot.lane.b32.xlu0 %v1965, 64
  %v1969 = vpop.permute.xlu0 %1968
  %v1971 = vmul.f32 %v1964, %v1969
  %1973 = vrot.lane.b32.xlu0 %v1971, 32
  %v1974 = vpop.permute.xlu0 %1973
  %v1976 = vadd.f32 %v1966, %v1974
  %v1977 = vtanh.pop %v1976
  %1979 = vrot.lane.b32.xlu0 %v1977, 64
  %v1980 = vpop.permute.xlu0 %1979
  %v1982 = vmul.f32 %v1964, %v1980
  %1984 = vrot.lane.b32.xlu0 %v1982, 32
  %v1985 = vpop.permute.xlu0 %1984
  %s1987 = scalar_lea.vmem %s7, 56
  %1988 = vst.msk [vmem:[%s1987] sm:$0xff] %vm406, %v1985
  %v1989 = vld [vmem:[#allocation5] sm:$0xff]
  %v1990 = vsel %vm406, %v1880, 0
  %1992 = vmatprep.subr.mxu0 0.0
  %1993 = vmatpush1.msra.mxu0 %v395
  %1994 = vmatprep.subr.mxu0 0.0
  %1995 = vmatpush1.msra.mxu0 %v396
  %1996 = vmatprep.subr.mxu0 0.0
  %1997 = vmatpush1.msra.mxu0 %v397
  %1998 = vmatprep.subr.mxu0 0.0
  %1999 = vmatpush1.msra.mxu0 %v398
  %2000 = vmatprep.subr.mxu0 0.0
  %2001 = vmatpush1.msra.mxu0 0.0
  %2002 = vmatprep.subr.mxu0 0.0
  %2003 = vmatpush1.msra.mxu0 0.0
  %2004 = vmatprep.subr.mxu0 0.0
  %2005 = vmatpush1.msra.mxu0 0.0
  %2006 = vmatprep.subr.mxu0 0.0
  %2007 = vmatpush1.msra.mxu0 0.0
  %2008 = vmatprep.subr.mxu0 0.0
  %2009 = vmatpush1.msra.mxu0 0.0
  %2010 = vmatprep.subr.mxu0 0.0
  %2011 = vmatpush1.msra.mxu0 0.0
  %2012 = vmatprep.subr.mxu0 0.0
  %2013 = vmatpush1.msra.mxu0 0.0
  %2014 = vmatprep.subr.mxu0 0.0
  %2015 = vmatpush1.msra.mxu0 0.0
  %2016 = vmatprep.subr.mxu0 0.0
  %2017 = vmatpush1.msra.mxu0 0.0
  %2018 = vmatprep.subr.mxu0 0.0
  %2019 = vmatpush1.msra.mxu0 0.0
  %2020 = vmatprep.subr.mxu0 0.0
  %2021 = vmatpush1.msra.mxu0 0.0
  %2022 = vmatprep.subr.mxu0 0.0
  %2023 = vmatpush1.msra.mxu0 0.0
  %2024 = vmatprep.subr.mxu0 0.0
  %2025 = vmatpush1.msra.mxu0 0.0
  %2026 = vmatprep.subr.mxu0 0.0
  %2027 = vmatpush1.msra.mxu0 0.0
  %2028 = vmatprep.subr.mxu0 0.0
  %2029 = vmatpush1.msra.mxu0 0.0
  %2030 = vmatprep.subr.mxu0 0.0
  %2031 = vmatpush1.msra.mxu0 0.0
  %2032 = vmatprep.subr.mxu0 0.0
  %2033 = vmatpush1.msra.mxu0 0.0
  %2034 = vmatprep.subr.mxu0 0.0
  %2035 = vmatpush1.msra.mxu0 0.0
  %2036 = vmatprep.subr.mxu0 0.0
  %2037 = vmatpush1.msra.mxu0 0.0
  %2038 = vmatprep.subr.mxu0 0.0
  %2039 = vmatpush1.msra.mxu0 0.0
  %2040 = vmatprep.subr.mxu0 0.0
  %2041 = vmatpush1.msra.mxu0 0.0
  %2042 = vmatprep.subr.mxu0 0.0
  %2043 = vmatpush1.msra.mxu0 0.0
  %2044 = vmatprep.subr.mxu0 0.0
  %2045 = vmatpush1.msra.mxu0 0.0
  %2046 = vmatprep.subr.mxu0 0.0
  %2047 = vmatpush1.msra.mxu0 0.0
  %2048 = vmatprep.subr.mxu0 0.0
  %2049 = vmatpush1.msra.mxu0 0.0
  %2050 = vmatprep.subr.mxu0 0.0
  %2051 = vmatpush1.msra.mxu0 0.0
  %2052 = vmatprep.subr.mxu0 0.0
  %2053 = vmatpush1.msra.mxu0 0.0
  %2054 = vmatprep.subr.mxu0 0.0
  %2055 = vmatpush1.msra.mxu0 0.0
  %2056 = vmatprep.mubr.f32.mxu0 0.0
  %2057 = vmatmul.mubr.f32.gmra.mrb[0].mxu0 %v1990
  %v2058 = vpop.f32.mrb[0].mxu0
  %v2059 = vadd.f32 0.0, %v2058
  %v2060 = vpop.f32.mrb[0].mxu0
  %2061 = vdwg.mxu0
  %v2062 = vadd.f32 %v1989, %v2059
  %v2063 = vxor.u32 %v2062, 2147483648
  %v2064 = vmul.f32 %v2063, 1.442695
  %v2065 = vpow.pop %v2064
  %v2066 = vadd.f32 %v2065, 1.0
  %v2067 = vrcp.pop %v2066
  %v2068 = vmul.f32 1.0, %v2067
  %v2069 = vtanh.pop %v2062
  %v2070 = vmul.f32 %v2068, %v1871
  %2072 = vrot.lane.b32.xlu0 %v2069, 64
  %v2073 = vpop.permute.xlu0 %2072
  %v2075 = vmul.f32 %v2068, %v2073
  %2077 = vrot.lane.b32.xlu0 %v2075, 32
  %v2078 = vpop.permute.xlu0 %2077
  %v2080 = vadd.f32 %v2070, %v2078
  %v2081 = vtanh.pop %v2080
  %2083 = vrot.lane.b32.xlu0 %v2081, 64
  %v2084 = vpop.permute.xlu0 %2083
  %v2086 = vmul.f32 %v2068, %v2084
  %2088 = vrot.lane.b32.xlu0 %v2086, 32
  %v2089 = vpop.permute.xlu0 %2088
  %2091 = vst.msk [vmem:[%s63] sm:$0xff] %vm406, %v2089
  %2092 = vst.msk [vmem:[#allocation2] sm:$0xff] %vm406, %v1985
  %2094 = vrot.lane.b32.xlu0 %v1976, 96
  %v2095 = vpop.permute.xlu0 %2094
  %2097 = vst.msk [vmem:[#allocation3] sm:$0xff] %vm406, %v2095
  %2098 = vst.msk [vmem:[%s401] sm:$0xff] %vm406, %v2089
  %2100 = vrot.lane.b32.xlu0 %v2080, 96
  %v2101 = vpop.permute.xlu0 %2100
  %2103 = vst.msk [vmem:[%s403] sm:$0xff] %vm406, %v2101
  // Predicated region
  $region34: #{birnn_forward.2} parent=0 // pred_check
    %p2104 = pneg %p66
  $region35: #{birnn_forward.2} parent=0 // pred_check_branch
    %2106 = sbr.rel (%p2104) target = $region37
  $region36: #{birnn_forward.2} parent=0 // pred_region
    %v2107 = vld [vmem:[#allocation2] sm:$0xff]
    %v2108 = vld [vmem:[#allocation2 + $0x8] sm:$0xff]
    %2109 = vst.msk [vmem:[%s9] sm:$0xff] %vm406, %v2107
    %2110 = vst.msk [vmem:[%s9 + $0x8] sm:$0xff] %vm406, %v2108
    %v2111 = vld [vmem:[#allocation3] sm:$0xff]
    %v2112 = vld [vmem:[#allocation3 + $0x8] sm:$0xff]
    %2113 = vst.msk [vmem:[%s10] sm:$0xff] %vm406, %v2111
    %2114 = vst.msk [vmem:[%s10 + $0x8] sm:$0xff] %vm406, %v2112
  $region37: #{birnn_forward.2} parent=0 // pred_fallthru
    _
  %s2115 = ssub.s32 0, 0
  %s2116 = smul.u32 8, %s2115
  %p2117 = scmp.lt.s32.totalorder %s2116, 7
  %s2118 = scalar_select %p2117, %s2116, 7
  %s2119 = smul.addr %s2118, 8
  %s2120 = scalar_lea.vmem %s8, %s2119
  // Predicated region
  $region38: #{birnn_forward.2} parent=0 // pred_check
    _
  $region39: #{birnn_forward.2} parent=0 // pred_check_branch
    %2122 = sbr.rel (0) target = $region41
  $region40: #{birnn_forward.2} parent=0 // pred_region
    _
  $region41: #{birnn_forward.2} parent=0 // pred_fallthru
    _
  // Predicated region
  $region42: #{birnn_forward.2} parent=0 // pred_check
    _
  $region43: #{birnn_forward.2} parent=0 // pred_check_branch
    %2124 = sbr.rel (0) target = $region45
  $region44: #{birnn_forward.2} parent=0 // pred_region
    %s2125 = ssub.s32 0, 0
    %s2126 = smul.u32 8, %s2125
  $region45: #{birnn_forward.2} parent=0 // pred_fallthru
    _
  // Predicated region
  $region46: #{birnn_forward.2} parent=0 // pred_check
    _
  $region47: #{birnn_forward.2} parent=0 // pred_check_branch
    %2128 = sbr.rel (0) target = $region49
  $region48: #{birnn_forward.2} parent=0 // pred_region
    _
  $region49: #{birnn_forward.2} parent=0 // pred_fallthru
    _
  // Predicated region
  $region50: #{birnn_forward.2} parent=0 // pred_check
    _
  $region51: #{birnn_forward.2} parent=0 // pred_check_branch
    %2130 = sbr.rel (0) target = $region53
  $region52: #{birnn_forward.2} parent=0 // pred_region
    _
  $region53: #{birnn_forward.2} parent=0 // pred_fallthru
    _
  // Predicated region
  $region54: #{birnn_forward.2} parent=0 // pred_check
    _
  $region55: #{birnn_forward.2} parent=0 // pred_check_branch
    %2132 = sbr.rel (0) target = $region57
  $region56: #{birnn_forward.2} parent=0 // pred_region
    _
  $region57: #{birnn_forward.2} parent=0 // pred_fallthru
    _
  // Predicated region
  $region58: #{birnn_forward.2} parent=0 // pred_check
    _
  $region59: #{birnn_forward.2} parent=0 // pred_check_branch
    %2134 = sbr.rel (0) target = $region61
  $region60: #{birnn_forward.2} parent=0 // pred_region
    %s2135 = ssub.s32 0, 0
    %s2136 = smul.u32 8, %s2135
    %p2137 = scmp.lt.s32.totalorder %s2136, 7
    %s2138 = scalar_select %p2137, %s2136, 7
    %s2139 = smul.addr %s2138, 8
    %s2140 = scalar_lea.vmem %s8, %s2139
  $region61: #{birnn_forward.2} parent=0 // pred_fallthru
    _
  // Predicated region
  $region62: #{birnn_forward.2} parent=0 // pred_check
    _
  $region63: #{birnn_forward.2} parent=0 // pred_check_branch
    %2142 = sbr.rel (0) target = $region65
  $region64: #{birnn_forward.2} parent=0 // pred_region
    _
  $region65: #{birnn_forward.2} parent=0 // pred_fallthru
    _
  // Predicated region
  $region66: #{birnn_forward.2} parent=0 // pred_check
    _
  $region67: #{birnn_forward.2} parent=0 // pred_check_branch
    %2144 = sbr.rel (0) target = $region69
  $region68: #{birnn_forward.2} parent=0 // pred_region
    _
  $region69: #{birnn_forward.2} parent=0 // pred_fallthru
    _

// kernel: birnn_forward.3
$region0: #{birnn_forward.3}
  #allocation0 [shape = 'u32[]', space=smem, size = 0x4, offset = 0x4, fixed_abs, tag = 'smem constant byte address 0x4 - core index']
  #allocation1 [shape = 'u32[144,128]{1,0:T(1,128)}', space=vmem, size = 0x12000, scoped, tag = 'internal scratch']
  #allocation2 [shape = 'f32[2,8,32]{2,1,0:T(8,128)}', space=vmem, size = 0x2000, scoped, tag = 'scratch operand']
  #allocation3 [shape = 'f32[2,8,32]{2,1,0:T(8,128)}', space=vmem, size = 0x2000, scoped, tag = 'scratch operand']
  #allocation4 [shape = 'f32[8,8,128]{2,1,0:T(8,128)}', space=vmem, size = 0x8000, scoped, tag = 'scratch operand']
  #allocation5 [shape = 'f32[8,8,128]{2,1,0:T(8,128)}', space=vmem, size = 0x8000, scoped, tag = 'scratch operand']
  %s0 = inlined_call_operand.vmem [shape: f32[8,8,64], index: 0, kind: input, shape index: {}, may-alias: {0,1}]
  %s1 = inlined_call_operand.vmem [shape: f32[8,8,64], index: 1, kind: input, shape index: {}, may-alias: {0,1}]
  %s2 = inlined_call_operand.vmem [shape: f32[2,64,128], index: 2, kind: input, shape index: {}]
  %s3 = inlined_call_operand.vmem [shape: f32[2,32,128], index: 3, kind: input, shape index: {}]
  %s4 = inlined_call_operand.vmem [shape: f32[2,1,128], index: 4, kind: input, shape index: {}]
  %s5 = inlined_call_operand.vmem [shape: f32[2,8,32], index: 5, kind: input, shape index: {}]
  %s6 = inlined_call_operand.vmem [shape: f32[2,8,32], index: 6, kind: input, shape index: {}]
  %s7 = inlined_call_operand.vmem [shape: f32[8,8,32], index: 7, kind: output, shape index: {0}]
  %s8 = inlined_call_operand.vmem [shape: f32[8,8,32], index: 8, kind: output, shape index: {1}]
  %s9 = inlined_call_operand.vmem [shape: f32[2,8,32], index: 9, kind: output, shape index: {2}]
  %s10 = inlined_call_operand.vmem [shape: f32[2,8,32], index: 10, kind: output, shape index: {3}]
  %11 = xla_tuple %s7, %s8, %s9, %s10
  %s12 = sld [smem:[#allocation0]]
  $region70: #{birnn_forward.3} parent=0
    _
  %s14 = ssub.s32 1, %s12
  %s15 = scalar_select 0, %s14, %s12
  // Predicated region
  $region2: #{birnn_forward.3} parent=0 // pred_check
    _
  $region3: #{birnn_forward.3} parent=0 // pred_check_branch
    %17 = sbr.rel (0) target = $region5
  $region4: #{birnn_forward.3} parent=0 // pred_region
    _
  $region5: #{birnn_forward.3} parent=0 // pred_fallthru
    _
  // Predicated region
  $region6: #{birnn_forward.3} parent=0 // pred_check
    _
  $region7: #{birnn_forward.3} parent=0 // pred_check_branch
    %19 = sbr.rel (0) target = $region9
  $region8: #{birnn_forward.3} parent=0 // pred_region
    %s20 = ssub.s32 0, 0
    %s21 = smul.u32 8, %s20
    %p22 = scmp.lt.s32.totalorder %s21, 7
    %s23 = scalar_select %p22, %s21, 7
    %s24 = smul.addr %s23, 8
    %s25 = scalar_lea.vmem %s1, %s24
    %s26 = ssub.s32 0, 0
    %s27 = smul.u32 8, %s26
  $region9: #{birnn_forward.3} parent=0 // pred_fallthru
    _
  // Predicated region
  $region10: #{birnn_forward.3} parent=0 // pred_check
    _
  $region11: #{birnn_forward.3} parent=0 // pred_check_branch
    %29 = sbr.rel (0) target = $region13
  $region12: #{birnn_forward.3} parent=0 // pred_region
    _
  $region13: #{birnn_forward.3} parent=0 // pred_fallthru
    _
  // Predicated region
  $region14: #{birnn_forward.3} parent=0 // pred_check
    _
  $region15: #{birnn_forward.3} parent=0 // pred_check_branch
    %31 = sbr.rel (0) target = $region17
  $region16: #{birnn_forward.3} parent=0 // pred_region
    _
  $region17: #{birnn_forward.3} parent=0 // pred_fallthru
    _
  // Predicated region
  $region18: #{birnn_forward.3} parent=0 // pred_check
    _
  $region19: #{birnn_forward.3} parent=0 // pred_check_branch
    %33 = sbr.rel (0) target = $region21
  $region20: #{birnn_forward.3} parent=0 // pred_region
    _
  $region21: #{birnn_forward.3} parent=0 // pred_fallthru
    _
  // Predicated region
  $region22: #{birnn_forward.3} parent=0 // pred_check
    _
  $region23: #{birnn_forward.3} parent=0 // pred_check_branch
    %35 = sbr.rel (0) target = $region25
  $region24: #{birnn_forward.3} parent=0 // pred_region
    _
  $region25: #{birnn_forward.3} parent=0 // pred_fallthru
    _
  // Predicated region
  $region26: #{birnn_forward.3} parent=0 // pred_check
    _
  $region27: #{birnn_forward.3} parent=0 // pred_check_branch
    %37 = sbr.rel (0) target = $region29
  $region28: #{birnn_forward.3} parent=0 // pred_region
    _
  $region29: #{birnn_forward.3} parent=0 // pred_fallthru
    _
  %s38 = ssub.s32 0, 0
  %s39 = smul.u32 8, %s38
  %p40 = scmp.lt.s32.totalorder %s39, 7
  %s41 = scalar_select %p40, %s39, 7
  %s42 = smul.addr %s41, 8
  %s43 = scalar_lea.vmem %s1, %s42
  %s44 = ssub.s32 0, 0
  %s45 = smul.u32 8, %s44
  %p46 = scmp.lt.s32.totalorder %s45, 7
  %s47 = scalar_select %p46, %s45, 7
  %s48 = smul.addr %s47, 8
  %s49 = scalar_lea.vmem %s8, %s48
  %s50 = ssub.s32 0, 0
  %s51 = smul.u32 8, %s50
  %p52 = scmp.lt.s32.totalorder %s51, 7
  %s53 = scalar_select %p52, %s51, 7
  %s54 = smul.addr %s53, 8
  %s55 = scalar_lea.vmem %s1, %s54
  %s56 = ssub.s32 0, 0
  %s57 = smul.u32 8, %s56
  %s58 = ssub.s32 0, 0
  %s59 = smul.u32 8, %s58
  %p60 = scmp.lt.s32.totalorder %s59, 7
  %s61 = scalar_select %p60, %s59, 7
  %s62 = smul.addr %s61, 8
  %s63 = scalar_lea.vmem %s8, %s62
  %s64 = ssub.s32 0, 0
  %s65 = smul.u32 8, %s64
  %p66 = scmp.eq.s32.totalorder 0, 0
  // Predicated region
  $region30: #{birnn_forward.3} parent=0 // pred_check
    %p67 = pneg %p66
  $region31: #{birnn_forward.3} parent=0 // pred_check_branch
    %69 = sbr.rel (%p67) target = $region33
  $region32: #{birnn_forward.3} parent=0 // pred_region
    %v70 = vld [vmem:[%s5] sm:$0xff]
    %v71 = vld [vmem:[%s5 + $0x8] sm:$0xff]
    %vm72 = vcmask 261120
    %73 = vst.msk [vmem:[#allocation2] sm:$0xff] %vm72, %v70
    %74 = vst.msk [vmem:[#allocation2 + $0x8] sm:$0xff] %vm72, %v71
    %v75 = vld [vmem:[%s6] sm:$0xff]
    %v76 = vld [vmem:[%s6 + $0x8] sm:$0xff]
    %77 = vst.msk [vmem:[#allocation3] sm:$0xff] %vm72, %v75
    %78 = vst.msk [vmem:[#allocation3 + $0x8] sm:$0xff] %vm72, %v76
  $region33: #{birnn_forward.3} parent=0 // pred_fallthru
    _
  %v79 = vld [vmem:[%s0] sm:$0xff]
  %v80 = vld [vmem:[%s0 + $0x8] sm:$0xff]
  %v81 = vld [vmem:[%s0 + $0x10] sm:$0xff]
  %v82 = vld [vmem:[%s0 + $0x18] sm:$0xff]
  %v83 = vld [vmem:[%s0 + $0x20] sm:$0xff]
  %v84 = vld [vmem:[%s0 + $0x28] sm:$0xff]
  %v85 = vld [vmem:[%s0 + $0x30] sm:$0xff]
  %v86 = vld [vmem:[%s0 + $0x38] sm:$0xff]
  %v87 = vld [vmem:[%s2] sm:$0xff]
  %v88 = vld [vmem:[%s2 + $0x8] sm:$0xff]
  %v89 = vld [vmem:[%s2 + $0x10] sm:$0xff]
  %v90 = vld [vmem:[%s2 + $0x18] sm:$0xff]
  %v91 = vld [vmem:[%s2 + $0x20] sm:$0xff]
  %v92 = vld [vmem:[%s2 + $0x28] sm:$0xff]
  %v93 = vld [vmem:[%s2 + $0x30] sm:$0xff]
  %v94 = vld [vmem:[%s2 + $0x38] sm:$0xff]
  %v95 = vld [vmem:[%s4] sm:$0x1]
  %v97 = vlaneseq
  %v98 = vshrl.u32 %v97, 7
  %v99 = vsub.s32 0, %v98
  %v100 = vrot.slane %v95, %v99
  %vm102 = vcmask 523264
  %v104 = vsel %vm102, %v79, 0
  %v107 = vsel %vm102, %v80, 0
  %v110 = vsel %vm102, %v81, 0
  %v113 = vsel %vm102, %v82, 0
  %v116 = vsel %vm102, %v83, 0
  %v119 = vsel %vm102, %v84, 0
  %v122 = vsel %vm102, %v85, 0
  %v125 = vsel %vm102, %v86, 0
  %127 = vmatprep.subr.mxu0 0.0
  %128 = vmatpush1.msra.mxu0 %v87
  %129 = vmatprep.subr.mxu0 0.0
  %130 = vmatpush1.msra.mxu0 %v88
  %131 = vmatprep.subr.mxu0 0.0
  %132 = vmatpush1.msra.mxu0 %v89
  %133 = vmatprep.subr.mxu0 0.0
  %134 = vmatpush1.msra.mxu0 %v90
  %135 = vmatprep.subr.mxu0 0.0
  %136 = vmatpush1.msra.mxu0 %v91
  %137 = vmatprep.subr.mxu0 0.0
  %138 = vmatpush1.msra.mxu0 %v92
  %139 = vmatprep.subr.mxu0 0.0
  %140 = vmatpush1.msra.mxu0 %v93
  %141 = vmatprep.subr.mxu0 0.0
  %142 = vmatpush1.msra.mxu0 %v94
  %143 = vmatprep.subr.mxu0 0.0
  %144 = vmatpush1.msra.mxu0 0.0
  %145 = vmatprep.subr.mxu0 0.0
  %146 = vmatpush1.msra.mxu0 0.0
  %147 = vmatprep.subr.mxu0 0.0
  %148 = vmatpush1.msra.mxu0 0.0
  %149 = vmatprep.subr.mxu0 0.0
  %150 = vmatpush1.msra.mxu0 0.0
  %151 = vmatprep.subr.mxu0 0.0
  %152 = vmatpush1.msra.mxu0 0.0
  %153 = vmatprep.subr.mxu0 0.0
  %154 = vmatpush1.msra.mxu0 0.0
  %155 = vmatprep.subr.mxu0 0.0
  %156 = vmatpush1.msra.mxu0 0.0
  %157 = vmatprep.subr.mxu0 0.0
  %158 = vmatpush1.msra.mxu0 0.0
  %159 = vmatprep.subr.mxu0 0.0
  %160 = vmatpush1.msra.mxu0 0.0
  %161 = vmatprep.subr.mxu0 0.0
  %162 = vmatpush1.msra.mxu0 0.0
  %163 = vmatprep.subr.mxu0 0.0
  %164 = vmatpush1.msra.mxu0 0.0
  %165 = vmatprep.subr.mxu0 0.0
  %166 = vmatpush1.msra.mxu0 0.0
  %167 = vmatprep.subr.mxu0 0.0
  %168 = vmatpush1.msra.mxu0 0.0
  %169 = vmatprep.subr.mxu0 0.0
  %170 = vmatpush1.msra.mxu0 0.0
  %171 = vmatprep.subr.mxu0 0.0
  %172 = vmatpush1.msra.mxu0 0.0
  %173 = vmatprep.subr.mxu0 0.0
  %174 = vmatpush1.msra.mxu0 0.0
  %175 = vmatprep.subr.mxu0 0.0
  %176 = vmatpush1.msra.mxu0 0.0
  %177 = vmatprep.subr.mxu0 0.0
  %178 = vmatpush1.msra.mxu0 0.0
  %179 = vmatprep.subr.mxu0 0.0
  %180 = vmatpush1.msra.mxu0 0.0
  %181 = vmatprep.subr.mxu0 0.0
  %182 = vmatpush1.msra.mxu0 0.0
  %183 = vmatprep.subr.mxu0 0.0
  %184 = vmatpush1.msra.mxu0 0.0
  %185 = vmatprep.subr.mxu0 0.0
  %186 = vmatpush1.msra.mxu0 0.0
  %187 = vmatprep.subr.mxu0 0.0
  %188 = vmatpush1.msra.mxu0 0.0
  %189 = vmatprep.subr.mxu0 0.0
  %190 = vmatpush1.msra.mxu0 0.0
  %191 = vmatprep.mubr.f32.mxu0 0.0
  %192 = vmatmul.mubr.f32.gmra.mrb[0].mxu0 %v104
  %v193 = vpop.f32.mrb[0].mxu0
  %v194 = vadd.f32 %v100, %v193
  %v195 = vpop.f32.mrb[0].mxu0
  %196 = vmatprep.mubr.f32.mxu0 0.0
  %197 = vmatmul.mubr.f32.gmra.mrb[0].mxu0 %v107
  %v198 = vpop.f32.mrb[0].mxu0
  %v199 = vadd.f32 %v100, %v198
  %v200 = vpop.f32.mrb[0].mxu0
  %201 = vmatprep.mubr.f32.mxu0 0.0
  %202 = vmatmul.mubr.f32.gmra.mrb[0].mxu0 %v110
  %v203 = vpop.f32.mrb[0].mxu0
  %v204 = vadd.f32 %v100, %v203
  %v205 = vpop.f32.mrb[0].mxu0
  %206 = vmatprep.mubr.f32.mxu0 0.0
  %207 = vmatmul.mubr.f32.gmra.mrb[0].mxu0 %v113
  %v208 = vpop.f32.mrb[0].mxu0
  %v209 = vadd.f32 %v100, %v208
  %v210 = vpop.f32.mrb[0].mxu0
  %211 = vmatprep.mubr.f32.mxu0 0.0
  %212 = vmatmul.mubr.f32.gmra.mrb[0].mxu0 %v116
  %v213 = vpop.f32.mrb[0].mxu0
  %v214 = vadd.f32 %v100, %v213
  %v215 = vpop.f32.mrb[0].mxu0
  %216 = vmatprep.mubr.f32.mxu0 0.0
  %217 = vmatmul.mubr.f32.gmra.mrb[0].mxu0 %v119
  %v218 = vpop.f32.mrb[0].mxu0
  %v219 = vadd.f32 %v100, %v218
  %v220 = vpop.f32.mrb[0].mxu0
  %221 = vmatprep.mubr.f32.mxu0 0.0
  %222 = vmatmul.mubr.f32.gmra.mrb[0].mxu0 %v122
  %v223 = vpop.f32.mrb[0].mxu0
  %v224 = vadd.f32 %v100, %v223
  %v225 = vpop.f32.mrb[0].mxu0
  %226 = vmatprep.mubr.f32.mxu0 0.0
  %227 = vmatmul.mubr.f32.gmra.mrb[0].mxu0 %v125
  %v228 = vpop.f32.mrb[0].mxu0
  %v229 = vadd.f32 %v100, %v228
  %v230 = vpop.f32.mrb[0].mxu0
  %231 = vdwg.mxu0
  %232 = vst [vmem:[#allocation4] sm:$0xff] %v194
  %233 = vst [vmem:[#allocation4 + $0x8] sm:$0xff] %v199
  %234 = vst [vmem:[#allocation4 + $0x10] sm:$0xff] %v204
  %235 = vst [vmem:[#allocation4 + $0x18] sm:$0xff] %v209
  %236 = vst [vmem:[#allocation4 + $0x20] sm:$0xff] %v214
  %237 = vst [vmem:[#allocation4 + $0x28] sm:$0xff] %v219
  %238 = vst [vmem:[#allocation4 + $0x30] sm:$0xff] %v224
  %239 = vst [vmem:[#allocation4 + $0x38] sm:$0xff] %v229
  %v240 = vld [vmem:[%s55] sm:$0xff]
  %v241 = vld [vmem:[%s55 + $0x8] sm:$0xff]
  %v242 = vld [vmem:[%s55 + $0x10] sm:$0xff]
  %v243 = vld [vmem:[%s55 + $0x18] sm:$0xff]
  %v244 = vld [vmem:[%s55 + $0x20] sm:$0xff]
  %v245 = vld [vmem:[%s55 + $0x28] sm:$0xff]
  %v246 = vld [vmem:[%s55 + $0x30] sm:$0xff]
  %v247 = vld [vmem:[%s55 + $0x38] sm:$0xff]
  %s248 = scalar_lea.vmem %s2, 64
  %v249 = vld [vmem:[%s248] sm:$0xff]
  %v250 = vld [vmem:[%s248 + $0x8] sm:$0xff]
  %v251 = vld [vmem:[%s248 + $0x10] sm:$0xff]
  %v252 = vld [vmem:[%s248 + $0x18] sm:$0xff]
  %v253 = vld [vmem:[%s248 + $0x20] sm:$0xff]
  %v254 = vld [vmem:[%s248 + $0x28] sm:$0xff]
  %v255 = vld [vmem:[%s248 + $0x30] sm:$0xff]
  %v256 = vld [vmem:[%s248 + $0x38] sm:$0xff]
  %s257 = scalar_lea.vmem %s4, 1
  %v258 = vld [vmem:[%s257] sm:$0x1]
  %v260 = vlaneseq
  %v261 = vshrl.u32 %v260, 7
  %v262 = vsub.s32 0, %v261
  %v263 = vrot.slane %v258, %v262
  %v266 = vsel %vm102, %v240, 0
  %v269 = vsel %vm102, %v241, 0
  %v272 = vsel %vm102, %v242, 0
  %v275 = vsel %vm102, %v243, 0
  %v278 = vsel %vm102, %v244, 0
  %v281 = vsel %vm102, %v245, 0
  %v284 = vsel %vm102, %v246, 0
  %v287 = vsel %vm102, %v247, 0
  %289 = vmatprep.subr.mxu0 0.0
  %290 = vmatpush1.msra.mxu0 %v249
  %291 = vmatprep.subr.mxu0 0.0
  %292 = vmatpush1.msra.mxu0 %v250
  %293 = vmatprep.subr.mxu0 0.0
  %294 = vmatpush1.msra.mxu0 %v251
  %295 = vmatprep.subr.mxu0 0.0
  %296 = vmatpush1.msra.mxu0 %v252
  %297 = vmatprep.subr.mxu0 0.0
  %298 = vmatpush1.msra.mxu0 %v253
  %299 = vmatprep.subr.mxu0 0.0
  %300 = vmatpush1.msra.mxu0 %v254
  %301 = vmatprep.subr.mxu0 0.0
  %302 = vmatpush1.msra.mxu0 %v255
  %303 = vmatprep.subr.mxu0 0.0
  %304 = vmatpush1.msra.mxu0 %v256
  %305 = vmatprep.subr.mxu0 0.0
  %306 = vmatpush1.msra.mxu0 0.0
  %307 = vmatprep.subr.mxu0 0.0
  %308 = vmatpush1.msra.mxu0 0.0
  %309 = vmatprep.subr.mxu0 0.0
  %310 = vmatpush1.msra.mxu0 0.0
  %311 = vmatprep.subr.mxu0 0.0
  %312 = vmatpush1.msra.mxu0 0.0
  %313 = vmatprep.subr.mxu0 0.0
  %314 = vmatpush1.msra.mxu0 0.0
  %315 = vmatprep.subr.mxu0 0.0
  %316 = vmatpush1.msra.mxu0 0.0
  %317 = vmatprep.subr.mxu0 0.0
  %318 = vmatpush1.msra.mxu0 0.0
  %319 = vmatprep.subr.mxu0 0.0
  %320 = vmatpush1.msra.mxu0 0.0
  %321 = vmatprep.subr.mxu0 0.0
  %322 = vmatpush1.msra.mxu0 0.0
  %323 = vmatprep.subr.mxu0 0.0
  %324 = vmatpush1.msra.mxu0 0.0
  %325 = vmatprep.subr.mxu0 0.0
  %326 = vmatpush1.msra.mxu0 0.0
  %327 = vmatprep.subr.mxu0 0.0
  %328 = vmatpush1.msra.mxu0 0.0
  %329 = vmatprep.subr.mxu0 0.0
  %330 = vmatpush1.msra.mxu0 0.0
  %331 = vmatprep.subr.mxu0 0.0
  %332 = vmatpush1.msra.mxu0 0.0
  %333 = vmatprep.subr.mxu0 0.0
  %334 = vmatpush1.msra.mxu0 0.0
  %335 = vmatprep.subr.mxu0 0.0
  %336 = vmatpush1.msra.mxu0 0.0
  %337 = vmatprep.subr.mxu0 0.0
  %338 = vmatpush1.msra.mxu0 0.0
  %339 = vmatprep.subr.mxu0 0.0
  %340 = vmatpush1.msra.mxu0 0.0
  %341 = vmatprep.subr.mxu0 0.0
  %342 = vmatpush1.msra.mxu0 0.0
  %343 = vmatprep.subr.mxu0 0.0
  %344 = vmatpush1.msra.mxu0 0.0
  %345 = vmatprep.subr.mxu0 0.0
  %346 = vmatpush1.msra.mxu0 0.0
  %347 = vmatprep.subr.mxu0 0.0
  %348 = vmatpush1.msra.mxu0 0.0
  %349 = vmatprep.subr.mxu0 0.0
  %350 = vmatpush1.msra.mxu0 0.0
  %351 = vmatprep.subr.mxu0 0.0
  %352 = vmatpush1.msra.mxu0 0.0
  %353 = vmatprep.mubr.f32.mxu0 0.0
  %354 = vmatmul.mubr.f32.gmra.mrb[0].mxu0 %v266
  %v355 = vpop.f32.mrb[0].mxu0
  %v356 = vadd.f32 %v263, %v355
  %v357 = vpop.f32.mrb[0].mxu0
  %358 = vmatprep.mubr.f32.mxu0 0.0
  %359 = vmatmul.mubr.f32.gmra.mrb[0].mxu0 %v269
  %v360 = vpop.f32.mrb[0].mxu0
  %v361 = vadd.f32 %v263, %v360
  %v362 = vpop.f32.mrb[0].mxu0
  %363 = vmatprep.mubr.f32.mxu0 0.0
  %364 = vmatmul.mubr.f32.gmra.mrb[0].mxu0 %v272
  %v365 = vpop.f32.mrb[0].mxu0
  %v366 = vadd.f32 %v263, %v365
  %v367 = vpop.f32.mrb[0].mxu0
  %368 = vmatprep.mubr.f32.mxu0 0.0
  %369 = vmatmul.mubr.f32.gmra.mrb[0].mxu0 %v275
  %v370 = vpop.f32.mrb[0].mxu0
  %v371 = vadd.f32 %v263, %v370
  %v372 = vpop.f32.mrb[0].mxu0
  %373 = vmatprep.mubr.f32.mxu0 0.0
  %374 = vmatmul.mubr.f32.gmra.mrb[0].mxu0 %v278
  %v375 = vpop.f32.mrb[0].mxu0
  %v376 = vadd.f32 %v263, %v375
  %v377 = vpop.f32.mrb[0].mxu0
  %378 = vmatprep.mubr.f32.mxu0 0.0
  %379 = vmatmul.mubr.f32.gmra.mrb[0].mxu0 %v281
  %v380 = vpop.f32.mrb[0].mxu0
  %v381 = vadd.f32 %v263, %v380
  %v382 = vpop.f32.mrb[0].mxu0
  %383 = vmatprep.mubr.f32.mxu0 0.0
  %384 = vmatmul.mubr.f32.gmra.mrb[0].mxu0 %v284
  %v385 = vpop.f32.mrb[0].mxu0
  %v386 = vadd.f32 %v263, %v385
  %v387 = vpop.f32.mrb[0].mxu0
  %388 = vmatprep.mubr.f32.mxu0 0.0
  %389 = vmatmul.mubr.f32.gmra.mrb[0].mxu0 %v287
  %v390 = vpop.f32.mrb[0].mxu0
  %v391 = vadd.f32 %v263, %v390
  %v392 = vpop.f32.mrb[0].mxu0
  %393 = vdwg.mxu0
  %394 = vst [vmem:[#allocation5] sm:$0xff] %v356
  %395 = vst [vmem:[#allocation5 + $0x8] sm:$0xff] %v361
  %396 = vst [vmem:[#allocation5 + $0x10] sm:$0xff] %v366
  %397 = vst [vmem:[#allocation5 + $0x18] sm:$0xff] %v371
  %398 = vst [vmem:[#allocation5 + $0x20] sm:$0xff] %v376
  %399 = vst [vmem:[#allocation5 + $0x28] sm:$0xff] %v381
  %400 = vst [vmem:[#allocation5 + $0x30] sm:$0xff] %v386
  %401 = vst [vmem:[#allocation5 + $0x38] sm:$0xff] %v391
  %v402 = vld [vmem:[%s3] sm:$0xff]
  %v403 = vld [vmem:[%s3 + $0x8] sm:$0xff]
  %v404 = vld [vmem:[%s3 + $0x10] sm:$0xff]
  %v405 = vld [vmem:[%s3 + $0x18] sm:$0xff]
  %s406 = scalar_lea.vmem %s3, 32
  %v407 = vld [vmem:[%s406] sm:$0xff]
  %v408 = vld [vmem:[%s406 + $0x8] sm:$0xff]
  %v409 = vld [vmem:[%s406 + $0x10] sm:$0xff]
  %v410 = vld [vmem:[%s406 + $0x18] sm:$0xff]
  %v411 = vld [vmem:[#allocation2] sm:$0xff]
  %v412 = vld [vmem:[#allocation3] sm:$0xff]
  %s413 = scalar_lea.vmem [#allocation2], 8
  %v414 = vld [vmem:[%s413] sm:$0xff]
  %s415 = scalar_lea.vmem [#allocation3], 8
  %v416 = vld [vmem:[%s415] sm:$0xff]
  %v417 = vld [vmem:[#allocation4] sm:$0xff]
  %vm418 = vcmask 261120
  %v420 = vsel %vm418, %v411, 0
  %422 = vmatprep.subr.mxu0 0.0
  %423 = vmatpush1.msra.mxu0 %v402
  %424 = vmatprep.subr.mxu0 0.0
  %425 = vmatpush1.msra.mxu0 %v403
  %426 = vmatprep.subr.mxu0 0.0
  %427 = vmatpush1.msra.mxu0 %v404
  %428 = vmatprep.subr.mxu0 0.0
  %429 = vmatpush1.msra.mxu0 %v405
  %430 = vmatprep.subr.mxu0 0.0
  %431 = vmatpush1.msra.mxu0 0.0
  %432 = vmatprep.subr.mxu0 0.0
  %433 = vmatpush1.msra.mxu0 0.0
  %434 = vmatprep.subr.mxu0 0.0
  %435 = vmatpush1.msra.mxu0 0.0
  %436 = vmatprep.subr.mxu0 0.0
  %437 = vmatpush1.msra.mxu0 0.0
  %438 = vmatprep.subr.mxu0 0.0
  %439 = vmatpush1.msra.mxu0 0.0
  %440 = vmatprep.subr.mxu0 0.0
  %441 = vmatpush1.msra.mxu0 0.0
  %442 = vmatprep.subr.mxu0 0.0
  %443 = vmatpush1.msra.mxu0 0.0
  %444 = vmatprep.subr.mxu0 0.0
  %445 = vmatpush1.msra.mxu0 0.0
  %446 = vmatprep.subr.mxu0 0.0
  %447 = vmatpush1.msra.mxu0 0.0
  %448 = vmatprep.subr.mxu0 0.0
  %449 = vmatpush1.msra.mxu0 0.0
  %450 = vmatprep.subr.mxu0 0.0
  %451 = vmatpush1.msra.mxu0 0.0
  %452 = vmatprep.subr.mxu0 0.0
  %453 = vmatpush1.msra.mxu0 0.0
  %454 = vmatprep.subr.mxu0 0.0
  %455 = vmatpush1.msra.mxu0 0.0
  %456 = vmatprep.subr.mxu0 0.0
  %457 = vmatpush1.msra.mxu0 0.0
  %458 = vmatprep.subr.mxu0 0.0
  %459 = vmatpush1.msra.mxu0 0.0
  %460 = vmatprep.subr.mxu0 0.0
  %461 = vmatpush1.msra.mxu0 0.0
  %462 = vmatprep.subr.mxu0 0.0
  %463 = vmatpush1.msra.mxu0 0.0
  %464 = vmatprep.subr.mxu0 0.0
  %465 = vmatpush1.msra.mxu0 0.0
  %466 = vmatprep.subr.mxu0 0.0
  %467 = vmatpush1.msra.mxu0 0.0
  %468 = vmatprep.subr.mxu0 0.0
  %469 = vmatpush1.msra.mxu0 0.0
  %470 = vmatprep.subr.mxu0 0.0
  %471 = vmatpush1.msra.mxu0 0.0
  %472 = vmatprep.subr.mxu0 0.0
  %473 = vmatpush1.msra.mxu0 0.0
  %474 = vmatprep.subr.mxu0 0.0
  %475 = vmatpush1.msra.mxu0 0.0
  %476 = vmatprep.subr.mxu0 0.0
  %477 = vmatpush1.msra.mxu0 0.0
  %478 = vmatprep.subr.mxu0 0.0
  %479 = vmatpush1.msra.mxu0 0.0
  %480 = vmatprep.subr.mxu0 0.0
  %481 = vmatpush1.msra.mxu0 0.0
  %482 = vmatprep.subr.mxu0 0.0
  %483 = vmatpush1.msra.mxu0 0.0
  %484 = vmatprep.subr.mxu0 0.0
  %485 = vmatpush1.msra.mxu0 0.0
  %486 = vmatprep.mubr.f32.mxu0 0.0
  %487 = vmatmul.mubr.f32.gmra.mrb[0].mxu0 %v420
  %v488 = vpop.f32.mrb[0].mxu0
  %v489 = vadd.f32 0.0, %v488
  %v490 = vpop.f32.mrb[0].mxu0
  %491 = vdwg.mxu0
  %v492 = vadd.f32 %v417, %v489
  %v493 = vxor.u32 %v492, 2147483648
  %v494 = vmul.f32 %v493, 1.442695
  %v495 = vpow.pop %v494
  %v496 = vadd.f32 %v495, 1.0
  %v497 = vrcp.pop %v496
  %v498 = vmul.f32 1.0, %v497
  %v499 = vtanh.pop %v492
  %501 = vrot.lane.b32.xlu0 %v412, 32
  %v502 = vpop.permute.xlu0 %501
  %v504 = vmul.f32 %v498, %v502
  %506 = vrot.lane.b32.xlu0 %v499, 64
  %v507 = vpop.permute.xlu0 %506
  %v509 = vmul.f32 %v498, %v507
  %511 = vrot.lane.b32.xlu0 %v509, 32
  %v512 = vpop.permute.xlu0 %511
  %v514 = vadd.f32 %v504, %v512
  %v515 = vtanh.pop %v514
  %517 = vrot.lane.b32.xlu0 %v515, 64
  %v518 = vpop.permute.xlu0 %517
  %v520 = vmul.f32 %v498, %v518
  %522 = vrot.lane.b32.xlu0 %v520, 32
  %v523 = vpop.permute.xlu0 %522
  %525 = vst.msk [vmem:[%s7] sm:$0xff] %vm418, %v523
  %s526 = scalar_lea.vmem [#allocation5], 56
  %v527 = vld [vmem:[%s526] sm:$0xff]
  %v529 = vsel %vm418, %v414, 0
  %531 = vmatprep.subr.mxu0 0.0
  %532 = vmatpush1.msra.mxu0 %v407
  %533 = vmatprep.subr.mxu0 0.0
  %534 = vmatpush1.msra.mxu0 %v408
  %535 = vmatprep.subr.mxu0 0.0
  %536 = vmatpush1.msra.mxu0 %v409
  %537 = vmatprep.subr.mxu0 0.0
  %538 = vmatpush1.msra.mxu0 %v410
  %539 = vmatprep.subr.mxu0 0.0
  %540 = vmatpush1.msra.mxu0 0.0
  %541 = vmatprep.subr.mxu0 0.0
  %542 = vmatpush1.msra.mxu0 0.0
  %543 = vmatprep.subr.mxu0 0.0
  %544 = vmatpush1.msra.mxu0 0.0
  %545 = vmatprep.subr.mxu0 0.0
  %546 = vmatpush1.msra.mxu0 0.0
  %547 = vmatprep.subr.mxu0 0.0
  %548 = vmatpush1.msra.mxu0 0.0
  %549 = vmatprep.subr.mxu0 0.0
  %550 = vmatpush1.msra.mxu0 0.0
  %551 = vmatprep.subr.mxu0 0.0
  %552 = vmatpush1.msra.mxu0 0.0
  %553 = vmatprep.subr.mxu0 0.0
  %554 = vmatpush1.msra.mxu0 0.0
  %555 = vmatprep.subr.mxu0 0.0
  %556 = vmatpush1.msra.mxu0 0.0
  %557 = vmatprep.subr.mxu0 0.0
  %558 = vmatpush1.msra.mxu0 0.0
  %559 = vmatprep.subr.mxu0 0.0
  %560 = vmatpush1.msra.mxu0 0.0
  %561 = vmatprep.subr.mxu0 0.0
  %562 = vmatpush1.msra.mxu0 0.0
  %563 = vmatprep.subr.mxu0 0.0
  %564 = vmatpush1.msra.mxu0 0.0
  %565 = vmatprep.subr.mxu0 0.0
  %566 = vmatpush1.msra.mxu0 0.0
  %567 = vmatprep.subr.mxu0 0.0
  %568 = vmatpush1.msra.mxu0 0.0
  %569 = vmatprep.subr.mxu0 0.0
  %570 = vmatpush1.msra.mxu0 0.0
  %571 = vmatprep.subr.mxu0 0.0
  %572 = vmatpush1.msra.mxu0 0.0
  %573 = vmatprep.subr.mxu0 0.0
  %574 = vmatpush1.msra.mxu0 0.0
  %575 = vmatprep.subr.mxu0 0.0
  %576 = vmatpush1.msra.mxu0 0.0
  %577 = vmatprep.subr.mxu0 0.0
  %578 = vmatpush1.msra.mxu0 0.0
  %579 = vmatprep.subr.mxu0 0.0
  %580 = vmatpush1.msra.mxu0 0.0
  %581 = vmatprep.subr.mxu0 0.0
  %582 = vmatpush1.msra.mxu0 0.0
  %583 = vmatprep.subr.mxu0 0.0
  %584 = vmatpush1.msra.mxu0 0.0
  %585 = vmatprep.subr.mxu0 0.0
  %586 = vmatpush1.msra.mxu0 0.0
  %587 = vmatprep.subr.mxu0 0.0
  %588 = vmatpush1.msra.mxu0 0.0
  %589 = vmatprep.subr.mxu0 0.0
  %590 = vmatpush1.msra.mxu0 0.0
  %591 = vmatprep.subr.mxu0 0.0
  %592 = vmatpush1.msra.mxu0 0.0
  %593 = vmatprep.subr.mxu0 0.0
  %594 = vmatpush1.msra.mxu0 0.0
  %595 = vmatprep.mubr.f32.mxu0 0.0
  %596 = vmatmul.mubr.f32.gmra.mrb[0].mxu0 %v529
  %v597 = vpop.f32.mrb[0].mxu0
  %v598 = vadd.f32 0.0, %v597
  %v599 = vpop.f32.mrb[0].mxu0
  %600 = vdwg.mxu0
  %v601 = vadd.f32 %v527, %v598
  %v602 = vxor.u32 %v601, 2147483648
  %v603 = vmul.f32 %v602, 1.442695
  %v604 = vpow.pop %v603
  %v605 = vadd.f32 %v604, 1.0
  %v606 = vrcp.pop %v605
  %v607 = vmul.f32 1.0, %v606
  %v608 = vtanh.pop %v601
  %610 = vrot.lane.b32.xlu0 %v416, 32
  %v611 = vpop.permute.xlu0 %610
  %v613 = vmul.f32 %v607, %v611
  %615 = vrot.lane.b32.xlu0 %v608, 64
  %v616 = vpop.permute.xlu0 %615
  %v618 = vmul.f32 %v607, %v616
  %620 = vrot.lane.b32.xlu0 %v618, 32
  %v621 = vpop.permute.xlu0 %620
  %v623 = vadd.f32 %v613, %v621
  %v624 = vtanh.pop %v623
  %626 = vrot.lane.b32.xlu0 %v624, 64
  %v627 = vpop.permute.xlu0 %626
  %v629 = vmul.f32 %v607, %v627
  %631 = vrot.lane.b32.xlu0 %v629, 32
  %v632 = vpop.permute.xlu0 %631
  %s634 = scalar_lea.vmem %s63, 56
  %635 = vst.msk [vmem:[%s634] sm:$0xff] %vm418, %v632
  %s636 = scalar_lea.vmem [#allocation4], 8
  %v637 = vld [vmem:[%s636] sm:$0xff]
  %v638 = vsel %vm418, %v523, 0
  %640 = vmatprep.subr.mxu0 0.0
  %641 = vmatpush1.msra.mxu0 %v402
  %642 = vmatprep.subr.mxu0 0.0
  %643 = vmatpush1.msra.mxu0 %v403
  %644 = vmatprep.subr.mxu0 0.0
  %645 = vmatpush1.msra.mxu0 %v404
  %646 = vmatprep.subr.mxu0 0.0
  %647 = vmatpush1.msra.mxu0 %v405
  %648 = vmatprep.subr.mxu0 0.0
  %649 = vmatpush1.msra.mxu0 0.0
  %650 = vmatprep.subr.mxu0 0.0
  %651 = vmatpush1.msra.mxu0 0.0
  %652 = vmatprep.subr.mxu0 0.0
  %653 = vmatpush1.msra.mxu0 0.0
  %654 = vmatprep.subr.mxu0 0.0
  %655 = vmatpush1.msra.mxu0 0.0
  %656 = vmatprep.subr.mxu0 0.0
  %657 = vmatpush1.msra.mxu0 0.0
  %658 = vmatprep.subr.mxu0 0.0
  %659 = vmatpush1.msra.mxu0 0.0
  %660 = vmatprep.subr.mxu0 0.0
  %661 = vmatpush1.msra.mxu0 0.0
  %662 = vmatprep.subr.mxu0 0.0
  %663 = vmatpush1.msra.mxu0 0.0
  %664 = vmatprep.subr.mxu0 0.0
  %665 = vmatpush1.msra.mxu0 0.0
  %666 = vmatprep.subr.mxu0 0.0
  %667 = vmatpush1.msra.mxu0 0.0
  %668 = vmatprep.subr.mxu0 0.0
  %669 = vmatpush1.msra.mxu0 0.0
  %670 = vmatprep.subr.mxu0 0.0
  %671 = vmatpush1.msra.mxu0 0.0
  %672 = vmatprep.subr.mxu0 0.0
  %673 = vmatpush1.msra.mxu0 0.0
  %674 = vmatprep.subr.mxu0 0.0
  %675 = vmatpush1.msra.mxu0 0.0
  %676 = vmatprep.subr.mxu0 0.0
  %677 = vmatpush1.msra.mxu0 0.0
  %678 = vmatprep.subr.mxu0 0.0
  %679 = vmatpush1.msra.mxu0 0.0
  %680 = vmatprep.subr.mxu0 0.0
  %681 = vmatpush1.msra.mxu0 0.0
  %682 = vmatprep.subr.mxu0 0.0
  %683 = vmatpush1.msra.mxu0 0.0
  %684 = vmatprep.subr.mxu0 0.0
  %685 = vmatpush1.msra.mxu0 0.0
  %686 = vmatprep.subr.mxu0 0.0
  %687 = vmatpush1.msra.mxu0 0.0
  %688 = vmatprep.subr.mxu0 0.0
  %689 = vmatpush1.msra.mxu0 0.0
  %690 = vmatprep.subr.mxu0 0.0
  %691 = vmatpush1.msra.mxu0 0.0
  %692 = vmatprep.subr.mxu0 0.0
  %693 = vmatpush1.msra.mxu0 0.0
  %694 = vmatprep.subr.mxu0 0.0
  %695 = vmatpush1.msra.mxu0 0.0
  %696 = vmatprep.subr.mxu0 0.0
  %697 = vmatpush1.msra.mxu0 0.0
  %698 = vmatprep.subr.mxu0 0.0
  %699 = vmatpush1.msra.mxu0 0.0
  %700 = vmatprep.subr.mxu0 0.0
  %701 = vmatpush1.msra.mxu0 0.0
  %702 = vmatprep.subr.mxu0 0.0
  %703 = vmatpush1.msra.mxu0 0.0
  %704 = vmatprep.mubr.f32.mxu0 0.0
  %705 = vmatmul.mubr.f32.gmra.mrb[0].mxu0 %v638
  %v706 = vpop.f32.mrb[0].mxu0
  %v707 = vadd.f32 0.0, %v706
  %v708 = vpop.f32.mrb[0].mxu0
  %709 = vdwg.mxu0
  %v710 = vadd.f32 %v637, %v707
  %v711 = vxor.u32 %v710, 2147483648
  %v712 = vmul.f32 %v711, 1.442695
  %v713 = vpow.pop %v712
  %v714 = vadd.f32 %v713, 1.0
  %v715 = vrcp.pop %v714
  %v716 = vmul.f32 1.0, %v715
  %v717 = vtanh.pop %v710
  %v718 = vmul.f32 %v716, %v514
  %720 = vrot.lane.b32.xlu0 %v717, 64
  %v721 = vpop.permute.xlu0 %720
  %v723 = vmul.f32 %v716, %v721
  %725 = vrot.lane.b32.xlu0 %v723, 32
  %v726 = vpop.permute.xlu0 %725
  %v728 = vadd.f32 %v718, %v726
  %v729 = vtanh.pop %v728
  %731 = vrot.lane.b32.xlu0 %v729, 64
  %v732 = vpop.permute.xlu0 %731
  %v734 = vmul.f32 %v716, %v732
  %736 = vrot.lane.b32.xlu0 %v734, 32
  %v737 = vpop.permute.xlu0 %736
  %s739 = scalar_lea.vmem %s7, 8
  %740 = vst.msk [vmem:[%s739] sm:$0xff] %vm418, %v737
  %s741 = scalar_lea.vmem [#allocation5], 48
  %v742 = vld [vmem:[%s741] sm:$0xff]
  %v743 = vsel %vm418, %v632, 0
  %745 = vmatprep.subr.mxu0 0.0
  %746 = vmatpush1.msra.mxu0 %v407
  %747 = vmatprep.subr.mxu0 0.0
  %748 = vmatpush1.msra.mxu0 %v408
  %749 = vmatprep.subr.mxu0 0.0
  %750 = vmatpush1.msra.mxu0 %v409
  %751 = vmatprep.subr.mxu0 0.0
  %752 = vmatpush1.msra.mxu0 %v410
  %753 = vmatprep.subr.mxu0 0.0
  %754 = vmatpush1.msra.mxu0 0.0
  %755 = vmatprep.subr.mxu0 0.0
  %756 = vmatpush1.msra.mxu0 0.0
  %757 = vmatprep.subr.mxu0 0.0
  %758 = vmatpush1.msra.mxu0 0.0
  %759 = vmatprep.subr.mxu0 0.0
  %760 = vmatpush1.msra.mxu0 0.0
  %761 = vmatprep.subr.mxu0 0.0
  %762 = vmatpush1.msra.mxu0 0.0
  %763 = vmatprep.subr.mxu0 0.0
  %764 = vmatpush1.msra.mxu0 0.0
  %765 = vmatprep.subr.mxu0 0.0
  %766 = vmatpush1.msra.mxu0 0.0
  %767 = vmatprep.subr.mxu0 0.0
  %768 = vmatpush1.msra.mxu0 0.0
  %769 = vmatprep.subr.mxu0 0.0
  %770 = vmatpush1.msra.mxu0 0.0
  %771 = vmatprep.subr.mxu0 0.0
  %772 = vmatpush1.msra.mxu0 0.0
  %773 = vmatprep.subr.mxu0 0.0
  %774 = vmatpush1.msra.mxu0 0.0
  %775 = vmatprep.subr.mxu0 0.0
  %776 = vmatpush1.msra.mxu0 0.0
  %777 = vmatprep.subr.mxu0 0.0
  %778 = vmatpush1.msra.mxu0 0.0
  %779 = vmatprep.subr.mxu0 0.0
  %780 = vmatpush1.msra.mxu0 0.0
  %781 = vmatprep.subr.mxu0 0.0
  %782 = vmatpush1.msra.mxu0 0.0
  %783 = vmatprep.subr.mxu0 0.0
  %784 = vmatpush1.msra.mxu0 0.0
  %785 = vmatprep.subr.mxu0 0.0
  %786 = vmatpush1.msra.mxu0 0.0
  %787 = vmatprep.subr.mxu0 0.0
  %788 = vmatpush1.msra.mxu0 0.0
  %789 = vmatprep.subr.mxu0 0.0
  %790 = vmatpush1.msra.mxu0 0.0
  %791 = vmatprep.subr.mxu0 0.0
  %792 = vmatpush1.msra.mxu0 0.0
  %793 = vmatprep.subr.mxu0 0.0
  %794 = vmatpush1.msra.mxu0 0.0
  %795 = vmatprep.subr.mxu0 0.0
  %796 = vmatpush1.msra.mxu0 0.0
  %797 = vmatprep.subr.mxu0 0.0
  %798 = vmatpush1.msra.mxu0 0.0
  %799 = vmatprep.subr.mxu0 0.0
  %800 = vmatpush1.msra.mxu0 0.0
  %801 = vmatprep.subr.mxu0 0.0
  %802 = vmatpush1.msra.mxu0 0.0
  %803 = vmatprep.subr.mxu0 0.0
  %804 = vmatpush1.msra.mxu0 0.0
  %805 = vmatprep.subr.mxu0 0.0
  %806 = vmatpush1.msra.mxu0 0.0
  %807 = vmatprep.subr.mxu0 0.0
  %808 = vmatpush1.msra.mxu0 0.0
  %809 = vmatprep.mubr.f32.mxu0 0.0
  %810 = vmatmul.mubr.f32.gmra.mrb[0].mxu0 %v743
  %v811 = vpop.f32.mrb[0].mxu0
  %v812 = vadd.f32 0.0, %v811
  %v813 = vpop.f32.mrb[0].mxu0
  %814 = vdwg.mxu0
  %v815 = vadd.f32 %v742, %v812
  %v816 = vxor.u32 %v815, 2147483648
  %v817 = vmul.f32 %v816, 1.442695
  %v818 = vpow.pop %v817
  %v819 = vadd.f32 %v818, 1.0
  %v820 = vrcp.pop %v819
  %v821 = vmul.f32 1.0, %v820
  %v822 = vtanh.pop %v815
  %v823 = vmul.f32 %v821, %v623
  %825 = vrot.lane.b32.xlu0 %v822, 64
  %v826 = vpop.permute.xlu0 %825
  %v828 = vmul.f32 %v821, %v826
  %830 = vrot.lane.b32.xlu0 %v828, 32
  %v831 = vpop.permute.xlu0 %830
  %v833 = vadd.f32 %v823, %v831
  %v834 = vtanh.pop %v833
  %836 = vrot.lane.b32.xlu0 %v834, 64
  %v837 = vpop.permute.xlu0 %836
  %v839 = vmul.f32 %v821, %v837
  %841 = vrot.lane.b32.xlu0 %v839, 32
  %v842 = vpop.permute.xlu0 %841
  %s844 = scalar_lea.vmem %s63, 48
  %845 = vst.msk [vmem:[%s844] sm:$0xff] %vm418, %v842
  %s846 = scalar_lea.vmem [#allocation4], 16
  %v847 = vld [vmem:[%s846] sm:$0xff]
  %v848 = vsel %vm418, %v737, 0
  %850 = vmatprep.subr.mxu0 0.0
  %851 = vmatpush1.msra.mxu0 %v402
  %852 = vmatprep.subr.mxu0 0.0
  %853 = vmatpush1.msra.mxu0 %v403
  %854 = vmatprep.subr.mxu0 0.0
  %855 = vmatpush1.msra.mxu0 %v404
  %856 = vmatprep.subr.mxu0 0.0
  %857 = vmatpush1.msra.mxu0 %v405
  %858 = vmatprep.subr.mxu0 0.0
  %859 = vmatpush1.msra.mxu0 0.0
  %860 = vmatprep.subr.mxu0 0.0
  %861 = vmatpush1.msra.mxu0 0.0
  %862 = vmatprep.subr.mxu0 0.0
  %863 = vmatpush1.msra.mxu0 0.0
  %864 = vmatprep.subr.mxu0 0.0
  %865 = vmatpush1.msra.mxu0 0.0
  %866 = vmatprep.subr.mxu0 0.0
  %867 = vmatpush1.msra.mxu0 0.0
  %868 = vmatprep.subr.mxu0 0.0
  %869 = vmatpush1.msra.mxu0 0.0
  %870 = vmatprep.subr.mxu0 0.0
  %871 = vmatpush1.msra.mxu0 0.0
  %872 = vmatprep.subr.mxu0 0.0
  %873 = vmatpush1.msra.mxu0 0.0
  %874 = vmatprep.subr.mxu0 0.0
  %875 = vmatpush1.msra.mxu0 0.0
  %876 = vmatprep.subr.mxu0 0.0
  %877 = vmatpush1.msra.mxu0 0.0
  %878 = vmatprep.subr.mxu0 0.0
  %879 = vmatpush1.msra.mxu0 0.0
  %880 = vmatprep.subr.mxu0 0.0
  %881 = vmatpush1.msra.mxu0 0.0
  %882 = vmatprep.subr.mxu0 0.0
  %883 = vmatpush1.msra.mxu0 0.0
  %884 = vmatprep.subr.mxu0 0.0
  %885 = vmatpush1.msra.mxu0 0.0
  %886 = vmatprep.subr.mxu0 0.0
  %887 = vmatpush1.msra.mxu0 0.0
  %888 = vmatprep.subr.mxu0 0.0
  %889 = vmatpush1.msra.mxu0 0.0
  %890 = vmatprep.subr.mxu0 0.0
  %891 = vmatpush1.msra.mxu0 0.0
  %892 = vmatprep.subr.mxu0 0.0
  %893 = vmatpush1.msra.mxu0 0.0
  %894 = vmatprep.subr.mxu0 0.0
  %895 = vmatpush1.msra.mxu0 0.0
  %896 = vmatprep.subr.mxu0 0.0
  %897 = vmatpush1.msra.mxu0 0.0
  %898 = vmatprep.subr.mxu0 0.0
  %899 = vmatpush1.msra.mxu0 0.0
  %900 = vmatprep.subr.mxu0 0.0
  %901 = vmatpush1.msra.mxu0 0.0
  %902 = vmatprep.subr.mxu0 0.0
  %903 = vmatpush1.msra.mxu0 0.0
  %904 = vmatprep.subr.mxu0 0.0
  %905 = vmatpush1.msra.mxu0 0.0
  %906 = vmatprep.subr.mxu0 0.0
  %907 = vmatpush1.msra.mxu0 0.0
  %908 = vmatprep.subr.mxu0 0.0
  %909 = vmatpush1.msra.mxu0 0.0
  %910 = vmatprep.subr.mxu0 0.0
  %911 = vmatpush1.msra.mxu0 0.0
  %912 = vmatprep.subr.mxu0 0.0
  %913 = vmatpush1.msra.mxu0 0.0
  %914 = vmatprep.mubr.f32.mxu0 0.0
  %915 = vmatmul.mubr.f32.gmra.mrb[0].mxu0 %v848
  %v916 = vpop.f32.mrb[0].mxu0
  %v917 = vadd.f32 0.0, %v916
  %v918 = vpop.f32.mrb[0].mxu0
  %919 = vdwg.mxu0
  %v920 = vadd.f32 %v847, %v917
  %v921 = vxor.u32 %v920, 2147483648
  %v922 = vmul.f32 %v921, 1.442695
  %v923 = vpow.pop %v922
  %v924 = vadd.f32 %v923, 1.0
  %v925 = vrcp.pop %v924
  %v926 = vmul.f32 1.0, %v925
  %v927 = vtanh.pop %v920
  %v928 = vmul.f32 %v926, %v728
  %930 = vrot.lane.b32.xlu0 %v927, 64
  %v931 = vpop.permute.xlu0 %930
  %v933 = vmul.f32 %v926, %v931
  %935 = vrot.lane.b32.xlu0 %v933, 32
  %v936 = vpop.permute.xlu0 %935
  %v938 = vadd.f32 %v928, %v936
  %v939 = vtanh.pop %v938
  %941 = vrot.lane.b32.xlu0 %v939, 64
  %v942 = vpop.permute.xlu0 %941
  %v944 = vmul.f32 %v926, %v942
  %946 = vrot.lane.b32.xlu0 %v944, 32
  %v947 = vpop.permute.xlu0 %946
  %s949 = scalar_lea.vmem %s7, 16
  %950 = vst.msk [vmem:[%s949] sm:$0xff] %vm418, %v947
  %s951 = scalar_lea.vmem [#allocation5], 40
  %v952 = vld [vmem:[%s951] sm:$0xff]
  %v953 = vsel %vm418, %v842, 0
  %955 = vmatprep.subr.mxu0 0.0
  %956 = vmatpush1.msra.mxu0 %v407
  %957 = vmatprep.subr.mxu0 0.0
  %958 = vmatpush1.msra.mxu0 %v408
  %959 = vmatprep.subr.mxu0 0.0
  %960 = vmatpush1.msra.mxu0 %v409
  %961 = vmatprep.subr.mxu0 0.0
  %962 = vmatpush1.msra.mxu0 %v410
  %963 = vmatprep.subr.mxu0 0.0
  %964 = vmatpush1.msra.mxu0 0.0
  %965 = vmatprep.subr.mxu0 0.0
  %966 = vmatpush1.msra.mxu0 0.0
  %967 = vmatprep.subr.mxu0 0.0
  %968 = vmatpush1.msra.mxu0 0.0
  %969 = vmatprep.subr.mxu0 0.0
  %970 = vmatpush1.msra.mxu0 0.0
  %971 = vmatprep.subr.mxu0 0.0
  %972 = vmatpush1.msra.mxu0 0.0
  %973 = vmatprep.subr.mxu0 0.0
  %974 = vmatpush1.msra.mxu0 0.0
  %975 = vmatprep.subr.mxu0 0.0
  %976 = vmatpush1.msra.mxu0 0.0
  %977 = vmatprep.subr.mxu0 0.0
  %978 = vmatpush1.msra.mxu0 0.0
  %979 = vmatprep.subr.mxu0 0.0
  %980 = vmatpush1.msra.mxu0 0.0
  %981 = vmatprep.subr.mxu0 0.0
  %982 = vmatpush1.msra.mxu0 0.0
  %983 = vmatprep.subr.mxu0 0.0
  %984 = vmatpush1.msra.mxu0 0.0
  %985 = vmatprep.subr.mxu0 0.0
  %986 = vmatpush1.msra.mxu0 0.0
  %987 = vmatprep.subr.mxu0 0.0
  %988 = vmatpush1.msra.mxu0 0.0
  %989 = vmatprep.subr.mxu0 0.0
  %990 = vmatpush1.msra.mxu0 0.0
  %991 = vmatprep.subr.mxu0 0.0
  %992 = vmatpush1.msra.mxu0 0.0
  %993 = vmatprep.subr.mxu0 0.0
  %994 = vmatpush1.msra.mxu0 0.0
  %995 = vmatprep.subr.mxu0 0.0
  %996 = vmatpush1.msra.mxu0 0.0
  %997 = vmatprep.subr.mxu0 0.0
  %998 = vmatpush1.msra.mxu0 0.0
  %999 = vmatprep.subr.mxu0 0.0
  %1000 = vmatpush1.msra.mxu0 0.0
  %1001 = vmatprep.subr.mxu0 0.0
  %1002 = vmatpush1.msra.mxu0 0.0
  %1003 = vmatprep.subr.mxu0 0.0
  %1004 = vmatpush1.msra.mxu0 0.0
  %1005 = vmatprep.subr.mxu0 0.0
  %1006 = vmatpush1.msra.mxu0 0.0
  %1007 = vmatprep.subr.mxu0 0.0
  %1008 = vmatpush1.msra.mxu0 0.0
  %1009 = vmatprep.subr.mxu0 0.0
  %1010 = vmatpush1.msra.mxu0 0.0
  %1011 = vmatprep.subr.mxu0 0.0
  %1012 = vmatpush1.msra.mxu0 0.0
  %1013 = vmatprep.subr.mxu0 0.0
  %1014 = vmatpush1.msra.mxu0 0.0
  %1015 = vmatprep.subr.mxu0 0.0
  %1016 = vmatpush1.msra.mxu0 0.0
  %1017 = vmatprep.subr.mxu0 0.0
  %1018 = vmatpush1.msra.mxu0 0.0
  %1019 = vmatprep.mubr.f32.mxu0 0.0
  %1020 = vmatmul.mubr.f32.gmra.mrb[0].mxu0 %v953
  %v1021 = vpop.f32.mrb[0].mxu0
  %v1022 = vadd.f32 0.0, %v1021
  %v1023 = vpop.f32.mrb[0].mxu0
  %1024 = vdwg.mxu0
  %v1025 = vadd.f32 %v952, %v1022
  %v1026 = vxor.u32 %v1025, 2147483648
  %v1027 = vmul.f32 %v1026, 1.442695
  %v1028 = vpow.pop %v1027
  %v1029 = vadd.f32 %v1028, 1.0
  %v1030 = vrcp.pop %v1029
  %v1031 = vmul.f32 1.0, %v1030
  %v1032 = vtanh.pop %v1025
  %v1033 = vmul.f32 %v1031, %v833
  %1035 = vrot.lane.b32.xlu0 %v1032, 64
  %v1036 = vpop.permute.xlu0 %1035
  %v1038 = vmul.f32 %v1031, %v1036
  %1040 = vrot.lane.b32.xlu0 %v1038, 32
  %v1041 = vpop.permute.xlu0 %1040
  %v1043 = vadd.f32 %v1033, %v1041
  %v1044 = vtanh.pop %v1043
  %1046 = vrot.lane.b32.xlu0 %v1044, 64
  %v1047 = vpop.permute.xlu0 %1046
  %v1049 = vmul.f32 %v1031, %v1047
  %1051 = vrot.lane.b32.xlu0 %v1049, 32
  %v1052 = vpop.permute.xlu0 %1051
  %s1054 = scalar_lea.vmem %s63, 40
  %1055 = vst.msk [vmem:[%s1054] sm:$0xff] %vm418, %v1052
  %s1056 = scalar_lea.vmem [#allocation4], 24
  %v1057 = vld [vmem:[%s1056] sm:$0xff]
  %v1058 = vsel %vm418, %v947, 0
  %1060 = vmatprep.subr.mxu0 0.0
  %1061 = vmatpush1.msra.mxu0 %v402
  %1062 = vmatprep.subr.mxu0 0.0
  %1063 = vmatpush1.msra.mxu0 %v403
  %1064 = vmatprep.subr.mxu0 0.0
  %1065 = vmatpush1.msra.mxu0 %v404
  %1066 = vmatprep.subr.mxu0 0.0
  %1067 = vmatpush1.msra.mxu0 %v405
  %1068 = vmatprep.subr.mxu0 0.0
  %1069 = vmatpush1.msra.mxu0 0.0
  %1070 = vmatprep.subr.mxu0 0.0
  %1071 = vmatpush1.msra.mxu0 0.0
  %1072 = vmatprep.subr.mxu0 0.0
  %1073 = vmatpush1.msra.mxu0 0.0
  %1074 = vmatprep.subr.mxu0 0.0
  %1075 = vmatpush1.msra.mxu0 0.0
  %1076 = vmatprep.subr.mxu0 0.0
  %1077 = vmatpush1.msra.mxu0 0.0
  %1078 = vmatprep.subr.mxu0 0.0
  %1079 = vmatpush1.msra.mxu0 0.0
  %1080 = vmatprep.subr.mxu0 0.0
  %1081 = vmatpush1.msra.mxu0 0.0
  %1082 = vmatprep.subr.mxu0 0.0
  %1083 = vmatpush1.msra.mxu0 0.0
  %1084 = vmatprep.subr.mxu0 0.0
  %1085 = vmatpush1.msra.mxu0 0.0
  %1086 = vmatprep.subr.mxu0 0.0
  %1087 = vmatpush1.msra.mxu0 0.0
  %1088 = vmatprep.subr.mxu0 0.0
  %1089 = vmatpush1.msra.mxu0 0.0
  %1090 = vmatprep.subr.mxu0 0.0
  %1091 = vmatpush1.msra.mxu0 0.0
  %1092 = vmatprep.subr.mxu0 0.0
  %1093 = vmatpush1.msra.mxu0 0.0
  %1094 = vmatprep.subr.mxu0 0.0
  %1095 = vmatpush1.msra.mxu0 0.0
  %1096 = vmatprep.subr.mxu0 0.0
  %1097 = vmatpush1.msra.mxu0 0.0
  %1098 = vmatprep.subr.mxu0 0.0
  %1099 = vmatpush1.msra.mxu0 0.0
  %1100 = vmatprep.subr.mxu0 0.0
  %1101 = vmatpush1.msra.mxu0 0.0
  %1102 = vmatprep.subr.mxu0 0.0
  %1103 = vmatpush1.msra.mxu0 0.0
  %1104 = vmatprep.subr.mxu0 0.0
  %1105 = vmatpush1.msra.mxu0 0.0
  %1106 = vmatprep.subr.mxu0 0.0
  %1107 = vmatpush1.msra.mxu0 0.0
  %1108 = vmatprep.subr.mxu0 0.0
  %1109 = vmatpush1.msra.mxu0 0.0
  %1110 = vmatprep.subr.mxu0 0.0
  %1111 = vmatpush1.msra.mxu0 0.0
  %1112 = vmatprep.subr.mxu0 0.0
  %1113 = vmatpush1.msra.mxu0 0.0
  %1114 = vmatprep.subr.mxu0 0.0
  %1115 = vmatpush1.msra.mxu0 0.0
  %1116 = vmatprep.subr.mxu0 0.0
  %1117 = vmatpush1.msra.mxu0 0.0
  %1118 = vmatprep.subr.mxu0 0.0
  %1119 = vmatpush1.msra.mxu0 0.0
  %1120 = vmatprep.subr.mxu0 0.0
  %1121 = vmatpush1.msra.mxu0 0.0
  %1122 = vmatprep.subr.mxu0 0.0
  %1123 = vmatpush1.msra.mxu0 0.0
  %1124 = vmatprep.mubr.f32.mxu0 0.0
  %1125 = vmatmul.mubr.f32.gmra.mrb[0].mxu0 %v1058
  %v1126 = vpop.f32.mrb[0].mxu0
  %v1127 = vadd.f32 0.0, %v1126
  %v1128 = vpop.f32.mrb[0].mxu0
  %1129 = vdwg.mxu0
  %v1130 = vadd.f32 %v1057, %v1127
  %v1131 = vxor.u32 %v1130, 2147483648
  %v1132 = vmul.f32 %v1131, 1.442695
  %v1133 = vpow.pop %v1132
  %v1134 = vadd.f32 %v1133, 1.0
  %v1135 = vrcp.pop %v1134
  %v1136 = vmul.f32 1.0, %v1135
  %v1137 = vtanh.pop %v1130
  %v1138 = vmul.f32 %v1136, %v938
  %1140 = vrot.lane.b32.xlu0 %v1137, 64
  %v1141 = vpop.permute.xlu0 %1140
  %v1143 = vmul.f32 %v1136, %v1141
  %1145 = vrot.lane.b32.xlu0 %v1143, 32
  %v1146 = vpop.permute.xlu0 %1145
  %v1148 = vadd.f32 %v1138, %v1146
  %v1149 = vtanh.pop %v1148
  %1151 = vrot.lane.b32.xlu0 %v1149, 64
  %v1152 = vpop.permute.xlu0 %1151
  %v1154 = vmul.f32 %v1136, %v1152
  %1156 = vrot.lane.b32.xlu0 %v1154, 32
  %v1157 = vpop.permute.xlu0 %1156
  %s1159 = scalar_lea.vmem %s7, 24
  %1160 = vst.msk [vmem:[%s1159] sm:$0xff] %vm418, %v1157
  %s1161 = scalar_lea.vmem [#allocation5], 32
  %v1162 = vld [vmem:[%s1161] sm:$0xff]
  %v1163 = vsel %vm418, %v1052, 0
  %1165 = vmatprep.subr.mxu0 0.0
  %1166 = vmatpush1.msra.mxu0 %v407
  %1167 = vmatprep.subr.mxu0 0.0
  %1168 = vmatpush1.msra.mxu0 %v408
  %1169 = vmatprep.subr.mxu0 0.0
  %1170 = vmatpush1.msra.mxu0 %v409
  %1171 = vmatprep.subr.mxu0 0.0
  %1172 = vmatpush1.msra.mxu0 %v410
  %1173 = vmatprep.subr.mxu0 0.0
  %1174 = vmatpush1.msra.mxu0 0.0
  %1175 = vmatprep.subr.mxu0 0.0
  %1176 = vmatpush1.msra.mxu0 0.0
  %1177 = vmatprep.subr.mxu0 0.0
  %1178 = vmatpush1.msra.mxu0 0.0
  %1179 = vmatprep.subr.mxu0 0.0
  %1180 = vmatpush1.msra.mxu0 0.0
  %1181 = vmatprep.subr.mxu0 0.0
  %1182 = vmatpush1.msra.mxu0 0.0
  %1183 = vmatprep.subr.mxu0 0.0
  %1184 = vmatpush1.msra.mxu0 0.0
  %1185 = vmatprep.subr.mxu0 0.0
  %1186 = vmatpush1.msra.mxu0 0.0
  %1187 = vmatprep.subr.mxu0 0.0
  %1188 = vmatpush1.msra.mxu0 0.0
  %1189 = vmatprep.subr.mxu0 0.0
  %1190 = vmatpush1.msra.mxu0 0.0
  %1191 = vmatprep.subr.mxu0 0.0
  %1192 = vmatpush1.msra.mxu0 0.0
  %1193 = vmatprep.subr.mxu0 0.0
  %1194 = vmatpush1.msra.mxu0 0.0
  %1195 = vmatprep.subr.mxu0 0.0
  %1196 = vmatpush1.msra.mxu0 0.0
  %1197 = vmatprep.subr.mxu0 0.0
  %1198 = vmatpush1.msra.mxu0 0.0
  %1199 = vmatprep.subr.mxu0 0.0
  %1200 = vmatpush1.msra.mxu0 0.0
  %1201 = vmatprep.subr.mxu0 0.0
  %1202 = vmatpush1.msra.mxu0 0.0
  %1203 = vmatprep.subr.mxu0 0.0
  %1204 = vmatpush1.msra.mxu0 0.0
  %1205 = vmatprep.subr.mxu0 0.0
  %1206 = vmatpush1.msra.mxu0 0.0
  %1207 = vmatprep.subr.mxu0 0.0
  %1208 = vmatpush1.msra.mxu0 0.0
  %1209 = vmatprep.subr.mxu0 0.0
  %1210 = vmatpush1.msra.mxu0 0.0
  %1211 = vmatprep.subr.mxu0 0.0
  %1212 = vmatpush1.msra.mxu0 0.0
  %1213 = vmatprep.subr.mxu0 0.0
  %1214 = vmatpush1.msra.mxu0 0.0
  %1215 = vmatprep.subr.mxu0 0.0
  %1216 = vmatpush1.msra.mxu0 0.0
  %1217 = vmatprep.subr.mxu0 0.0
  %1218 = vmatpush1.msra.mxu0 0.0
  %1219 = vmatprep.subr.mxu0 0.0
  %1220 = vmatpush1.msra.mxu0 0.0
  %1221 = vmatprep.subr.mxu0 0.0
  %1222 = vmatpush1.msra.mxu0 0.0
  %1223 = vmatprep.subr.mxu0 0.0
  %1224 = vmatpush1.msra.mxu0 0.0
  %1225 = vmatprep.subr.mxu0 0.0
  %1226 = vmatpush1.msra.mxu0 0.0
  %1227 = vmatprep.subr.mxu0 0.0
  %1228 = vmatpush1.msra.mxu0 0.0
  %1229 = vmatprep.mubr.f32.mxu0 0.0
  %1230 = vmatmul.mubr.f32.gmra.mrb[0].mxu0 %v1163
  %v1231 = vpop.f32.mrb[0].mxu0
  %v1232 = vadd.f32 0.0, %v1231
  %v1233 = vpop.f32.mrb[0].mxu0
  %1234 = vdwg.mxu0
  %v1235 = vadd.f32 %v1162, %v1232
  %v1236 = vxor.u32 %v1235, 2147483648
  %v1237 = vmul.f32 %v1236, 1.442695
  %v1238 = vpow.pop %v1237
  %v1239 = vadd.f32 %v1238, 1.0
  %v1240 = vrcp.pop %v1239
  %v1241 = vmul.f32 1.0, %v1240
  %v1242 = vtanh.pop %v1235
  %v1243 = vmul.f32 %v1241, %v1043
  %1245 = vrot.lane.b32.xlu0 %v1242, 64
  %v1246 = vpop.permute.xlu0 %1245
  %v1248 = vmul.f32 %v1241, %v1246
  %1250 = vrot.lane.b32.xlu0 %v1248, 32
  %v1251 = vpop.permute.xlu0 %1250
  %v1253 = vadd.f32 %v1243, %v1251
  %v1254 = vtanh.pop %v1253
  %1256 = vrot.lane.b32.xlu0 %v1254, 64
  %v1257 = vpop.permute.xlu0 %1256
  %v1259 = vmul.f32 %v1241, %v1257
  %1261 = vrot.lane.b32.xlu0 %v1259, 32
  %v1262 = vpop.permute.xlu0 %1261
  %s1264 = scalar_lea.vmem %s63, 32
  %1265 = vst.msk [vmem:[%s1264] sm:$0xff] %vm418, %v1262
  %s1266 = scalar_lea.vmem [#allocation4], 32
  %v1267 = vld [vmem:[%s1266] sm:$0xff]
  %v1268 = vsel %vm418, %v1157, 0
  %1270 = vmatprep.subr.mxu0 0.0
  %1271 = vmatpush1.msra.mxu0 %v402
  %1272 = vmatprep.subr.mxu0 0.0
  %1273 = vmatpush1.msra.mxu0 %v403
  %1274 = vmatprep.subr.mxu0 0.0
  %1275 = vmatpush1.msra.mxu0 %v404
  %1276 = vmatprep.subr.mxu0 0.0
  %1277 = vmatpush1.msra.mxu0 %v405
  %1278 = vmatprep.subr.mxu0 0.0
  %1279 = vmatpush1.msra.mxu0 0.0
  %1280 = vmatprep.subr.mxu0 0.0
  %1281 = vmatpush1.msra.mxu0 0.0
  %1282 = vmatprep.subr.mxu0 0.0
  %1283 = vmatpush1.msra.mxu0 0.0
  %1284 = vmatprep.subr.mxu0 0.0
  %1285 = vmatpush1.msra.mxu0 0.0
  %1286 = vmatprep.subr.mxu0 0.0
  %1287 = vmatpush1.msra.mxu0 0.0
  %1288 = vmatprep.subr.mxu0 0.0
  %1289 = vmatpush1.msra.mxu0 0.0
  %1290 = vmatprep.subr.mxu0 0.0
  %1291 = vmatpush1.msra.mxu0 0.0
  %1292 = vmatprep.subr.mxu0 0.0
  %1293 = vmatpush1.msra.mxu0 0.0
  %1294 = vmatprep.subr.mxu0 0.0
  %1295 = vmatpush1.msra.mxu0 0.0
  %1296 = vmatprep.subr.mxu0 0.0
  %1297 = vmatpush1.msra.mxu0 0.0
  %1298 = vmatprep.subr.mxu0 0.0
  %1299 = vmatpush1.msra.mxu0 0.0
  %1300 = vmatprep.subr.mxu0 0.0
  %1301 = vmatpush1.msra.mxu0 0.0
  %1302 = vmatprep.subr.mxu0 0.0
  %1303 = vmatpush1.msra.mxu0 0.0
  %1304 = vmatprep.subr.mxu0 0.0
  %1305 = vmatpush1.msra.mxu0 0.0
  %1306 = vmatprep.subr.mxu0 0.0
  %1307 = vmatpush1.msra.mxu0 0.0
  %1308 = vmatprep.subr.mxu0 0.0
  %1309 = vmatpush1.msra.mxu0 0.0
  %1310 = vmatprep.subr.mxu0 0.0
  %1311 = vmatpush1.msra.mxu0 0.0
  %1312 = vmatprep.subr.mxu0 0.0
  %1313 = vmatpush1.msra.mxu0 0.0
  %1314 = vmatprep.subr.mxu0 0.0
  %1315 = vmatpush1.msra.mxu0 0.0
  %1316 = vmatprep.subr.mxu0 0.0
  %1317 = vmatpush1.msra.mxu0 0.0
  %1318 = vmatprep.subr.mxu0 0.0
  %1319 = vmatpush1.msra.mxu0 0.0
  %1320 = vmatprep.subr.mxu0 0.0
  %1321 = vmatpush1.msra.mxu0 0.0
  %1322 = vmatprep.subr.mxu0 0.0
  %1323 = vmatpush1.msra.mxu0 0.0
  %1324 = vmatprep.subr.mxu0 0.0
  %1325 = vmatpush1.msra.mxu0 0.0
  %1326 = vmatprep.subr.mxu0 0.0
  %1327 = vmatpush1.msra.mxu0 0.0
  %1328 = vmatprep.subr.mxu0 0.0
  %1329 = vmatpush1.msra.mxu0 0.0
  %1330 = vmatprep.subr.mxu0 0.0
  %1331 = vmatpush1.msra.mxu0 0.0
  %1332 = vmatprep.subr.mxu0 0.0
  %1333 = vmatpush1.msra.mxu0 0.0
  %1334 = vmatprep.mubr.f32.mxu0 0.0
  %1335 = vmatmul.mubr.f32.gmra.mrb[0].mxu0 %v1268
  %v1336 = vpop.f32.mrb[0].mxu0
  %v1337 = vadd.f32 0.0, %v1336
  %v1338 = vpop.f32.mrb[0].mxu0
  %1339 = vdwg.mxu0
  %v1340 = vadd.f32 %v1267, %v1337
  %v1341 = vxor.u32 %v1340, 2147483648
  %v1342 = vmul.f32 %v1341, 1.442695
  %v1343 = vpow.pop %v1342
  %v1344 = vadd.f32 %v1343, 1.0
  %v1345 = vrcp.pop %v1344
  %v1346 = vmul.f32 1.0, %v1345
  %v1347 = vtanh.pop %v1340
  %v1348 = vmul.f32 %v1346, %v1148
  %1350 = vrot.lane.b32.xlu0 %v1347, 64
  %v1351 = vpop.permute.xlu0 %1350
  %v1353 = vmul.f32 %v1346, %v1351
  %1355 = vrot.lane.b32.xlu0 %v1353, 32
  %v1356 = vpop.permute.xlu0 %1355
  %v1358 = vadd.f32 %v1348, %v1356
  %v1359 = vtanh.pop %v1358
  %1361 = vrot.lane.b32.xlu0 %v1359, 64
  %v1362 = vpop.permute.xlu0 %1361
  %v1364 = vmul.f32 %v1346, %v1362
  %1366 = vrot.lane.b32.xlu0 %v1364, 32
  %v1367 = vpop.permute.xlu0 %1366
  %s1369 = scalar_lea.vmem %s7, 32
  %1370 = vst.msk [vmem:[%s1369] sm:$0xff] %vm418, %v1367
  %s1371 = scalar_lea.vmem [#allocation5], 24
  %v1372 = vld [vmem:[%s1371] sm:$0xff]
  %v1373 = vsel %vm418, %v1262, 0
  %1375 = vmatprep.subr.mxu0 0.0
  %1376 = vmatpush1.msra.mxu0 %v407
  %1377 = vmatprep.subr.mxu0 0.0
  %1378 = vmatpush1.msra.mxu0 %v408
  %1379 = vmatprep.subr.mxu0 0.0
  %1380 = vmatpush1.msra.mxu0 %v409
  %1381 = vmatprep.subr.mxu0 0.0
  %1382 = vmatpush1.msra.mxu0 %v410
  %1383 = vmatprep.subr.mxu0 0.0
  %1384 = vmatpush1.msra.mxu0 0.0
  %1385 = vmatprep.subr.mxu0 0.0
  %1386 = vmatpush1.msra.mxu0 0.0
  %1387 = vmatprep.subr.mxu0 0.0
  %1388 = vmatpush1.msra.mxu0 0.0
  %1389 = vmatprep.subr.mxu0 0.0
  %1390 = vmatpush1.msra.mxu0 0.0
  %1391 = vmatprep.subr.mxu0 0.0
  %1392 = vmatpush1.msra.mxu0 0.0
  %1393 = vmatprep.subr.mxu0 0.0
  %1394 = vmatpush1.msra.mxu0 0.0
  %1395 = vmatprep.subr.mxu0 0.0
  %1396 = vmatpush1.msra.mxu0 0.0
  %1397 = vmatprep.subr.mxu0 0.0
  %1398 = vmatpush1.msra.mxu0 0.0
  %1399 = vmatprep.subr.mxu0 0.0
  %1400 = vmatpush1.msra.mxu0 0.0
  %1401 = vmatprep.subr.mxu0 0.0
  %1402 = vmatpush1.msra.mxu0 0.0
  %1403 = vmatprep.subr.mxu0 0.0
  %1404 = vmatpush1.msra.mxu0 0.0
  %1405 = vmatprep.subr.mxu0 0.0
  %1406 = vmatpush1.msra.mxu0 0.0
  %1407 = vmatprep.subr.mxu0 0.0
  %1408 = vmatpush1.msra.mxu0 0.0
  %1409 = vmatprep.subr.mxu0 0.0
  %1410 = vmatpush1.msra.mxu0 0.0
  %1411 = vmatprep.subr.mxu0 0.0
  %1412 = vmatpush1.msra.mxu0 0.0
  %1413 = vmatprep.subr.mxu0 0.0
  %1414 = vmatpush1.msra.mxu0 0.0
  %1415 = vmatprep.subr.mxu0 0.0
  %1416 = vmatpush1.msra.mxu0 0.0
  %1417 = vmatprep.subr.mxu0 0.0
  %1418 = vmatpush1.msra.mxu0 0.0
  %1419 = vmatprep.subr.mxu0 0.0
  %1420 = vmatpush1.msra.mxu0 0.0
  %1421 = vmatprep.subr.mxu0 0.0
  %1422 = vmatpush1.msra.mxu0 0.0
  %1423 = vmatprep.subr.mxu0 0.0
  %1424 = vmatpush1.msra.mxu0 0.0
  %1425 = vmatprep.subr.mxu0 0.0
  %1426 = vmatpush1.msra.mxu0 0.0
  %1427 = vmatprep.subr.mxu0 0.0
  %1428 = vmatpush1.msra.mxu0 0.0
  %1429 = vmatprep.subr.mxu0 0.0
  %1430 = vmatpush1.msra.mxu0 0.0
  %1431 = vmatprep.subr.mxu0 0.0
  %1432 = vmatpush1.msra.mxu0 0.0
  %1433 = vmatprep.subr.mxu0 0.0
  %1434 = vmatpush1.msra.mxu0 0.0
  %1435 = vmatprep.subr.mxu0 0.0
  %1436 = vmatpush1.msra.mxu0 0.0
  %1437 = vmatprep.subr.mxu0 0.0
  %1438 = vmatpush1.msra.mxu0 0.0
  %1439 = vmatprep.mubr.f32.mxu0 0.0
  %1440 = vmatmul.mubr.f32.gmra.mrb[0].mxu0 %v1373
  %v1441 = vpop.f32.mrb[0].mxu0
  %v1442 = vadd.f32 0.0, %v1441
  %v1443 = vpop.f32.mrb[0].mxu0
  %1444 = vdwg.mxu0
  %v1445 = vadd.f32 %v1372, %v1442
  %v1446 = vxor.u32 %v1445, 2147483648
  %v1447 = vmul.f32 %v1446, 1.442695
  %v1448 = vpow.pop %v1447
  %v1449 = vadd.f32 %v1448, 1.0
  %v1450 = vrcp.pop %v1449
  %v1451 = vmul.f32 1.0, %v1450
  %v1452 = vtanh.pop %v1445
  %v1453 = vmul.f32 %v1451, %v1253
  %1455 = vrot.lane.b32.xlu0 %v1452, 64
  %v1456 = vpop.permute.xlu0 %1455
  %v1458 = vmul.f32 %v1451, %v1456
  %1460 = vrot.lane.b32.xlu0 %v1458, 32
  %v1461 = vpop.permute.xlu0 %1460
  %v1463 = vadd.f32 %v1453, %v1461
  %v1464 = vtanh.pop %v1463
  %1466 = vrot.lane.b32.xlu0 %v1464, 64
  %v1467 = vpop.permute.xlu0 %1466
  %v1469 = vmul.f32 %v1451, %v1467
  %1471 = vrot.lane.b32.xlu0 %v1469, 32
  %v1472 = vpop.permute.xlu0 %1471
  %s1474 = scalar_lea.vmem %s63, 24
  %1475 = vst.msk [vmem:[%s1474] sm:$0xff] %vm418, %v1472
  %s1476 = scalar_lea.vmem [#allocation4], 40
  %v1477 = vld [vmem:[%s1476] sm:$0xff]
  %v1478 = vsel %vm418, %v1367, 0
  %1480 = vmatprep.subr.mxu0 0.0
  %1481 = vmatpush1.msra.mxu0 %v402
  %1482 = vmatprep.subr.mxu0 0.0
  %1483 = vmatpush1.msra.mxu0 %v403
  %1484 = vmatprep.subr.mxu0 0.0
  %1485 = vmatpush1.msra.mxu0 %v404
  %1486 = vmatprep.subr.mxu0 0.0
  %1487 = vmatpush1.msra.mxu0 %v405
  %1488 = vmatprep.subr.mxu0 0.0
  %1489 = vmatpush1.msra.mxu0 0.0
  %1490 = vmatprep.subr.mxu0 0.0
  %1491 = vmatpush1.msra.mxu0 0.0
  %1492 = vmatprep.subr.mxu0 0.0
  %1493 = vmatpush1.msra.mxu0 0.0
  %1494 = vmatprep.subr.mxu0 0.0
  %1495 = vmatpush1.msra.mxu0 0.0
  %1496 = vmatprep.subr.mxu0 0.0
  %1497 = vmatpush1.msra.mxu0 0.0
  %1498 = vmatprep.subr.mxu0 0.0
  %1499 = vmatpush1.msra.mxu0 0.0
  %1500 = vmatprep.subr.mxu0 0.0
  %1501 = vmatpush1.msra.mxu0 0.0
  %1502 = vmatprep.subr.mxu0 0.0
  %1503 = vmatpush1.msra.mxu0 0.0
  %1504 = vmatprep.subr.mxu0 0.0
  %1505 = vmatpush1.msra.mxu0 0.0
  %1506 = vmatprep.subr.mxu0 0.0
  %1507 = vmatpush1.msra.mxu0 0.0
  %1508 = vmatprep.subr.mxu0 0.0
  %1509 = vmatpush1.msra.mxu0 0.0
  %1510 = vmatprep.subr.mxu0 0.0
  %1511 = vmatpush1.msra.mxu0 0.0
  %1512 = vmatprep.subr.mxu0 0.0
  %1513 = vmatpush1.msra.mxu0 0.0
  %1514 = vmatprep.subr.mxu0 0.0
  %1515 = vmatpush1.msra.mxu0 0.0
  %1516 = vmatprep.subr.mxu0 0.0
  %1517 = vmatpush1.msra.mxu0 0.0
  %1518 = vmatprep.subr.mxu0 0.0
  %1519 = vmatpush1.msra.mxu0 0.0
  %1520 = vmatprep.subr.mxu0 0.0
  %1521 = vmatpush1.msra.mxu0 0.0
  %1522 = vmatprep.subr.mxu0 0.0
  %1523 = vmatpush1.msra.mxu0 0.0
  %1524 = vmatprep.subr.mxu0 0.0
  %1525 = vmatpush1.msra.mxu0 0.0
  %1526 = vmatprep.subr.mxu0 0.0
  %1527 = vmatpush1.msra.mxu0 0.0
  %1528 = vmatprep.subr.mxu0 0.0
  %1529 = vmatpush1.msra.mxu0 0.0
  %1530 = vmatprep.subr.mxu0 0.0
  %1531 = vmatpush1.msra.mxu0 0.0
  %1532 = vmatprep.subr.mxu0 0.0
  %1533 = vmatpush1.msra.mxu0 0.0
  %1534 = vmatprep.subr.mxu0 0.0
  %1535 = vmatpush1.msra.mxu0 0.0
  %1536 = vmatprep.subr.mxu0 0.0
  %1537 = vmatpush1.msra.mxu0 0.0
  %1538 = vmatprep.subr.mxu0 0.0
  %1539 = vmatpush1.msra.mxu0 0.0
  %1540 = vmatprep.subr.mxu0 0.0
  %1541 = vmatpush1.msra.mxu0 0.0
  %1542 = vmatprep.subr.mxu0 0.0
  %1543 = vmatpush1.msra.mxu0 0.0
  %1544 = vmatprep.mubr.f32.mxu0 0.0
  %1545 = vmatmul.mubr.f32.gmra.mrb[0].mxu0 %v1478
  %v1546 = vpop.f32.mrb[0].mxu0
  %v1547 = vadd.f32 0.0, %v1546
  %v1548 = vpop.f32.mrb[0].mxu0
  %1549 = vdwg.mxu0
  %v1550 = vadd.f32 %v1477, %v1547
  %v1551 = vxor.u32 %v1550, 2147483648
  %v1552 = vmul.f32 %v1551, 1.442695
  %v1553 = vpow.pop %v1552
  %v1554 = vadd.f32 %v1553, 1.0
  %v1555 = vrcp.pop %v1554
  %v1556 = vmul.f32 1.0, %v1555
  %v1557 = vtanh.pop %v1550
  %v1558 = vmul.f32 %v1556, %v1358
  %1560 = vrot.lane.b32.xlu0 %v1557, 64
  %v1561 = vpop.permute.xlu0 %1560
  %v1563 = vmul.f32 %v1556, %v1561
  %1565 = vrot.lane.b32.xlu0 %v1563, 32
  %v1566 = vpop.permute.xlu0 %1565
  %v1568 = vadd.f32 %v1558, %v1566
  %v1569 = vtanh.pop %v1568
  %1571 = vrot.lane.b32.xlu0 %v1569, 64
  %v1572 = vpop.permute.xlu0 %1571
  %v1574 = vmul.f32 %v1556, %v1572
  %1576 = vrot.lane.b32.xlu0 %v1574, 32
  %v1577 = vpop.permute.xlu0 %1576
  %s1579 = scalar_lea.vmem %s7, 40
  %1580 = vst.msk [vmem:[%s1579] sm:$0xff] %vm418, %v1577
  %s1581 = scalar_lea.vmem [#allocation5], 16
  %v1582 = vld [vmem:[%s1581] sm:$0xff]
  %v1583 = vsel %vm418, %v1472, 0
  %1585 = vmatprep.subr.mxu0 0.0
  %1586 = vmatpush1.msra.mxu0 %v407
  %1587 = vmatprep.subr.mxu0 0.0
  %1588 = vmatpush1.msra.mxu0 %v408
  %1589 = vmatprep.subr.mxu0 0.0
  %1590 = vmatpush1.msra.mxu0 %v409
  %1591 = vmatprep.subr.mxu0 0.0
  %1592 = vmatpush1.msra.mxu0 %v410
  %1593 = vmatprep.subr.mxu0 0.0
  %1594 = vmatpush1.msra.mxu0 0.0
  %1595 = vmatprep.subr.mxu0 0.0
  %1596 = vmatpush1.msra.mxu0 0.0
  %1597 = vmatprep.subr.mxu0 0.0
  %1598 = vmatpush1.msra.mxu0 0.0
  %1599 = vmatprep.subr.mxu0 0.0
  %1600 = vmatpush1.msra.mxu0 0.0
  %1601 = vmatprep.subr.mxu0 0.0
  %1602 = vmatpush1.msra.mxu0 0.0
  %1603 = vmatprep.subr.mxu0 0.0
  %1604 = vmatpush1.msra.mxu0 0.0
  %1605 = vmatprep.subr.mxu0 0.0
  %1606 = vmatpush1.msra.mxu0 0.0
  %1607 = vmatprep.subr.mxu0 0.0
  %1608 = vmatpush1.msra.mxu0 0.0
  %1609 = vmatprep.subr.mxu0 0.0
  %1610 = vmatpush1.msra.mxu0 0.0
  %1611 = vmatprep.subr.mxu0 0.0
  %1612 = vmatpush1.msra.mxu0 0.0
  %1613 = vmatprep.subr.mxu0 0.0
  %1614 = vmatpush1.msra.mxu0 0.0
  %1615 = vmatprep.subr.mxu0 0.0
  %1616 = vmatpush1.msra.mxu0 0.0
  %1617 = vmatprep.subr.mxu0 0.0
  %1618 = vmatpush1.msra.mxu0 0.0
  %1619 = vmatprep.subr.mxu0 0.0
  %1620 = vmatpush1.msra.mxu0 0.0
  %1621 = vmatprep.subr.mxu0 0.0
  %1622 = vmatpush1.msra.mxu0 0.0
  %1623 = vmatprep.subr.mxu0 0.0
  %1624 = vmatpush1.msra.mxu0 0.0
  %1625 = vmatprep.subr.mxu0 0.0
  %1626 = vmatpush1.msra.mxu0 0.0
  %1627 = vmatprep.subr.mxu0 0.0
  %1628 = vmatpush1.msra.mxu0 0.0
  %1629 = vmatprep.subr.mxu0 0.0
  %1630 = vmatpush1.msra.mxu0 0.0
  %1631 = vmatprep.subr.mxu0 0.0
  %1632 = vmatpush1.msra.mxu0 0.0
  %1633 = vmatprep.subr.mxu0 0.0
  %1634 = vmatpush1.msra.mxu0 0.0
  %1635 = vmatprep.subr.mxu0 0.0
  %1636 = vmatpush1.msra.mxu0 0.0
  %1637 = vmatprep.subr.mxu0 0.0
  %1638 = vmatpush1.msra.mxu0 0.0
  %1639 = vmatprep.subr.mxu0 0.0
  %1640 = vmatpush1.msra.mxu0 0.0
  %1641 = vmatprep.subr.mxu0 0.0
  %1642 = vmatpush1.msra.mxu0 0.0
  %1643 = vmatprep.subr.mxu0 0.0
  %1644 = vmatpush1.msra.mxu0 0.0
  %1645 = vmatprep.subr.mxu0 0.0
  %1646 = vmatpush1.msra.mxu0 0.0
  %1647 = vmatprep.subr.mxu0 0.0
  %1648 = vmatpush1.msra.mxu0 0.0
  %1649 = vmatprep.mubr.f32.mxu0 0.0
  %1650 = vmatmul.mubr.f32.gmra.mrb[0].mxu0 %v1583
  %v1651 = vpop.f32.mrb[0].mxu0
  %v1652 = vadd.f32 0.0, %v1651
  %v1653 = vpop.f32.mrb[0].mxu0
  %1654 = vdwg.mxu0
  %v1655 = vadd.f32 %v1582, %v1652
  %v1656 = vxor.u32 %v1655, 2147483648
  %v1657 = vmul.f32 %v1656, 1.442695
  %v1658 = vpow.pop %v1657
  %v1659 = vadd.f32 %v1658, 1.0
  %v1660 = vrcp.pop %v1659
  %v1661 = vmul.f32 1.0, %v1660
  %v1662 = vtanh.pop %v1655
  %v1663 = vmul.f32 %v1661, %v1463
  %1665 = vrot.lane.b32.xlu0 %v1662, 64
  %v1666 = vpop.permute.xlu0 %1665
  %v1668 = vmul.f32 %v1661, %v1666
  %1670 = vrot.lane.b32.xlu0 %v1668, 32
  %v1671 = vpop.permute.xlu0 %1670
  %v1673 = vadd.f32 %v1663, %v1671
  %v1674 = vtanh.pop %v1673
  %1676 = vrot.lane.b32.xlu0 %v1674, 64
  %v1677 = vpop.permute.xlu0 %1676
  %v1679 = vmul.f32 %v1661, %v1677
  %1681 = vrot.lane.b32.xlu0 %v1679, 32
  %v1682 = vpop.permute.xlu0 %1681
  %s1684 = scalar_lea.vmem %s63, 16
  %1685 = vst.msk [vmem:[%s1684] sm:$0xff] %vm418, %v1682
  %s1686 = scalar_lea.vmem [#allocation4], 48
  %v1687 = vld [vmem:[%s1686] sm:$0xff]
  %v1688 = vsel %vm418, %v1577, 0
  %1690 = vmatprep.subr.mxu0 0.0
  %1691 = vmatpush1.msra.mxu0 %v402
  %1692 = vmatprep.subr.mxu0 0.0
  %1693 = vmatpush1.msra.mxu0 %v403
  %1694 = vmatprep.subr.mxu0 0.0
  %1695 = vmatpush1.msra.mxu0 %v404
  %1696 = vmatprep.subr.mxu0 0.0
  %1697 = vmatpush1.msra.mxu0 %v405
  %1698 = vmatprep.subr.mxu0 0.0
  %1699 = vmatpush1.msra.mxu0 0.0
  %1700 = vmatprep.subr.mxu0 0.0
  %1701 = vmatpush1.msra.mxu0 0.0
  %1702 = vmatprep.subr.mxu0 0.0
  %1703 = vmatpush1.msra.mxu0 0.0
  %1704 = vmatprep.subr.mxu0 0.0
  %1705 = vmatpush1.msra.mxu0 0.0
  %1706 = vmatprep.subr.mxu0 0.0
  %1707 = vmatpush1.msra.mxu0 0.0
  %1708 = vmatprep.subr.mxu0 0.0
  %1709 = vmatpush1.msra.mxu0 0.0
  %1710 = vmatprep.subr.mxu0 0.0
  %1711 = vmatpush1.msra.mxu0 0.0
  %1712 = vmatprep.subr.mxu0 0.0
  %1713 = vmatpush1.msra.mxu0 0.0
  %1714 = vmatprep.subr.mxu0 0.0
  %1715 = vmatpush1.msra.mxu0 0.0
  %1716 = vmatprep.subr.mxu0 0.0
  %1717 = vmatpush1.msra.mxu0 0.0
  %1718 = vmatprep.subr.mxu0 0.0
  %1719 = vmatpush1.msra.mxu0 0.0
  %1720 = vmatprep.subr.mxu0 0.0
  %1721 = vmatpush1.msra.mxu0 0.0
  %1722 = vmatprep.subr.mxu0 0.0
  %1723 = vmatpush1.msra.mxu0 0.0
  %1724 = vmatprep.subr.mxu0 0.0
  %1725 = vmatpush1.msra.mxu0 0.0
  %1726 = vmatprep.subr.mxu0 0.0
  %1727 = vmatpush1.msra.mxu0 0.0
  %1728 = vmatprep.subr.mxu0 0.0
  %1729 = vmatpush1.msra.mxu0 0.0
  %1730 = vmatprep.subr.mxu0 0.0
  %1731 = vmatpush1.msra.mxu0 0.0
  %1732 = vmatprep.subr.mxu0 0.0
  %1733 = vmatpush1.msra.mxu0 0.0
  %1734 = vmatprep.subr.mxu0 0.0
  %1735 = vmatpush1.msra.mxu0 0.0
  %1736 = vmatprep.subr.mxu0 0.0
  %1737 = vmatpush1.msra.mxu0 0.0
  %1738 = vmatprep.subr.mxu0 0.0
  %1739 = vmatpush1.msra.mxu0 0.0
  %1740 = vmatprep.subr.mxu0 0.0
  %1741 = vmatpush1.msra.mxu0 0.0
  %1742 = vmatprep.subr.mxu0 0.0
  %1743 = vmatpush1.msra.mxu0 0.0
  %1744 = vmatprep.subr.mxu0 0.0
  %1745 = vmatpush1.msra.mxu0 0.0
  %1746 = vmatprep.subr.mxu0 0.0
  %1747 = vmatpush1.msra.mxu0 0.0
  %1748 = vmatprep.subr.mxu0 0.0
  %1749 = vmatpush1.msra.mxu0 0.0
  %1750 = vmatprep.subr.mxu0 0.0
  %1751 = vmatpush1.msra.mxu0 0.0
  %1752 = vmatprep.subr.mxu0 0.0
  %1753 = vmatpush1.msra.mxu0 0.0
  %1754 = vmatprep.mubr.f32.mxu0 0.0
  %1755 = vmatmul.mubr.f32.gmra.mrb[0].mxu0 %v1688
  %v1756 = vpop.f32.mrb[0].mxu0
  %v1757 = vadd.f32 0.0, %v1756
  %v1758 = vpop.f32.mrb[0].mxu0
  %1759 = vdwg.mxu0
  %v1760 = vadd.f32 %v1687, %v1757
  %v1761 = vxor.u32 %v1760, 2147483648
  %v1762 = vmul.f32 %v1761, 1.442695
  %v1763 = vpow.pop %v1762
  %v1764 = vadd.f32 %v1763, 1.0
  %v1765 = vrcp.pop %v1764
  %v1766 = vmul.f32 1.0, %v1765
  %v1767 = vtanh.pop %v1760
  %v1768 = vmul.f32 %v1766, %v1568
  %1770 = vrot.lane.b32.xlu0 %v1767, 64
  %v1771 = vpop.permute.xlu0 %1770
  %v1773 = vmul.f32 %v1766, %v1771
  %1775 = vrot.lane.b32.xlu0 %v1773, 32
  %v1776 = vpop.permute.xlu0 %1775
  %v1778 = vadd.f32 %v1768, %v1776
  %v1779 = vtanh.pop %v1778
  %1781 = vrot.lane.b32.xlu0 %v1779, 64
  %v1782 = vpop.permute.xlu0 %1781
  %v1784 = vmul.f32 %v1766, %v1782
  %1786 = vrot.lane.b32.xlu0 %v1784, 32
  %v1787 = vpop.permute.xlu0 %1786
  %s1789 = scalar_lea.vmem %s7, 48
  %1790 = vst.msk [vmem:[%s1789] sm:$0xff] %vm418, %v1787
  %s1791 = scalar_lea.vmem [#allocation5], 8
  %v1792 = vld [vmem:[%s1791] sm:$0xff]
  %v1793 = vsel %vm418, %v1682, 0
  %1795 = vmatprep.subr.mxu0 0.0
  %1796 = vmatpush1.msra.mxu0 %v407
  %1797 = vmatprep.subr.mxu0 0.0
  %1798 = vmatpush1.msra.mxu0 %v408
  %1799 = vmatprep.subr.mxu0 0.0
  %1800 = vmatpush1.msra.mxu0 %v409
  %1801 = vmatprep.subr.mxu0 0.0
  %1802 = vmatpush1.msra.mxu0 %v410
  %1803 = vmatprep.subr.mxu0 0.0
  %1804 = vmatpush1.msra.mxu0 0.0
  %1805 = vmatprep.subr.mxu0 0.0
  %1806 = vmatpush1.msra.mxu0 0.0
  %1807 = vmatprep.subr.mxu0 0.0
  %1808 = vmatpush1.msra.mxu0 0.0
  %1809 = vmatprep.subr.mxu0 0.0
  %1810 = vmatpush1.msra.mxu0 0.0
  %1811 = vmatprep.subr.mxu0 0.0
  %1812 = vmatpush1.msra.mxu0 0.0
  %1813 = vmatprep.subr.mxu0 0.0
  %1814 = vmatpush1.msra.mxu0 0.0
  %1815 = vmatprep.subr.mxu0 0.0
  %1816 = vmatpush1.msra.mxu0 0.0
  %1817 = vmatprep.subr.mxu0 0.0
  %1818 = vmatpush1.msra.mxu0 0.0
  %1819 = vmatprep.subr.mxu0 0.0
  %1820 = vmatpush1.msra.mxu0 0.0
  %1821 = vmatprep.subr.mxu0 0.0
  %1822 = vmatpush1.msra.mxu0 0.0
  %1823 = vmatprep.subr.mxu0 0.0
  %1824 = vmatpush1.msra.mxu0 0.0
  %1825 = vmatprep.subr.mxu0 0.0
  %1826 = vmatpush1.msra.mxu0 0.0
  %1827 = vmatprep.subr.mxu0 0.0
  %1828 = vmatpush1.msra.mxu0 0.0
  %1829 = vmatprep.subr.mxu0 0.0
  %1830 = vmatpush1.msra.mxu0 0.0
  %1831 = vmatprep.subr.mxu0 0.0
  %1832 = vmatpush1.msra.mxu0 0.0
  %1833 = vmatprep.subr.mxu0 0.0
  %1834 = vmatpush1.msra.mxu0 0.0
  %1835 = vmatprep.subr.mxu0 0.0
  %1836 = vmatpush1.msra.mxu0 0.0
  %1837 = vmatprep.subr.mxu0 0.0
  %1838 = vmatpush1.msra.mxu0 0.0
  %1839 = vmatprep.subr.mxu0 0.0
  %1840 = vmatpush1.msra.mxu0 0.0
  %1841 = vmatprep.subr.mxu0 0.0
  %1842 = vmatpush1.msra.mxu0 0.0
  %1843 = vmatprep.subr.mxu0 0.0
  %1844 = vmatpush1.msra.mxu0 0.0
  %1845 = vmatprep.subr.mxu0 0.0
  %1846 = vmatpush1.msra.mxu0 0.0
  %1847 = vmatprep.subr.mxu0 0.0
  %1848 = vmatpush1.msra.mxu0 0.0
  %1849 = vmatprep.subr.mxu0 0.0
  %1850 = vmatpush1.msra.mxu0 0.0
  %1851 = vmatprep.subr.mxu0 0.0
  %1852 = vmatpush1.msra.mxu0 0.0
  %1853 = vmatprep.subr.mxu0 0.0
  %1854 = vmatpush1.msra.mxu0 0.0
  %1855 = vmatprep.subr.mxu0 0.0
  %1856 = vmatpush1.msra.mxu0 0.0
  %1857 = vmatprep.subr.mxu0 0.0
  %1858 = vmatpush1.msra.mxu0 0.0
  %1859 = vmatprep.mubr.f32.mxu0 0.0
  %1860 = vmatmul.mubr.f32.gmra.mrb[0].mxu0 %v1793
  %v1861 = vpop.f32.mrb[0].mxu0
  %v1862 = vadd.f32 0.0, %v1861
  %v1863 = vpop.f32.mrb[0].mxu0
  %1864 = vdwg.mxu0
  %v1865 = vadd.f32 %v1792, %v1862
  %v1866 = vxor.u32 %v1865, 2147483648
  %v1867 = vmul.f32 %v1866, 1.442695
  %v1868 = vpow.pop %v1867
  %v1869 = vadd.f32 %v1868, 1.0
  %v1870 = vrcp.pop %v1869
  %v1871 = vmul.f32 1.0, %v1870
  %v1872 = vtanh.pop %v1865
  %v1873 = vmul.f32 %v1871, %v1673
  %1875 = vrot.lane.b32.xlu0 %v1872, 64
  %v1876 = vpop.permute.xlu0 %1875
  %v1878 = vmul.f32 %v1871, %v1876
  %1880 = vrot.lane.b32.xlu0 %v1878, 32
  %v1881 = vpop.permute.xlu0 %1880
  %v1883 = vadd.f32 %v1873, %v1881
  %v1884 = vtanh.pop %v1883
  %1886 = vrot.lane.b32.xlu0 %v1884, 64
  %v1887 = vpop.permute.xlu0 %1886
  %v1889 = vmul.f32 %v1871, %v1887
  %1891 = vrot.lane.b32.xlu0 %v1889, 32
  %v1892 = vpop.permute.xlu0 %1891
  %s1894 = scalar_lea.vmem %s63, 8
  %1895 = vst.msk [vmem:[%s1894] sm:$0xff] %vm418, %v1892
  %s1896 = scalar_lea.vmem [#allocation4], 56
  %v1897 = vld [vmem:[%s1896] sm:$0xff]
  %v1898 = vsel %vm418, %v1787, 0
  %1900 = vmatprep.subr.mxu0 0.0
  %1901 = vmatpush1.msra.mxu0 %v402
  %1902 = vmatprep.subr.mxu0 0.0
  %1903 = vmatpush1.msra.mxu0 %v403
  %1904 = vmatprep.subr.mxu0 0.0
  %1905 = vmatpush1.msra.mxu0 %v404
  %1906 = vmatprep.subr.mxu0 0.0
  %1907 = vmatpush1.msra.mxu0 %v405
  %1908 = vmatprep.subr.mxu0 0.0
  %1909 = vmatpush1.msra.mxu0 0.0
  %1910 = vmatprep.subr.mxu0 0.0
  %1911 = vmatpush1.msra.mxu0 0.0
  %1912 = vmatprep.subr.mxu0 0.0
  %1913 = vmatpush1.msra.mxu0 0.0
  %1914 = vmatprep.subr.mxu0 0.0
  %1915 = vmatpush1.msra.mxu0 0.0
  %1916 = vmatprep.subr.mxu0 0.0
  %1917 = vmatpush1.msra.mxu0 0.0
  %1918 = vmatprep.subr.mxu0 0.0
  %1919 = vmatpush1.msra.mxu0 0.0
  %1920 = vmatprep.subr.mxu0 0.0
  %1921 = vmatpush1.msra.mxu0 0.0
  %1922 = vmatprep.subr.mxu0 0.0
  %1923 = vmatpush1.msra.mxu0 0.0
  %1924 = vmatprep.subr.mxu0 0.0
  %1925 = vmatpush1.msra.mxu0 0.0
  %1926 = vmatprep.subr.mxu0 0.0
  %1927 = vmatpush1.msra.mxu0 0.0
  %1928 = vmatprep.subr.mxu0 0.0
  %1929 = vmatpush1.msra.mxu0 0.0
  %1930 = vmatprep.subr.mxu0 0.0
  %1931 = vmatpush1.msra.mxu0 0.0
  %1932 = vmatprep.subr.mxu0 0.0
  %1933 = vmatpush1.msra.mxu0 0.0
  %1934 = vmatprep.subr.mxu0 0.0
  %1935 = vmatpush1.msra.mxu0 0.0
  %1936 = vmatprep.subr.mxu0 0.0
  %1937 = vmatpush1.msra.mxu0 0.0
  %1938 = vmatprep.subr.mxu0 0.0
  %1939 = vmatpush1.msra.mxu0 0.0
  %1940 = vmatprep.subr.mxu0 0.0
  %1941 = vmatpush1.msra.mxu0 0.0
  %1942 = vmatprep.subr.mxu0 0.0
  %1943 = vmatpush1.msra.mxu0 0.0
  %1944 = vmatprep.subr.mxu0 0.0
  %1945 = vmatpush1.msra.mxu0 0.0
  %1946 = vmatprep.subr.mxu0 0.0
  %1947 = vmatpush1.msra.mxu0 0.0
  %1948 = vmatprep.subr.mxu0 0.0
  %1949 = vmatpush1.msra.mxu0 0.0
  %1950 = vmatprep.subr.mxu0 0.0
  %1951 = vmatpush1.msra.mxu0 0.0
  %1952 = vmatprep.subr.mxu0 0.0
  %1953 = vmatpush1.msra.mxu0 0.0
  %1954 = vmatprep.subr.mxu0 0.0
  %1955 = vmatpush1.msra.mxu0 0.0
  %1956 = vmatprep.subr.mxu0 0.0
  %1957 = vmatpush1.msra.mxu0 0.0
  %1958 = vmatprep.subr.mxu0 0.0
  %1959 = vmatpush1.msra.mxu0 0.0
  %1960 = vmatprep.subr.mxu0 0.0
  %1961 = vmatpush1.msra.mxu0 0.0
  %1962 = vmatprep.subr.mxu0 0.0
  %1963 = vmatpush1.msra.mxu0 0.0
  %1964 = vmatprep.mubr.f32.mxu0 0.0
  %1965 = vmatmul.mubr.f32.gmra.mrb[0].mxu0 %v1898
  %v1966 = vpop.f32.mrb[0].mxu0
  %v1967 = vadd.f32 0.0, %v1966
  %v1968 = vpop.f32.mrb[0].mxu0
  %1969 = vdwg.mxu0
  %v1970 = vadd.f32 %v1897, %v1967
  %v1971 = vxor.u32 %v1970, 2147483648
  %v1972 = vmul.f32 %v1971, 1.442695
  %v1973 = vpow.pop %v1972
  %v1974 = vadd.f32 %v1973, 1.0
  %v1975 = vrcp.pop %v1974
  %v1976 = vmul.f32 1.0, %v1975
  %v1977 = vtanh.pop %v1970
  %v1978 = vmul.f32 %v1976, %v1778
  %1980 = vrot.lane.b32.xlu0 %v1977, 64
  %v1981 = vpop.permute.xlu0 %1980
  %v1983 = vmul.f32 %v1976, %v1981
  %1985 = vrot.lane.b32.xlu0 %v1983, 32
  %v1986 = vpop.permute.xlu0 %1985
  %v1988 = vadd.f32 %v1978, %v1986
  %v1989 = vtanh.pop %v1988
  %1991 = vrot.lane.b32.xlu0 %v1989, 64
  %v1992 = vpop.permute.xlu0 %1991
  %v1994 = vmul.f32 %v1976, %v1992
  %1996 = vrot.lane.b32.xlu0 %v1994, 32
  %v1997 = vpop.permute.xlu0 %1996
  %s1999 = scalar_lea.vmem %s7, 56
  %2000 = vst.msk [vmem:[%s1999] sm:$0xff] %vm418, %v1997
  %v2001 = vld [vmem:[#allocation5] sm:$0xff]
  %v2002 = vsel %vm418, %v1892, 0
  %2004 = vmatprep.subr.mxu0 0.0
  %2005 = vmatpush1.msra.mxu0 %v407
  %2006 = vmatprep.subr.mxu0 0.0
  %2007 = vmatpush1.msra.mxu0 %v408
  %2008 = vmatprep.subr.mxu0 0.0
  %2009 = vmatpush1.msra.mxu0 %v409
  %2010 = vmatprep.subr.mxu0 0.0
  %2011 = vmatpush1.msra.mxu0 %v410
  %2012 = vmatprep.subr.mxu0 0.0
  %2013 = vmatpush1.msra.mxu0 0.0
  %2014 = vmatprep.subr.mxu0 0.0
  %2015 = vmatpush1.msra.mxu0 0.0
  %2016 = vmatprep.subr.mxu0 0.0
  %2017 = vmatpush1.msra.mxu0 0.0
  %2018 = vmatprep.subr.mxu0 0.0
  %2019 = vmatpush1.msra.mxu0 0.0
  %2020 = vmatprep.subr.mxu0 0.0
  %2021 = vmatpush1.msra.mxu0 0.0
  %2022 = vmatprep.subr.mxu0 0.0
  %2023 = vmatpush1.msra.mxu0 0.0
  %2024 = vmatprep.subr.mxu0 0.0
  %2025 = vmatpush1.msra.mxu0 0.0
  %2026 = vmatprep.subr.mxu0 0.0
  %2027 = vmatpush1.msra.mxu0 0.0
  %2028 = vmatprep.subr.mxu0 0.0
  %2029 = vmatpush1.msra.mxu0 0.0
  %2030 = vmatprep.subr.mxu0 0.0
  %2031 = vmatpush1.msra.mxu0 0.0
  %2032 = vmatprep.subr.mxu0 0.0
  %2033 = vmatpush1.msra.mxu0 0.0
  %2034 = vmatprep.subr.mxu0 0.0
  %2035 = vmatpush1.msra.mxu0 0.0
  %2036 = vmatprep.subr.mxu0 0.0
  %2037 = vmatpush1.msra.mxu0 0.0
  %2038 = vmatprep.subr.mxu0 0.0
  %2039 = vmatpush1.msra.mxu0 0.0
  %2040 = vmatprep.subr.mxu0 0.0
  %2041 = vmatpush1.msra.mxu0 0.0
  %2042 = vmatprep.subr.mxu0 0.0
  %2043 = vmatpush1.msra.mxu0 0.0
  %2044 = vmatprep.subr.mxu0 0.0
  %2045 = vmatpush1.msra.mxu0 0.0
  %2046 = vmatprep.subr.mxu0 0.0
  %2047 = vmatpush1.msra.mxu0 0.0
  %2048 = vmatprep.subr.mxu0 0.0
  %2049 = vmatpush1.msra.mxu0 0.0
  %2050 = vmatprep.subr.mxu0 0.0
  %2051 = vmatpush1.msra.mxu0 0.0
  %2052 = vmatprep.subr.mxu0 0.0
  %2053 = vmatpush1.msra.mxu0 0.0
  %2054 = vmatprep.subr.mxu0 0.0
  %2055 = vmatpush1.msra.mxu0 0.0
  %2056 = vmatprep.subr.mxu0 0.0
  %2057 = vmatpush1.msra.mxu0 0.0
  %2058 = vmatprep.subr.mxu0 0.0
  %2059 = vmatpush1.msra.mxu0 0.0
  %2060 = vmatprep.subr.mxu0 0.0
  %2061 = vmatpush1.msra.mxu0 0.0
  %2062 = vmatprep.subr.mxu0 0.0
  %2063 = vmatpush1.msra.mxu0 0.0
  %2064 = vmatprep.subr.mxu0 0.0
  %2065 = vmatpush1.msra.mxu0 0.0
  %2066 = vmatprep.subr.mxu0 0.0
  %2067 = vmatpush1.msra.mxu0 0.0
  %2068 = vmatprep.mubr.f32.mxu0 0.0
  %2069 = vmatmul.mubr.f32.gmra.mrb[0].mxu0 %v2002
  %v2070 = vpop.f32.mrb[0].mxu0
  %v2071 = vadd.f32 0.0, %v2070
  %v2072 = vpop.f32.mrb[0].mxu0
  %2073 = vdwg.mxu0
  %v2074 = vadd.f32 %v2001, %v2071
  %v2075 = vxor.u32 %v2074, 2147483648
  %v2076 = vmul.f32 %v2075, 1.442695
  %v2077 = vpow.pop %v2076
  %v2078 = vadd.f32 %v2077, 1.0
  %v2079 = vrcp.pop %v2078
  %v2080 = vmul.f32 1.0, %v2079
  %v2081 = vtanh.pop %v2074
  %v2082 = vmul.f32 %v2080, %v1883
  %2084 = vrot.lane.b32.xlu0 %v2081, 64
  %v2085 = vpop.permute.xlu0 %2084
  %v2087 = vmul.f32 %v2080, %v2085
  %2089 = vrot.lane.b32.xlu0 %v2087, 32
  %v2090 = vpop.permute.xlu0 %2089
  %v2092 = vadd.f32 %v2082, %v2090
  %v2093 = vtanh.pop %v2092
  %2095 = vrot.lane.b32.xlu0 %v2093, 64
  %v2096 = vpop.permute.xlu0 %2095
  %v2098 = vmul.f32 %v2080, %v2096
  %2100 = vrot.lane.b32.xlu0 %v2098, 32
  %v2101 = vpop.permute.xlu0 %2100
  %2103 = vst.msk [vmem:[%s63] sm:$0xff] %vm418, %v2101
  %2104 = vst.msk [vmem:[#allocation2] sm:$0xff] %vm418, %v1997
  %2106 = vrot.lane.b32.xlu0 %v1988, 96
  %v2107 = vpop.permute.xlu0 %2106
  %2109 = vst.msk [vmem:[#allocation3] sm:$0xff] %vm418, %v2107
  %2110 = vst.msk [vmem:[%s413] sm:$0xff] %vm418, %v2101
  %2112 = vrot.lane.b32.xlu0 %v2092, 96
  %v2113 = vpop.permute.xlu0 %2112
  %2115 = vst.msk [vmem:[%s415] sm:$0xff] %vm418, %v2113
  // Predicated region
  $region34: #{birnn_forward.3} parent=0 // pred_check
    %p2116 = pneg %p66
  $region35: #{birnn_forward.3} parent=0 // pred_check_branch
    %2118 = sbr.rel (%p2116) target = $region37
  $region36: #{birnn_forward.3} parent=0 // pred_region
    %v2119 = vld [vmem:[#allocation2] sm:$0xff]
    %v2120 = vld [vmem:[#allocation2 + $0x8] sm:$0xff]
    %2121 = vst.msk [vmem:[%s9] sm:$0xff] %vm418, %v2119
    %2122 = vst.msk [vmem:[%s9 + $0x8] sm:$0xff] %vm418, %v2120
    %v2123 = vld [vmem:[#allocation3] sm:$0xff]
    %v2124 = vld [vmem:[#allocation3 + $0x8] sm:$0xff]
    %2125 = vst.msk [vmem:[%s10] sm:$0xff] %vm418, %v2123
    %2126 = vst.msk [vmem:[%s10 + $0x8] sm:$0xff] %vm418, %v2124
  $region37: #{birnn_forward.3} parent=0 // pred_fallthru
    _
  %s2127 = ssub.s32 0, 0
  %s2128 = smul.u32 8, %s2127
  %p2129 = scmp.lt.s32.totalorder %s2128, 7
  %s2130 = scalar_select %p2129, %s2128, 7
  %s2131 = smul.addr %s2130, 8
  %s2132 = scalar_lea.vmem %s8, %s2131
  // Predicated region
  $region38: #{birnn_forward.3} parent=0 // pred_check
    _
  $region39: #{birnn_forward.3} parent=0 // pred_check_branch
    %2134 = sbr.rel (0) target = $region41
  $region40: #{birnn_forward.3} parent=0 // pred_region
    _
  $region41: #{birnn_forward.3} parent=0 // pred_fallthru
    _
  // Predicated region
  $region42: #{birnn_forward.3} parent=0 // pred_check
    _
  $region43: #{birnn_forward.3} parent=0 // pred_check_branch
    %2136 = sbr.rel (0) target = $region45
  $region44: #{birnn_forward.3} parent=0 // pred_region
    %s2137 = ssub.s32 0, 0
    %s2138 = smul.u32 8, %s2137
  $region45: #{birnn_forward.3} parent=0 // pred_fallthru
    _
  // Predicated region
  $region46: #{birnn_forward.3} parent=0 // pred_check
    _
  $region47: #{birnn_forward.3} parent=0 // pred_check_branch
    %2140 = sbr.rel (0) target = $region49
  $region48: #{birnn_forward.3} parent=0 // pred_region
    _
  $region49: #{birnn_forward.3} parent=0 // pred_fallthru
    _
  // Predicated region
  $region50: #{birnn_forward.3} parent=0 // pred_check
    _
  $region51: #{birnn_forward.3} parent=0 // pred_check_branch
    %2142 = sbr.rel (0) target = $region53
  $region52: #{birnn_forward.3} parent=0 // pred_region
    _
  $region53: #{birnn_forward.3} parent=0 // pred_fallthru
    _
  // Predicated region
  $region54: #{birnn_forward.3} parent=0 // pred_check
    _
  $region55: #{birnn_forward.3} parent=0 // pred_check_branch
    %2144 = sbr.rel (0) target = $region57
  $region56: #{birnn_forward.3} parent=0 // pred_region
    _
  $region57: #{birnn_forward.3} parent=0 // pred_fallthru
    _
  // Predicated region
  $region58: #{birnn_forward.3} parent=0 // pred_check
    _
  $region59: #{birnn_forward.3} parent=0 // pred_check_branch
    %2146 = sbr.rel (0) target = $region61
  $region60: #{birnn_forward.3} parent=0 // pred_region
    %s2147 = ssub.s32 0, 0
    %s2148 = smul.u32 8, %s2147
    %p2149 = scmp.lt.s32.totalorder %s2148, 7
    %s2150 = scalar_select %p2149, %s2148, 7
    %s2151 = smul.addr %s2150, 8
    %s2152 = scalar_lea.vmem %s8, %s2151
  $region61: #{birnn_forward.3} parent=0 // pred_fallthru
    _
  // Predicated region
  $region62: #{birnn_forward.3} parent=0 // pred_check
    _
  $region63: #{birnn_forward.3} parent=0 // pred_check_branch
    %2154 = sbr.rel (0) target = $region65
  $region64: #{birnn_forward.3} parent=0 // pred_region
    _
  $region65: #{birnn_forward.3} parent=0 // pred_fallthru
    _
  // Predicated region
  $region66: #{birnn_forward.3} parent=0 // pred_check
    _
  $region67: #{birnn_forward.3} parent=0 // pred_check_branch
    %2156 = sbr.rel (0) target = $region69
  $region68: #{birnn_forward.3} parent=0 // pred_region
    _
  $region69: #{birnn_forward.3} parent=0 // pred_fallthru
    _

</llo_original>
